<compile_context>
chip_gen: v7x
topology: tpu7x:2x2x1
jax: 0.10.0
libtpu: 0.0.40
codegen_flags: <defaults>
</compile_context>

<pallas_src>
import math

import jax
import jax.numpy as jnp
from jax import lax
from jax.experimental import pallas as pl
from jax.experimental.pallas import tpu as pltpu

LANE = 128
SUBLANE = 8


def _pad_to(n, m):
    return ((n + m - 1) // m) * m


def _largest_divisor(n, cap, multiple=1):
    """Largest d <= cap with n % d == 0 and d % multiple == 0."""
    for d in range(min(n, cap), 0, -1):
        if n % d == 0 and d % multiple == 0:
            return d
    return multiple


# ------------------------------ fused kernel -------------------------------

def _make_rae_kernel(TC, CB):
    """Fused RAE kernel for one (batch-chunk, time-chunk) grid point.

    All activations are time-major and flattened to (TC*CB, feat) rows;
    CB is a multiple of 8 (sublanes), feature widths multiples of 128 (lanes),
    so every per-step load/store is tile-aligned and unmasked.
    """
    unroll = TC if TC <= 8 else 8   # partial unroll: scheduler visibility
                                    # without inlining the whole sequence.

    def kernel(x_ref,
               wih1, whh1, bp1, bn1,
               wih2, whh2, bp2, bn2,
               wih3, whh3, bp3, bn3,
               wih4, whh4, bp4, bn4,
               wd_ref,
               out_ref,
               s1, s2, s3, s4, proj_ref,
               h1, h2, h3, h4):

        # Reset the per-layer recurrent carries at the first time chunk of
        # each batch chunk (time is the innermost, "arbitrary" grid axis).
        @pl.when(pl.program_id(1) == 0)
        def _():
            h1[...] = jnp.zeros_like(h1)
            h2[...] = jnp.zeros_like(h2)
            h3[...] = jnp.zeros_like(h3)
            h4[...] = jnp.zeros_like(h4)

        def run_gru(in_ref, seq_ref, h_ref, wih_ref, whh_ref, bpre_ref,
                    bhn_ref):
            HP = whh_ref.shape[0]          # padded hidden width (mult of 128)
            G3 = 3 * HP

            # Hoisted input projection for the whole chunk: one MXU matmul;
            # r/z biases (input+hidden) are pre-summed into bpre.
            proj_ref[:, :G3] = (
                jnp.dot(in_ref[...], wih_ref[...],
                        preferred_element_type=jnp.float32)
                + bpre_ref[...])

            whh = whh_ref[...]             # hoisted weight / bias loads
            bhn = bhn_ref[...]

            def step(t, h):                # h carried in vregs, not VMEM
                row = pl.multiple_of(t * CB, CB)   # sublane-aligned row base
                # Only the recurrent matmul stays in the serial loop.
                hh = jnp.dot(h, whh, preferred_element_type=jnp.float32)
                p = proj_ref[pl.ds(row, CB), :G3]
                r = jax.nn.sigmoid(p[:, :HP] + hh[:, :HP])
                z = jax.nn.sigmoid(p[:, HP:2 * HP] + hh[:, HP:2 * HP])
                n = jnp.tanh(p[:, 2 * HP:G3] + r * (hh[:, 2 * HP:G3] + bhn))
                h_new = (1.0 - z) * n + z * h
                seq_ref[pl.ds(row, CB), :] = h_new  # unmasked (8,128) store
                return h_new

            h_final = lax.fori_loop(0, TC, step, h_ref[...], unroll=unroll)
            h_ref[...] = h_final           # carry to the next time chunk

        # Encoder: F -> 2E -> E ; Decoder: E -> E -> 2E ; dense head: 2E -> F
        run_gru(x_ref, s1, h1, wih1, whh1, bp1, bn1)
        run_gru(s1,    s2, h2, wih2, whh2, bp2, bn2)
        run_gru(s2,    s3, h3, wih3, whh3, bp3, bn3)
        run_gru(s3,    s4, h4, wih4, whh4, bp4, bn4)
        # Dense head fused into the epilogue (lane-dense output block).
        out_ref[...] = jnp.dot(s4[...], wd_ref[...],
                               preferred_element_type=jnp.float32)

    return kernel


# ----------------------------- parameter prep ------------------------------

def init_gru_params(key, in_dim, hidden):
    """PyTorch nn.GRU init: U(-1/sqrt(H), 1/sqrt(H)); gate order (r, z, n)."""
    k = float(hidden) ** -0.5
    k1, k2, k3, k4 = jax.random.split(key, 4)
    wih = jax.random.uniform(k1, (3, in_dim, hidden), jnp.float32, -k, k)
    whh = jax.random.uniform(k2, (3, hidden, hidden), jnp.float32, -k, k)
    bih = jax.random.uniform(k3, (3, hidden), jnp.float32, -k, k)
    bhh = jax.random.uniform(k4, (3, hidden), jnp.float32, -k, k)
    return wih, whh, bih, bhh


def init_rae_params(key, num_features, embedding_dim):
    E, F = embedding_dim, num_features
    k1, k2, k3, k4, k5 = jax.random.split(key, 5)
    return {
        "embedding_dim": E,
        "enc_rnn1": init_gru_params(k1, F, 2 * E),
        "enc_rnn2": init_gru_params(k2, 2 * E, E),
        "dec_rnn1": init_gru_params(k3, E, E),
        "dec_rnn2": init_gru_params(k4, E, 2 * E),
        "dense": jax.random.uniform(k5, (2 * E, F), jnp.float32, 0.0, 1.0),
    }


def _prep_gru_params(wih, whh, bih, bhh, ip, hp):
    """Fuse gates and pad to kernel layout.

    Returns wih_f (ip, 3*hp), whh_f (hp, 3*hp), b_pre (1, 3*hp), b_hn (1, hp).
    Each gate occupies a 128-aligned lane block of width hp; pad lanes are 0,
    so padded hidden lanes stay exactly 0 through the recurrence.
    """
    _, I, H = wih.shape

    def fuse(w, rows_p):
        w = jnp.pad(w, ((0, 0), (0, rows_p - w.shape[1]), (0, hp - H)))
        return jnp.transpose(w, (1, 0, 2)).reshape(rows_p, 3 * hp)

    wih_f = fuse(wih, ip)
    whh_f = fuse(whh, hp)
    # Pre-sum r/z biases; keep bhh_n separate (lives inside r*(h@Whh_n+bhh_n)).
    b_pre = jnp.stack([bih[0] + bhh[0], bih[1] + bhh[1], bih[2]])      # (3, H)
    b_pre = jnp.pad(b_pre, ((0, 0), (0, hp - H))).reshape(1, 3 * hp)
    b_hn = jnp.pad(bhh[2], (0, hp - H)).reshape(1, hp)
    return wih_f, whh_f, b_pre, b_hn


# -------------------------------- forward ----------------------------------

def rae_forward(x, params, *, time_chunk=16, batch_chunk=64):
    """x: (B, T, F) -> reconstruction (B, T, F)."""
    B, T, F = x.shape
    E = params["embedding_dim"]
    H1, H2, H3, H4 = 2 * E, E, E, 2 * E
    HP1, HP2, HP3, HP4 = (_pad_to(H1, LANE), _pad_to(H2, LANE),
                          _pad_to(H3, LANE), _pad_to(H4, LANE))
    FP = _pad_to(F, LANE)
    BP = _pad_to(B, SUBLANE)
    HPmax = max(HP1, HP2, HP3, HP4)

    # Chunking: batch chunk (parallel grid axis), time chunk (arbitrary axis).
    CB = _largest_divisor(BP, min(batch_chunk, BP), multiple=SUBLANE)
    TC = _largest_divisor(T, min(time_chunk, T))
    nb, nt = BP // CB, T // TC
    R = TC * CB                                   # rows per chunk

    # Fuse + pad weights (constant-folded under jit).
    l1 = _prep_gru_params(*params["enc_rnn1"], ip=FP,  hp=HP1)
    l2 = _prep_gru_params(*params["enc_rnn2"], ip=HP1, hp=HP2)
    l3 = _prep_gru_params(*params["dec_rnn1"], ip=HP2, hp=HP3)
    l4 = _prep_gru_params(*params["dec_rnn2"], ip=HP3, hp=HP4)
    wd = jnp.pad(params["dense"].astype(jnp.float32),
                 ((0, HP4 - H4), (0, FP - F)))
    weights = (*l1, *l2, *l3, *l4, wd)

    # Time-major, pad batch->8 sublanes / feat->128 lanes, then chunk-block to
    # (nt, nb, TC*CB, FP) so the kernel sees a flat 2-D lane-dense slab.
    x_tm = jnp.transpose(x, (1, 0, 2))                           # (T, B, F)
    x_p = jnp.pad(x_tm, ((0, 0), (0, BP - B), (0, FP - F)))      # (T, BP, FP)
    x_blk = (x_p.reshape(nt, TC, nb, CB, FP)
                 .transpose(0, 2, 1, 3, 4)
                 .reshape(nt, nb, R, FP))

    io_spec = pl.BlockSpec((None, None, R, FP), lambda b, t: (t, b, 0, 0))
    w_specs = [pl.BlockSpec(w.shape, lambda b, t: (0, 0)) for w in weights]

    scratch_shapes = [
        pltpu.VMEM((R, HP1), jnp.float32),        # seq after layer 1
        pltpu.VMEM((R, HP2), jnp.float32),        # seq after layer 2
        pltpu.VMEM((R, HP3), jnp.float32),        # seq after layer 3
        pltpu.VMEM((R, HP4), jnp.float32),        # seq after layer 4
        pltpu.VMEM((R, 3 * HPmax), jnp.float32),  # hoisted projections
        pltpu.VMEM((CB, HP1), jnp.float32),       # per-layer h carries
        pltpu.VMEM((CB, HP2), jnp.float32),
        pltpu.VMEM((CB, HP3), jnp.float32),
        pltpu.VMEM((CB, HP4), jnp.float32),
    ]

    # Scoped-VMEM budget from the actual footprint (double-buffered blocks +
    # weights, plus scratch) with headroom; keeps v5e's 16 MiB default from
    # binding while staying modest for v7x's 64 MiB physical VMEM.
    f32 = 4
    w_bytes = sum(math.prod(w.shape) for w in weights) * f32
    io_bytes = 2 * (R * FP) * f32                 # x block + out block
    sc_bytes = (R * (HP1 + HP2 + HP3 + HP4 + 3 * HPmax)
                + CB * (HP1 + HP2 + HP3 + HP4)) * f32
    total = 2 * (w_bytes + io_bytes) + sc_bytes
    vmem_limit = int(min(max(2 * total + (2 << 20), 32 << 20), 96 << 20))

    out_blk = pl.pallas_call(
        _make_rae_kernel(TC, CB),
        out_shape=jax.ShapeDtypeStruct((nt, nb, R, FP), jnp.float32),
        grid_spec=pltpu.PrefetchScalarGridSpec(
            num_scalar_prefetch=0,
            grid=(nb, nt),
            in_specs=[io_spec] + w_specs,
            out_specs=io_spec,
            scratch_shapes=scratch_shapes),
        compiler_params=pltpu.CompilerParams(
            dimension_semantics=("parallel", "arbitrary"),
            vmem_limit_bytes=vmem_limit),
    )(x_blk, *weights)

    out = (out_blk.reshape(nt, nb, TC, CB, FP)
                  .transpose(0, 2, 1, 3, 4)
                  .reshape(T, BP, FP))[:, :B, :F]
    return jnp.transpose(out, (1, 0, 2))                         # (B, T, F)


# -------------------------- pure-JAX reference -----------------------------

def _gru_ref(x_tm, wih, whh, bih, bhh):
    H = whh.shape[-1]
    B = x_tm.shape[1]

    def step(h, x_t):
        i = jnp.einsum("bi,gih->gbh", x_t, wih) + bih[:, None, :]
        hh = jnp.einsum("bh,ghk->gbk", h, whh) + bhh[:, None, :]
        r = jax.nn.sigmoid(i[0] + hh[0])
        z = jax.nn.sigmoid(i[1] + hh[1])
        n = jnp.tanh(i[2] + r * hh[2])
        h_new = (1.0 - z) * n + z * h
        return h_new, h_new

    _, seq = lax.scan(step, jnp.zeros((B, H), jnp.float32), x_tm)
    return seq


def rae_reference(x, params):
    h = jnp.transpose(x, (1, 0, 2))
    h = _gru_ref(h, *params["enc_rnn1"])
    h = _gru_ref(h, *params["enc_rnn2"])
    h = _gru_ref(h, *params["dec_rnn1"])
    h = _gru_ref(h, *params["dec_rnn2"])
    out = jnp.einsum("tbh,hf->tbf", h, params["dense"])
    return jnp.transpose(out, (1, 0, 2))


if __name__ == "__main__":
    B, T, F, E = 2, 8, 4, 32   # batch, seq_len, num_features, embedding_dim
    key = jax.random.PRNGKey(0)
    kx, kp = jax.random.split(key)
    x = jax.random.normal(kx, (B, T, F), dtype=jnp.float32)
    params = init_rae_params(kp, num_features=F, embedding_dim=E)

    out = jax.jit(lambda inp: rae_forward(inp, params))(x)
    out = jax.block_until_ready(out)
    assert out.shape == (B, T, F), out.shape
    assert bool(jnp.all(jnp.isfinite(out)))

    ref = jax.jit(lambda inp: rae_reference(inp, params))(x)
    ref = jax.block_until_ready(ref)
    assert bool(jnp.allclose(out, ref, rtol=1e-4, atol=1e-4)), (
        float(jnp.max(jnp.abs(out - ref))))
    print("KERNEL_OK")
</pallas_src>

<mosaic_0001>
module attributes {stable_mosaic.version = 11 : i64} {
  func.func @kernel(%arg0: i32, %arg1: i32, %arg2: memref<1x1x64x128xf32, #tpu.memory_space<vmem>>, %arg3: memref<128x384xf32, #tpu.memory_space<vmem>>, %arg4: memref<128x384xf32, #tpu.memory_space<vmem>>, %arg5: memref<1x384xf32, #tpu.memory_space<vmem>>, %arg6: memref<1x128xf32, #tpu.memory_space<vmem>>, %arg7: memref<128x384xf32, #tpu.memory_space<vmem>>, %arg8: memref<128x384xf32, #tpu.memory_space<vmem>>, %arg9: memref<1x384xf32, #tpu.memory_space<vmem>>, %arg10: memref<1x128xf32, #tpu.memory_space<vmem>>, %arg11: memref<128x384xf32, #tpu.memory_space<vmem>>, %arg12: memref<128x384xf32, #tpu.memory_space<vmem>>, %arg13: memref<1x384xf32, #tpu.memory_space<vmem>>, %arg14: memref<1x128xf32, #tpu.memory_space<vmem>>, %arg15: memref<128x384xf32, #tpu.memory_space<vmem>>, %arg16: memref<128x384xf32, #tpu.memory_space<vmem>>, %arg17: memref<1x384xf32, #tpu.memory_space<vmem>>, %arg18: memref<1x128xf32, #tpu.memory_space<vmem>>, %arg19: memref<128x128xf32, #tpu.memory_space<vmem>>, %arg20: memref<1x1x64x128xf32, #tpu.memory_space<vmem>>, %arg21: memref<64x128xf32, #tpu.memory_space<vmem>>, %arg22: memref<64x128xf32, #tpu.memory_space<vmem>>, %arg23: memref<64x128xf32, #tpu.memory_space<vmem>>, %arg24: memref<64x128xf32, #tpu.memory_space<vmem>>, %arg25: memref<64x384xf32, #tpu.memory_space<vmem>>, %arg26: memref<8x128xf32, #tpu.memory_space<vmem>>, %arg27: memref<8x128xf32, #tpu.memory_space<vmem>>, %arg28: memref<8x128xf32, #tpu.memory_space<vmem>>, %arg29: memref<8x128xf32, #tpu.memory_space<vmem>>) attributes {dimension_semantics = [#tpu.dimension_semantics<parallel>, #tpu.dimension_semantics<arbitrary>], iteration_bounds = array<i64: 1, 1>, scalar_prefetch = 0 : i64, scratch_operands = 9 : i64, tpu.core_type = #tpu.core_type<tc>, window_params = [{transform_indices = @transform_0, window_bounds = array<i64: 1, 1, 64, 128>}, {pipeline_mode = #tpu.pipeline_mode<synchronous>, transform_indices = @transform_1, window_bounds = array<i64: 128, 384>}, {pipeline_mode = #tpu.pipeline_mode<synchronous>, transform_indices = @transform_2, window_bounds = array<i64: 128, 384>}, {pipeline_mode = #tpu.pipeline_mode<synchronous>, transform_indices = @transform_3, window_bounds = array<i64: 1, 384>}, {pipeline_mode = #tpu.pipeline_mode<synchronous>, transform_indices = @transform_4, window_bounds = array<i64: 1, 128>}, {pipeline_mode = #tpu.pipeline_mode<synchronous>, transform_indices = @transform_5, window_bounds = array<i64: 128, 384>}, {pipeline_mode = #tpu.pipeline_mode<synchronous>, transform_indices = @transform_6, window_bounds = array<i64: 128, 384>}, {pipeline_mode = #tpu.pipeline_mode<synchronous>, transform_indices = @transform_7, window_bounds = array<i64: 1, 384>}, {pipeline_mode = #tpu.pipeline_mode<synchronous>, transform_indices = @transform_8, window_bounds = array<i64: 1, 128>}, {pipeline_mode = #tpu.pipeline_mode<synchronous>, transform_indices = @transform_9, window_bounds = array<i64: 128, 384>}, {pipeline_mode = #tpu.pipeline_mode<synchronous>, transform_indices = @transform_10, window_bounds = array<i64: 128, 384>}, {pipeline_mode = #tpu.pipeline_mode<synchronous>, transform_indices = @transform_11, window_bounds = array<i64: 1, 384>}, {pipeline_mode = #tpu.pipeline_mode<synchronous>, transform_indices = @transform_12, window_bounds = array<i64: 1, 128>}, {pipeline_mode = #tpu.pipeline_mode<synchronous>, transform_indices = @transform_13, window_bounds = array<i64: 128, 384>}, {pipeline_mode = #tpu.pipeline_mode<synchronous>, transform_indices = @transform_14, window_bounds = array<i64: 128, 384>}, {pipeline_mode = #tpu.pipeline_mode<synchronous>, transform_indices = @transform_15, window_bounds = array<i64: 1, 384>}, {pipeline_mode = #tpu.pipeline_mode<synchronous>, transform_indices = @transform_16, window_bounds = array<i64: 1, 128>}, {pipeline_mode = #tpu.pipeline_mode<synchronous>, transform_indices = @transform_17, window_bounds = array<i64: 128, 128>}, {transform_indices = @transform_18, window_bounds = array<i64: 1, 1, 64, 128>}]} {
    %c0_i32 = arith.constant 0 : i32
    %0 = arith.cmpi eq, %arg1, %c0_i32 : i32
    %1 = arith.extui %0 : i1 to i32
    %c0_i32_0 = arith.constant 0 : i32
    %2 = arith.cmpi ne, %1, %c0_i32_0 : i32
    scf.if %2 {
      %cst_330 = arith.constant 0.000000e+00 : f32
      %1174 = vector.broadcast %cst_330 : f32 to vector<8x128xf32>
      %c0_331 = arith.constant 0 : index
      %c0_332 = arith.constant 0 : index
      %1175 = vector.load %arg26[%c0_331, %c0_332] : memref<8x128xf32, #tpu.memory_space<vmem>>, vector<8x128xf32>
      tpu.vector_store %arg26[%c0_331, %c0_332], %1174 {strides = array<i32>} : memref<8x128xf32, #tpu.memory_space<vmem>>, vector<8x128xf32>,
      %cst_333 = arith.constant 0.000000e+00 : f32
      %1176 = vector.broadcast %cst_333 : f32 to vector<8x128xf32>
      %c0_334 = arith.constant 0 : index
      %c0_335 = arith.constant 0 : index
      %1177 = vector.load %arg27[%c0_334, %c0_335] : memref<8x128xf32, #tpu.memory_space<vmem>>, vector<8x128xf32>
      tpu.vector_store %arg27[%c0_334, %c0_335], %1176 {strides = array<i32>} : memref<8x128xf32, #tpu.memory_space<vmem>>, vector<8x128xf32>,
      %cst_336 = arith.constant 0.000000e+00 : f32
      %1178 = vector.broadcast %cst_336 : f32 to vector<8x128xf32>
      %c0_337 = arith.constant 0 : index
      %c0_338 = arith.constant 0 : index
      %1179 = vector.load %arg28[%c0_337, %c0_338] : memref<8x128xf32, #tpu.memory_space<vmem>>, vector<8x128xf32>
      tpu.vector_store %arg28[%c0_337, %c0_338], %1178 {strides = array<i32>} : memref<8x128xf32, #tpu.memory_space<vmem>>, vector<8x128xf32>,
      %cst_339 = arith.constant 0.000000e+00 : f32
      %1180 = vector.broadcast %cst_339 : f32 to vector<8x128xf32>
      %c0_340 = arith.constant 0 : index
      %c0_341 = arith.constant 0 : index
      %1181 = vector.load %arg29[%c0_340, %c0_341] : memref<8x128xf32, #tpu.memory_space<vmem>>, vector<8x128xf32>
      tpu.vector_store %arg29[%c0_340, %c0_341], %1180 {strides = array<i32>} : memref<8x128xf32, #tpu.memory_space<vmem>>, vector<8x128xf32>,
    } else {
    }
    %c0 = arith.constant 0 : index
    %c0_1 = arith.constant 0 : index
    %c0_2 = arith.constant 0 : index
    %c0_3 = arith.constant 0 : index
    %3 = vector.load %arg2[%c0, %c0_1, %c0_2, %c0_3] : memref<1x1x64x128xf32, #tpu.memory_space<vmem>>, vector<1x1x64x128xf32>
    %4 = vector.shape_cast %3 : vector<1x1x64x128xf32> to vector<64x128xf32>
    %c0_4 = arith.constant 0 : index
    %c0_5 = arith.constant 0 : index
    %5 = vector.load %arg3[%c0_4, %c0_5] : memref<128x384xf32, #tpu.memory_space<vmem>>, vector<128x384xf32>
    %cst = arith.constant dense<0.000000e+00> : vector<64x384xf32>
    %6 = tpu.matmul %4, %5, %cst {dimension_numbers = #tpu.dot_dimension_numbers<[1], [0], [0], [1], [0, 0, 1, 1], [], []>} : vector<64x128xf32>, vector<128x384xf32>, vector<64x384xf32> -> vector<64x384xf32>
    %c0_6 = arith.constant 0 : index
    %c0_7 = arith.constant 0 : index
    %7 = vector.load %arg5[%c0_6, %c0_7] : memref<1x384xf32, #tpu.memory_space<vmem>>, vector<1x384xf32>
    %8 = vector.broadcast %7 : vector<1x384xf32> to vector<64x384xf32>
    %9 = arith.addf %6, %8 : vector<64x384xf32>
    %c0_8 = arith.constant 0 : index
    %c0_9 = arith.constant 0 : index
    %10 = vector.load %arg25[%c0_8, %c0_9] : memref<64x384xf32, #tpu.memory_space<vmem>>, vector<64x384xf32>
    tpu.vector_store %arg25[%c0_8, %c0_9], %9 {strides = array<i32>} : memref<64x384xf32, #tpu.memory_space<vmem>>, vector<64x384xf32>,
    %c0_10 = arith.constant 0 : index
    %c0_11 = arith.constant 0 : index
    %11 = vector.load %arg4[%c0_10, %c0_11] : memref<128x384xf32, #tpu.memory_space<vmem>>, vector<128x384xf32>
    %c0_12 = arith.constant 0 : index
    %c0_13 = arith.constant 0 : index
    %12 = vector.load %arg6[%c0_12, %c0_13] : memref<1x128xf32, #tpu.memory_space<vmem>>, vector<1x128xf32>
    %c0_14 = arith.constant 0 : index
    %c0_15 = arith.constant 0 : index
    %13 = vector.load %arg26[%c0_14, %c0_15] : memref<8x128xf32, #tpu.memory_space<vmem>>, vector<8x128xf32>
    %c0_i32_16 = arith.constant 0 : i32
    %c8_i32 = arith.constant 8 : i32
    %14 = arith.muli %c0_i32_16, %c8_i32 : i32
    %15 = tpu.assume_multiple %14, 8 : i32
    %cst_17 = arith.constant dense<0.000000e+00> : vector<8x384xf32>
    %16 = tpu.matmul %13, %11, %cst_17 {dimension_numbers = #tpu.dot_dimension_numbers<[1], [0], [0], [1], [0, 0, 1, 1], [], []>} : vector<8x128xf32>, vector<128x384xf32>, vector<8x384xf32> -> vector<8x384xf32>
    %17 = arith.index_cast %15 : i32 to index
    %c0_18 = arith.constant 0 : index
    %18 = vector.load %arg25[%17, %c0_18] : memref<64x384xf32, #tpu.memory_space<vmem>>, vector<8x384xf32>
    %19 = vector.extract_strided_slice %18 {offsets = [0, 0], sizes = [8, 128], strides = [1, 1]} : vector<8x384xf32> to vector<8x128xf32>
    %20 = vector.extract_strided_slice %16 {offsets = [0, 0], sizes = [8, 128], strides = [1, 1]} : vector<8x384xf32> to vector<8x128xf32>
    %21 = arith.addf %19, %20 : vector<8x128xf32>
    %22 = arith.negf %21 : vector<8x128xf32>
    %23 = math.exp %22 : vector<8x128xf32>
    %cst_19 = arith.constant 1.000000e+00 : f32
    %24 = vector.broadcast %cst_19 : f32 to vector<8x128xf32>
    %25 = arith.addf %24, %23 : vector<8x128xf32>
    %26 = arith.divf %24, %25 : vector<8x128xf32>
    %27 = vector.extract_strided_slice %18 {offsets = [0, 128], sizes = [8, 128], strides = [1, 1]} : vector<8x384xf32> to vector<8x128xf32>
    %28 = vector.extract_strided_slice %16 {offsets = [0, 128], sizes = [8, 128], strides = [1, 1]} : vector<8x384xf32> to vector<8x128xf32>
    %29 = arith.addf %27, %28 : vector<8x128xf32>
    %30 = arith.negf %29 : vector<8x128xf32>
    %31 = math.exp %30 : vector<8x128xf32>
    %cst_20 = arith.constant 1.000000e+00 : f32
    %32 = vector.broadcast %cst_20 : f32 to vector<8x128xf32>
    %33 = arith.addf %32, %31 : vector<8x128xf32>
    %34 = arith.divf %32, %33 : vector<8x128xf32>
    %35 = vector.extract_strided_slice %18 {offsets = [0, 256], sizes = [8, 128], strides = [1, 1]} : vector<8x384xf32> to vector<8x128xf32>
    %36 = vector.extract_strided_slice %16 {offsets = [0, 256], sizes = [8, 128], strides = [1, 1]} : vector<8x384xf32> to vector<8x128xf32>
    %37 = vector.broadcast %12 : vector<1x128xf32> to vector<8x128xf32>
    %38 = arith.addf %36, %37 : vector<8x128xf32>
    %39 = arith.mulf %26, %38 : vector<8x128xf32>
    %40 = arith.addf %35, %39 : vector<8x128xf32>
    %41 = math.tanh %40 : vector<8x128xf32>
    %cst_21 = arith.constant 1.000000e+00 : f32
    %42 = vector.broadcast %cst_21 : f32 to vector<8x128xf32>
    %43 = arith.subf %42, %34 : vector<8x128xf32>
    %44 = arith.mulf %43, %41 : vector<8x128xf32>
    %45 = arith.mulf %34, %13 : vector<8x128xf32>
    %46 = arith.addf %44, %45 : vector<8x128xf32>
    %47 = arith.index_cast %15 : i32 to index
    %c0_22 = arith.constant 0 : index
    %48 = vector.load %arg21[%47, %c0_22] : memref<64x128xf32, #tpu.memory_space<vmem>>, vector<8x128xf32>
    tpu.vector_store %arg21[%47, %c0_22], %46 {strides = array<i32>} : memref<64x128xf32, #tpu.memory_space<vmem>>, vector<8x128xf32>,
    %c1_i32 = arith.constant 1 : i32
    %c8_i32_23 = arith.constant 8 : i32
    %49 = arith.muli %c1_i32, %c8_i32_23 : i32
    %50 = tpu.assume_multiple %49, 8 : i32
    %cst_24 = arith.constant dense<0.000000e+00> : vector<8x384xf32>
    %51 = tpu.matmul %46, %11, %cst_24 {dimension_numbers = #tpu.dot_dimension_numbers<[1], [0], [0], [1], [0, 0, 1, 1], [], []>} : vector<8x128xf32>, vector<128x384xf32>, vector<8x384xf32> -> vector<8x384xf32>
    %52 = arith.index_cast %50 : i32 to index
    %c0_25 = arith.constant 0 : index
    %53 = vector.load %arg25[%52, %c0_25] : memref<64x384xf32, #tpu.memory_space<vmem>>, vector<8x384xf32>
    %54 = vector.extract_strided_slice %53 {offsets = [0, 0], sizes = [8, 128], strides = [1, 1]} : vector<8x384xf32> to vector<8x128xf32>
    %55 = vector.extract_strided_slice %51 {offsets = [0, 0], sizes = [8, 128], strides = [1, 1]} : vector<8x384xf32> to vector<8x128xf32>
    %56 = arith.addf %54, %55 : vector<8x128xf32>
    %57 = arith.negf %56 : vector<8x128xf32>
    %58 = math.exp %57 : vector<8x128xf32>
    %cst_26 = arith.constant 1.000000e+00 : f32
    %59 = vector.broadcast %cst_26 : f32 to vector<8x128xf32>
    %60 = arith.addf %59, %58 : vector<8x128xf32>
    %61 = arith.divf %59, %60 : vector<8x128xf32>
    %62 = vector.extract_strided_slice %53 {offsets = [0, 128], sizes = [8, 128], strides = [1, 1]} : vector<8x384xf32> to vector<8x128xf32>
    %63 = vector.extract_strided_slice %51 {offsets = [0, 128], sizes = [8, 128], strides = [1, 1]} : vector<8x384xf32> to vector<8x128xf32>
    %64 = arith.addf %62, %63 : vector<8x128xf32>
    %65 = arith.negf %64 : vector<8x128xf32>
    %66 = math.exp %65 : vector<8x128xf32>
    %cst_27 = arith.constant 1.000000e+00 : f32
    %67 = vector.broadcast %cst_27 : f32 to vector<8x128xf32>
    %68 = arith.addf %67, %66 : vector<8x128xf32>
    %69 = arith.divf %67, %68 : vector<8x128xf32>
    %70 = vector.extract_strided_slice %53 {offsets = [0, 256], sizes = [8, 128], strides = [1, 1]} : vector<8x384xf32> to vector<8x128xf32>
    %71 = vector.extract_strided_slice %51 {offsets = [0, 256], sizes = [8, 128], strides = [1, 1]} : vector<8x384xf32> to vector<8x128xf32>
    %72 = vector.broadcast %12 : vector<1x128xf32> to vector<8x128xf32>
    %73 = arith.addf %71, %72 : vector<8x128xf32>
    %74 = arith.mulf %61, %73 : vector<8x128xf32>
    %75 = arith.addf %70, %74 : vector<8x128xf32>
    %76 = math.tanh %75 : vector<8x128xf32>
    %cst_28 = arith.constant 1.000000e+00 : f32
    %77 = vector.broadcast %cst_28 : f32 to vector<8x128xf32>
    %78 = arith.subf %77, %69 : vector<8x128xf32>
    %79 = arith.mulf %78, %76 : vector<8x128xf32>
    %80 = arith.mulf %69, %46 : vector<8x128xf32>
    %81 = arith.addf %79, %80 : vector<8x128xf32>
    %82 = arith.index_cast %50 : i32 to index
    %c0_29 = arith.constant 0 : index
    %83 = vector.load %arg21[%82, %c0_29] : memref<64x128xf32, #tpu.memory_space<vmem>>, vector<8x128xf32>
    tpu.vector_store %arg21[%82, %c0_29], %81 {strides = array<i32>} : memref<64x128xf32, #tpu.memory_space<vmem>>, vector<8x128xf32>,
    %c2_i32 = arith.constant 2 : i32
    %c8_i32_30 = arith.constant 8 : i32
    %84 = arith.muli %c2_i32, %c8_i32_30 : i32
    %85 = tpu.assume_multiple %84, 8 : i32
    %cst_31 = arith.constant dense<0.000000e+00> : vector<8x384xf32>
    %86 = tpu.matmul %81, %11, %cst_31 {dimension_numbers = #tpu.dot_dimension_numbers<[1], [0], [0], [1], [0, 0, 1, 1], [], []>} : vector<8x128xf32>, vector<128x384xf32>, vector<8x384xf32> -> vector<8x384xf32>
    %87 = arith.index_cast %85 : i32 to index
    %c0_32 = arith.constant 0 : index
    %88 = vector.load %arg25[%87, %c0_32] : memref<64x384xf32, #tpu.memory_space<vmem>>, vector<8x384xf32>
    %89 = vector.extract_strided_slice %88 {offsets = [0, 0], sizes = [8, 128], strides = [1, 1]} : vector<8x384xf32> to vector<8x128xf32>
    %90 = vector.extract_strided_slice %86 {offsets = [0, 0], sizes = [8, 128], strides = [1, 1]} : vector<8x384xf32> to vector<8x128xf32>
    %91 = arith.addf %89, %90 : vector<8x128xf32>
    %92 = arith.negf %91 : vector<8x128xf32>
    %93 = math.exp %92 : vector<8x128xf32>
    %cst_33 = arith.constant 1.000000e+00 : f32
    %94 = vector.broadcast %cst_33 : f32 to vector<8x128xf32>
    %95 = arith.addf %94, %93 : vector<8x128xf32>
    %96 = arith.divf %94, %95 : vector<8x128xf32>
    %97 = vector.extract_strided_slice %88 {offsets = [0, 128], sizes = [8, 128], strides = [1, 1]} : vector<8x384xf32> to vector<8x128xf32>
    %98 = vector.extract_strided_slice %86 {offsets = [0, 128], sizes = [8, 128], strides = [1, 1]} : vector<8x384xf32> to vector<8x128xf32>
    %99 = arith.addf %97, %98 : vector<8x128xf32>
    %100 = arith.negf %99 : vector<8x128xf32>
    %101 = math.exp %100 : vector<8x128xf32>
    %cst_34 = arith.constant 1.000000e+00 : f32
    %102 = vector.broadcast %cst_34 : f32 to vector<8x128xf32>
    %103 = arith.addf %102, %101 : vector<8x128xf32>
    %104 = arith.divf %102, %103 : vector<8x128xf32>
    %105 = vector.extract_strided_slice %88 {offsets = [0, 256], sizes = [8, 128], strides = [1, 1]} : vector<8x384xf32> to vector<8x128xf32>
    %106 = vector.extract_strided_slice %86 {offsets = [0, 256], sizes = [8, 128], strides = [1, 1]} : vector<8x384xf32> to vector<8x128xf32>
    %107 = vector.broadcast %12 : vector<1x128xf32> to vector<8x128xf32>
    %108 = arith.addf %106, %107 : vector<8x128xf32>
    %109 = arith.mulf %96, %108 : vector<8x128xf32>
    %110 = arith.addf %105, %109 : vector<8x128xf32>
    %111 = math.tanh %110 : vector<8x128xf32>
    %cst_35 = arith.constant 1.000000e+00 : f32
    %112 = vector.broadcast %cst_35 : f32 to vector<8x128xf32>
    %113 = arith.subf %112, %104 : vector<8x128xf32>
    %114 = arith.mulf %113, %111 : vector<8x128xf32>
    %115 = arith.mulf %104, %81 : vector<8x128xf32>
    %116 = arith.addf %114, %115 : vector<8x128xf32>
    %117 = arith.index_cast %85 : i32 to index
    %c0_36 = arith.constant 0 : index
    %118 = vector.load %arg21[%117, %c0_36] : memref<64x128xf32, #tpu.memory_space<vmem>>, vector<8x128xf32>
    tpu.vector_store %arg21[%117, %c0_36], %116 {strides = array<i32>} : memref<64x128xf32, #tpu.memory_space<vmem>>, vector<8x128xf32>,
    %c3_i32 = arith.constant 3 : i32
    %c8_i32_37 = arith.constant 8 : i32
    %119 = arith.muli %c3_i32, %c8_i32_37 : i32
    %120 = tpu.assume_multiple %119, 8 : i32
    %cst_38 = arith.constant dense<0.000000e+00> : vector<8x384xf32>
    %121 = tpu.matmul %116, %11, %cst_38 {dimension_numbers = #tpu.dot_dimension_numbers<[1], [0], [0], [1], [0, 0, 1, 1], [], []>} : vector<8x128xf32>, vector<128x384xf32>, vector<8x384xf32> -> vector<8x384xf32>
    %122 = arith.index_cast %120 : i32 to index
    %c0_39 = arith.constant 0 : index
    %123 = vector.load %arg25[%122, %c0_39] : memref<64x384xf32, #tpu.memory_space<vmem>>, vector<8x384xf32>
    %124 = vector.extract_strided_slice %123 {offsets = [0, 0], sizes = [8, 128], strides = [1, 1]} : vector<8x384xf32> to vector<8x128xf32>
    %125 = vector.extract_strided_slice %121 {offsets = [0, 0], sizes = [8, 128], strides = [1, 1]} : vector<8x384xf32> to vector<8x128xf32>
    %126 = arith.addf %124, %125 : vector<8x128xf32>
    %127 = arith.negf %126 : vector<8x128xf32>
    %128 = math.exp %127 : vector<8x128xf32>
    %cst_40 = arith.constant 1.000000e+00 : f32
    %129 = vector.broadcast %cst_40 : f32 to vector<8x128xf32>
    %130 = arith.addf %129, %128 : vector<8x128xf32>
    %131 = arith.divf %129, %130 : vector<8x128xf32>
    %132 = vector.extract_strided_slice %123 {offsets = [0, 128], sizes = [8, 128], strides = [1, 1]} : vector<8x384xf32> to vector<8x128xf32>
    %133 = vector.extract_strided_slice %121 {offsets = [0, 128], sizes = [8, 128], strides = [1, 1]} : vector<8x384xf32> to vector<8x128xf32>
    %134 = arith.addf %132, %133 : vector<8x128xf32>
    %135 = arith.negf %134 : vector<8x128xf32>
    %136 = math.exp %135 : vector<8x128xf32>
    %cst_41 = arith.constant 1.000000e+00 : f32
    %137 = vector.broadcast %cst_41 : f32 to vector<8x128xf32>
    %138 = arith.addf %137, %136 : vector<8x128xf32>
    %139 = arith.divf %137, %138 : vector<8x128xf32>
    %140 = vector.extract_strided_slice %123 {offsets = [0, 256], sizes = [8, 128], strides = [1, 1]} : vector<8x384xf32> to vector<8x128xf32>
    %141 = vector.extract_strided_slice %121 {offsets = [0, 256], sizes = [8, 128], strides = [1, 1]} : vector<8x384xf32> to vector<8x128xf32>
    %142 = vector.broadcast %12 : vector<1x128xf32> to vector<8x128xf32>
    %143 = arith.addf %141, %142 : vector<8x128xf32>
    %144 = arith.mulf %131, %143 : vector<8x128xf32>
    %145 = arith.addf %140, %144 : vector<8x128xf32>
    %146 = math.tanh %145 : vector<8x128xf32>
    %cst_42 = arith.constant 1.000000e+00 : f32
    %147 = vector.broadcast %cst_42 : f32 to vector<8x128xf32>
    %148 = arith.subf %147, %139 : vector<8x128xf32>
    %149 = arith.mulf %148, %146 : vector<8x128xf32>
    %150 = arith.mulf %139, %116 : vector<8x128xf32>
    %151 = arith.addf %149, %150 : vector<8x128xf32>
    %152 = arith.index_cast %120 : i32 to index
    %c0_43 = arith.constant 0 : index
    %153 = vector.load %arg21[%152, %c0_43] : memref<64x128xf32, #tpu.memory_space<vmem>>, vector<8x128xf32>
    tpu.vector_store %arg21[%152, %c0_43], %151 {strides = array<i32>} : memref<64x128xf32, #tpu.memory_space<vmem>>, vector<8x128xf32>,
    %c4_i32 = arith.constant 4 : i32
    %c8_i32_44 = arith.constant 8 : i32
    %154 = arith.muli %c4_i32, %c8_i32_44 : i32
    %155 = tpu.assume_multiple %154, 8 : i32
    %cst_45 = arith.constant dense<0.000000e+00> : vector<8x384xf32>
    %156 = tpu.matmul %151, %11, %cst_45 {dimension_numbers = #tpu.dot_dimension_numbers<[1], [0], [0], [1], [0, 0, 1, 1], [], []>} : vector<8x128xf32>, vector<128x384xf32>, vector<8x384xf32> -> vector<8x384xf32>
    %157 = arith.index_cast %155 : i32 to index
    %c0_46 = arith.constant 0 : index
    %158 = vector.load %arg25[%157, %c0_46] : memref<64x384xf32, #tpu.memory_space<vmem>>, vector<8x384xf32>
    %159 = vector.extract_strided_slice %158 {offsets = [0, 0], sizes = [8, 128], strides = [1, 1]} : vector<8x384xf32> to vector<8x128xf32>
    %160 = vector.extract_strided_slice %156 {offsets = [0, 0], sizes = [8, 128], strides = [1, 1]} : vector<8x384xf32> to vector<8x128xf32>
    %161 = arith.addf %159, %160 : vector<8x128xf32>
    %162 = arith.negf %161 : vector<8x128xf32>
    %163 = math.exp %162 : vector<8x128xf32>
    %cst_47 = arith.constant 1.000000e+00 : f32
    %164 = vector.broadcast %cst_47 : f32 to vector<8x128xf32>
    %165 = arith.addf %164, %163 : vector<8x128xf32>
    %166 = arith.divf %164, %165 : vector<8x128xf32>
    %167 = vector.extract_strided_slice %158 {offsets = [0, 128], sizes = [8, 128], strides = [1, 1]} : vector<8x384xf32> to vector<8x128xf32>
    %168 = vector.extract_strided_slice %156 {offsets = [0, 128], sizes = [8, 128], strides = [1, 1]} : vector<8x384xf32> to vector<8x128xf32>
    %169 = arith.addf %167, %168 : vector<8x128xf32>
    %170 = arith.negf %169 : vector<8x128xf32>
    %171 = math.exp %170 : vector<8x128xf32>
    %cst_48 = arith.constant 1.000000e+00 : f32
    %172 = vector.broadcast %cst_48 : f32 to vector<8x128xf32>
    %173 = arith.addf %172, %171 : vector<8x128xf32>
    %174 = arith.divf %172, %173 : vector<8x128xf32>
    %175 = vector.extract_strided_slice %158 {offsets = [0, 256], sizes = [8, 128], strides = [1, 1]} : vector<8x384xf32> to vector<8x128xf32>
    %176 = vector.extract_strided_slice %156 {offsets = [0, 256], sizes = [8, 128], strides = [1, 1]} : vector<8x384xf32> to vector<8x128xf32>
    %177 = vector.broadcast %12 : vector<1x128xf32> to vector<8x128xf32>
    %178 = arith.addf %176, %177 : vector<8x128xf32>
    %179 = arith.mulf %166, %178 : vector<8x128xf32>
    %180 = arith.addf %175, %179 : vector<8x128xf32>
    %181 = math.tanh %180 : vector<8x128xf32>
    %cst_49 = arith.constant 1.000000e+00 : f32
    %182 = vector.broadcast %cst_49 : f32 to vector<8x128xf32>
    %183 = arith.subf %182, %174 : vector<8x128xf32>
    %184 = arith.mulf %183, %181 : vector<8x128xf32>
    %185 = arith.mulf %174, %151 : vector<8x128xf32>
    %186 = arith.addf %184, %185 : vector<8x128xf32>
    %187 = arith.index_cast %155 : i32 to index
    %c0_50 = arith.constant 0 : index
    %188 = vector.load %arg21[%187, %c0_50] : memref<64x128xf32, #tpu.memory_space<vmem>>, vector<8x128xf32>
    tpu.vector_store %arg21[%187, %c0_50], %186 {strides = array<i32>} : memref<64x128xf32, #tpu.memory_space<vmem>>, vector<8x128xf32>,
    %c5_i32 = arith.constant 5 : i32
    %c8_i32_51 = arith.constant 8 : i32
    %189 = arith.muli %c5_i32, %c8_i32_51 : i32
    %190 = tpu.assume_multiple %189, 8 : i32
    %cst_52 = arith.constant dense<0.000000e+00> : vector<8x384xf32>
    %191 = tpu.matmul %186, %11, %cst_52 {dimension_numbers = #tpu.dot_dimension_numbers<[1], [0], [0], [1], [0, 0, 1, 1], [], []>} : vector<8x128xf32>, vector<128x384xf32>, vector<8x384xf32> -> vector<8x384xf32>
    %192 = arith.index_cast %190 : i32 to index
    %c0_53 = arith.constant 0 : index
    %193 = vector.load %arg25[%192, %c0_53] : memref<64x384xf32, #tpu.memory_space<vmem>>, vector<8x384xf32>
    %194 = vector.extract_strided_slice %193 {offsets = [0, 0], sizes = [8, 128], strides = [1, 1]} : vector<8x384xf32> to vector<8x128xf32>
    %195 = vector.extract_strided_slice %191 {offsets = [0, 0], sizes = [8, 128], strides = [1, 1]} : vector<8x384xf32> to vector<8x128xf32>
    %196 = arith.addf %194, %195 : vector<8x128xf32>
    %197 = arith.negf %196 : vector<8x128xf32>
    %198 = math.exp %197 : vector<8x128xf32>
    %cst_54 = arith.constant 1.000000e+00 : f32
    %199 = vector.broadcast %cst_54 : f32 to vector<8x128xf32>
    %200 = arith.addf %199, %198 : vector<8x128xf32>
    %201 = arith.divf %199, %200 : vector<8x128xf32>
    %202 = vector.extract_strided_slice %193 {offsets = [0, 128], sizes = [8, 128], strides = [1, 1]} : vector<8x384xf32> to vector<8x128xf32>
    %203 = vector.extract_strided_slice %191 {offsets = [0, 128], sizes = [8, 128], strides = [1, 1]} : vector<8x384xf32> to vector<8x128xf32>
    %204 = arith.addf %202, %203 : vector<8x128xf32>
    %205 = arith.negf %204 : vector<8x128xf32>
    %206 = math.exp %205 : vector<8x128xf32>
    %cst_55 = arith.constant 1.000000e+00 : f32
    %207 = vector.broadcast %cst_55 : f32 to vector<8x128xf32>
    %208 = arith.addf %207, %206 : vector<8x128xf32>
    %209 = arith.divf %207, %208 : vector<8x128xf32>
    %210 = vector.extract_strided_slice %193 {offsets = [0, 256], sizes = [8, 128], strides = [1, 1]} : vector<8x384xf32> to vector<8x128xf32>
    %211 = vector.extract_strided_slice %191 {offsets = [0, 256], sizes = [8, 128], strides = [1, 1]} : vector<8x384xf32> to vector<8x128xf32>
    %212 = vector.broadcast %12 : vector<1x128xf32> to vector<8x128xf32>
    %213 = arith.addf %211, %212 : vector<8x128xf32>
    %214 = arith.mulf %201, %213 : vector<8x128xf32>
    %215 = arith.addf %210, %214 : vector<8x128xf32>
    %216 = math.tanh %215 : vector<8x128xf32>
    %cst_56 = arith.constant 1.000000e+00 : f32
    %217 = vector.broadcast %cst_56 : f32 to vector<8x128xf32>
    %218 = arith.subf %217, %209 : vector<8x128xf32>
    %219 = arith.mulf %218, %216 : vector<8x128xf32>
    %220 = arith.mulf %209, %186 : vector<8x128xf32>
    %221 = arith.addf %219, %220 : vector<8x128xf32>
    %222 = arith.index_cast %190 : i32 to index
    %c0_57 = arith.constant 0 : index
    %223 = vector.load %arg21[%222, %c0_57] : memref<64x128xf32, #tpu.memory_space<vmem>>, vector<8x128xf32>
    tpu.vector_store %arg21[%222, %c0_57], %221 {strides = array<i32>} : memref<64x128xf32, #tpu.memory_space<vmem>>, vector<8x128xf32>,
    %c6_i32 = arith.constant 6 : i32
    %c8_i32_58 = arith.constant 8 : i32
    %224 = arith.muli %c6_i32, %c8_i32_58 : i32
    %225 = tpu.assume_multiple %224, 8 : i32
    %cst_59 = arith.constant dense<0.000000e+00> : vector<8x384xf32>
    %226 = tpu.matmul %221, %11, %cst_59 {dimension_numbers = #tpu.dot_dimension_numbers<[1], [0], [0], [1], [0, 0, 1, 1], [], []>} : vector<8x128xf32>, vector<128x384xf32>, vector<8x384xf32> -> vector<8x384xf32>
    %227 = arith.index_cast %225 : i32 to index
    %c0_60 = arith.constant 0 : index
    %228 = vector.load %arg25[%227, %c0_60] : memref<64x384xf32, #tpu.memory_space<vmem>>, vector<8x384xf32>
    %229 = vector.extract_strided_slice %228 {offsets = [0, 0], sizes = [8, 128], strides = [1, 1]} : vector<8x384xf32> to vector<8x128xf32>
    %230 = vector.extract_strided_slice %226 {offsets = [0, 0], sizes = [8, 128], strides = [1, 1]} : vector<8x384xf32> to vector<8x128xf32>
    %231 = arith.addf %229, %230 : vector<8x128xf32>
    %232 = arith.negf %231 : vector<8x128xf32>
    %233 = math.exp %232 : vector<8x128xf32>
    %cst_61 = arith.constant 1.000000e+00 : f32
    %234 = vector.broadcast %cst_61 : f32 to vector<8x128xf32>
    %235 = arith.addf %234, %233 : vector<8x128xf32>
    %236 = arith.divf %234, %235 : vector<8x128xf32>
    %237 = vector.extract_strided_slice %228 {offsets = [0, 128], sizes = [8, 128], strides = [1, 1]} : vector<8x384xf32> to vector<8x128xf32>
    %238 = vector.extract_strided_slice %226 {offsets = [0, 128], sizes = [8, 128], strides = [1, 1]} : vector<8x384xf32> to vector<8x128xf32>
    %239 = arith.addf %237, %238 : vector<8x128xf32>
    %240 = arith.negf %239 : vector<8x128xf32>
    %241 = math.exp %240 : vector<8x128xf32>
    %cst_62 = arith.constant 1.000000e+00 : f32
    %242 = vector.broadcast %cst_62 : f32 to vector<8x128xf32>
    %243 = arith.addf %242, %241 : vector<8x128xf32>
    %244 = arith.divf %242, %243 : vector<8x128xf32>
    %245 = vector.extract_strided_slice %228 {offsets = [0, 256], sizes = [8, 128], strides = [1, 1]} : vector<8x384xf32> to vector<8x128xf32>
    %246 = vector.extract_strided_slice %226 {offsets = [0, 256], sizes = [8, 128], strides = [1, 1]} : vector<8x384xf32> to vector<8x128xf32>
    %247 = vector.broadcast %12 : vector<1x128xf32> to vector<8x128xf32>
    %248 = arith.addf %246, %247 : vector<8x128xf32>
    %249 = arith.mulf %236, %248 : vector<8x128xf32>
    %250 = arith.addf %245, %249 : vector<8x128xf32>
    %251 = math.tanh %250 : vector<8x128xf32>
    %cst_63 = arith.constant 1.000000e+00 : f32
    %252 = vector.broadcast %cst_63 : f32 to vector<8x128xf32>
    %253 = arith.subf %252, %244 : vector<8x128xf32>
    %254 = arith.mulf %253, %251 : vector<8x128xf32>
    %255 = arith.mulf %244, %221 : vector<8x128xf32>
    %256 = arith.addf %254, %255 : vector<8x128xf32>
    %257 = arith.index_cast %225 : i32 to index
    %c0_64 = arith.constant 0 : index
    %258 = vector.load %arg21[%257, %c0_64] : memref<64x128xf32, #tpu.memory_space<vmem>>, vector<8x128xf32>
    tpu.vector_store %arg21[%257, %c0_64], %256 {strides = array<i32>} : memref<64x128xf32, #tpu.memory_space<vmem>>, vector<8x128xf32>,
    %c7_i32 = arith.constant 7 : i32
    %c8_i32_65 = arith.constant 8 : i32
    %259 = arith.muli %c7_i32, %c8_i32_65 : i32
    %260 = tpu.assume_multiple %259, 8 : i32
    %cst_66 = arith.constant dense<0.000000e+00> : vector<8x384xf32>
    %261 = tpu.matmul %256, %11, %cst_66 {dimension_numbers = #tpu.dot_dimension_numbers<[1], [0], [0], [1], [0, 0, 1, 1], [], []>} : vector<8x128xf32>, vector<128x384xf32>, vector<8x384xf32> -> vector<8x384xf32>
    %262 = arith.index_cast %260 : i32 to index
    %c0_67 = arith.constant 0 : index
    %263 = vector.load %arg25[%262, %c0_67] : memref<64x384xf32, #tpu.memory_space<vmem>>, vector<8x384xf32>
    %264 = vector.extract_strided_slice %263 {offsets = [0, 0], sizes = [8, 128], strides = [1, 1]} : vector<8x384xf32> to vector<8x128xf32>
    %265 = vector.extract_strided_slice %261 {offsets = [0, 0], sizes = [8, 128], strides = [1, 1]} : vector<8x384xf32> to vector<8x128xf32>
    %266 = arith.addf %264, %265 : vector<8x128xf32>
    %267 = arith.negf %266 : vector<8x128xf32>
    %268 = math.exp %267 : vector<8x128xf32>
    %cst_68 = arith.constant 1.000000e+00 : f32
    %269 = vector.broadcast %cst_68 : f32 to vector<8x128xf32>
    %270 = arith.addf %269, %268 : vector<8x128xf32>
    %271 = arith.divf %269, %270 : vector<8x128xf32>
    %272 = vector.extract_strided_slice %263 {offsets = [0, 128], sizes = [8, 128], strides = [1, 1]} : vector<8x384xf32> to vector<8x128xf32>
    %273 = vector.extract_strided_slice %261 {offsets = [0, 128], sizes = [8, 128], strides = [1, 1]} : vector<8x384xf32> to vector<8x128xf32>
    %274 = arith.addf %272, %273 : vector<8x128xf32>
    %275 = arith.negf %274 : vector<8x128xf32>
    %276 = math.exp %275 : vector<8x128xf32>
    %cst_69 = arith.constant 1.000000e+00 : f32
    %277 = vector.broadcast %cst_69 : f32 to vector<8x128xf32>
    %278 = arith.addf %277, %276 : vector<8x128xf32>
    %279 = arith.divf %277, %278 : vector<8x128xf32>
    %280 = vector.extract_strided_slice %263 {offsets = [0, 256], sizes = [8, 128], strides = [1, 1]} : vector<8x384xf32> to vector<8x128xf32>
    %281 = vector.extract_strided_slice %261 {offsets = [0, 256], sizes = [8, 128], strides = [1, 1]} : vector<8x384xf32> to vector<8x128xf32>
    %282 = vector.broadcast %12 : vector<1x128xf32> to vector<8x128xf32>
    %283 = arith.addf %281, %282 : vector<8x128xf32>
    %284 = arith.mulf %271, %283 : vector<8x128xf32>
    %285 = arith.addf %280, %284 : vector<8x128xf32>
    %286 = math.tanh %285 : vector<8x128xf32>
    %cst_70 = arith.constant 1.000000e+00 : f32
    %287 = vector.broadcast %cst_70 : f32 to vector<8x128xf32>
    %288 = arith.subf %287, %279 : vector<8x128xf32>
    %289 = arith.mulf %288, %286 : vector<8x128xf32>
    %290 = arith.mulf %279, %256 : vector<8x128xf32>
    %291 = arith.addf %289, %290 : vector<8x128xf32>
    %292 = arith.index_cast %260 : i32 to index
    %c0_71 = arith.constant 0 : index
    %293 = vector.load %arg21[%292, %c0_71] : memref<64x128xf32, #tpu.memory_space<vmem>>, vector<8x128xf32>
    tpu.vector_store %arg21[%292, %c0_71], %291 {strides = array<i32>} : memref<64x128xf32, #tpu.memory_space<vmem>>, vector<8x128xf32>,
    %c8_i32_72 = arith.constant 8 : i32
    %c0_73 = arith.constant 0 : index
    %c0_74 = arith.constant 0 : index
    %294 = vector.load %arg26[%c0_73, %c0_74] : memref<8x128xf32, #tpu.memory_space<vmem>>, vector<8x128xf32>
    tpu.vector_store %arg26[%c0_73, %c0_74], %291 {strides = array<i32>} : memref<8x128xf32, #tpu.memory_space<vmem>>, vector<8x128xf32>,
    %c0_75 = arith.constant 0 : index
    %c0_76 = arith.constant 0 : index
    %295 = vector.load %arg21[%c0_75, %c0_76] : memref<64x128xf32, #tpu.memory_space<vmem>>, vector<64x128xf32>
    %c0_77 = arith.constant 0 : index
    %c0_78 = arith.constant 0 : index
    %296 = vector.load %arg7[%c0_77, %c0_78] : memref<128x384xf32, #tpu.memory_space<vmem>>, vector<128x384xf32>
    %cst_79 = arith.constant dense<0.000000e+00> : vector<64x384xf32>
    %297 = tpu.matmul %295, %296, %cst_79 {dimension_numbers = #tpu.dot_dimension_numbers<[1], [0], [0], [1], [0, 0, 1, 1], [], []>} : vector<64x128xf32>, vector<128x384xf32>, vector<64x384xf32> -> vector<64x384xf32>
    %c0_80 = arith.constant 0 : index
    %c0_81 = arith.constant 0 : index
    %298 = vector.load %arg9[%c0_80, %c0_81] : memref<1x384xf32, #tpu.memory_space<vmem>>, vector<1x384xf32>
    %299 = vector.broadcast %298 : vector<1x384xf32> to vector<64x384xf32>
    %300 = arith.addf %297, %299 : vector<64x384xf32>
    %c0_82 = arith.constant 0 : index
    %c0_83 = arith.constant 0 : index
    %301 = vector.load %arg25[%c0_82, %c0_83] : memref<64x384xf32, #tpu.memory_space<vmem>>, vector<64x384xf32>
    tpu.vector_store %arg25[%c0_82, %c0_83], %300 {strides = array<i32>} : memref<64x384xf32, #tpu.memory_space<vmem>>, vector<64x384xf32>,
    %c0_84 = arith.constant 0 : index
    %c0_85 = arith.constant 0 : index
    %302 = vector.load %arg8[%c0_84, %c0_85] : memref<128x384xf32, #tpu.memory_space<vmem>>, vector<128x384xf32>
    %c0_86 = arith.constant 0 : index
    %c0_87 = arith.constant 0 : index
    %303 = vector.load %arg10[%c0_86, %c0_87] : memref<1x128xf32, #tpu.memory_space<vmem>>, vector<1x128xf32>
    %c0_88 = arith.constant 0 : index
    %c0_89 = arith.constant 0 : index
    %304 = vector.load %arg27[%c0_88, %c0_89] : memref<8x128xf32, #tpu.memory_space<vmem>>, vector<8x128xf32>
    %c0_i32_90 = arith.constant 0 : i32
    %c8_i32_91 = arith.constant 8 : i32
    %305 = arith.muli %c0_i32_90, %c8_i32_91 : i32
    %306 = tpu.assume_multiple %305, 8 : i32
    %cst_92 = arith.constant dense<0.000000e+00> : vector<8x384xf32>
    %307 = tpu.matmul %304, %302, %cst_92 {dimension_numbers = #tpu.dot_dimension_numbers<[1], [0], [0], [1], [0, 0, 1, 1], [], []>} : vector<8x128xf32>, vector<128x384xf32>, vector<8x384xf32> -> vector<8x384xf32>
    %308 = arith.index_cast %306 : i32 to index
    %c0_93 = arith.constant 0 : index
    %309 = vector.load %arg25[%308, %c0_93] : memref<64x384xf32, #tpu.memory_space<vmem>>, vector<8x384xf32>
    %310 = vector.extract_strided_slice %309 {offsets = [0, 0], sizes = [8, 128], strides = [1, 1]} : vector<8x384xf32> to vector<8x128xf32>
    %311 = vector.extract_strided_slice %307 {offsets = [0, 0], sizes = [8, 128], strides = [1, 1]} : vector<8x384xf32> to vector<8x128xf32>
    %312 = arith.addf %310, %311 : vector<8x128xf32>
    %313 = arith.negf %312 : vector<8x128xf32>
    %314 = math.exp %313 : vector<8x128xf32>
    %cst_94 = arith.constant 1.000000e+00 : f32
    %315 = vector.broadcast %cst_94 : f32 to vector<8x128xf32>
    %316 = arith.addf %315, %314 : vector<8x128xf32>
    %317 = arith.divf %315, %316 : vector<8x128xf32>
    %318 = vector.extract_strided_slice %309 {offsets = [0, 128], sizes = [8, 128], strides = [1, 1]} : vector<8x384xf32> to vector<8x128xf32>
    %319 = vector.extract_strided_slice %307 {offsets = [0, 128], sizes = [8, 128], strides = [1, 1]} : vector<8x384xf32> to vector<8x128xf32>
    %320 = arith.addf %318, %319 : vector<8x128xf32>
    %321 = arith.negf %320 : vector<8x128xf32>
    %322 = math.exp %321 : vector<8x128xf32>
    %cst_95 = arith.constant 1.000000e+00 : f32
    %323 = vector.broadcast %cst_95 : f32 to vector<8x128xf32>
    %324 = arith.addf %323, %322 : vector<8x128xf32>
    %325 = arith.divf %323, %324 : vector<8x128xf32>
    %326 = vector.extract_strided_slice %309 {offsets = [0, 256], sizes = [8, 128], strides = [1, 1]} : vector<8x384xf32> to vector<8x128xf32>
    %327 = vector.extract_strided_slice %307 {offsets = [0, 256], sizes = [8, 128], strides = [1, 1]} : vector<8x384xf32> to vector<8x128xf32>
    %328 = vector.broadcast %303 : vector<1x128xf32> to vector<8x128xf32>
    %329 = arith.addf %327, %328 : vector<8x128xf32>
    %330 = arith.mulf %317, %329 : vector<8x128xf32>
    %331 = arith.addf %326, %330 : vector<8x128xf32>
    %332 = math.tanh %331 : vector<8x128xf32>
    %cst_96 = arith.constant 1.000000e+00 : f32
    %333 = vector.broadcast %cst_96 : f32 to vector<8x128xf32>
    %334 = arith.subf %333, %325 : vector<8x128xf32>
    %335 = arith.mulf %334, %332 : vector<8x128xf32>
    %336 = arith.mulf %325, %304 : vector<8x128xf32>
    %337 = arith.addf %335, %336 : vector<8x128xf32>
    %338 = arith.index_cast %306 : i32 to index
    %c0_97 = arith.constant 0 : index
    %339 = vector.load %arg22[%338, %c0_97] : memref<64x128xf32, #tpu.memory_space<vmem>>, vector<8x128xf32>
    tpu.vector_store %arg22[%338, %c0_97], %337 {strides = array<i32>} : memref<64x128xf32, #tpu.memory_space<vmem>>, vector<8x128xf32>,
    %c1_i32_98 = arith.constant 1 : i32
    %c8_i32_99 = arith.constant 8 : i32
    %340 = arith.muli %c1_i32_98, %c8_i32_99 : i32
    %341 = tpu.assume_multiple %340, 8 : i32
    %cst_100 = arith.constant dense<0.000000e+00> : vector<8x384xf32>
    %342 = tpu.matmul %337, %302, %cst_100 {dimension_numbers = #tpu.dot_dimension_numbers<[1], [0], [0], [1], [0, 0, 1, 1], [], []>} : vector<8x128xf32>, vector<128x384xf32>, vector<8x384xf32> -> vector<8x384xf32>
    %343 = arith.index_cast %341 : i32 to index
    %c0_101 = arith.constant 0 : index
    %344 = vector.load %arg25[%343, %c0_101] : memref<64x384xf32, #tpu.memory_space<vmem>>, vector<8x384xf32>
    %345 = vector.extract_strided_slice %344 {offsets = [0, 0], sizes = [8, 128], strides = [1, 1]} : vector<8x384xf32> to vector<8x128xf32>
    %346 = vector.extract_strided_slice %342 {offsets = [0, 0], sizes = [8, 128], strides = [1, 1]} : vector<8x384xf32> to vector<8x128xf32>
    %347 = arith.addf %345, %346 : vector<8x128xf32>
    %348 = arith.negf %347 : vector<8x128xf32>
    %349 = math.exp %348 : vector<8x128xf32>
    %cst_102 = arith.constant 1.000000e+00 : f32
    %350 = vector.broadcast %cst_102 : f32 to vector<8x128xf32>
    %351 = arith.addf %350, %349 : vector<8x128xf32>
    %352 = arith.divf %350, %351 : vector<8x128xf32>
    %353 = vector.extract_strided_slice %344 {offsets = [0, 128], sizes = [8, 128], strides = [1, 1]} : vector<8x384xf32> to vector<8x128xf32>
    %354 = vector.extract_strided_slice %342 {offsets = [0, 128], sizes = [8, 128], strides = [1, 1]} : vector<8x384xf32> to vector<8x128xf32>
    %355 = arith.addf %353, %354 : vector<8x128xf32>
    %356 = arith.negf %355 : vector<8x128xf32>
    %357 = math.exp %356 : vector<8x128xf32>
    %cst_103 = arith.constant 1.000000e+00 : f32
    %358 = vector.broadcast %cst_103 : f32 to vector<8x128xf32>
    %359 = arith.addf %358, %357 : vector<8x128xf32>
    %360 = arith.divf %358, %359 : vector<8x128xf32>
    %361 = vector.extract_strided_slice %344 {offsets = [0, 256], sizes = [8, 128], strides = [1, 1]} : vector<8x384xf32> to vector<8x128xf32>
    %362 = vector.extract_strided_slice %342 {offsets = [0, 256], sizes = [8, 128], strides = [1, 1]} : vector<8x384xf32> to vector<8x128xf32>
    %363 = vector.broadcast %303 : vector<1x128xf32> to vector<8x128xf32>
    %364 = arith.addf %362, %363 : vector<8x128xf32>
    %365 = arith.mulf %352, %364 : vector<8x128xf32>
    %366 = arith.addf %361, %365 : vector<8x128xf32>
    %367 = math.tanh %366 : vector<8x128xf32>
    %cst_104 = arith.constant 1.000000e+00 : f32
    %368 = vector.broadcast %cst_104 : f32 to vector<8x128xf32>
    %369 = arith.subf %368, %360 : vector<8x128xf32>
    %370 = arith.mulf %369, %367 : vector<8x128xf32>
    %371 = arith.mulf %360, %337 : vector<8x128xf32>
    %372 = arith.addf %370, %371 : vector<8x128xf32>
    %373 = arith.index_cast %341 : i32 to index
    %c0_105 = arith.constant 0 : index
    %374 = vector.load %arg22[%373, %c0_105] : memref<64x128xf32, #tpu.memory_space<vmem>>, vector<8x128xf32>
    tpu.vector_store %arg22[%373, %c0_105], %372 {strides = array<i32>} : memref<64x128xf32, #tpu.memory_space<vmem>>, vector<8x128xf32>,
    %c2_i32_106 = arith.constant 2 : i32
    %c8_i32_107 = arith.constant 8 : i32
    %375 = arith.muli %c2_i32_106, %c8_i32_107 : i32
    %376 = tpu.assume_multiple %375, 8 : i32
    %cst_108 = arith.constant dense<0.000000e+00> : vector<8x384xf32>
    %377 = tpu.matmul %372, %302, %cst_108 {dimension_numbers = #tpu.dot_dimension_numbers<[1], [0], [0], [1], [0, 0, 1, 1], [], []>} : vector<8x128xf32>, vector<128x384xf32>, vector<8x384xf32> -> vector<8x384xf32>
    %378 = arith.index_cast %376 : i32 to index
    %c0_109 = arith.constant 0 : index
    %379 = vector.load %arg25[%378, %c0_109] : memref<64x384xf32, #tpu.memory_space<vmem>>, vector<8x384xf32>
    %380 = vector.extract_strided_slice %379 {offsets = [0, 0], sizes = [8, 128], strides = [1, 1]} : vector<8x384xf32> to vector<8x128xf32>
    %381 = vector.extract_strided_slice %377 {offsets = [0, 0], sizes = [8, 128], strides = [1, 1]} : vector<8x384xf32> to vector<8x128xf32>
    %382 = arith.addf %380, %381 : vector<8x128xf32>
    %383 = arith.negf %382 : vector<8x128xf32>
    %384 = math.exp %383 : vector<8x128xf32>
    %cst_110 = arith.constant 1.000000e+00 : f32
    %385 = vector.broadcast %cst_110 : f32 to vector<8x128xf32>
    %386 = arith.addf %385, %384 : vector<8x128xf32>
    %387 = arith.divf %385, %386 : vector<8x128xf32>
    %388 = vector.extract_strided_slice %379 {offsets = [0, 128], sizes = [8, 128], strides = [1, 1]} : vector<8x384xf32> to vector<8x128xf32>
    %389 = vector.extract_strided_slice %377 {offsets = [0, 128], sizes = [8, 128], strides = [1, 1]} : vector<8x384xf32> to vector<8x128xf32>
    %390 = arith.addf %388, %389 : vector<8x128xf32>
    %391 = arith.negf %390 : vector<8x128xf32>
    %392 = math.exp %391 : vector<8x128xf32>
    %cst_111 = arith.constant 1.000000e+00 : f32
    %393 = vector.broadcast %cst_111 : f32 to vector<8x128xf32>
    %394 = arith.addf %393, %392 : vector<8x128xf32>
    %395 = arith.divf %393, %394 : vector<8x128xf32>
    %396 = vector.extract_strided_slice %379 {offsets = [0, 256], sizes = [8, 128], strides = [1, 1]} : vector<8x384xf32> to vector<8x128xf32>
    %397 = vector.extract_strided_slice %377 {offsets = [0, 256], sizes = [8, 128], strides = [1, 1]} : vector<8x384xf32> to vector<8x128xf32>
    %398 = vector.broadcast %303 : vector<1x128xf32> to vector<8x128xf32>
    %399 = arith.addf %397, %398 : vector<8x128xf32>
    %400 = arith.mulf %387, %399 : vector<8x128xf32>
    %401 = arith.addf %396, %400 : vector<8x128xf32>
    %402 = math.tanh %401 : vector<8x128xf32>
    %cst_112 = arith.constant 1.000000e+00 : f32
    %403 = vector.broadcast %cst_112 : f32 to vector<8x128xf32>
    %404 = arith.subf %403, %395 : vector<8x128xf32>
    %405 = arith.mulf %404, %402 : vector<8x128xf32>
    %406 = arith.mulf %395, %372 : vector<8x128xf32>
    %407 = arith.addf %405, %406 : vector<8x128xf32>
    %408 = arith.index_cast %376 : i32 to index
    %c0_113 = arith.constant 0 : index
    %409 = vector.load %arg22[%408, %c0_113] : memref<64x128xf32, #tpu.memory_space<vmem>>, vector<8x128xf32>
    tpu.vector_store %arg22[%408, %c0_113], %407 {strides = array<i32>} : memref<64x128xf32, #tpu.memory_space<vmem>>, vector<8x128xf32>,
    %c3_i32_114 = arith.constant 3 : i32
    %c8_i32_115 = arith.constant 8 : i32
    %410 = arith.muli %c3_i32_114, %c8_i32_115 : i32
    %411 = tpu.assume_multiple %410, 8 : i32
    %cst_116 = arith.constant dense<0.000000e+00> : vector<8x384xf32>
    %412 = tpu.matmul %407, %302, %cst_116 {dimension_numbers = #tpu.dot_dimension_numbers<[1], [0], [0], [1], [0, 0, 1, 1], [], []>} : vector<8x128xf32>, vector<128x384xf32>, vector<8x384xf32> -> vector<8x384xf32>
    %413 = arith.index_cast %411 : i32 to index
    %c0_117 = arith.constant 0 : index
    %414 = vector.load %arg25[%413, %c0_117] : memref<64x384xf32, #tpu.memory_space<vmem>>, vector<8x384xf32>
    %415 = vector.extract_strided_slice %414 {offsets = [0, 0], sizes = [8, 128], strides = [1, 1]} : vector<8x384xf32> to vector<8x128xf32>
    %416 = vector.extract_strided_slice %412 {offsets = [0, 0], sizes = [8, 128], strides = [1, 1]} : vector<8x384xf32> to vector<8x128xf32>
    %417 = arith.addf %415, %416 : vector<8x128xf32>
    %418 = arith.negf %417 : vector<8x128xf32>
    %419 = math.exp %418 : vector<8x128xf32>
    %cst_118 = arith.constant 1.000000e+00 : f32
    %420 = vector.broadcast %cst_118 : f32 to vector<8x128xf32>
    %421 = arith.addf %420, %419 : vector<8x128xf32>
    %422 = arith.divf %420, %421 : vector<8x128xf32>
    %423 = vector.extract_strided_slice %414 {offsets = [0, 128], sizes = [8, 128], strides = [1, 1]} : vector<8x384xf32> to vector<8x128xf32>
    %424 = vector.extract_strided_slice %412 {offsets = [0, 128], sizes = [8, 128], strides = [1, 1]} : vector<8x384xf32> to vector<8x128xf32>
    %425 = arith.addf %423, %424 : vector<8x128xf32>
    %426 = arith.negf %425 : vector<8x128xf32>
    %427 = math.exp %426 : vector<8x128xf32>
    %cst_119 = arith.constant 1.000000e+00 : f32
    %428 = vector.broadcast %cst_119 : f32 to vector<8x128xf32>
    %429 = arith.addf %428, %427 : vector<8x128xf32>
    %430 = arith.divf %428, %429 : vector<8x128xf32>
    %431 = vector.extract_strided_slice %414 {offsets = [0, 256], sizes = [8, 128], strides = [1, 1]} : vector<8x384xf32> to vector<8x128xf32>
    %432 = vector.extract_strided_slice %412 {offsets = [0, 256], sizes = [8, 128], strides = [1, 1]} : vector<8x384xf32> to vector<8x128xf32>
    %433 = vector.broadcast %303 : vector<1x128xf32> to vector<8x128xf32>
    %434 = arith.addf %432, %433 : vector<8x128xf32>
    %435 = arith.mulf %422, %434 : vector<8x128xf32>
    %436 = arith.addf %431, %435 : vector<8x128xf32>
    %437 = math.tanh %436 : vector<8x128xf32>
    %cst_120 = arith.constant 1.000000e+00 : f32
    %438 = vector.broadcast %cst_120 : f32 to vector<8x128xf32>
    %439 = arith.subf %438, %430 : vector<8x128xf32>
    %440 = arith.mulf %439, %437 : vector<8x128xf32>
    %441 = arith.mulf %430, %407 : vector<8x128xf32>
    %442 = arith.addf %440, %441 : vector<8x128xf32>
    %443 = arith.index_cast %411 : i32 to index
    %c0_121 = arith.constant 0 : index
    %444 = vector.load %arg22[%443, %c0_121] : memref<64x128xf32, #tpu.memory_space<vmem>>, vector<8x128xf32>
    tpu.vector_store %arg22[%443, %c0_121], %442 {strides = array<i32>} : memref<64x128xf32, #tpu.memory_space<vmem>>, vector<8x128xf32>,
    %c4_i32_122 = arith.constant 4 : i32
    %c8_i32_123 = arith.constant 8 : i32
    %445 = arith.muli %c4_i32_122, %c8_i32_123 : i32
    %446 = tpu.assume_multiple %445, 8 : i32
    %cst_124 = arith.constant dense<0.000000e+00> : vector<8x384xf32>
    %447 = tpu.matmul %442, %302, %cst_124 {dimension_numbers = #tpu.dot_dimension_numbers<[1], [0], [0], [1], [0, 0, 1, 1], [], []>} : vector<8x128xf32>, vector<128x384xf32>, vector<8x384xf32> -> vector<8x384xf32>
    %448 = arith.index_cast %446 : i32 to index
    %c0_125 = arith.constant 0 : index
    %449 = vector.load %arg25[%448, %c0_125] : memref<64x384xf32, #tpu.memory_space<vmem>>, vector<8x384xf32>
    %450 = vector.extract_strided_slice %449 {offsets = [0, 0], sizes = [8, 128], strides = [1, 1]} : vector<8x384xf32> to vector<8x128xf32>
    %451 = vector.extract_strided_slice %447 {offsets = [0, 0], sizes = [8, 128], strides = [1, 1]} : vector<8x384xf32> to vector<8x128xf32>
    %452 = arith.addf %450, %451 : vector<8x128xf32>
    %453 = arith.negf %452 : vector<8x128xf32>
    %454 = math.exp %453 : vector<8x128xf32>
    %cst_126 = arith.constant 1.000000e+00 : f32
    %455 = vector.broadcast %cst_126 : f32 to vector<8x128xf32>
    %456 = arith.addf %455, %454 : vector<8x128xf32>
    %457 = arith.divf %455, %456 : vector<8x128xf32>
    %458 = vector.extract_strided_slice %449 {offsets = [0, 128], sizes = [8, 128], strides = [1, 1]} : vector<8x384xf32> to vector<8x128xf32>
    %459 = vector.extract_strided_slice %447 {offsets = [0, 128], sizes = [8, 128], strides = [1, 1]} : vector<8x384xf32> to vector<8x128xf32>
    %460 = arith.addf %458, %459 : vector<8x128xf32>
    %461 = arith.negf %460 : vector<8x128xf32>
    %462 = math.exp %461 : vector<8x128xf32>
    %cst_127 = arith.constant 1.000000e+00 : f32
    %463 = vector.broadcast %cst_127 : f32 to vector<8x128xf32>
    %464 = arith.addf %463, %462 : vector<8x128xf32>
    %465 = arith.divf %463, %464 : vector<8x128xf32>
    %466 = vector.extract_strided_slice %449 {offsets = [0, 256], sizes = [8, 128], strides = [1, 1]} : vector<8x384xf32> to vector<8x128xf32>
    %467 = vector.extract_strided_slice %447 {offsets = [0, 256], sizes = [8, 128], strides = [1, 1]} : vector<8x384xf32> to vector<8x128xf32>
    %468 = vector.broadcast %303 : vector<1x128xf32> to vector<8x128xf32>
    %469 = arith.addf %467, %468 : vector<8x128xf32>
    %470 = arith.mulf %457, %469 : vector<8x128xf32>
    %471 = arith.addf %466, %470 : vector<8x128xf32>
    %472 = math.tanh %471 : vector<8x128xf32>
    %cst_128 = arith.constant 1.000000e+00 : f32
    %473 = vector.broadcast %cst_128 : f32 to vector<8x128xf32>
    %474 = arith.subf %473, %465 : vector<8x128xf32>
    %475 = arith.mulf %474, %472 : vector<8x128xf32>
    %476 = arith.mulf %465, %442 : vector<8x128xf32>
    %477 = arith.addf %475, %476 : vector<8x128xf32>
    %478 = arith.index_cast %446 : i32 to index
    %c0_129 = arith.constant 0 : index
    %479 = vector.load %arg22[%478, %c0_129] : memref<64x128xf32, #tpu.memory_space<vmem>>, vector<8x128xf32>
    tpu.vector_store %arg22[%478, %c0_129], %477 {strides = array<i32>} : memref<64x128xf32, #tpu.memory_space<vmem>>, vector<8x128xf32>,
    %c5_i32_130 = arith.constant 5 : i32
    %c8_i32_131 = arith.constant 8 : i32
    %480 = arith.muli %c5_i32_130, %c8_i32_131 : i32
    %481 = tpu.assume_multiple %480, 8 : i32
    %cst_132 = arith.constant dense<0.000000e+00> : vector<8x384xf32>
    %482 = tpu.matmul %477, %302, %cst_132 {dimension_numbers = #tpu.dot_dimension_numbers<[1], [0], [0], [1], [0, 0, 1, 1], [], []>} : vector<8x128xf32>, vector<128x384xf32>, vector<8x384xf32> -> vector<8x384xf32>
    %483 = arith.index_cast %481 : i32 to index
    %c0_133 = arith.constant 0 : index
    %484 = vector.load %arg25[%483, %c0_133] : memref<64x384xf32, #tpu.memory_space<vmem>>, vector<8x384xf32>
    %485 = vector.extract_strided_slice %484 {offsets = [0, 0], sizes = [8, 128], strides = [1, 1]} : vector<8x384xf32> to vector<8x128xf32>
    %486 = vector.extract_strided_slice %482 {offsets = [0, 0], sizes = [8, 128], strides = [1, 1]} : vector<8x384xf32> to vector<8x128xf32>
    %487 = arith.addf %485, %486 : vector<8x128xf32>
    %488 = arith.negf %487 : vector<8x128xf32>
    %489 = math.exp %488 : vector<8x128xf32>
    %cst_134 = arith.constant 1.000000e+00 : f32
    %490 = vector.broadcast %cst_134 : f32 to vector<8x128xf32>
    %491 = arith.addf %490, %489 : vector<8x128xf32>
    %492 = arith.divf %490, %491 : vector<8x128xf32>
    %493 = vector.extract_strided_slice %484 {offsets = [0, 128], sizes = [8, 128], strides = [1, 1]} : vector<8x384xf32> to vector<8x128xf32>
    %494 = vector.extract_strided_slice %482 {offsets = [0, 128], sizes = [8, 128], strides = [1, 1]} : vector<8x384xf32> to vector<8x128xf32>
    %495 = arith.addf %493, %494 : vector<8x128xf32>
    %496 = arith.negf %495 : vector<8x128xf32>
    %497 = math.exp %496 : vector<8x128xf32>
    %cst_135 = arith.constant 1.000000e+00 : f32
    %498 = vector.broadcast %cst_135 : f32 to vector<8x128xf32>
    %499 = arith.addf %498, %497 : vector<8x128xf32>
    %500 = arith.divf %498, %499 : vector<8x128xf32>
    %501 = vector.extract_strided_slice %484 {offsets = [0, 256], sizes = [8, 128], strides = [1, 1]} : vector<8x384xf32> to vector<8x128xf32>
    %502 = vector.extract_strided_slice %482 {offsets = [0, 256], sizes = [8, 128], strides = [1, 1]} : vector<8x384xf32> to vector<8x128xf32>
    %503 = vector.broadcast %303 : vector<1x128xf32> to vector<8x128xf32>
    %504 = arith.addf %502, %503 : vector<8x128xf32>
    %505 = arith.mulf %492, %504 : vector<8x128xf32>
    %506 = arith.addf %501, %505 : vector<8x128xf32>
    %507 = math.tanh %506 : vector<8x128xf32>
    %cst_136 = arith.constant 1.000000e+00 : f32
    %508 = vector.broadcast %cst_136 : f32 to vector<8x128xf32>
    %509 = arith.subf %508, %500 : vector<8x128xf32>
    %510 = arith.mulf %509, %507 : vector<8x128xf32>
    %511 = arith.mulf %500, %477 : vector<8x128xf32>
    %512 = arith.addf %510, %511 : vector<8x128xf32>
    %513 = arith.index_cast %481 : i32 to index
    %c0_137 = arith.constant 0 : index
    %514 = vector.load %arg22[%513, %c0_137] : memref<64x128xf32, #tpu.memory_space<vmem>>, vector<8x128xf32>
    tpu.vector_store %arg22[%513, %c0_137], %512 {strides = array<i32>} : memref<64x128xf32, #tpu.memory_space<vmem>>, vector<8x128xf32>,
    %c6_i32_138 = arith.constant 6 : i32
    %c8_i32_139 = arith.constant 8 : i32
    %515 = arith.muli %c6_i32_138, %c8_i32_139 : i32
    %516 = tpu.assume_multiple %515, 8 : i32
    %cst_140 = arith.constant dense<0.000000e+00> : vector<8x384xf32>
    %517 = tpu.matmul %512, %302, %cst_140 {dimension_numbers = #tpu.dot_dimension_numbers<[1], [0], [0], [1], [0, 0, 1, 1], [], []>} : vector<8x128xf32>, vector<128x384xf32>, vector<8x384xf32> -> vector<8x384xf32>
    %518 = arith.index_cast %516 : i32 to index
    %c0_141 = arith.constant 0 : index
    %519 = vector.load %arg25[%518, %c0_141] : memref<64x384xf32, #tpu.memory_space<vmem>>, vector<8x384xf32>
    %520 = vector.extract_strided_slice %519 {offsets = [0, 0], sizes = [8, 128], strides = [1, 1]} : vector<8x384xf32> to vector<8x128xf32>
    %521 = vector.extract_strided_slice %517 {offsets = [0, 0], sizes = [8, 128], strides = [1, 1]} : vector<8x384xf32> to vector<8x128xf32>
    %522 = arith.addf %520, %521 : vector<8x128xf32>
    %523 = arith.negf %522 : vector<8x128xf32>
    %524 = math.exp %523 : vector<8x128xf32>
    %cst_142 = arith.constant 1.000000e+00 : f32
    %525 = vector.broadcast %cst_142 : f32 to vector<8x128xf32>
    %526 = arith.addf %525, %524 : vector<8x128xf32>
    %527 = arith.divf %525, %526 : vector<8x128xf32>
    %528 = vector.extract_strided_slice %519 {offsets = [0, 128], sizes = [8, 128], strides = [1, 1]} : vector<8x384xf32> to vector<8x128xf32>
    %529 = vector.extract_strided_slice %517 {offsets = [0, 128], sizes = [8, 128], strides = [1, 1]} : vector<8x384xf32> to vector<8x128xf32>
    %530 = arith.addf %528, %529 : vector<8x128xf32>
    %531 = arith.negf %530 : vector<8x128xf32>
    %532 = math.exp %531 : vector<8x128xf32>
    %cst_143 = arith.constant 1.000000e+00 : f32
    %533 = vector.broadcast %cst_143 : f32 to vector<8x128xf32>
    %534 = arith.addf %533, %532 : vector<8x128xf32>
    %535 = arith.divf %533, %534 : vector<8x128xf32>
    %536 = vector.extract_strided_slice %519 {offsets = [0, 256], sizes = [8, 128], strides = [1, 1]} : vector<8x384xf32> to vector<8x128xf32>
    %537 = vector.extract_strided_slice %517 {offsets = [0, 256], sizes = [8, 128], strides = [1, 1]} : vector<8x384xf32> to vector<8x128xf32>
    %538 = vector.broadcast %303 : vector<1x128xf32> to vector<8x128xf32>
    %539 = arith.addf %537, %538 : vector<8x128xf32>
    %540 = arith.mulf %527, %539 : vector<8x128xf32>
    %541 = arith.addf %536, %540 : vector<8x128xf32>
    %542 = math.tanh %541 : vector<8x128xf32>
    %cst_144 = arith.constant 1.000000e+00 : f32
    %543 = vector.broadcast %cst_144 : f32 to vector<8x128xf32>
    %544 = arith.subf %543, %535 : vector<8x128xf32>
    %545 = arith.mulf %544, %542 : vector<8x128xf32>
    %546 = arith.mulf %535, %512 : vector<8x128xf32>
    %547 = arith.addf %545, %546 : vector<8x128xf32>
    %548 = arith.index_cast %516 : i32 to index
    %c0_145 = arith.constant 0 : index
    %549 = vector.load %arg22[%548, %c0_145] : memref<64x128xf32, #tpu.memory_space<vmem>>, vector<8x128xf32>
    tpu.vector_store %arg22[%548, %c0_145], %547 {strides = array<i32>} : memref<64x128xf32, #tpu.memory_space<vmem>>, vector<8x128xf32>,
    %c7_i32_146 = arith.constant 7 : i32
    %c8_i32_147 = arith.constant 8 : i32
    %550 = arith.muli %c7_i32_146, %c8_i32_147 : i32
    %551 = tpu.assume_multiple %550, 8 : i32
    %cst_148 = arith.constant dense<0.000000e+00> : vector<8x384xf32>
    %552 = tpu.matmul %547, %302, %cst_148 {dimension_numbers = #tpu.dot_dimension_numbers<[1], [0], [0], [1], [0, 0, 1, 1], [], []>} : vector<8x128xf32>, vector<128x384xf32>, vector<8x384xf32> -> vector<8x384xf32>
    %553 = arith.index_cast %551 : i32 to index
    %c0_149 = arith.constant 0 : index
    %554 = vector.load %arg25[%553, %c0_149] : memref<64x384xf32, #tpu.memory_space<vmem>>, vector<8x384xf32>
    %555 = vector.extract_strided_slice %554 {offsets = [0, 0], sizes = [8, 128], strides = [1, 1]} : vector<8x384xf32> to vector<8x128xf32>
    %556 = vector.extract_strided_slice %552 {offsets = [0, 0], sizes = [8, 128], strides = [1, 1]} : vector<8x384xf32> to vector<8x128xf32>
    %557 = arith.addf %555, %556 : vector<8x128xf32>
    %558 = arith.negf %557 : vector<8x128xf32>
    %559 = math.exp %558 : vector<8x128xf32>
    %cst_150 = arith.constant 1.000000e+00 : f32
    %560 = vector.broadcast %cst_150 : f32 to vector<8x128xf32>
    %561 = arith.addf %560, %559 : vector<8x128xf32>
    %562 = arith.divf %560, %561 : vector<8x128xf32>
    %563 = vector.extract_strided_slice %554 {offsets = [0, 128], sizes = [8, 128], strides = [1, 1]} : vector<8x384xf32> to vector<8x128xf32>
    %564 = vector.extract_strided_slice %552 {offsets = [0, 128], sizes = [8, 128], strides = [1, 1]} : vector<8x384xf32> to vector<8x128xf32>
    %565 = arith.addf %563, %564 : vector<8x128xf32>
    %566 = arith.negf %565 : vector<8x128xf32>
    %567 = math.exp %566 : vector<8x128xf32>
    %cst_151 = arith.constant 1.000000e+00 : f32
    %568 = vector.broadcast %cst_151 : f32 to vector<8x128xf32>
    %569 = arith.addf %568, %567 : vector<8x128xf32>
    %570 = arith.divf %568, %569 : vector<8x128xf32>
    %571 = vector.extract_strided_slice %554 {offsets = [0, 256], sizes = [8, 128], strides = [1, 1]} : vector<8x384xf32> to vector<8x128xf32>
    %572 = vector.extract_strided_slice %552 {offsets = [0, 256], sizes = [8, 128], strides = [1, 1]} : vector<8x384xf32> to vector<8x128xf32>
    %573 = vector.broadcast %303 : vector<1x128xf32> to vector<8x128xf32>
    %574 = arith.addf %572, %573 : vector<8x128xf32>
    %575 = arith.mulf %562, %574 : vector<8x128xf32>
    %576 = arith.addf %571, %575 : vector<8x128xf32>
    %577 = math.tanh %576 : vector<8x128xf32>
    %cst_152 = arith.constant 1.000000e+00 : f32
    %578 = vector.broadcast %cst_152 : f32 to vector<8x128xf32>
    %579 = arith.subf %578, %570 : vector<8x128xf32>
    %580 = arith.mulf %579, %577 : vector<8x128xf32>
    %581 = arith.mulf %570, %547 : vector<8x128xf32>
    %582 = arith.addf %580, %581 : vector<8x128xf32>
    %583 = arith.index_cast %551 : i32 to index
    %c0_153 = arith.constant 0 : index
    %584 = vector.load %arg22[%583, %c0_153] : memref<64x128xf32, #tpu.memory_space<vmem>>, vector<8x128xf32>
    tpu.vector_store %arg22[%583, %c0_153], %582 {strides = array<i32>} : memref<64x128xf32, #tpu.memory_space<vmem>>, vector<8x128xf32>,
    %c8_i32_154 = arith.constant 8 : i32
    %c0_155 = arith.constant 0 : index
    %c0_156 = arith.constant 0 : index
    %585 = vector.load %arg27[%c0_155, %c0_156] : memref<8x128xf32, #tpu.memory_space<vmem>>, vector<8x128xf32>
    tpu.vector_store %arg27[%c0_155, %c0_156], %582 {strides = array<i32>} : memref<8x128xf32, #tpu.memory_space<vmem>>, vector<8x128xf32>,
    %c0_157 = arith.constant 0 : index
    %c0_158 = arith.constant 0 : index
    %586 = vector.load %arg22[%c0_157, %c0_158] : memref<64x128xf32, #tpu.memory_space<vmem>>, vector<64x128xf32>
    %c0_159 = arith.constant 0 : index
    %c0_160 = arith.constant 0 : index
    %587 = vector.load %arg11[%c0_159, %c0_160] : memref<128x384xf32, #tpu.memory_space<vmem>>, vector<128x384xf32>
    %cst_161 = arith.constant dense<0.000000e+00> : vector<64x384xf32>
    %588 = tpu.matmul %586, %587, %cst_161 {dimension_numbers = #tpu.dot_dimension_numbers<[1], [0], [0], [1], [0, 0, 1, 1], [], []>} : vector<64x128xf32>, vector<128x384xf32>, vector<64x384xf32> -> vector<64x384xf32>
    %c0_162 = arith.constant 0 : index
    %c0_163 = arith.constant 0 : index
    %589 = vector.load %arg13[%c0_162, %c0_163] : memref<1x384xf32, #tpu.memory_space<vmem>>, vector<1x384xf32>
    %590 = vector.broadcast %589 : vector<1x384xf32> to vector<64x384xf32>
    %591 = arith.addf %588, %590 : vector<64x384xf32>
    %c0_164 = arith.constant 0 : index
    %c0_165 = arith.constant 0 : index
    %592 = vector.load %arg25[%c0_164, %c0_165] : memref<64x384xf32, #tpu.memory_space<vmem>>, vector<64x384xf32>
    tpu.vector_store %arg25[%c0_164, %c0_165], %591 {strides = array<i32>} : memref<64x384xf32, #tpu.memory_space<vmem>>, vector<64x384xf32>,
    %c0_166 = arith.constant 0 : index
    %c0_167 = arith.constant 0 : index
    %593 = vector.load %arg12[%c0_166, %c0_167] : memref<128x384xf32, #tpu.memory_space<vmem>>, vector<128x384xf32>
    %c0_168 = arith.constant 0 : index
    %c0_169 = arith.constant 0 : index
    %594 = vector.load %arg14[%c0_168, %c0_169] : memref<1x128xf32, #tpu.memory_space<vmem>>, vector<1x128xf32>
    %c0_170 = arith.constant 0 : index
    %c0_171 = arith.constant 0 : index
    %595 = vector.load %arg28[%c0_170, %c0_171] : memref<8x128xf32, #tpu.memory_space<vmem>>, vector<8x128xf32>
    %c0_i32_172 = arith.constant 0 : i32
    %c8_i32_173 = arith.constant 8 : i32
    %596 = arith.muli %c0_i32_172, %c8_i32_173 : i32
    %597 = tpu.assume_multiple %596, 8 : i32
    %cst_174 = arith.constant dense<0.000000e+00> : vector<8x384xf32>
    %598 = tpu.matmul %595, %593, %cst_174 {dimension_numbers = #tpu.dot_dimension_numbers<[1], [0], [0], [1], [0, 0, 1, 1], [], []>} : vector<8x128xf32>, vector<128x384xf32>, vector<8x384xf32> -> vector<8x384xf32>
    %599 = arith.index_cast %597 : i32 to index
    %c0_175 = arith.constant 0 : index
    %600 = vector.load %arg25[%599, %c0_175] : memref<64x384xf32, #tpu.memory_space<vmem>>, vector<8x384xf32>
    %601 = vector.extract_strided_slice %600 {offsets = [0, 0], sizes = [8, 128], strides = [1, 1]} : vector<8x384xf32> to vector<8x128xf32>
    %602 = vector.extract_strided_slice %598 {offsets = [0, 0], sizes = [8, 128], strides = [1, 1]} : vector<8x384xf32> to vector<8x128xf32>
    %603 = arith.addf %601, %602 : vector<8x128xf32>
    %604 = arith.negf %603 : vector<8x128xf32>
    %605 = math.exp %604 : vector<8x128xf32>
    %cst_176 = arith.constant 1.000000e+00 : f32
    %606 = vector.broadcast %cst_176 : f32 to vector<8x128xf32>
    %607 = arith.addf %606, %605 : vector<8x128xf32>
    %608 = arith.divf %606, %607 : vector<8x128xf32>
    %609 = vector.extract_strided_slice %600 {offsets = [0, 128], sizes = [8, 128], strides = [1, 1]} : vector<8x384xf32> to vector<8x128xf32>
    %610 = vector.extract_strided_slice %598 {offsets = [0, 128], sizes = [8, 128], strides = [1, 1]} : vector<8x384xf32> to vector<8x128xf32>
    %611 = arith.addf %609, %610 : vector<8x128xf32>
    %612 = arith.negf %611 : vector<8x128xf32>
    %613 = math.exp %612 : vector<8x128xf32>
    %cst_177 = arith.constant 1.000000e+00 : f32
    %614 = vector.broadcast %cst_177 : f32 to vector<8x128xf32>
    %615 = arith.addf %614, %613 : vector<8x128xf32>
    %616 = arith.divf %614, %615 : vector<8x128xf32>
    %617 = vector.extract_strided_slice %600 {offsets = [0, 256], sizes = [8, 128], strides = [1, 1]} : vector<8x384xf32> to vector<8x128xf32>
    %618 = vector.extract_strided_slice %598 {offsets = [0, 256], sizes = [8, 128], strides = [1, 1]} : vector<8x384xf32> to vector<8x128xf32>
    %619 = vector.broadcast %594 : vector<1x128xf32> to vector<8x128xf32>
    %620 = arith.addf %618, %619 : vector<8x128xf32>
    %621 = arith.mulf %608, %620 : vector<8x128xf32>
    %622 = arith.addf %617, %621 : vector<8x128xf32>
    %623 = math.tanh %622 : vector<8x128xf32>
    %cst_178 = arith.constant 1.000000e+00 : f32
    %624 = vector.broadcast %cst_178 : f32 to vector<8x128xf32>
    %625 = arith.subf %624, %616 : vector<8x128xf32>
    %626 = arith.mulf %625, %623 : vector<8x128xf32>
    %627 = arith.mulf %616, %595 : vector<8x128xf32>
    %628 = arith.addf %626, %627 : vector<8x128xf32>
    %629 = arith.index_cast %597 : i32 to index
    %c0_179 = arith.constant 0 : index
    %630 = vector.load %arg23[%629, %c0_179] : memref<64x128xf32, #tpu.memory_space<vmem>>, vector<8x128xf32>
    tpu.vector_store %arg23[%629, %c0_179], %628 {strides = array<i32>} : memref<64x128xf32, #tpu.memory_space<vmem>>, vector<8x128xf32>,
    %c1_i32_180 = arith.constant 1 : i32
    %c8_i32_181 = arith.constant 8 : i32
    %631 = arith.muli %c1_i32_180, %c8_i32_181 : i32
    %632 = tpu.assume_multiple %631, 8 : i32
    %cst_182 = arith.constant dense<0.000000e+00> : vector<8x384xf32>
    %633 = tpu.matmul %628, %593, %cst_182 {dimension_numbers = #tpu.dot_dimension_numbers<[1], [0], [0], [1], [0, 0, 1, 1], [], []>} : vector<8x128xf32>, vector<128x384xf32>, vector<8x384xf32> -> vector<8x384xf32>
    %634 = arith.index_cast %632 : i32 to index
    %c0_183 = arith.constant 0 : index
    %635 = vector.load %arg25[%634, %c0_183] : memref<64x384xf32, #tpu.memory_space<vmem>>, vector<8x384xf32>
    %636 = vector.extract_strided_slice %635 {offsets = [0, 0], sizes = [8, 128], strides = [1, 1]} : vector<8x384xf32> to vector<8x128xf32>
    %637 = vector.extract_strided_slice %633 {offsets = [0, 0], sizes = [8, 128], strides = [1, 1]} : vector<8x384xf32> to vector<8x128xf32>
    %638 = arith.addf %636, %637 : vector<8x128xf32>
    %639 = arith.negf %638 : vector<8x128xf32>
    %640 = math.exp %639 : vector<8x128xf32>
    %cst_184 = arith.constant 1.000000e+00 : f32
    %641 = vector.broadcast %cst_184 : f32 to vector<8x128xf32>
    %642 = arith.addf %641, %640 : vector<8x128xf32>
    %643 = arith.divf %641, %642 : vector<8x128xf32>
    %644 = vector.extract_strided_slice %635 {offsets = [0, 128], sizes = [8, 128], strides = [1, 1]} : vector<8x384xf32> to vector<8x128xf32>
    %645 = vector.extract_strided_slice %633 {offsets = [0, 128], sizes = [8, 128], strides = [1, 1]} : vector<8x384xf32> to vector<8x128xf32>
    %646 = arith.addf %644, %645 : vector<8x128xf32>
    %647 = arith.negf %646 : vector<8x128xf32>
    %648 = math.exp %647 : vector<8x128xf32>
    %cst_185 = arith.constant 1.000000e+00 : f32
    %649 = vector.broadcast %cst_185 : f32 to vector<8x128xf32>
    %650 = arith.addf %649, %648 : vector<8x128xf32>
    %651 = arith.divf %649, %650 : vector<8x128xf32>
    %652 = vector.extract_strided_slice %635 {offsets = [0, 256], sizes = [8, 128], strides = [1, 1]} : vector<8x384xf32> to vector<8x128xf32>
    %653 = vector.extract_strided_slice %633 {offsets = [0, 256], sizes = [8, 128], strides = [1, 1]} : vector<8x384xf32> to vector<8x128xf32>
    %654 = vector.broadcast %594 : vector<1x128xf32> to vector<8x128xf32>
    %655 = arith.addf %653, %654 : vector<8x128xf32>
    %656 = arith.mulf %643, %655 : vector<8x128xf32>
    %657 = arith.addf %652, %656 : vector<8x128xf32>
    %658 = math.tanh %657 : vector<8x128xf32>
    %cst_186 = arith.constant 1.000000e+00 : f32
    %659 = vector.broadcast %cst_186 : f32 to vector<8x128xf32>
    %660 = arith.subf %659, %651 : vector<8x128xf32>
    %661 = arith.mulf %660, %658 : vector<8x128xf32>
    %662 = arith.mulf %651, %628 : vector<8x128xf32>
    %663 = arith.addf %661, %662 : vector<8x128xf32>
    %664 = arith.index_cast %632 : i32 to index
    %c0_187 = arith.constant 0 : index
    %665 = vector.load %arg23[%664, %c0_187] : memref<64x128xf32, #tpu.memory_space<vmem>>, vector<8x128xf32>
    tpu.vector_store %arg23[%664, %c0_187], %663 {strides = array<i32>} : memref<64x128xf32, #tpu.memory_space<vmem>>, vector<8x128xf32>,
    %c2_i32_188 = arith.constant 2 : i32
    %c8_i32_189 = arith.constant 8 : i32
    %666 = arith.muli %c2_i32_188, %c8_i32_189 : i32
    %667 = tpu.assume_multiple %666, 8 : i32
    %cst_190 = arith.constant dense<0.000000e+00> : vector<8x384xf32>
    %668 = tpu.matmul %663, %593, %cst_190 {dimension_numbers = #tpu.dot_dimension_numbers<[1], [0], [0], [1], [0, 0, 1, 1], [], []>} : vector<8x128xf32>, vector<128x384xf32>, vector<8x384xf32> -> vector<8x384xf32>
    %669 = arith.index_cast %667 : i32 to index
    %c0_191 = arith.constant 0 : index
    %670 = vector.load %arg25[%669, %c0_191] : memref<64x384xf32, #tpu.memory_space<vmem>>, vector<8x384xf32>
    %671 = vector.extract_strided_slice %670 {offsets = [0, 0], sizes = [8, 128], strides = [1, 1]} : vector<8x384xf32> to vector<8x128xf32>
    %672 = vector.extract_strided_slice %668 {offsets = [0, 0], sizes = [8, 128], strides = [1, 1]} : vector<8x384xf32> to vector<8x128xf32>
    %673 = arith.addf %671, %672 : vector<8x128xf32>
    %674 = arith.negf %673 : vector<8x128xf32>
    %675 = math.exp %674 : vector<8x128xf32>
    %cst_192 = arith.constant 1.000000e+00 : f32
    %676 = vector.broadcast %cst_192 : f32 to vector<8x128xf32>
    %677 = arith.addf %676, %675 : vector<8x128xf32>
    %678 = arith.divf %676, %677 : vector<8x128xf32>
    %679 = vector.extract_strided_slice %670 {offsets = [0, 128], sizes = [8, 128], strides = [1, 1]} : vector<8x384xf32> to vector<8x128xf32>
    %680 = vector.extract_strided_slice %668 {offsets = [0, 128], sizes = [8, 128], strides = [1, 1]} : vector<8x384xf32> to vector<8x128xf32>
    %681 = arith.addf %679, %680 : vector<8x128xf32>
    %682 = arith.negf %681 : vector<8x128xf32>
    %683 = math.exp %682 : vector<8x128xf32>
    %cst_193 = arith.constant 1.000000e+00 : f32
    %684 = vector.broadcast %cst_193 : f32 to vector<8x128xf32>
    %685 = arith.addf %684, %683 : vector<8x128xf32>
    %686 = arith.divf %684, %685 : vector<8x128xf32>
    %687 = vector.extract_strided_slice %670 {offsets = [0, 256], sizes = [8, 128], strides = [1, 1]} : vector<8x384xf32> to vector<8x128xf32>
    %688 = vector.extract_strided_slice %668 {offsets = [0, 256], sizes = [8, 128], strides = [1, 1]} : vector<8x384xf32> to vector<8x128xf32>
    %689 = vector.broadcast %594 : vector<1x128xf32> to vector<8x128xf32>
    %690 = arith.addf %688, %689 : vector<8x128xf32>
    %691 = arith.mulf %678, %690 : vector<8x128xf32>
    %692 = arith.addf %687, %691 : vector<8x128xf32>
    %693 = math.tanh %692 : vector<8x128xf32>
    %cst_194 = arith.constant 1.000000e+00 : f32
    %694 = vector.broadcast %cst_194 : f32 to vector<8x128xf32>
    %695 = arith.subf %694, %686 : vector<8x128xf32>
    %696 = arith.mulf %695, %693 : vector<8x128xf32>
    %697 = arith.mulf %686, %663 : vector<8x128xf32>
    %698 = arith.addf %696, %697 : vector<8x128xf32>
    %699 = arith.index_cast %667 : i32 to index
    %c0_195 = arith.constant 0 : index
    %700 = vector.load %arg23[%699, %c0_195] : memref<64x128xf32, #tpu.memory_space<vmem>>, vector<8x128xf32>
    tpu.vector_store %arg23[%699, %c0_195], %698 {strides = array<i32>} : memref<64x128xf32, #tpu.memory_space<vmem>>, vector<8x128xf32>,
    %c3_i32_196 = arith.constant 3 : i32
    %c8_i32_197 = arith.constant 8 : i32
    %701 = arith.muli %c3_i32_196, %c8_i32_197 : i32
    %702 = tpu.assume_multiple %701, 8 : i32
    %cst_198 = arith.constant dense<0.000000e+00> : vector<8x384xf32>
    %703 = tpu.matmul %698, %593, %cst_198 {dimension_numbers = #tpu.dot_dimension_numbers<[1], [0], [0], [1], [0, 0, 1, 1], [], []>} : vector<8x128xf32>, vector<128x384xf32>, vector<8x384xf32> -> vector<8x384xf32>
    %704 = arith.index_cast %702 : i32 to index
    %c0_199 = arith.constant 0 : index
    %705 = vector.load %arg25[%704, %c0_199] : memref<64x384xf32, #tpu.memory_space<vmem>>, vector<8x384xf32>
    %706 = vector.extract_strided_slice %705 {offsets = [0, 0], sizes = [8, 128], strides = [1, 1]} : vector<8x384xf32> to vector<8x128xf32>
    %707 = vector.extract_strided_slice %703 {offsets = [0, 0], sizes = [8, 128], strides = [1, 1]} : vector<8x384xf32> to vector<8x128xf32>
    %708 = arith.addf %706, %707 : vector<8x128xf32>
    %709 = arith.negf %708 : vector<8x128xf32>
    %710 = math.exp %709 : vector<8x128xf32>
    %cst_200 = arith.constant 1.000000e+00 : f32
    %711 = vector.broadcast %cst_200 : f32 to vector<8x128xf32>
    %712 = arith.addf %711, %710 : vector<8x128xf32>
    %713 = arith.divf %711, %712 : vector<8x128xf32>
    %714 = vector.extract_strided_slice %705 {offsets = [0, 128], sizes = [8, 128], strides = [1, 1]} : vector<8x384xf32> to vector<8x128xf32>
    %715 = vector.extract_strided_slice %703 {offsets = [0, 128], sizes = [8, 128], strides = [1, 1]} : vector<8x384xf32> to vector<8x128xf32>
    %716 = arith.addf %714, %715 : vector<8x128xf32>
    %717 = arith.negf %716 : vector<8x128xf32>
    %718 = math.exp %717 : vector<8x128xf32>
    %cst_201 = arith.constant 1.000000e+00 : f32
    %719 = vector.broadcast %cst_201 : f32 to vector<8x128xf32>
    %720 = arith.addf %719, %718 : vector<8x128xf32>
    %721 = arith.divf %719, %720 : vector<8x128xf32>
    %722 = vector.extract_strided_slice %705 {offsets = [0, 256], sizes = [8, 128], strides = [1, 1]} : vector<8x384xf32> to vector<8x128xf32>
    %723 = vector.extract_strided_slice %703 {offsets = [0, 256], sizes = [8, 128], strides = [1, 1]} : vector<8x384xf32> to vector<8x128xf32>
    %724 = vector.broadcast %594 : vector<1x128xf32> to vector<8x128xf32>
    %725 = arith.addf %723, %724 : vector<8x128xf32>
    %726 = arith.mulf %713, %725 : vector<8x128xf32>
    %727 = arith.addf %722, %726 : vector<8x128xf32>
    %728 = math.tanh %727 : vector<8x128xf32>
    %cst_202 = arith.constant 1.000000e+00 : f32
    %729 = vector.broadcast %cst_202 : f32 to vector<8x128xf32>
    %730 = arith.subf %729, %721 : vector<8x128xf32>
    %731 = arith.mulf %730, %728 : vector<8x128xf32>
    %732 = arith.mulf %721, %698 : vector<8x128xf32>
    %733 = arith.addf %731, %732 : vector<8x128xf32>
    %734 = arith.index_cast %702 : i32 to index
    %c0_203 = arith.constant 0 : index
    %735 = vector.load %arg23[%734, %c0_203] : memref<64x128xf32, #tpu.memory_space<vmem>>, vector<8x128xf32>
    tpu.vector_store %arg23[%734, %c0_203], %733 {strides = array<i32>} : memref<64x128xf32, #tpu.memory_space<vmem>>, vector<8x128xf32>,
    %c4_i32_204 = arith.constant 4 : i32
    %c8_i32_205 = arith.constant 8 : i32
    %736 = arith.muli %c4_i32_204, %c8_i32_205 : i32
    %737 = tpu.assume_multiple %736, 8 : i32
    %cst_206 = arith.constant dense<0.000000e+00> : vector<8x384xf32>
    %738 = tpu.matmul %733, %593, %cst_206 {dimension_numbers = #tpu.dot_dimension_numbers<[1], [0], [0], [1], [0, 0, 1, 1], [], []>} : vector<8x128xf32>, vector<128x384xf32>, vector<8x384xf32> -> vector<8x384xf32>
    %739 = arith.index_cast %737 : i32 to index
    %c0_207 = arith.constant 0 : index
    %740 = vector.load %arg25[%739, %c0_207] : memref<64x384xf32, #tpu.memory_space<vmem>>, vector<8x384xf32>
    %741 = vector.extract_strided_slice %740 {offsets = [0, 0], sizes = [8, 128], strides = [1, 1]} : vector<8x384xf32> to vector<8x128xf32>
    %742 = vector.extract_strided_slice %738 {offsets = [0, 0], sizes = [8, 128], strides = [1, 1]} : vector<8x384xf32> to vector<8x128xf32>
    %743 = arith.addf %741, %742 : vector<8x128xf32>
    %744 = arith.negf %743 : vector<8x128xf32>
    %745 = math.exp %744 : vector<8x128xf32>
    %cst_208 = arith.constant 1.000000e+00 : f32
    %746 = vector.broadcast %cst_208 : f32 to vector<8x128xf32>
    %747 = arith.addf %746, %745 : vector<8x128xf32>
    %748 = arith.divf %746, %747 : vector<8x128xf32>
    %749 = vector.extract_strided_slice %740 {offsets = [0, 128], sizes = [8, 128], strides = [1, 1]} : vector<8x384xf32> to vector<8x128xf32>
    %750 = vector.extract_strided_slice %738 {offsets = [0, 128], sizes = [8, 128], strides = [1, 1]} : vector<8x384xf32> to vector<8x128xf32>
    %751 = arith.addf %749, %750 : vector<8x128xf32>
    %752 = arith.negf %751 : vector<8x128xf32>
    %753 = math.exp %752 : vector<8x128xf32>
    %cst_209 = arith.constant 1.000000e+00 : f32
    %754 = vector.broadcast %cst_209 : f32 to vector<8x128xf32>
    %755 = arith.addf %754, %753 : vector<8x128xf32>
    %756 = arith.divf %754, %755 : vector<8x128xf32>
    %757 = vector.extract_strided_slice %740 {offsets = [0, 256], sizes = [8, 128], strides = [1, 1]} : vector<8x384xf32> to vector<8x128xf32>
    %758 = vector.extract_strided_slice %738 {offsets = [0, 256], sizes = [8, 128], strides = [1, 1]} : vector<8x384xf32> to vector<8x128xf32>
    %759 = vector.broadcast %594 : vector<1x128xf32> to vector<8x128xf32>
    %760 = arith.addf %758, %759 : vector<8x128xf32>
    %761 = arith.mulf %748, %760 : vector<8x128xf32>
    %762 = arith.addf %757, %761 : vector<8x128xf32>
    %763 = math.tanh %762 : vector<8x128xf32>
    %cst_210 = arith.constant 1.000000e+00 : f32
    %764 = vector.broadcast %cst_210 : f32 to vector<8x128xf32>
    %765 = arith.subf %764, %756 : vector<8x128xf32>
    %766 = arith.mulf %765, %763 : vector<8x128xf32>
    %767 = arith.mulf %756, %733 : vector<8x128xf32>
    %768 = arith.addf %766, %767 : vector<8x128xf32>
    %769 = arith.index_cast %737 : i32 to index
    %c0_211 = arith.constant 0 : index
    %770 = vector.load %arg23[%769, %c0_211] : memref<64x128xf32, #tpu.memory_space<vmem>>, vector<8x128xf32>
    tpu.vector_store %arg23[%769, %c0_211], %768 {strides = array<i32>} : memref<64x128xf32, #tpu.memory_space<vmem>>, vector<8x128xf32>,
    %c5_i32_212 = arith.constant 5 : i32
    %c8_i32_213 = arith.constant 8 : i32
    %771 = arith.muli %c5_i32_212, %c8_i32_213 : i32
    %772 = tpu.assume_multiple %771, 8 : i32
    %cst_214 = arith.constant dense<0.000000e+00> : vector<8x384xf32>
    %773 = tpu.matmul %768, %593, %cst_214 {dimension_numbers = #tpu.dot_dimension_numbers<[1], [0], [0], [1], [0, 0, 1, 1], [], []>} : vector<8x128xf32>, vector<128x384xf32>, vector<8x384xf32> -> vector<8x384xf32>
    %774 = arith.index_cast %772 : i32 to index
    %c0_215 = arith.constant 0 : index
    %775 = vector.load %arg25[%774, %c0_215] : memref<64x384xf32, #tpu.memory_space<vmem>>, vector<8x384xf32>
    %776 = vector.extract_strided_slice %775 {offsets = [0, 0], sizes = [8, 128], strides = [1, 1]} : vector<8x384xf32> to vector<8x128xf32>
    %777 = vector.extract_strided_slice %773 {offsets = [0, 0], sizes = [8, 128], strides = [1, 1]} : vector<8x384xf32> to vector<8x128xf32>
    %778 = arith.addf %776, %777 : vector<8x128xf32>
    %779 = arith.negf %778 : vector<8x128xf32>
    %780 = math.exp %779 : vector<8x128xf32>
    %cst_216 = arith.constant 1.000000e+00 : f32
    %781 = vector.broadcast %cst_216 : f32 to vector<8x128xf32>
    %782 = arith.addf %781, %780 : vector<8x128xf32>
    %783 = arith.divf %781, %782 : vector<8x128xf32>
    %784 = vector.extract_strided_slice %775 {offsets = [0, 128], sizes = [8, 128], strides = [1, 1]} : vector<8x384xf32> to vector<8x128xf32>
    %785 = vector.extract_strided_slice %773 {offsets = [0, 128], sizes = [8, 128], strides = [1, 1]} : vector<8x384xf32> to vector<8x128xf32>
    %786 = arith.addf %784, %785 : vector<8x128xf32>
    %787 = arith.negf %786 : vector<8x128xf32>
    %788 = math.exp %787 : vector<8x128xf32>
    %cst_217 = arith.constant 1.000000e+00 : f32
    %789 = vector.broadcast %cst_217 : f32 to vector<8x128xf32>
    %790 = arith.addf %789, %788 : vector<8x128xf32>
    %791 = arith.divf %789, %790 : vector<8x128xf32>
    %792 = vector.extract_strided_slice %775 {offsets = [0, 256], sizes = [8, 128], strides = [1, 1]} : vector<8x384xf32> to vector<8x128xf32>
    %793 = vector.extract_strided_slice %773 {offsets = [0, 256], sizes = [8, 128], strides = [1, 1]} : vector<8x384xf32> to vector<8x128xf32>
    %794 = vector.broadcast %594 : vector<1x128xf32> to vector<8x128xf32>
    %795 = arith.addf %793, %794 : vector<8x128xf32>
    %796 = arith.mulf %783, %795 : vector<8x128xf32>
    %797 = arith.addf %792, %796 : vector<8x128xf32>
    %798 = math.tanh %797 : vector<8x128xf32>
    %cst_218 = arith.constant 1.000000e+00 : f32
    %799 = vector.broadcast %cst_218 : f32 to vector<8x128xf32>
    %800 = arith.subf %799, %791 : vector<8x128xf32>
    %801 = arith.mulf %800, %798 : vector<8x128xf32>
    %802 = arith.mulf %791, %768 : vector<8x128xf32>
    %803 = arith.addf %801, %802 : vector<8x128xf32>
    %804 = arith.index_cast %772 : i32 to index
    %c0_219 = arith.constant 0 : index
    %805 = vector.load %arg23[%804, %c0_219] : memref<64x128xf32, #tpu.memory_space<vmem>>, vector<8x128xf32>
    tpu.vector_store %arg23[%804, %c0_219], %803 {strides = array<i32>} : memref<64x128xf32, #tpu.memory_space<vmem>>, vector<8x128xf32>,
    %c6_i32_220 = arith.constant 6 : i32
    %c8_i32_221 = arith.constant 8 : i32
    %806 = arith.muli %c6_i32_220, %c8_i32_221 : i32
    %807 = tpu.assume_multiple %806, 8 : i32
    %cst_222 = arith.constant dense<0.000000e+00> : vector<8x384xf32>
    %808 = tpu.matmul %803, %593, %cst_222 {dimension_numbers = #tpu.dot_dimension_numbers<[1], [0], [0], [1], [0, 0, 1, 1], [], []>} : vector<8x128xf32>, vector<128x384xf32>, vector<8x384xf32> -> vector<8x384xf32>
    %809 = arith.index_cast %807 : i32 to index
    %c0_223 = arith.constant 0 : index
    %810 = vector.load %arg25[%809, %c0_223] : memref<64x384xf32, #tpu.memory_space<vmem>>, vector<8x384xf32>
    %811 = vector.extract_strided_slice %810 {offsets = [0, 0], sizes = [8, 128], strides = [1, 1]} : vector<8x384xf32> to vector<8x128xf32>
    %812 = vector.extract_strided_slice %808 {offsets = [0, 0], sizes = [8, 128], strides = [1, 1]} : vector<8x384xf32> to vector<8x128xf32>
    %813 = arith.addf %811, %812 : vector<8x128xf32>
    %814 = arith.negf %813 : vector<8x128xf32>
    %815 = math.exp %814 : vector<8x128xf32>
    %cst_224 = arith.constant 1.000000e+00 : f32
    %816 = vector.broadcast %cst_224 : f32 to vector<8x128xf32>
    %817 = arith.addf %816, %815 : vector<8x128xf32>
    %818 = arith.divf %816, %817 : vector<8x128xf32>
    %819 = vector.extract_strided_slice %810 {offsets = [0, 128], sizes = [8, 128], strides = [1, 1]} : vector<8x384xf32> to vector<8x128xf32>
    %820 = vector.extract_strided_slice %808 {offsets = [0, 128], sizes = [8, 128], strides = [1, 1]} : vector<8x384xf32> to vector<8x128xf32>
    %821 = arith.addf %819, %820 : vector<8x128xf32>
    %822 = arith.negf %821 : vector<8x128xf32>
    %823 = math.exp %822 : vector<8x128xf32>
    %cst_225 = arith.constant 1.000000e+00 : f32
    %824 = vector.broadcast %cst_225 : f32 to vector<8x128xf32>
    %825 = arith.addf %824, %823 : vector<8x128xf32>
    %826 = arith.divf %824, %825 : vector<8x128xf32>
    %827 = vector.extract_strided_slice %810 {offsets = [0, 256], sizes = [8, 128], strides = [1, 1]} : vector<8x384xf32> to vector<8x128xf32>
    %828 = vector.extract_strided_slice %808 {offsets = [0, 256], sizes = [8, 128], strides = [1, 1]} : vector<8x384xf32> to vector<8x128xf32>
    %829 = vector.broadcast %594 : vector<1x128xf32> to vector<8x128xf32>
    %830 = arith.addf %828, %829 : vector<8x128xf32>
    %831 = arith.mulf %818, %830 : vector<8x128xf32>
    %832 = arith.addf %827, %831 : vector<8x128xf32>
    %833 = math.tanh %832 : vector<8x128xf32>
    %cst_226 = arith.constant 1.000000e+00 : f32
    %834 = vector.broadcast %cst_226 : f32 to vector<8x128xf32>
    %835 = arith.subf %834, %826 : vector<8x128xf32>
    %836 = arith.mulf %835, %833 : vector<8x128xf32>
    %837 = arith.mulf %826, %803 : vector<8x128xf32>
    %838 = arith.addf %836, %837 : vector<8x128xf32>
    %839 = arith.index_cast %807 : i32 to index
    %c0_227 = arith.constant 0 : index
    %840 = vector.load %arg23[%839, %c0_227] : memref<64x128xf32, #tpu.memory_space<vmem>>, vector<8x128xf32>
    tpu.vector_store %arg23[%839, %c0_227], %838 {strides = array<i32>} : memref<64x128xf32, #tpu.memory_space<vmem>>, vector<8x128xf32>,
    %c7_i32_228 = arith.constant 7 : i32
    %c8_i32_229 = arith.constant 8 : i32
    %841 = arith.muli %c7_i32_228, %c8_i32_229 : i32
    %842 = tpu.assume_multiple %841, 8 : i32
    %cst_230 = arith.constant dense<0.000000e+00> : vector<8x384xf32>
    %843 = tpu.matmul %838, %593, %cst_230 {dimension_numbers = #tpu.dot_dimension_numbers<[1], [0], [0], [1], [0, 0, 1, 1], [], []>} : vector<8x128xf32>, vector<128x384xf32>, vector<8x384xf32> -> vector<8x384xf32>
    %844 = arith.index_cast %842 : i32 to index
    %c0_231 = arith.constant 0 : index
    %845 = vector.load %arg25[%844, %c0_231] : memref<64x384xf32, #tpu.memory_space<vmem>>, vector<8x384xf32>
    %846 = vector.extract_strided_slice %845 {offsets = [0, 0], sizes = [8, 128], strides = [1, 1]} : vector<8x384xf32> to vector<8x128xf32>
    %847 = vector.extract_strided_slice %843 {offsets = [0, 0], sizes = [8, 128], strides = [1, 1]} : vector<8x384xf32> to vector<8x128xf32>
    %848 = arith.addf %846, %847 : vector<8x128xf32>
    %849 = arith.negf %848 : vector<8x128xf32>
    %850 = math.exp %849 : vector<8x128xf32>
    %cst_232 = arith.constant 1.000000e+00 : f32
    %851 = vector.broadcast %cst_232 : f32 to vector<8x128xf32>
    %852 = arith.addf %851, %850 : vector<8x128xf32>
    %853 = arith.divf %851, %852 : vector<8x128xf32>
    %854 = vector.extract_strided_slice %845 {offsets = [0, 128], sizes = [8, 128], strides = [1, 1]} : vector<8x384xf32> to vector<8x128xf32>
    %855 = vector.extract_strided_slice %843 {offsets = [0, 128], sizes = [8, 128], strides = [1, 1]} : vector<8x384xf32> to vector<8x128xf32>
    %856 = arith.addf %854, %855 : vector<8x128xf32>
    %857 = arith.negf %856 : vector<8x128xf32>
    %858 = math.exp %857 : vector<8x128xf32>
    %cst_233 = arith.constant 1.000000e+00 : f32
    %859 = vector.broadcast %cst_233 : f32 to vector<8x128xf32>
    %860 = arith.addf %859, %858 : vector<8x128xf32>
    %861 = arith.divf %859, %860 : vector<8x128xf32>
    %862 = vector.extract_strided_slice %845 {offsets = [0, 256], sizes = [8, 128], strides = [1, 1]} : vector<8x384xf32> to vector<8x128xf32>
    %863 = vector.extract_strided_slice %843 {offsets = [0, 256], sizes = [8, 128], strides = [1, 1]} : vector<8x384xf32> to vector<8x128xf32>
    %864 = vector.broadcast %594 : vector<1x128xf32> to vector<8x128xf32>
    %865 = arith.addf %863, %864 : vector<8x128xf32>
    %866 = arith.mulf %853, %865 : vector<8x128xf32>
    %867 = arith.addf %862, %866 : vector<8x128xf32>
    %868 = math.tanh %867 : vector<8x128xf32>
    %cst_234 = arith.constant 1.000000e+00 : f32
    %869 = vector.broadcast %cst_234 : f32 to vector<8x128xf32>
    %870 = arith.subf %869, %861 : vector<8x128xf32>
    %871 = arith.mulf %870, %868 : vector<8x128xf32>
    %872 = arith.mulf %861, %838 : vector<8x128xf32>
    %873 = arith.addf %871, %872 : vector<8x128xf32>
    %874 = arith.index_cast %842 : i32 to index
    %c0_235 = arith.constant 0 : index
    %875 = vector.load %arg23[%874, %c0_235] : memref<64x128xf32, #tpu.memory_space<vmem>>, vector<8x128xf32>
    tpu.vector_store %arg23[%874, %c0_235], %873 {strides = array<i32>} : memref<64x128xf32, #tpu.memory_space<vmem>>, vector<8x128xf32>,
    %c8_i32_236 = arith.constant 8 : i32
    %c0_237 = arith.constant 0 : index
    %c0_238 = arith.constant 0 : index
    %876 = vector.load %arg28[%c0_237, %c0_238] : memref<8x128xf32, #tpu.memory_space<vmem>>, vector<8x128xf32>
    tpu.vector_store %arg28[%c0_237, %c0_238], %873 {strides = array<i32>} : memref<8x128xf32, #tpu.memory_space<vmem>>, vector<8x128xf32>,
    %c0_239 = arith.constant 0 : index
    %c0_240 = arith.constant 0 : index
    %877 = vector.load %arg23[%c0_239, %c0_240] : memref<64x128xf32, #tpu.memory_space<vmem>>, vector<64x128xf32>
    %c0_241 = arith.constant 0 : index
    %c0_242 = arith.constant 0 : index
    %878 = vector.load %arg15[%c0_241, %c0_242] : memref<128x384xf32, #tpu.memory_space<vmem>>, vector<128x384xf32>
    %cst_243 = arith.constant dense<0.000000e+00> : vector<64x384xf32>
    %879 = tpu.matmul %877, %878, %cst_243 {dimension_numbers = #tpu.dot_dimension_numbers<[1], [0], [0], [1], [0, 0, 1, 1], [], []>} : vector<64x128xf32>, vector<128x384xf32>, vector<64x384xf32> -> vector<64x384xf32>
    %c0_244 = arith.constant 0 : index
    %c0_245 = arith.constant 0 : index
    %880 = vector.load %arg17[%c0_244, %c0_245] : memref<1x384xf32, #tpu.memory_space<vmem>>, vector<1x384xf32>
    %881 = vector.broadcast %880 : vector<1x384xf32> to vector<64x384xf32>
    %882 = arith.addf %879, %881 : vector<64x384xf32>
    %c0_246 = arith.constant 0 : index
    %c0_247 = arith.constant 0 : index
    %883 = vector.load %arg25[%c0_246, %c0_247] : memref<64x384xf32, #tpu.memory_space<vmem>>, vector<64x384xf32>
    tpu.vector_store %arg25[%c0_246, %c0_247], %882 {strides = array<i32>} : memref<64x384xf32, #tpu.memory_space<vmem>>, vector<64x384xf32>,
    %c0_248 = arith.constant 0 : index
    %c0_249 = arith.constant 0 : index
    %884 = vector.load %arg16[%c0_248, %c0_249] : memref<128x384xf32, #tpu.memory_space<vmem>>, vector<128x384xf32>
    %c0_250 = arith.constant 0 : index
    %c0_251 = arith.constant 0 : index
    %885 = vector.load %arg18[%c0_250, %c0_251] : memref<1x128xf32, #tpu.memory_space<vmem>>, vector<1x128xf32>
    %c0_252 = arith.constant 0 : index
    %c0_253 = arith.constant 0 : index
    %886 = vector.load %arg29[%c0_252, %c0_253] : memref<8x128xf32, #tpu.memory_space<vmem>>, vector<8x128xf32>
    %c0_i32_254 = arith.constant 0 : i32
    %c8_i32_255 = arith.constant 8 : i32
    %887 = arith.muli %c0_i32_254, %c8_i32_255 : i32
    %888 = tpu.assume_multiple %887, 8 : i32
    %cst_256 = arith.constant dense<0.000000e+00> : vector<8x384xf32>
    %889 = tpu.matmul %886, %884, %cst_256 {dimension_numbers = #tpu.dot_dimension_numbers<[1], [0], [0], [1], [0, 0, 1, 1], [], []>} : vector<8x128xf32>, vector<128x384xf32>, vector<8x384xf32> -> vector<8x384xf32>
    %890 = arith.index_cast %888 : i32 to index
    %c0_257 = arith.constant 0 : index
    %891 = vector.load %arg25[%890, %c0_257] : memref<64x384xf32, #tpu.memory_space<vmem>>, vector<8x384xf32>
    %892 = vector.extract_strided_slice %891 {offsets = [0, 0], sizes = [8, 128], strides = [1, 1]} : vector<8x384xf32> to vector<8x128xf32>
    %893 = vector.extract_strided_slice %889 {offsets = [0, 0], sizes = [8, 128], strides = [1, 1]} : vector<8x384xf32> to vector<8x128xf32>
    %894 = arith.addf %892, %893 : vector<8x128xf32>
    %895 = arith.negf %894 : vector<8x128xf32>
    %896 = math.exp %895 : vector<8x128xf32>
    %cst_258 = arith.constant 1.000000e+00 : f32
    %897 = vector.broadcast %cst_258 : f32 to vector<8x128xf32>
    %898 = arith.addf %897, %896 : vector<8x128xf32>
    %899 = arith.divf %897, %898 : vector<8x128xf32>
    %900 = vector.extract_strided_slice %891 {offsets = [0, 128], sizes = [8, 128], strides = [1, 1]} : vector<8x384xf32> to vector<8x128xf32>
    %901 = vector.extract_strided_slice %889 {offsets = [0, 128], sizes = [8, 128], strides = [1, 1]} : vector<8x384xf32> to vector<8x128xf32>
    %902 = arith.addf %900, %901 : vector<8x128xf32>
    %903 = arith.negf %902 : vector<8x128xf32>
    %904 = math.exp %903 : vector<8x128xf32>
    %cst_259 = arith.constant 1.000000e+00 : f32
    %905 = vector.broadcast %cst_259 : f32 to vector<8x128xf32>
    %906 = arith.addf %905, %904 : vector<8x128xf32>
    %907 = arith.divf %905, %906 : vector<8x128xf32>
    %908 = vector.extract_strided_slice %891 {offsets = [0, 256], sizes = [8, 128], strides = [1, 1]} : vector<8x384xf32> to vector<8x128xf32>
    %909 = vector.extract_strided_slice %889 {offsets = [0, 256], sizes = [8, 128], strides = [1, 1]} : vector<8x384xf32> to vector<8x128xf32>
    %910 = vector.broadcast %885 : vector<1x128xf32> to vector<8x128xf32>
    %911 = arith.addf %909, %910 : vector<8x128xf32>
    %912 = arith.mulf %899, %911 : vector<8x128xf32>
    %913 = arith.addf %908, %912 : vector<8x128xf32>
    %914 = math.tanh %913 : vector<8x128xf32>
    %cst_260 = arith.constant 1.000000e+00 : f32
    %915 = vector.broadcast %cst_260 : f32 to vector<8x128xf32>
    %916 = arith.subf %915, %907 : vector<8x128xf32>
    %917 = arith.mulf %916, %914 : vector<8x128xf32>
    %918 = arith.mulf %907, %886 : vector<8x128xf32>
    %919 = arith.addf %917, %918 : vector<8x128xf32>
    %920 = arith.index_cast %888 : i32 to index
    %c0_261 = arith.constant 0 : index
    %921 = vector.load %arg24[%920, %c0_261] : memref<64x128xf32, #tpu.memory_space<vmem>>, vector<8x128xf32>
    tpu.vector_store %arg24[%920, %c0_261], %919 {strides = array<i32>} : memref<64x128xf32, #tpu.memory_space<vmem>>, vector<8x128xf32>,
    %c1_i32_262 = arith.constant 1 : i32
    %c8_i32_263 = arith.constant 8 : i32
    %922 = arith.muli %c1_i32_262, %c8_i32_263 : i32
    %923 = tpu.assume_multiple %922, 8 : i32
    %cst_264 = arith.constant dense<0.000000e+00> : vector<8x384xf32>
    %924 = tpu.matmul %919, %884, %cst_264 {dimension_numbers = #tpu.dot_dimension_numbers<[1], [0], [0], [1], [0, 0, 1, 1], [], []>} : vector<8x128xf32>, vector<128x384xf32>, vector<8x384xf32> -> vector<8x384xf32>
    %925 = arith.index_cast %923 : i32 to index
    %c0_265 = arith.constant 0 : index
    %926 = vector.load %arg25[%925, %c0_265] : memref<64x384xf32, #tpu.memory_space<vmem>>, vector<8x384xf32>
    %927 = vector.extract_strided_slice %926 {offsets = [0, 0], sizes = [8, 128], strides = [1, 1]} : vector<8x384xf32> to vector<8x128xf32>
    %928 = vector.extract_strided_slice %924 {offsets = [0, 0], sizes = [8, 128], strides = [1, 1]} : vector<8x384xf32> to vector<8x128xf32>
    %929 = arith.addf %927, %928 : vector<8x128xf32>
    %930 = arith.negf %929 : vector<8x128xf32>
    %931 = math.exp %930 : vector<8x128xf32>
    %cst_266 = arith.constant 1.000000e+00 : f32
    %932 = vector.broadcast %cst_266 : f32 to vector<8x128xf32>
    %933 = arith.addf %932, %931 : vector<8x128xf32>
    %934 = arith.divf %932, %933 : vector<8x128xf32>
    %935 = vector.extract_strided_slice %926 {offsets = [0, 128], sizes = [8, 128], strides = [1, 1]} : vector<8x384xf32> to vector<8x128xf32>
    %936 = vector.extract_strided_slice %924 {offsets = [0, 128], sizes = [8, 128], strides = [1, 1]} : vector<8x384xf32> to vector<8x128xf32>
    %937 = arith.addf %935, %936 : vector<8x128xf32>
    %938 = arith.negf %937 : vector<8x128xf32>
    %939 = math.exp %938 : vector<8x128xf32>
    %cst_267 = arith.constant 1.000000e+00 : f32
    %940 = vector.broadcast %cst_267 : f32 to vector<8x128xf32>
    %941 = arith.addf %940, %939 : vector<8x128xf32>
    %942 = arith.divf %940, %941 : vector<8x128xf32>
    %943 = vector.extract_strided_slice %926 {offsets = [0, 256], sizes = [8, 128], strides = [1, 1]} : vector<8x384xf32> to vector<8x128xf32>
    %944 = vector.extract_strided_slice %924 {offsets = [0, 256], sizes = [8, 128], strides = [1, 1]} : vector<8x384xf32> to vector<8x128xf32>
    %945 = vector.broadcast %885 : vector<1x128xf32> to vector<8x128xf32>
    %946 = arith.addf %944, %945 : vector<8x128xf32>
    %947 = arith.mulf %934, %946 : vector<8x128xf32>
    %948 = arith.addf %943, %947 : vector<8x128xf32>
    %949 = math.tanh %948 : vector<8x128xf32>
    %cst_268 = arith.constant 1.000000e+00 : f32
    %950 = vector.broadcast %cst_268 : f32 to vector<8x128xf32>
    %951 = arith.subf %950, %942 : vector<8x128xf32>
    %952 = arith.mulf %951, %949 : vector<8x128xf32>
    %953 = arith.mulf %942, %919 : vector<8x128xf32>
    %954 = arith.addf %952, %953 : vector<8x128xf32>
    %955 = arith.index_cast %923 : i32 to index
    %c0_269 = arith.constant 0 : index
    %956 = vector.load %arg24[%955, %c0_269] : memref<64x128xf32, #tpu.memory_space<vmem>>, vector<8x128xf32>
    tpu.vector_store %arg24[%955, %c0_269], %954 {strides = array<i32>} : memref<64x128xf32, #tpu.memory_space<vmem>>, vector<8x128xf32>,
    %c2_i32_270 = arith.constant 2 : i32
    %c8_i32_271 = arith.constant 8 : i32
    %957 = arith.muli %c2_i32_270, %c8_i32_271 : i32
    %958 = tpu.assume_multiple %957, 8 : i32
    %cst_272 = arith.constant dense<0.000000e+00> : vector<8x384xf32>
    %959 = tpu.matmul %954, %884, %cst_272 {dimension_numbers = #tpu.dot_dimension_numbers<[1], [0], [0], [1], [0, 0, 1, 1], [], []>} : vector<8x128xf32>, vector<128x384xf32>, vector<8x384xf32> -> vector<8x384xf32>
    %960 = arith.index_cast %958 : i32 to index
    %c0_273 = arith.constant 0 : index
    %961 = vector.load %arg25[%960, %c0_273] : memref<64x384xf32, #tpu.memory_space<vmem>>, vector<8x384xf32>
    %962 = vector.extract_strided_slice %961 {offsets = [0, 0], sizes = [8, 128], strides = [1, 1]} : vector<8x384xf32> to vector<8x128xf32>
    %963 = vector.extract_strided_slice %959 {offsets = [0, 0], sizes = [8, 128], strides = [1, 1]} : vector<8x384xf32> to vector<8x128xf32>
    %964 = arith.addf %962, %963 : vector<8x128xf32>
    %965 = arith.negf %964 : vector<8x128xf32>
    %966 = math.exp %965 : vector<8x128xf32>
    %cst_274 = arith.constant 1.000000e+00 : f32
    %967 = vector.broadcast %cst_274 : f32 to vector<8x128xf32>
    %968 = arith.addf %967, %966 : vector<8x128xf32>
    %969 = arith.divf %967, %968 : vector<8x128xf32>
    %970 = vector.extract_strided_slice %961 {offsets = [0, 128], sizes = [8, 128], strides = [1, 1]} : vector<8x384xf32> to vector<8x128xf32>
    %971 = vector.extract_strided_slice %959 {offsets = [0, 128], sizes = [8, 128], strides = [1, 1]} : vector<8x384xf32> to vector<8x128xf32>
    %972 = arith.addf %970, %971 : vector<8x128xf32>
    %973 = arith.negf %972 : vector<8x128xf32>
    %974 = math.exp %973 : vector<8x128xf32>
    %cst_275 = arith.constant 1.000000e+00 : f32
    %975 = vector.broadcast %cst_275 : f32 to vector<8x128xf32>
    %976 = arith.addf %975, %974 : vector<8x128xf32>
    %977 = arith.divf %975, %976 : vector<8x128xf32>
    %978 = vector.extract_strided_slice %961 {offsets = [0, 256], sizes = [8, 128], strides = [1, 1]} : vector<8x384xf32> to vector<8x128xf32>
    %979 = vector.extract_strided_slice %959 {offsets = [0, 256], sizes = [8, 128], strides = [1, 1]} : vector<8x384xf32> to vector<8x128xf32>
    %980 = vector.broadcast %885 : vector<1x128xf32> to vector<8x128xf32>
    %981 = arith.addf %979, %980 : vector<8x128xf32>
    %982 = arith.mulf %969, %981 : vector<8x128xf32>
    %983 = arith.addf %978, %982 : vector<8x128xf32>
    %984 = math.tanh %983 : vector<8x128xf32>
    %cst_276 = arith.constant 1.000000e+00 : f32
    %985 = vector.broadcast %cst_276 : f32 to vector<8x128xf32>
    %986 = arith.subf %985, %977 : vector<8x128xf32>
    %987 = arith.mulf %986, %984 : vector<8x128xf32>
    %988 = arith.mulf %977, %954 : vector<8x128xf32>
    %989 = arith.addf %987, %988 : vector<8x128xf32>
    %990 = arith.index_cast %958 : i32 to index
    %c0_277 = arith.constant 0 : index
    %991 = vector.load %arg24[%990, %c0_277] : memref<64x128xf32, #tpu.memory_space<vmem>>, vector<8x128xf32>
    tpu.vector_store %arg24[%990, %c0_277], %989 {strides = array<i32>} : memref<64x128xf32, #tpu.memory_space<vmem>>, vector<8x128xf32>,
    %c3_i32_278 = arith.constant 3 : i32
    %c8_i32_279 = arith.constant 8 : i32
    %992 = arith.muli %c3_i32_278, %c8_i32_279 : i32
    %993 = tpu.assume_multiple %992, 8 : i32
    %cst_280 = arith.constant dense<0.000000e+00> : vector<8x384xf32>
    %994 = tpu.matmul %989, %884, %cst_280 {dimension_numbers = #tpu.dot_dimension_numbers<[1], [0], [0], [1], [0, 0, 1, 1], [], []>} : vector<8x128xf32>, vector<128x384xf32>, vector<8x384xf32> -> vector<8x384xf32>
    %995 = arith.index_cast %993 : i32 to index
    %c0_281 = arith.constant 0 : index
    %996 = vector.load %arg25[%995, %c0_281] : memref<64x384xf32, #tpu.memory_space<vmem>>, vector<8x384xf32>
    %997 = vector.extract_strided_slice %996 {offsets = [0, 0], sizes = [8, 128], strides = [1, 1]} : vector<8x384xf32> to vector<8x128xf32>
    %998 = vector.extract_strided_slice %994 {offsets = [0, 0], sizes = [8, 128], strides = [1, 1]} : vector<8x384xf32> to vector<8x128xf32>
    %999 = arith.addf %997, %998 : vector<8x128xf32>
    %1000 = arith.negf %999 : vector<8x128xf32>
    %1001 = math.exp %1000 : vector<8x128xf32>
    %cst_282 = arith.constant 1.000000e+00 : f32
    %1002 = vector.broadcast %cst_282 : f32 to vector<8x128xf32>
    %1003 = arith.addf %1002, %1001 : vector<8x128xf32>
    %1004 = arith.divf %1002, %1003 : vector<8x128xf32>
    %1005 = vector.extract_strided_slice %996 {offsets = [0, 128], sizes = [8, 128], strides = [1, 1]} : vector<8x384xf32> to vector<8x128xf32>
    %1006 = vector.extract_strided_slice %994 {offsets = [0, 128], sizes = [8, 128], strides = [1, 1]} : vector<8x384xf32> to vector<8x128xf32>
    %1007 = arith.addf %1005, %1006 : vector<8x128xf32>
    %1008 = arith.negf %1007 : vector<8x128xf32>
    %1009 = math.exp %1008 : vector<8x128xf32>
    %cst_283 = arith.constant 1.000000e+00 : f32
    %1010 = vector.broadcast %cst_283 : f32 to vector<8x128xf32>
    %1011 = arith.addf %1010, %1009 : vector<8x128xf32>
    %1012 = arith.divf %1010, %1011 : vector<8x128xf32>
    %1013 = vector.extract_strided_slice %996 {offsets = [0, 256], sizes = [8, 128], strides = [1, 1]} : vector<8x384xf32> to vector<8x128xf32>
    %1014 = vector.extract_strided_slice %994 {offsets = [0, 256], sizes = [8, 128], strides = [1, 1]} : vector<8x384xf32> to vector<8x128xf32>
    %1015 = vector.broadcast %885 : vector<1x128xf32> to vector<8x128xf32>
    %1016 = arith.addf %1014, %1015 : vector<8x128xf32>
    %1017 = arith.mulf %1004, %1016 : vector<8x128xf32>
    %1018 = arith.addf %1013, %1017 : vector<8x128xf32>
    %1019 = math.tanh %1018 : vector<8x128xf32>
    %cst_284 = arith.constant 1.000000e+00 : f32
    %1020 = vector.broadcast %cst_284 : f32 to vector<8x128xf32>
    %1021 = arith.subf %1020, %1012 : vector<8x128xf32>
    %1022 = arith.mulf %1021, %1019 : vector<8x128xf32>
    %1023 = arith.mulf %1012, %989 : vector<8x128xf32>
    %1024 = arith.addf %1022, %1023 : vector<8x128xf32>
    %1025 = arith.index_cast %993 : i32 to index
    %c0_285 = arith.constant 0 : index
    %1026 = vector.load %arg24[%1025, %c0_285] : memref<64x128xf32, #tpu.memory_space<vmem>>, vector<8x128xf32>
    tpu.vector_store %arg24[%1025, %c0_285], %1024 {strides = array<i32>} : memref<64x128xf32, #tpu.memory_space<vmem>>, vector<8x128xf32>,
    %c4_i32_286 = arith.constant 4 : i32
    %c8_i32_287 = arith.constant 8 : i32
    %1027 = arith.muli %c4_i32_286, %c8_i32_287 : i32
    %1028 = tpu.assume_multiple %1027, 8 : i32
    %cst_288 = arith.constant dense<0.000000e+00> : vector<8x384xf32>
    %1029 = tpu.matmul %1024, %884, %cst_288 {dimension_numbers = #tpu.dot_dimension_numbers<[1], [0], [0], [1], [0, 0, 1, 1], [], []>} : vector<8x128xf32>, vector<128x384xf32>, vector<8x384xf32> -> vector<8x384xf32>
    %1030 = arith.index_cast %1028 : i32 to index
    %c0_289 = arith.constant 0 : index
    %1031 = vector.load %arg25[%1030, %c0_289] : memref<64x384xf32, #tpu.memory_space<vmem>>, vector<8x384xf32>
    %1032 = vector.extract_strided_slice %1031 {offsets = [0, 0], sizes = [8, 128], strides = [1, 1]} : vector<8x384xf32> to vector<8x128xf32>
    %1033 = vector.extract_strided_slice %1029 {offsets = [0, 0], sizes = [8, 128], strides = [1, 1]} : vector<8x384xf32> to vector<8x128xf32>
    %1034 = arith.addf %1032, %1033 : vector<8x128xf32>
    %1035 = arith.negf %1034 : vector<8x128xf32>
    %1036 = math.exp %1035 : vector<8x128xf32>
    %cst_290 = arith.constant 1.000000e+00 : f32
    %1037 = vector.broadcast %cst_290 : f32 to vector<8x128xf32>
    %1038 = arith.addf %1037, %1036 : vector<8x128xf32>
    %1039 = arith.divf %1037, %1038 : vector<8x128xf32>
    %1040 = vector.extract_strided_slice %1031 {offsets = [0, 128], sizes = [8, 128], strides = [1, 1]} : vector<8x384xf32> to vector<8x128xf32>
    %1041 = vector.extract_strided_slice %1029 {offsets = [0, 128], sizes = [8, 128], strides = [1, 1]} : vector<8x384xf32> to vector<8x128xf32>
    %1042 = arith.addf %1040, %1041 : vector<8x128xf32>
    %1043 = arith.negf %1042 : vector<8x128xf32>
    %1044 = math.exp %1043 : vector<8x128xf32>
    %cst_291 = arith.constant 1.000000e+00 : f32
    %1045 = vector.broadcast %cst_291 : f32 to vector<8x128xf32>
    %1046 = arith.addf %1045, %1044 : vector<8x128xf32>
    %1047 = arith.divf %1045, %1046 : vector<8x128xf32>
    %1048 = vector.extract_strided_slice %1031 {offsets = [0, 256], sizes = [8, 128], strides = [1, 1]} : vector<8x384xf32> to vector<8x128xf32>
    %1049 = vector.extract_strided_slice %1029 {offsets = [0, 256], sizes = [8, 128], strides = [1, 1]} : vector<8x384xf32> to vector<8x128xf32>
    %1050 = vector.broadcast %885 : vector<1x128xf32> to vector<8x128xf32>
    %1051 = arith.addf %1049, %1050 : vector<8x128xf32>
    %1052 = arith.mulf %1039, %1051 : vector<8x128xf32>
    %1053 = arith.addf %1048, %1052 : vector<8x128xf32>
    %1054 = math.tanh %1053 : vector<8x128xf32>
    %cst_292 = arith.constant 1.000000e+00 : f32
    %1055 = vector.broadcast %cst_292 : f32 to vector<8x128xf32>
    %1056 = arith.subf %1055, %1047 : vector<8x128xf32>
    %1057 = arith.mulf %1056, %1054 : vector<8x128xf32>
    %1058 = arith.mulf %1047, %1024 : vector<8x128xf32>
    %1059 = arith.addf %1057, %1058 : vector<8x128xf32>
    %1060 = arith.index_cast %1028 : i32 to index
    %c0_293 = arith.constant 0 : index
    %1061 = vector.load %arg24[%1060, %c0_293] : memref<64x128xf32, #tpu.memory_space<vmem>>, vector<8x128xf32>
    tpu.vector_store %arg24[%1060, %c0_293], %1059 {strides = array<i32>} : memref<64x128xf32, #tpu.memory_space<vmem>>, vector<8x128xf32>,
    %c5_i32_294 = arith.constant 5 : i32
    %c8_i32_295 = arith.constant 8 : i32
    %1062 = arith.muli %c5_i32_294, %c8_i32_295 : i32
    %1063 = tpu.assume_multiple %1062, 8 : i32
    %cst_296 = arith.constant dense<0.000000e+00> : vector<8x384xf32>
    %1064 = tpu.matmul %1059, %884, %cst_296 {dimension_numbers = #tpu.dot_dimension_numbers<[1], [0], [0], [1], [0, 0, 1, 1], [], []>} : vector<8x128xf32>, vector<128x384xf32>, vector<8x384xf32> -> vector<8x384xf32>
    %1065 = arith.index_cast %1063 : i32 to index
    %c0_297 = arith.constant 0 : index
    %1066 = vector.load %arg25[%1065, %c0_297] : memref<64x384xf32, #tpu.memory_space<vmem>>, vector<8x384xf32>
    %1067 = vector.extract_strided_slice %1066 {offsets = [0, 0], sizes = [8, 128], strides = [1, 1]} : vector<8x384xf32> to vector<8x128xf32>
    %1068 = vector.extract_strided_slice %1064 {offsets = [0, 0], sizes = [8, 128], strides = [1, 1]} : vector<8x384xf32> to vector<8x128xf32>
    %1069 = arith.addf %1067, %1068 : vector<8x128xf32>
    %1070 = arith.negf %1069 : vector<8x128xf32>
    %1071 = math.exp %1070 : vector<8x128xf32>
    %cst_298 = arith.constant 1.000000e+00 : f32
    %1072 = vector.broadcast %cst_298 : f32 to vector<8x128xf32>
    %1073 = arith.addf %1072, %1071 : vector<8x128xf32>
    %1074 = arith.divf %1072, %1073 : vector<8x128xf32>
    %1075 = vector.extract_strided_slice %1066 {offsets = [0, 128], sizes = [8, 128], strides = [1, 1]} : vector<8x384xf32> to vector<8x128xf32>
    %1076 = vector.extract_strided_slice %1064 {offsets = [0, 128], sizes = [8, 128], strides = [1, 1]} : vector<8x384xf32> to vector<8x128xf32>
    %1077 = arith.addf %1075, %1076 : vector<8x128xf32>
    %1078 = arith.negf %1077 : vector<8x128xf32>
    %1079 = math.exp %1078 : vector<8x128xf32>
    %cst_299 = arith.constant 1.000000e+00 : f32
    %1080 = vector.broadcast %cst_299 : f32 to vector<8x128xf32>
    %1081 = arith.addf %1080, %1079 : vector<8x128xf32>
    %1082 = arith.divf %1080, %1081 : vector<8x128xf32>
    %1083 = vector.extract_strided_slice %1066 {offsets = [0, 256], sizes = [8, 128], strides = [1, 1]} : vector<8x384xf32> to vector<8x128xf32>
    %1084 = vector.extract_strided_slice %1064 {offsets = [0, 256], sizes = [8, 128], strides = [1, 1]} : vector<8x384xf32> to vector<8x128xf32>
    %1085 = vector.broadcast %885 : vector<1x128xf32> to vector<8x128xf32>
    %1086 = arith.addf %1084, %1085 : vector<8x128xf32>
    %1087 = arith.mulf %1074, %1086 : vector<8x128xf32>
    %1088 = arith.addf %1083, %1087 : vector<8x128xf32>
    %1089 = math.tanh %1088 : vector<8x128xf32>
    %cst_300 = arith.constant 1.000000e+00 : f32
    %1090 = vector.broadcast %cst_300 : f32 to vector<8x128xf32>
    %1091 = arith.subf %1090, %1082 : vector<8x128xf32>
    %1092 = arith.mulf %1091, %1089 : vector<8x128xf32>
    %1093 = arith.mulf %1082, %1059 : vector<8x128xf32>
    %1094 = arith.addf %1092, %1093 : vector<8x128xf32>
    %1095 = arith.index_cast %1063 : i32 to index
    %c0_301 = arith.constant 0 : index
    %1096 = vector.load %arg24[%1095, %c0_301] : memref<64x128xf32, #tpu.memory_space<vmem>>, vector<8x128xf32>
    tpu.vector_store %arg24[%1095, %c0_301], %1094 {strides = array<i32>} : memref<64x128xf32, #tpu.memory_space<vmem>>, vector<8x128xf32>,
    %c6_i32_302 = arith.constant 6 : i32
    %c8_i32_303 = arith.constant 8 : i32
    %1097 = arith.muli %c6_i32_302, %c8_i32_303 : i32
    %1098 = tpu.assume_multiple %1097, 8 : i32
    %cst_304 = arith.constant dense<0.000000e+00> : vector<8x384xf32>
    %1099 = tpu.matmul %1094, %884, %cst_304 {dimension_numbers = #tpu.dot_dimension_numbers<[1], [0], [0], [1], [0, 0, 1, 1], [], []>} : vector<8x128xf32>, vector<128x384xf32>, vector<8x384xf32> -> vector<8x384xf32>
    %1100 = arith.index_cast %1098 : i32 to index
    %c0_305 = arith.constant 0 : index
    %1101 = vector.load %arg25[%1100, %c0_305] : memref<64x384xf32, #tpu.memory_space<vmem>>, vector<8x384xf32>
    %1102 = vector.extract_strided_slice %1101 {offsets = [0, 0], sizes = [8, 128], strides = [1, 1]} : vector<8x384xf32> to vector<8x128xf32>
    %1103 = vector.extract_strided_slice %1099 {offsets = [0, 0], sizes = [8, 128], strides = [1, 1]} : vector<8x384xf32> to vector<8x128xf32>
    %1104 = arith.addf %1102, %1103 : vector<8x128xf32>
    %1105 = arith.negf %1104 : vector<8x128xf32>
    %1106 = math.exp %1105 : vector<8x128xf32>
    %cst_306 = arith.constant 1.000000e+00 : f32
    %1107 = vector.broadcast %cst_306 : f32 to vector<8x128xf32>
    %1108 = arith.addf %1107, %1106 : vector<8x128xf32>
    %1109 = arith.divf %1107, %1108 : vector<8x128xf32>
    %1110 = vector.extract_strided_slice %1101 {offsets = [0, 128], sizes = [8, 128], strides = [1, 1]} : vector<8x384xf32> to vector<8x128xf32>
    %1111 = vector.extract_strided_slice %1099 {offsets = [0, 128], sizes = [8, 128], strides = [1, 1]} : vector<8x384xf32> to vector<8x128xf32>
    %1112 = arith.addf %1110, %1111 : vector<8x128xf32>
    %1113 = arith.negf %1112 : vector<8x128xf32>
    %1114 = math.exp %1113 : vector<8x128xf32>
    %cst_307 = arith.constant 1.000000e+00 : f32
    %1115 = vector.broadcast %cst_307 : f32 to vector<8x128xf32>
    %1116 = arith.addf %1115, %1114 : vector<8x128xf32>
    %1117 = arith.divf %1115, %1116 : vector<8x128xf32>
    %1118 = vector.extract_strided_slice %1101 {offsets = [0, 256], sizes = [8, 128], strides = [1, 1]} : vector<8x384xf32> to vector<8x128xf32>
    %1119 = vector.extract_strided_slice %1099 {offsets = [0, 256], sizes = [8, 128], strides = [1, 1]} : vector<8x384xf32> to vector<8x128xf32>
    %1120 = vector.broadcast %885 : vector<1x128xf32> to vector<8x128xf32>
    %1121 = arith.addf %1119, %1120 : vector<8x128xf32>
    %1122 = arith.mulf %1109, %1121 : vector<8x128xf32>
    %1123 = arith.addf %1118, %1122 : vector<8x128xf32>
    %1124 = math.tanh %1123 : vector<8x128xf32>
    %cst_308 = arith.constant 1.000000e+00 : f32
    %1125 = vector.broadcast %cst_308 : f32 to vector<8x128xf32>
    %1126 = arith.subf %1125, %1117 : vector<8x128xf32>
    %1127 = arith.mulf %1126, %1124 : vector<8x128xf32>
    %1128 = arith.mulf %1117, %1094 : vector<8x128xf32>
    %1129 = arith.addf %1127, %1128 : vector<8x128xf32>
    %1130 = arith.index_cast %1098 : i32 to index
    %c0_309 = arith.constant 0 : index
    %1131 = vector.load %arg24[%1130, %c0_309] : memref<64x128xf32, #tpu.memory_space<vmem>>, vector<8x128xf32>
    tpu.vector_store %arg24[%1130, %c0_309], %1129 {strides = array<i32>} : memref<64x128xf32, #tpu.memory_space<vmem>>, vector<8x128xf32>,
    %c7_i32_310 = arith.constant 7 : i32
    %c8_i32_311 = arith.constant 8 : i32
    %1132 = arith.muli %c7_i32_310, %c8_i32_311 : i32
    %1133 = tpu.assume_multiple %1132, 8 : i32
    %cst_312 = arith.constant dense<0.000000e+00> : vector<8x384xf32>
    %1134 = tpu.matmul %1129, %884, %cst_312 {dimension_numbers = #tpu.dot_dimension_numbers<[1], [0], [0], [1], [0, 0, 1, 1], [], []>} : vector<8x128xf32>, vector<128x384xf32>, vector<8x384xf32> -> vector<8x384xf32>
    %1135 = arith.index_cast %1133 : i32 to index
    %c0_313 = arith.constant 0 : index
    %1136 = vector.load %arg25[%1135, %c0_313] : memref<64x384xf32, #tpu.memory_space<vmem>>, vector<8x384xf32>
    %1137 = vector.extract_strided_slice %1136 {offsets = [0, 0], sizes = [8, 128], strides = [1, 1]} : vector<8x384xf32> to vector<8x128xf32>
    %1138 = vector.extract_strided_slice %1134 {offsets = [0, 0], sizes = [8, 128], strides = [1, 1]} : vector<8x384xf32> to vector<8x128xf32>
    %1139 = arith.addf %1137, %1138 : vector<8x128xf32>
    %1140 = arith.negf %1139 : vector<8x128xf32>
    %1141 = math.exp %1140 : vector<8x128xf32>
    %cst_314 = arith.constant 1.000000e+00 : f32
    %1142 = vector.broadcast %cst_314 : f32 to vector<8x128xf32>
    %1143 = arith.addf %1142, %1141 : vector<8x128xf32>
    %1144 = arith.divf %1142, %1143 : vector<8x128xf32>
    %1145 = vector.extract_strided_slice %1136 {offsets = [0, 128], sizes = [8, 128], strides = [1, 1]} : vector<8x384xf32> to vector<8x128xf32>
    %1146 = vector.extract_strided_slice %1134 {offsets = [0, 128], sizes = [8, 128], strides = [1, 1]} : vector<8x384xf32> to vector<8x128xf32>
    %1147 = arith.addf %1145, %1146 : vector<8x128xf32>
    %1148 = arith.negf %1147 : vector<8x128xf32>
    %1149 = math.exp %1148 : vector<8x128xf32>
    %cst_315 = arith.constant 1.000000e+00 : f32
    %1150 = vector.broadcast %cst_315 : f32 to vector<8x128xf32>
    %1151 = arith.addf %1150, %1149 : vector<8x128xf32>
    %1152 = arith.divf %1150, %1151 : vector<8x128xf32>
    %1153 = vector.extract_strided_slice %1136 {offsets = [0, 256], sizes = [8, 128], strides = [1, 1]} : vector<8x384xf32> to vector<8x128xf32>
    %1154 = vector.extract_strided_slice %1134 {offsets = [0, 256], sizes = [8, 128], strides = [1, 1]} : vector<8x384xf32> to vector<8x128xf32>
    %1155 = vector.broadcast %885 : vector<1x128xf32> to vector<8x128xf32>
    %1156 = arith.addf %1154, %1155 : vector<8x128xf32>
    %1157 = arith.mulf %1144, %1156 : vector<8x128xf32>
    %1158 = arith.addf %1153, %1157 : vector<8x128xf32>
    %1159 = math.tanh %1158 : vector<8x128xf32>
    %cst_316 = arith.constant 1.000000e+00 : f32
    %1160 = vector.broadcast %cst_316 : f32 to vector<8x128xf32>
    %1161 = arith.subf %1160, %1152 : vector<8x128xf32>
    %1162 = arith.mulf %1161, %1159 : vector<8x128xf32>
    %1163 = arith.mulf %1152, %1129 : vector<8x128xf32>
    %1164 = arith.addf %1162, %1163 : vector<8x128xf32>
    %1165 = arith.index_cast %1133 : i32 to index
    %c0_317 = arith.constant 0 : index
    %1166 = vector.load %arg24[%1165, %c0_317] : memref<64x128xf32, #tpu.memory_space<vmem>>, vector<8x128xf32>
    tpu.vector_store %arg24[%1165, %c0_317], %1164 {strides = array<i32>} : memref<64x128xf32, #tpu.memory_space<vmem>>, vector<8x128xf32>,
    %c8_i32_318 = arith.constant 8 : i32
    %c0_319 = arith.constant 0 : index
    %c0_320 = arith.constant 0 : index
    %1167 = vector.load %arg29[%c0_319, %c0_320] : memref<8x128xf32, #tpu.memory_space<vmem>>, vector<8x128xf32>
    tpu.vector_store %arg29[%c0_319, %c0_320], %1164 {strides = array<i32>} : memref<8x128xf32, #tpu.memory_space<vmem>>, vector<8x128xf32>,
    %c0_321 = arith.constant 0 : index
    %c0_322 = arith.constant 0 : index
    %1168 = vector.load %arg24[%c0_321, %c0_322] : memref<64x128xf32, #tpu.memory_space<vmem>>, vector<64x128xf32>
    %c0_323 = arith.constant 0 : index
    %c0_324 = arith.constant 0 : index
    %1169 = vector.load %arg19[%c0_323, %c0_324] : memref<128x128xf32, #tpu.memory_space<vmem>>, vector<128x128xf32>
    %cst_325 = arith.constant dense<0.000000e+00> : vector<64x128xf32>
    %1170 = tpu.matmul %1168, %1169, %cst_325 {dimension_numbers = #tpu.dot_dimension_numbers<[1], [0], [0], [1], [0, 0, 1, 1], [], []>} : vector<64x128xf32>, vector<128x128xf32>, vector<64x128xf32> -> vector<64x128xf32>
    %c0_326 = arith.constant 0 : index
    %c0_327 = arith.constant 0 : index
    %c0_328 = arith.constant 0 : index
    %c0_329 = arith.constant 0 : index
    %1171 = vector.load %arg20[%c0_326, %c0_327, %c0_328, %c0_329] : memref<1x1x64x128xf32, #tpu.memory_space<vmem>>, vector<1x1x64x128xf32>
    %1172 = vector.shape_cast %1171 : vector<1x1x64x128xf32> to vector<64x128xf32>
    %1173 = vector.shape_cast %1170 : vector<64x128xf32> to vector<1x1x64x128xf32>
    tpu.vector_store %arg20[%c0_326, %c0_327, %c0_328, %c0_329], %1173 {strides = array<i32>} : memref<1x1x64x128xf32, #tpu.memory_space<vmem>>, vector<1x1x64x128xf32>,
    return
  }
  func.func @transform_0(%arg0: i32, %arg1: i32) -> (i32, i32, i32, i32) {
    %c0_i32 = arith.constant 0 : i32
    %c0_i32_0 = arith.constant 0 : i32
    %c0_i32_1 = arith.constant 0 : i32
    return %arg1, %arg0, %c0_i32, %c0_i32_0 : i32, i32, i32, i32
  }
  func.func @transform_1(%arg0: i32, %arg1: i32) -> (i32, i32) {
    %c0_i32 = arith.constant 0 : i32
    %c0_i32_0 = arith.constant 0 : i32
    %c0_i32_1 = arith.constant 0 : i32
    return %c0_i32, %c0_i32_0 : i32, i32
  }
  func.func @transform_2(%arg0: i32, %arg1: i32) -> (i32, i32) {
    %c0_i32 = arith.constant 0 : i32
    %c0_i32_0 = arith.constant 0 : i32
    %c0_i32_1 = arith.constant 0 : i32
    return %c0_i32, %c0_i32_0 : i32, i32
  }
  func.func @transform_3(%arg0: i32, %arg1: i32) -> (i32, i32) {
    %c0_i32 = arith.constant 0 : i32
    %c0_i32_0 = arith.constant 0 : i32
    %c0_i32_1 = arith.constant 0 : i32
    return %c0_i32, %c0_i32_0 : i32, i32
  }
  func.func @transform_4(%arg0: i32, %arg1: i32) -> (i32, i32) {
    %c0_i32 = arith.constant 0 : i32
    %c0_i32_0 = arith.constant 0 : i32
    %c0_i32_1 = arith.constant 0 : i32
    return %c0_i32, %c0_i32_0 : i32, i32
  }
  func.func @transform_5(%arg0: i32, %arg1: i32) -> (i32, i32) {
    %c0_i32 = arith.constant 0 : i32
    %c0_i32_0 = arith.constant 0 : i32
    %c0_i32_1 = arith.constant 0 : i32
    return %c0_i32, %c0_i32_0 : i32, i32
  }
  func.func @transform_6(%arg0: i32, %arg1: i32) -> (i32, i32) {
    %c0_i32 = arith.constant 0 : i32
    %c0_i32_0 = arith.constant 0 : i32
    %c0_i32_1 = arith.constant 0 : i32
    return %c0_i32, %c0_i32_0 : i32, i32
  }
  func.func @transform_7(%arg0: i32, %arg1: i32) -> (i32, i32) {
    %c0_i32 = arith.constant 0 : i32
    %c0_i32_0 = arith.constant 0 : i32
    %c0_i32_1 = arith.constant 0 : i32
    return %c0_i32, %c0_i32_0 : i32, i32
  }
  func.func @transform_8(%arg0: i32, %arg1: i32) -> (i32, i32) {
    %c0_i32 = arith.constant 0 : i32
    %c0_i32_0 = arith.constant 0 : i32
    %c0_i32_1 = arith.constant 0 : i32
    return %c0_i32, %c0_i32_0 : i32, i32
  }
  func.func @transform_9(%arg0: i32, %arg1: i32) -> (i32, i32) {
    %c0_i32 = arith.constant 0 : i32
    %c0_i32_0 = arith.constant 0 : i32
    %c0_i32_1 = arith.constant 0 : i32
    return %c0_i32, %c0_i32_0 : i32, i32
  }
  func.func @transform_10(%arg0: i32, %arg1: i32) -> (i32, i32) {
    %c0_i32 = arith.constant 0 : i32
    %c0_i32_0 = arith.constant 0 : i32
    %c0_i32_1 = arith.constant 0 : i32
    return %c0_i32, %c0_i32_0 : i32, i32
  }
  func.func @transform_11(%arg0: i32, %arg1: i32) -> (i32, i32) {
    %c0_i32 = arith.constant 0 : i32
    %c0_i32_0 = arith.constant 0 : i32
    %c0_i32_1 = arith.constant 0 : i32
    return %c0_i32, %c0_i32_0 : i32, i32
  }
  func.func @transform_12(%arg0: i32, %arg1: i32) -> (i32, i32) {
    %c0_i32 = arith.constant 0 : i32
    %c0_i32_0 = arith.constant 0 : i32
    %c0_i32_1 = arith.constant 0 : i32
    return %c0_i32, %c0_i32_0 : i32, i32
  }
  func.func @transform_13(%arg0: i32, %arg1: i32) -> (i32, i32) {
    %c0_i32 = arith.constant 0 : i32
    %c0_i32_0 = arith.constant 0 : i32
    %c0_i32_1 = arith.constant 0 : i32
    return %c0_i32, %c0_i32_0 : i32, i32
  }
  func.func @transform_14(%arg0: i32, %arg1: i32) -> (i32, i32) {
    %c0_i32 = arith.constant 0 : i32
    %c0_i32_0 = arith.constant 0 : i32
    %c0_i32_1 = arith.constant 0 : i32
    return %c0_i32, %c0_i32_0 : i32, i32
  }
  func.func @transform_15(%arg0: i32, %arg1: i32) -> (i32, i32) {
    %c0_i32 = arith.constant 0 : i32
    %c0_i32_0 = arith.constant 0 : i32
    %c0_i32_1 = arith.constant 0 : i32
    return %c0_i32, %c0_i32_0 : i32, i32
  }
  func.func @transform_16(%arg0: i32, %arg1: i32) -> (i32, i32) {
    %c0_i32 = arith.constant 0 : i32
    %c0_i32_0 = arith.constant 0 : i32
    %c0_i32_1 = arith.constant 0 : i32
    return %c0_i32, %c0_i32_0 : i32, i32
  }
  func.func @transform_17(%arg0: i32, %arg1: i32) -> (i32, i32) {
    %c0_i32 = arith.constant 0 : i32
    %c0_i32_0 = arith.constant 0 : i32
    %c0_i32_1 = arith.constant 0 : i32
    return %c0_i32, %c0_i32_0 : i32, i32
  }
  func.func @transform_18(%arg0: i32, %arg1: i32) -> (i32, i32, i32, i32) {
    %c0_i32 = arith.constant 0 : i32
    %c0_i32_0 = arith.constant 0 : i32
    %c0_i32_1 = arith.constant 0 : i32
    return %arg1, %arg0, %c0_i32, %c0_i32_0 : i32, i32, i32, i32
  }
}

</mosaic_0001>

<llo_original>
// kernel: _lambda_.1
$region0: #{_lambda_.1}
  #allocation0 [shape = 'u32[]', space=smem, size = 0x4, offset = 0x4, fixed_abs, tag = 'smem constant byte address 0x4 - core index']
  #allocation1 [shape = 'u32[144,128]{1,0:T(1,128)}', space=vmem, size = 0x12000, scoped, tag = 'internal scratch']
  #allocation2 [shape = 'f32[64,128]{1,0:T(8,128)}', space=vmem, size = 0x8000, scoped, tag = 'scratch operand']
  #allocation3 [shape = 'f32[64,128]{1,0:T(8,128)}', space=vmem, size = 0x8000, scoped, tag = 'scratch operand']
  #allocation4 [shape = 'f32[64,128]{1,0:T(8,128)}', space=vmem, size = 0x8000, scoped, tag = 'scratch operand']
  #allocation5 [shape = 'f32[64,128]{1,0:T(8,128)}', space=vmem, size = 0x8000, scoped, tag = 'scratch operand']
  #allocation6 [shape = 'f32[64,384]{1,0:T(8,128)}', space=vmem, size = 0x18000, scoped, tag = 'scratch operand']
  #allocation7 [shape = 'f32[8,128]{1,0:T(8,128)}', space=vmem, size = 0x1000, scoped, tag = 'scratch operand']
  #allocation8 [shape = 'f32[8,128]{1,0:T(8,128)}', space=vmem, size = 0x1000, scoped, tag = 'scratch operand']
  #allocation9 [shape = 'f32[8,128]{1,0:T(8,128)}', space=vmem, size = 0x1000, scoped, tag = 'scratch operand']
  #allocation10 [shape = 'f32[8,128]{1,0:T(8,128)}', space=vmem, size = 0x1000, scoped, tag = 'scratch operand']
  %s0 = inlined_call_operand.vmem [shape: f32[1,1,64,128], index: 0, kind: input, shape index: {}]
  %s1 = inlined_call_operand.hbm [shape: f32[128,384], index: 1, kind: input, shape index: {}]
  %s2 = inlined_call_operand.hbm [shape: f32[128,384], index: 2, kind: input, shape index: {}]
  %s3 = inlined_call_operand.vmem [shape: f32[1,384], index: 3, kind: input, shape index: {}]
  %s4 = inlined_call_operand.vmem [shape: f32[1,128], index: 4, kind: input, shape index: {}]
  %s5 = inlined_call_operand.hbm [shape: f32[128,384], index: 5, kind: input, shape index: {}]
  %s6 = inlined_call_operand.hbm [shape: f32[128,384], index: 6, kind: input, shape index: {}]
  %s7 = inlined_call_operand.vmem [shape: f32[1,384], index: 7, kind: input, shape index: {}]
  %s8 = inlined_call_operand.vmem [shape: f32[1,128], index: 8, kind: input, shape index: {}]
  %s9 = inlined_call_operand.hbm [shape: f32[128,384], index: 9, kind: input, shape index: {}]
  %s10 = inlined_call_operand.hbm [shape: f32[128,384], index: 10, kind: input, shape index: {}]
  %s11 = inlined_call_operand.vmem [shape: f32[1,384], index: 11, kind: input, shape index: {}]
  %s12 = inlined_call_operand.vmem [shape: f32[1,128], index: 12, kind: input, shape index: {}]
  %s13 = inlined_call_operand.hbm [shape: f32[128,384], index: 13, kind: input, shape index: {}]
  %s14 = inlined_call_operand.hbm [shape: f32[128,384], index: 14, kind: input, shape index: {}]
  %s15 = inlined_call_operand.vmem [shape: f32[1,384], index: 15, kind: input, shape index: {}]
  %s16 = inlined_call_operand.vmem [shape: f32[1,128], index: 16, kind: input, shape index: {}]
  %s17 = inlined_call_operand.vmem [shape: f32[128,128], index: 17, kind: input, shape index: {}]
  %s18 = inlined_call_operand.vmem [shape: f32[1,1,64,128], index: 18, kind: output, shape index: {}]
  %s19 = sld [smem:[#allocation0]]
  $region118: #{_lambda_.1} parent=0
    _
  %s21 = ssub.s32 1, %s19
  %s22 = scalar_select 0, %s21, %s19
  $region1: #{_lambda_.1} parent=0
    #allocation11 [shape = 'u8[196608]{0}', space=vmem, size = 0x30000, scoped, tag = 'input window, operand 1, single buffered']
    #allocation12 [shape = 's32[1]{0}', space=sflag, size = 0x4, scoped, tag = 'scoped memory for _lambda_.1']
    #allocation13 [shape = 'u8[196608]{0}', space=vmem, size = 0x30000, scoped, tag = 'input window, operand 2, single buffered']
    #allocation14 [shape = 's32[1]{0}', space=sflag, size = 0x4, scoped, tag = 'scoped memory for _lambda_.1']
    #allocation15 [shape = 'u8[196608]{0}', space=vmem, size = 0x30000, scoped, tag = 'input window, operand 5, single buffered']
    #allocation16 [shape = 'u8[196608]{0}', space=vmem, size = 0x30000, scoped, tag = 'input window, operand 6, single buffered']
    #allocation17 [shape = 's32[1]{0}', space=sflag, size = 0x4, scoped, tag = 'scoped memory for _lambda_.1']
    #allocation18 [shape = 'u8[196608]{0}', space=vmem, size = 0x30000, scoped, tag = 'input window, operand 9, single buffered']
    #allocation19 [shape = 'u8[196608]{0}', space=vmem, size = 0x30000, scoped, tag = 'input window, operand 10, single buffered']
    #allocation20 [shape = 's32[1]{0}', space=sflag, size = 0x4, scoped, tag = 'scoped memory for _lambda_.1']
    #allocation21 [shape = 'u8[196608]{0}', space=vmem, size = 0x30000, scoped, tag = 'input window, operand 13, single buffered']
    #allocation22 [shape = 'u8[196608]{0}', space=vmem, size = 0x30000, scoped, tag = 'input window, operand 14, single buffered']
    #allocation23 [shape = 's32[1]{0}', space=sflag, size = 0x4, scoped, tag = 'scoped memory for _lambda_.1']
    %23 = vsyncpa [#allocation12], 0
    %24 = vsyncpa [#allocation14], 0
    %25 = vsyncpa [#allocation17], 0
    %26 = vsyncpa [#allocation20], 0
    %27 = vsyncpa [#allocation23], 0
    // Predicated region
    $region2: #{_lambda_.1} parent=1 // pred_check
      _
    $region3: #{_lambda_.1} parent=1 // pred_check_branch
      %29 = sbr.rel (0) target = $region5
    $region4: #{_lambda_.1} parent=1 // pred_region
      _
    $region5: #{_lambda_.1} parent=1 // pred_fallthru
      _
    // Predicated region
    $region6: #{_lambda_.1} parent=1 // pred_check
      _
    $region7: #{_lambda_.1} parent=1 // pred_check_branch
      %31 = sbr.rel (0) target = $region9
    $region8: #{_lambda_.1} parent=1 // pred_region
      %s33 = ssub.s32 6144, 6144
      %34 = vsyncadd [#allocation12], %s33
      %s35 = sshll.u32 [#allocation11], 4
      %s36 = int_to_ptr.vmem [resolvable:$true] %s35
      %41 = dma.hbm_to_vmem [thread:$0]  %s1, 6144, %s36, [#allocation12], 384, 384, 24
    $region9: #{_lambda_.1} parent=1 // pred_fallthru
      _
    // Predicated region
    $region10: #{_lambda_.1} parent=1 // pred_check
      _
    $region11: #{_lambda_.1} parent=1 // pred_check_branch
      %43 = sbr.rel (0) target = $region13
    $region12: #{_lambda_.1} parent=1 // pred_region
      %s45 = ssub.s32 6144, 6144
      %46 = vsyncadd [#allocation14], %s45
      %s47 = sshll.u32 [#allocation13], 4
      %s48 = int_to_ptr.vmem [resolvable:$true] %s47
      %53 = dma.hbm_to_vmem [thread:$0]  %s2, 6144, %s48, [#allocation14], 384, 384, 24
    $region13: #{_lambda_.1} parent=1 // pred_fallthru
      _
    // Predicated region
    $region14: #{_lambda_.1} parent=1 // pred_check
      _
    $region15: #{_lambda_.1} parent=1 // pred_check_branch
      %55 = sbr.rel (0) target = $region17
    $region16: #{_lambda_.1} parent=1 // pred_region
      _
    $region17: #{_lambda_.1} parent=1 // pred_fallthru
      _
    // Predicated region
    $region18: #{_lambda_.1} parent=1 // pred_check
      _
    $region19: #{_lambda_.1} parent=1 // pred_check_branch
      %57 = sbr.rel (0) target = $region21
    $region20: #{_lambda_.1} parent=1 // pred_region
      _
    $region21: #{_lambda_.1} parent=1 // pred_fallthru
      _
    // Predicated region
    $region22: #{_lambda_.1} parent=1 // pred_check
      _
    $region23: #{_lambda_.1} parent=1 // pred_check_branch
      %59 = sbr.rel (0) target = $region25
    $region24: #{_lambda_.1} parent=1 // pred_region
      %s61 = ssub.s32 6144, 6144
      %62 = vsyncadd [#allocation14], %s61
      %s63 = sshll.u32 [#allocation15], 4
      %s64 = int_to_ptr.vmem [resolvable:$true] %s63
      %69 = dma.hbm_to_vmem [thread:$0]  %s5, 6144, %s64, [#allocation14], 384, 384, 24
    $region25: #{_lambda_.1} parent=1 // pred_fallthru
      _
    // Predicated region
    $region26: #{_lambda_.1} parent=1 // pred_check
      _
    $region27: #{_lambda_.1} parent=1 // pred_check_branch
      %71 = sbr.rel (0) target = $region29
    $region28: #{_lambda_.1} parent=1 // pred_region
      %s73 = ssub.s32 6144, 6144
      %74 = vsyncadd [#allocation17], %s73
      %s75 = sshll.u32 [#allocation16], 4
      %s76 = int_to_ptr.vmem [resolvable:$true] %s75
      %81 = dma.hbm_to_vmem [thread:$0]  %s6, 6144, %s76, [#allocation17], 384, 384, 24
    $region29: #{_lambda_.1} parent=1 // pred_fallthru
      _
    // Predicated region
    $region30: #{_lambda_.1} parent=1 // pred_check
      _
    $region31: #{_lambda_.1} parent=1 // pred_check_branch
      %83 = sbr.rel (0) target = $region33
    $region32: #{_lambda_.1} parent=1 // pred_region
      _
    $region33: #{_lambda_.1} parent=1 // pred_fallthru
      _
    // Predicated region
    $region34: #{_lambda_.1} parent=1 // pred_check
      _
    $region35: #{_lambda_.1} parent=1 // pred_check_branch
      %85 = sbr.rel (0) target = $region37
    $region36: #{_lambda_.1} parent=1 // pred_region
      _
    $region37: #{_lambda_.1} parent=1 // pred_fallthru
      _
    // Predicated region
    $region38: #{_lambda_.1} parent=1 // pred_check
      _
    $region39: #{_lambda_.1} parent=1 // pred_check_branch
      %87 = sbr.rel (0) target = $region41
    $region40: #{_lambda_.1} parent=1 // pred_region
      %s89 = ssub.s32 6144, 6144
      %90 = vsyncadd [#allocation17], %s89
      %s91 = sshll.u32 [#allocation18], 4
      %s92 = int_to_ptr.vmem [resolvable:$true] %s91
      %97 = dma.hbm_to_vmem [thread:$0]  %s9, 6144, %s92, [#allocation17], 384, 384, 24
    $region41: #{_lambda_.1} parent=1 // pred_fallthru
      _
    // Predicated region
    $region42: #{_lambda_.1} parent=1 // pred_check
      _
    $region43: #{_lambda_.1} parent=1 // pred_check_branch
      %99 = sbr.rel (0) target = $region45
    $region44: #{_lambda_.1} parent=1 // pred_region
      %s101 = ssub.s32 6144, 6144
      %102 = vsyncadd [#allocation20], %s101
      %s103 = sshll.u32 [#allocation19], 4
      %s104 = int_to_ptr.vmem [resolvable:$true] %s103
      %109 = dma.hbm_to_vmem [thread:$0]  %s10, 6144, %s104, [#allocation20], 384, 384, 24
    $region45: #{_lambda_.1} parent=1 // pred_fallthru
      _
    // Predicated region
    $region46: #{_lambda_.1} parent=1 // pred_check
      _
    $region47: #{_lambda_.1} parent=1 // pred_check_branch
      %111 = sbr.rel (0) target = $region49
    $region48: #{_lambda_.1} parent=1 // pred_region
      _
    $region49: #{_lambda_.1} parent=1 // pred_fallthru
      _
    // Predicated region
    $region50: #{_lambda_.1} parent=1 // pred_check
      _
    $region51: #{_lambda_.1} parent=1 // pred_check_branch
      %113 = sbr.rel (0) target = $region53
    $region52: #{_lambda_.1} parent=1 // pred_region
      _
    $region53: #{_lambda_.1} parent=1 // pred_fallthru
      _
    // Predicated region
    $region54: #{_lambda_.1} parent=1 // pred_check
      _
    $region55: #{_lambda_.1} parent=1 // pred_check_branch
      %115 = sbr.rel (0) target = $region57
    $region56: #{_lambda_.1} parent=1 // pred_region
      %s117 = ssub.s32 6144, 6144
      %118 = vsyncadd [#allocation20], %s117
      %s119 = sshll.u32 [#allocation21], 4
      %s120 = int_to_ptr.vmem [resolvable:$true] %s119
      %125 = dma.hbm_to_vmem [thread:$0]  %s13, 6144, %s120, [#allocation20], 384, 384, 24
    $region57: #{_lambda_.1} parent=1 // pred_fallthru
      _
    // Predicated region
    $region58: #{_lambda_.1} parent=1 // pred_check
      _
    $region59: #{_lambda_.1} parent=1 // pred_check_branch
      %127 = sbr.rel (0) target = $region61
    $region60: #{_lambda_.1} parent=1 // pred_region
      %s129 = ssub.s32 6144, 6144
      %130 = vsyncadd [#allocation23], %s129
      %s131 = sshll.u32 [#allocation22], 4
      %s132 = int_to_ptr.vmem [resolvable:$true] %s131
      %137 = dma.hbm_to_vmem [thread:$0]  %s14, 6144, %s132, [#allocation23], 384, 384, 24
    $region61: #{_lambda_.1} parent=1 // pred_fallthru
      _
    // Predicated region
    $region62: #{_lambda_.1} parent=1 // pred_check
      _
    $region63: #{_lambda_.1} parent=1 // pred_check_branch
      %139 = sbr.rel (0) target = $region65
    $region64: #{_lambda_.1} parent=1 // pred_region
      _
    $region65: #{_lambda_.1} parent=1 // pred_fallthru
      _
    // Predicated region
    $region66: #{_lambda_.1} parent=1 // pred_check
      _
    $region67: #{_lambda_.1} parent=1 // pred_check_branch
      %141 = sbr.rel (0) target = $region69
    $region68: #{_lambda_.1} parent=1 // pred_region
      _
    $region69: #{_lambda_.1} parent=1 // pred_fallthru
      _
    // Predicated region
    $region70: #{_lambda_.1} parent=1 // pred_check
      _
    $region71: #{_lambda_.1} parent=1 // pred_check_branch
      %143 = sbr.rel (0) target = $region73
    $region72: #{_lambda_.1} parent=1 // pred_region
      _
    $region73: #{_lambda_.1} parent=1 // pred_fallthru
      _
    // Predicated region
    $region74: #{_lambda_.1} parent=1 // pred_check
      _
    $region75: #{_lambda_.1} parent=1 // pred_check_branch
      %145 = sbr.rel (0) target = $region77
    $region76: #{_lambda_.1} parent=1 // pred_region
      %146 = dma.done [#allocation12], 6144
    $region77: #{_lambda_.1} parent=1 // pred_fallthru
      _
    // Predicated region
    $region78: #{_lambda_.1} parent=1 // pred_check
      _
    $region79: #{_lambda_.1} parent=1 // pred_check_branch
      %148 = sbr.rel (0) target = $region81
    $region80: #{_lambda_.1} parent=1 // pred_region
      %149 = dma.done [#allocation14], 6144
    $region81: #{_lambda_.1} parent=1 // pred_fallthru
      _
    // Predicated region
    $region82: #{_lambda_.1} parent=1 // pred_check
      _
    $region83: #{_lambda_.1} parent=1 // pred_check_branch
      %151 = sbr.rel (0) target = $region85
    $region84: #{_lambda_.1} parent=1 // pred_region
      %152 = dma.done [#allocation14], 6144
    $region85: #{_lambda_.1} parent=1 // pred_fallthru
      _
    // Predicated region
    $region86: #{_lambda_.1} parent=1 // pred_check
      _
    $region87: #{_lambda_.1} parent=1 // pred_check_branch
      %154 = sbr.rel (0) target = $region89
    $region88: #{_lambda_.1} parent=1 // pred_region
      %155 = dma.done [#allocation17], 6144
    $region89: #{_lambda_.1} parent=1 // pred_fallthru
      _
    // Predicated region
    $region90: #{_lambda_.1} parent=1 // pred_check
      _
    $region91: #{_lambda_.1} parent=1 // pred_check_branch
      %157 = sbr.rel (0) target = $region93
    $region92: #{_lambda_.1} parent=1 // pred_region
      %158 = dma.done [#allocation17], 6144
    $region93: #{_lambda_.1} parent=1 // pred_fallthru
      _
    // Predicated region
    $region94: #{_lambda_.1} parent=1 // pred_check
      _
    $region95: #{_lambda_.1} parent=1 // pred_check_branch
      %160 = sbr.rel (0) target = $region97
    $region96: #{_lambda_.1} parent=1 // pred_region
      %161 = dma.done [#allocation20], 6144
    $region97: #{_lambda_.1} parent=1 // pred_fallthru
      _
    // Predicated region
    $region98: #{_lambda_.1} parent=1 // pred_check
      _
    $region99: #{_lambda_.1} parent=1 // pred_check_branch
      %163 = sbr.rel (0) target = $region101
    $region100: #{_lambda_.1} parent=1 // pred_region
      %164 = dma.done [#allocation20], 6144
    $region101: #{_lambda_.1} parent=1 // pred_fallthru
      _
    // Predicated region
    $region102: #{_lambda_.1} parent=1 // pred_check
      _
    $region103: #{_lambda_.1} parent=1 // pred_check_branch
      %166 = sbr.rel (0) target = $region105
    $region104: #{_lambda_.1} parent=1 // pred_region
      %167 = dma.done [#allocation23], 6144
    $region105: #{_lambda_.1} parent=1 // pred_fallthru
      _
    %p168 = scmp.eq.s32.totalorder 0, 0
    // Predicated region
    $region106: #{_lambda_.1} parent=1 // pred_check
      %p169 = pneg %p168
    $region107: #{_lambda_.1} parent=1 // pred_check_branch
      %171 = sbr.rel (%p169) target = $region109
    $region108: #{_lambda_.1} parent=1 // pred_region
      %172 = vst [vmem:[#allocation7] sm:$0xff] 0.0
      %173 = vst [vmem:[#allocation8] sm:$0xff] 0.0
      %174 = vst [vmem:[#allocation9] sm:$0xff] 0.0
      %175 = vst [vmem:[#allocation10] sm:$0xff] 0.0
    $region109: #{_lambda_.1} parent=1 // pred_fallthru
      _
    %v176 = vld [vmem:[%s0] sm:$0xff]
    %v177 = vld [vmem:[%s0 + $0x8] sm:$0xff]
    %v178 = vld [vmem:[%s0 + $0x10] sm:$0xff]
    %v179 = vld [vmem:[%s0 + $0x18] sm:$0xff]
    %v180 = vld [vmem:[%s0 + $0x20] sm:$0xff]
    %v181 = vld [vmem:[%s0 + $0x28] sm:$0xff]
    %v182 = vld [vmem:[%s0 + $0x30] sm:$0xff]
    %v183 = vld [vmem:[%s0 + $0x38] sm:$0xff]
    %v184 = vld [vmem:[#allocation11] sm:$0xff]
    %v185 = vld [vmem:[#allocation11 + $0x8] sm:$0xff]
    %v186 = vld [vmem:[#allocation11 + $0x10] sm:$0xff]
    %v187 = vld [vmem:[#allocation11 + $0x18] sm:$0xff]
    %v188 = vld [vmem:[#allocation11 + $0x20] sm:$0xff]
    %v189 = vld [vmem:[#allocation11 + $0x28] sm:$0xff]
    %v190 = vld [vmem:[#allocation11 + $0x30] sm:$0xff]
    %v191 = vld [vmem:[#allocation11 + $0x38] sm:$0xff]
    %v192 = vld [vmem:[#allocation11 + $0x40] sm:$0xff]
    %v193 = vld [vmem:[#allocation11 + $0x48] sm:$0xff]
    %v194 = vld [vmem:[#allocation11 + $0x50] sm:$0xff]
    %v195 = vld [vmem:[#allocation11 + $0x58] sm:$0xff]
    %v196 = vld [vmem:[#allocation11 + $0x60] sm:$0xff]
    %v197 = vld [vmem:[#allocation11 + $0x68] sm:$0xff]
    %v198 = vld [vmem:[#allocation11 + $0x70] sm:$0xff]
    %v199 = vld [vmem:[#allocation11 + $0x78] sm:$0xff]
    %v200 = vld [vmem:[#allocation11 + $0x80] sm:$0xff]
    %v201 = vld [vmem:[#allocation11 + $0x88] sm:$0xff]
    %v202 = vld [vmem:[#allocation11 + $0x90] sm:$0xff]
    %v203 = vld [vmem:[#allocation11 + $0x98] sm:$0xff]
    %v204 = vld [vmem:[#allocation11 + $0xa0] sm:$0xff]
    %v205 = vld [vmem:[#allocation11 + $0xa8] sm:$0xff]
    %v206 = vld [vmem:[#allocation11 + $0xb0] sm:$0xff]
    %v207 = vld [vmem:[#allocation11 + $0xb8] sm:$0xff]
    %v208 = vld [vmem:[#allocation11 + $0xc0] sm:$0xff]
    %v209 = vld [vmem:[#allocation11 + $0xc8] sm:$0xff]
    %v210 = vld [vmem:[#allocation11 + $0xd0] sm:$0xff]
    %v211 = vld [vmem:[#allocation11 + $0xd8] sm:$0xff]
    %v212 = vld [vmem:[#allocation11 + $0xe0] sm:$0xff]
    %v213 = vld [vmem:[#allocation11 + $0xe8] sm:$0xff]
    %v214 = vld [vmem:[#allocation11 + $0xf0] sm:$0xff]
    %v215 = vld [vmem:[#allocation11 + $0xf8] sm:$0xff]
    %v216 = vld [vmem:[#allocation11 + $0x100] sm:$0xff]
    %v217 = vld [vmem:[#allocation11 + $0x108] sm:$0xff]
    %v218 = vld [vmem:[#allocation11 + $0x110] sm:$0xff]
    %v219 = vld [vmem:[#allocation11 + $0x118] sm:$0xff]
    %v220 = vld [vmem:[#allocation11 + $0x120] sm:$0xff]
    %v221 = vld [vmem:[#allocation11 + $0x128] sm:$0xff]
    %v222 = vld [vmem:[#allocation11 + $0x130] sm:$0xff]
    %v223 = vld [vmem:[#allocation11 + $0x138] sm:$0xff]
    %v224 = vld [vmem:[#allocation11 + $0x140] sm:$0xff]
    %v225 = vld [vmem:[#allocation11 + $0x148] sm:$0xff]
    %v226 = vld [vmem:[#allocation11 + $0x150] sm:$0xff]
    %v227 = vld [vmem:[#allocation11 + $0x158] sm:$0xff]
    %v228 = vld [vmem:[#allocation11 + $0x160] sm:$0xff]
    %v229 = vld [vmem:[#allocation11 + $0x168] sm:$0xff]
    %v230 = vld [vmem:[#allocation11 + $0x170] sm:$0xff]
    %v231 = vld [vmem:[#allocation11 + $0x178] sm:$0xff]
    %v232 = vld [vmem:[%s3] sm:$0x7]
    %v234 = vlaneseq
    %v235 = vshrl.u32 %v234, 7
    %v236 = vsub.s32 0, %v235
    %v237 = vrot.slane %v232, %v236
    %v238 = vlaneseq
    %v239 = vshrl.u32 %v238, 7
    %v240 = vsub.s32 1, %v239
    %v241 = vrot.slane %v232, %v240
    %v242 = vlaneseq
    %v243 = vshrl.u32 %v242, 7
    %v244 = vsub.s32 2, %v243
    %v245 = vrot.slane %v232, %v244
    %249 = vmatprep.subr.mxu0 %v185
    %250 = vmatpush1.msra.mxu0 %v184
    %251 = vmatprep.subr.mxu0 %v188
    %252 = vmatpush1.msra.mxu0 %v187
    %253 = vmatprep.subr.mxu0 %v191
    %254 = vmatpush1.msra.mxu0 %v190
    %255 = vmatprep.subr.mxu0 %v194
    %256 = vmatpush1.msra.mxu0 %v193
    %257 = vmatprep.subr.mxu0 %v197
    %258 = vmatpush1.msra.mxu0 %v196
    %259 = vmatprep.subr.mxu0 %v200
    %260 = vmatpush1.msra.mxu0 %v199
    %261 = vmatprep.subr.mxu0 %v203
    %262 = vmatpush1.msra.mxu0 %v202
    %263 = vmatprep.subr.mxu0 %v206
    %264 = vmatpush1.msra.mxu0 %v205
    %265 = vmatprep.subr.mxu0 %v209
    %266 = vmatpush1.msra.mxu0 %v208
    %267 = vmatprep.subr.mxu0 %v212
    %268 = vmatpush1.msra.mxu0 %v211
    %269 = vmatprep.subr.mxu0 %v215
    %270 = vmatpush1.msra.mxu0 %v214
    %271 = vmatprep.subr.mxu0 %v218
    %272 = vmatpush1.msra.mxu0 %v217
    %273 = vmatprep.subr.mxu0 %v221
    %274 = vmatpush1.msra.mxu0 %v220
    %275 = vmatprep.subr.mxu0 %v224
    %276 = vmatpush1.msra.mxu0 %v223
    %277 = vmatprep.subr.mxu0 %v227
    %278 = vmatpush1.msra.mxu0 %v226
    %279 = vmatprep.subr.mxu0 %v230
    %280 = vmatpush1.msra.mxu0 %v229
    %281 = vmatprep.subr.mxu0 0.0
    %282 = vmatpush1.msra.mxu0 0.0
    %283 = vmatprep.subr.mxu0 0.0
    %284 = vmatpush1.msra.mxu0 0.0
    %285 = vmatprep.subr.mxu0 0.0
    %286 = vmatpush1.msra.mxu0 0.0
    %287 = vmatprep.subr.mxu0 0.0
    %288 = vmatpush1.msra.mxu0 0.0
    %289 = vmatprep.subr.mxu0 0.0
    %290 = vmatpush1.msra.mxu0 0.0
    %291 = vmatprep.subr.mxu0 0.0
    %292 = vmatpush1.msra.mxu0 0.0
    %293 = vmatprep.subr.mxu0 0.0
    %294 = vmatpush1.msra.mxu0 0.0
    %295 = vmatprep.subr.mxu0 0.0
    %296 = vmatpush1.msra.mxu0 0.0
    %297 = vmatprep.subr.mxu0 0.0
    %298 = vmatpush1.msra.mxu0 0.0
    %299 = vmatprep.subr.mxu0 0.0
    %300 = vmatpush1.msra.mxu0 0.0
    %301 = vmatprep.subr.mxu0 0.0
    %302 = vmatpush1.msra.mxu0 0.0
    %303 = vmatprep.subr.mxu0 0.0
    %304 = vmatpush1.msra.mxu0 0.0
    %305 = vmatprep.subr.mxu0 0.0
    %306 = vmatpush1.msra.mxu0 0.0
    %307 = vmatprep.subr.mxu0 0.0
    %308 = vmatpush1.msra.mxu0 0.0
    %309 = vmatprep.subr.mxu0 0.0
    %310 = vmatpush1.msra.mxu0 0.0
    %311 = vmatprep.subr.mxu0 0.0
    %312 = vmatpush1.msra.mxu0 0.0
    %313 = vmatprep.mubr.f32.mxu0 0.0
    %314 = vmatmul.mubr.f32.gmra.mrb[0].mxu0 %v176
    %v315 = vpop.f32.mrb[0].mxu0
    %v316 = vadd.f32 %v237, %v315
    %v317 = vpop.f32.mrb[0].mxu0
    %v318 = vadd.f32 %v241, %v317
    %319 = vmatprep.mubr.f32.mxu0 0.0
    %320 = vmatmul.mubr.f32.gmra.mrb[0].mxu0 %v177
    %v321 = vpop.f32.mrb[0].mxu0
    %v322 = vadd.f32 %v237, %v321
    %v323 = vpop.f32.mrb[0].mxu0
    %v324 = vadd.f32 %v241, %v323
    %325 = vmatprep.mubr.f32.mxu0 0.0
    %326 = vmatmul.mubr.f32.gmra.mrb[0].mxu0 %v178
    %v327 = vpop.f32.mrb[0].mxu0
    %v328 = vadd.f32 %v237, %v327
    %v329 = vpop.f32.mrb[0].mxu0
    %v330 = vadd.f32 %v241, %v329
    %331 = vmatprep.mubr.f32.mxu0 0.0
    %332 = vmatmul.mubr.f32.gmra.mrb[0].mxu0 %v179
    %v333 = vpop.f32.mrb[0].mxu0
    %v334 = vadd.f32 %v237, %v333
    %v335 = vpop.f32.mrb[0].mxu0
    %v336 = vadd.f32 %v241, %v335
    %337 = vmatprep.mubr.f32.mxu0 0.0
    %338 = vmatmul.mubr.f32.gmra.mrb[0].mxu0 %v180
    %v339 = vpop.f32.mrb[0].mxu0
    %v340 = vadd.f32 %v237, %v339
    %v341 = vpop.f32.mrb[0].mxu0
    %v342 = vadd.f32 %v241, %v341
    %343 = vmatprep.mubr.f32.mxu0 0.0
    %344 = vmatmul.mubr.f32.gmra.mrb[0].mxu0 %v181
    %v345 = vpop.f32.mrb[0].mxu0
    %v346 = vadd.f32 %v237, %v345
    %v347 = vpop.f32.mrb[0].mxu0
    %v348 = vadd.f32 %v241, %v347
    %349 = vmatprep.mubr.f32.mxu0 0.0
    %350 = vmatmul.mubr.f32.gmra.mrb[0].mxu0 %v182
    %v351 = vpop.f32.mrb[0].mxu0
    %v352 = vadd.f32 %v237, %v351
    %v353 = vpop.f32.mrb[0].mxu0
    %v354 = vadd.f32 %v241, %v353
    %355 = vmatprep.mubr.f32.mxu0 0.0
    %356 = vmatmul.mubr.f32.gmra.mrb[0].mxu0 %v183
    %v357 = vpop.f32.mrb[0].mxu0
    %v358 = vadd.f32 %v237, %v357
    %v359 = vpop.f32.mrb[0].mxu0
    %v360 = vadd.f32 %v241, %v359
    %361 = vdwg.mxu0
    %362 = vmatprep.subr.mxu0 0.0
    %363 = vmatpush1.msra.mxu0 %v186
    %364 = vmatprep.subr.mxu0 0.0
    %365 = vmatpush1.msra.mxu0 %v189
    %366 = vmatprep.subr.mxu0 0.0
    %367 = vmatpush1.msra.mxu0 %v192
    %368 = vmatprep.subr.mxu0 0.0
    %369 = vmatpush1.msra.mxu0 %v195
    %370 = vmatprep.subr.mxu0 0.0
    %371 = vmatpush1.msra.mxu0 %v198
    %372 = vmatprep.subr.mxu0 0.0
    %373 = vmatpush1.msra.mxu0 %v201
    %374 = vmatprep.subr.mxu0 0.0
    %375 = vmatpush1.msra.mxu0 %v204
    %376 = vmatprep.subr.mxu0 0.0
    %377 = vmatpush1.msra.mxu0 %v207
    %378 = vmatprep.subr.mxu0 0.0
    %379 = vmatpush1.msra.mxu0 %v210
    %380 = vmatprep.subr.mxu0 0.0
    %381 = vmatpush1.msra.mxu0 %v213
    %382 = vmatprep.subr.mxu0 0.0
    %383 = vmatpush1.msra.mxu0 %v216
    %384 = vmatprep.subr.mxu0 0.0
    %385 = vmatpush1.msra.mxu0 %v219
    %386 = vmatprep.subr.mxu0 0.0
    %387 = vmatpush1.msra.mxu0 %v222
    %388 = vmatprep.subr.mxu0 0.0
    %389 = vmatpush1.msra.mxu0 %v225
    %390 = vmatprep.subr.mxu0 0.0
    %391 = vmatpush1.msra.mxu0 %v228
    %392 = vmatprep.subr.mxu0 0.0
    %393 = vmatpush1.msra.mxu0 %v231
    %394 = vmatprep.subr.mxu0 0.0
    %395 = vmatpush1.msra.mxu0 0.0
    %396 = vmatprep.subr.mxu0 0.0
    %397 = vmatpush1.msra.mxu0 0.0
    %398 = vmatprep.subr.mxu0 0.0
    %399 = vmatpush1.msra.mxu0 0.0
    %400 = vmatprep.subr.mxu0 0.0
    %401 = vmatpush1.msra.mxu0 0.0
    %402 = vmatprep.subr.mxu0 0.0
    %403 = vmatpush1.msra.mxu0 0.0
    %404 = vmatprep.subr.mxu0 0.0
    %405 = vmatpush1.msra.mxu0 0.0
    %406 = vmatprep.subr.mxu0 0.0
    %407 = vmatpush1.msra.mxu0 0.0
    %408 = vmatprep.subr.mxu0 0.0
    %409 = vmatpush1.msra.mxu0 0.0
    %410 = vmatprep.subr.mxu0 0.0
    %411 = vmatpush1.msra.mxu0 0.0
    %412 = vmatprep.subr.mxu0 0.0
    %413 = vmatpush1.msra.mxu0 0.0
    %414 = vmatprep.subr.mxu0 0.0
    %415 = vmatpush1.msra.mxu0 0.0
    %416 = vmatprep.subr.mxu0 0.0
    %417 = vmatpush1.msra.mxu0 0.0
    %418 = vmatprep.subr.mxu0 0.0
    %419 = vmatpush1.msra.mxu0 0.0
    %420 = vmatprep.subr.mxu0 0.0
    %421 = vmatpush1.msra.mxu0 0.0
    %422 = vmatprep.subr.mxu0 0.0
    %423 = vmatpush1.msra.mxu0 0.0
    %424 = vmatprep.subr.mxu0 0.0
    %425 = vmatpush1.msra.mxu0 0.0
    %426 = vmatprep.mubr.f32.mxu0 0.0
    %427 = vmatmul.mubr.f32.gmra.mrb[0].mxu0 %v176
    %v428 = vpop.f32.mrb[0].mxu0
    %v429 = vadd.f32 %v245, %v428
    %v430 = vpop.f32.mrb[0].mxu0
    %431 = vmatprep.mubr.f32.mxu0 0.0
    %432 = vmatmul.mubr.f32.gmra.mrb[0].mxu0 %v177
    %v433 = vpop.f32.mrb[0].mxu0
    %v434 = vadd.f32 %v245, %v433
    %v435 = vpop.f32.mrb[0].mxu0
    %436 = vmatprep.mubr.f32.mxu0 0.0
    %437 = vmatmul.mubr.f32.gmra.mrb[0].mxu0 %v178
    %v438 = vpop.f32.mrb[0].mxu0
    %v439 = vadd.f32 %v245, %v438
    %v440 = vpop.f32.mrb[0].mxu0
    %441 = vmatprep.mubr.f32.mxu0 0.0
    %442 = vmatmul.mubr.f32.gmra.mrb[0].mxu0 %v179
    %v443 = vpop.f32.mrb[0].mxu0
    %v444 = vadd.f32 %v245, %v443
    %v445 = vpop.f32.mrb[0].mxu0
    %446 = vmatprep.mubr.f32.mxu0 0.0
    %447 = vmatmul.mubr.f32.gmra.mrb[0].mxu0 %v180
    %v448 = vpop.f32.mrb[0].mxu0
    %v449 = vadd.f32 %v245, %v448
    %v450 = vpop.f32.mrb[0].mxu0
    %451 = vmatprep.mubr.f32.mxu0 0.0
    %452 = vmatmul.mubr.f32.gmra.mrb[0].mxu0 %v181
    %v453 = vpop.f32.mrb[0].mxu0
    %v454 = vadd.f32 %v245, %v453
    %v455 = vpop.f32.mrb[0].mxu0
    %456 = vmatprep.mubr.f32.mxu0 0.0
    %457 = vmatmul.mubr.f32.gmra.mrb[0].mxu0 %v182
    %v458 = vpop.f32.mrb[0].mxu0
    %v459 = vadd.f32 %v245, %v458
    %v460 = vpop.f32.mrb[0].mxu0
    %461 = vmatprep.mubr.f32.mxu0 0.0
    %462 = vmatmul.mubr.f32.gmra.mrb[0].mxu0 %v183
    %v463 = vpop.f32.mrb[0].mxu0
    %v464 = vadd.f32 %v245, %v463
    %v465 = vpop.f32.mrb[0].mxu0
    %466 = vdwg.mxu0
    %467 = vst [vmem:[#allocation6] sm:$0xff] %v316
    %468 = vst [vmem:[#allocation6 + $0x8] sm:$0xff] %v318
    %469 = vst [vmem:[#allocation6 + $0x10] sm:$0xff] %v429
    %470 = vst [vmem:[#allocation6 + $0x18] sm:$0xff] %v322
    %471 = vst [vmem:[#allocation6 + $0x20] sm:$0xff] %v324
    %472 = vst [vmem:[#allocation6 + $0x28] sm:$0xff] %v434
    %473 = vst [vmem:[#allocation6 + $0x30] sm:$0xff] %v328
    %474 = vst [vmem:[#allocation6 + $0x38] sm:$0xff] %v330
    %475 = vst [vmem:[#allocation6 + $0x40] sm:$0xff] %v439
    %476 = vst [vmem:[#allocation6 + $0x48] sm:$0xff] %v334
    %477 = vst [vmem:[#allocation6 + $0x50] sm:$0xff] %v336
    %478 = vst [vmem:[#allocation6 + $0x58] sm:$0xff] %v444
    %479 = vst [vmem:[#allocation6 + $0x60] sm:$0xff] %v340
    %480 = vst [vmem:[#allocation6 + $0x68] sm:$0xff] %v342
    %481 = vst [vmem:[#allocation6 + $0x70] sm:$0xff] %v449
    %482 = vst [vmem:[#allocation6 + $0x78] sm:$0xff] %v346
    %483 = vst [vmem:[#allocation6 + $0x80] sm:$0xff] %v348
    %484 = vst [vmem:[#allocation6 + $0x88] sm:$0xff] %v454
    %485 = vst [vmem:[#allocation6 + $0x90] sm:$0xff] %v352
    %486 = vst [vmem:[#allocation6 + $0x98] sm:$0xff] %v354
    %487 = vst [vmem:[#allocation6 + $0xa0] sm:$0xff] %v459
    %488 = vst [vmem:[#allocation6 + $0xa8] sm:$0xff] %v358
    %489 = vst [vmem:[#allocation6 + $0xb0] sm:$0xff] %v360
    %490 = vst [vmem:[#allocation6 + $0xb8] sm:$0xff] %v464
    %v491 = vld [vmem:[#allocation13] sm:$0xff]
    %v492 = vld [vmem:[#allocation13 + $0x8] sm:$0xff]
    %v493 = vld [vmem:[#allocation13 + $0x10] sm:$0xff]
    %v494 = vld [vmem:[#allocation13 + $0x18] sm:$0xff]
    %v495 = vld [vmem:[#allocation13 + $0x20] sm:$0xff]
    %v496 = vld [vmem:[#allocation13 + $0x28] sm:$0xff]
    %v497 = vld [vmem:[#allocation13 + $0x30] sm:$0xff]
    %v498 = vld [vmem:[#allocation13 + $0x38] sm:$0xff]
    %v499 = vld [vmem:[#allocation13 + $0x40] sm:$0xff]
    %v500 = vld [vmem:[#allocation13 + $0x48] sm:$0xff]
    %v501 = vld [vmem:[#allocation13 + $0x50] sm:$0xff]
    %v502 = vld [vmem:[#allocation13 + $0x58] sm:$0xff]
    %v503 = vld [vmem:[#allocation13 + $0x60] sm:$0xff]
    %v504 = vld [vmem:[#allocation13 + $0x68] sm:$0xff]
    %v505 = vld [vmem:[#allocation13 + $0x70] sm:$0xff]
    %v506 = vld [vmem:[#allocation13 + $0x78] sm:$0xff]
    %v507 = vld [vmem:[#allocation13 + $0x80] sm:$0xff]
    %v508 = vld [vmem:[#allocation13 + $0x88] sm:$0xff]
    %v509 = vld [vmem:[#allocation13 + $0x90] sm:$0xff]
    %v510 = vld [vmem:[#allocation13 + $0x98] sm:$0xff]
    %v511 = vld [vmem:[#allocation13 + $0xa0] sm:$0xff]
    %v512 = vld [vmem:[#allocation13 + $0xa8] sm:$0xff]
    %v513 = vld [vmem:[#allocation13 + $0xb0] sm:$0xff]
    %v514 = vld [vmem:[#allocation13 + $0xb8] sm:$0xff]
    %v515 = vld [vmem:[#allocation13 + $0xc0] sm:$0xff]
    %v516 = vld [vmem:[#allocation13 + $0xc8] sm:$0xff]
    %v517 = vld [vmem:[#allocation13 + $0xd0] sm:$0xff]
    %v518 = vld [vmem:[#allocation13 + $0xd8] sm:$0xff]
    %v519 = vld [vmem:[#allocation13 + $0xe0] sm:$0xff]
    %v520 = vld [vmem:[#allocation13 + $0xe8] sm:$0xff]
    %v521 = vld [vmem:[#allocation13 + $0xf0] sm:$0xff]
    %v522 = vld [vmem:[#allocation13 + $0xf8] sm:$0xff]
    %v523 = vld [vmem:[#allocation13 + $0x100] sm:$0xff]
    %v524 = vld [vmem:[#allocation13 + $0x108] sm:$0xff]
    %v525 = vld [vmem:[#allocation13 + $0x110] sm:$0xff]
    %v526 = vld [vmem:[#allocation13 + $0x118] sm:$0xff]
    %v527 = vld [vmem:[#allocation13 + $0x120] sm:$0xff]
    %v528 = vld [vmem:[#allocation13 + $0x128] sm:$0xff]
    %v529 = vld [vmem:[#allocation13 + $0x130] sm:$0xff]
    %v530 = vld [vmem:[#allocation13 + $0x138] sm:$0xff]
    %v531 = vld [vmem:[#allocation13 + $0x140] sm:$0xff]
    %v532 = vld [vmem:[#allocation13 + $0x148] sm:$0xff]
    %v533 = vld [vmem:[#allocation13 + $0x150] sm:$0xff]
    %v534 = vld [vmem:[#allocation13 + $0x158] sm:$0xff]
    %v535 = vld [vmem:[#allocation13 + $0x160] sm:$0xff]
    %v536 = vld [vmem:[#allocation13 + $0x168] sm:$0xff]
    %v537 = vld [vmem:[#allocation13 + $0x170] sm:$0xff]
    %v538 = vld [vmem:[#allocation13 + $0x178] sm:$0xff]
    %v539 = vld [vmem:[%s4] sm:$0x1]
    %v540 = vld [vmem:[#allocation7] sm:$0xff]
    %541 = vmatprep.subr.mxu0 %v492
    %542 = vmatpush1.msra.mxu0 %v491
    %543 = vmatprep.subr.mxu0 %v495
    %544 = vmatpush1.msra.mxu0 %v494
    %545 = vmatprep.subr.mxu0 %v498
    %546 = vmatpush1.msra.mxu0 %v497
    %547 = vmatprep.subr.mxu0 %v501
    %548 = vmatpush1.msra.mxu0 %v500
    %549 = vmatprep.subr.mxu0 %v504
    %550 = vmatpush1.msra.mxu0 %v503
    %551 = vmatprep.subr.mxu0 %v507
    %552 = vmatpush1.msra.mxu0 %v506
    %553 = vmatprep.subr.mxu0 %v510
    %554 = vmatpush1.msra.mxu0 %v509
    %555 = vmatprep.subr.mxu0 %v513
    %556 = vmatpush1.msra.mxu0 %v512
    %557 = vmatprep.subr.mxu0 %v516
    %558 = vmatpush1.msra.mxu0 %v515
    %559 = vmatprep.subr.mxu0 %v519
    %560 = vmatpush1.msra.mxu0 %v518
    %561 = vmatprep.subr.mxu0 %v522
    %562 = vmatpush1.msra.mxu0 %v521
    %563 = vmatprep.subr.mxu0 %v525
    %564 = vmatpush1.msra.mxu0 %v524
    %565 = vmatprep.subr.mxu0 %v528
    %566 = vmatpush1.msra.mxu0 %v527
    %567 = vmatprep.subr.mxu0 %v531
    %568 = vmatpush1.msra.mxu0 %v530
    %569 = vmatprep.subr.mxu0 %v534
    %570 = vmatpush1.msra.mxu0 %v533
    %571 = vmatprep.subr.mxu0 %v537
    %572 = vmatpush1.msra.mxu0 %v536
    %573 = vmatprep.subr.mxu0 0.0
    %574 = vmatpush1.msra.mxu0 0.0
    %575 = vmatprep.subr.mxu0 0.0
    %576 = vmatpush1.msra.mxu0 0.0
    %577 = vmatprep.subr.mxu0 0.0
    %578 = vmatpush1.msra.mxu0 0.0
    %579 = vmatprep.subr.mxu0 0.0
    %580 = vmatpush1.msra.mxu0 0.0
    %581 = vmatprep.subr.mxu0 0.0
    %582 = vmatpush1.msra.mxu0 0.0
    %583 = vmatprep.subr.mxu0 0.0
    %584 = vmatpush1.msra.mxu0 0.0
    %585 = vmatprep.subr.mxu0 0.0
    %586 = vmatpush1.msra.mxu0 0.0
    %587 = vmatprep.subr.mxu0 0.0
    %588 = vmatpush1.msra.mxu0 0.0
    %589 = vmatprep.subr.mxu0 0.0
    %590 = vmatpush1.msra.mxu0 0.0
    %591 = vmatprep.subr.mxu0 0.0
    %592 = vmatpush1.msra.mxu0 0.0
    %593 = vmatprep.subr.mxu0 0.0
    %594 = vmatpush1.msra.mxu0 0.0
    %595 = vmatprep.subr.mxu0 0.0
    %596 = vmatpush1.msra.mxu0 0.0
    %597 = vmatprep.subr.mxu0 0.0
    %598 = vmatpush1.msra.mxu0 0.0
    %599 = vmatprep.subr.mxu0 0.0
    %600 = vmatpush1.msra.mxu0 0.0
    %601 = vmatprep.subr.mxu0 0.0
    %602 = vmatpush1.msra.mxu0 0.0
    %603 = vmatprep.subr.mxu0 0.0
    %604 = vmatpush1.msra.mxu0 0.0
    %605 = vmatprep.mubr.f32.mxu0 0.0
    %606 = vmatmul.mubr.f32.gmra.mrb[0].mxu0 %v540
    %v607 = vpop.f32.mrb[0].mxu0
    %v608 = vadd.f32 0.0, %v607
    %v609 = vpop.f32.mrb[0].mxu0
    %v610 = vadd.f32 0.0, %v609
    %611 = vdwg.mxu0
    %612 = vmatprep.subr.mxu0 0.0
    %613 = vmatpush1.msra.mxu0 %v493
    %614 = vmatprep.subr.mxu0 0.0
    %615 = vmatpush1.msra.mxu0 %v496
    %616 = vmatprep.subr.mxu0 0.0
    %617 = vmatpush1.msra.mxu0 %v499
    %618 = vmatprep.subr.mxu0 0.0
    %619 = vmatpush1.msra.mxu0 %v502
    %620 = vmatprep.subr.mxu0 0.0
    %621 = vmatpush1.msra.mxu0 %v505
    %622 = vmatprep.subr.mxu0 0.0
    %623 = vmatpush1.msra.mxu0 %v508
    %624 = vmatprep.subr.mxu0 0.0
    %625 = vmatpush1.msra.mxu0 %v511
    %626 = vmatprep.subr.mxu0 0.0
    %627 = vmatpush1.msra.mxu0 %v514
    %628 = vmatprep.subr.mxu0 0.0
    %629 = vmatpush1.msra.mxu0 %v517
    %630 = vmatprep.subr.mxu0 0.0
    %631 = vmatpush1.msra.mxu0 %v520
    %632 = vmatprep.subr.mxu0 0.0
    %633 = vmatpush1.msra.mxu0 %v523
    %634 = vmatprep.subr.mxu0 0.0
    %635 = vmatpush1.msra.mxu0 %v526
    %636 = vmatprep.subr.mxu0 0.0
    %637 = vmatpush1.msra.mxu0 %v529
    %638 = vmatprep.subr.mxu0 0.0
    %639 = vmatpush1.msra.mxu0 %v532
    %640 = vmatprep.subr.mxu0 0.0
    %641 = vmatpush1.msra.mxu0 %v535
    %642 = vmatprep.subr.mxu0 0.0
    %643 = vmatpush1.msra.mxu0 %v538
    %644 = vmatprep.subr.mxu0 0.0
    %645 = vmatpush1.msra.mxu0 0.0
    %646 = vmatprep.subr.mxu0 0.0
    %647 = vmatpush1.msra.mxu0 0.0
    %648 = vmatprep.subr.mxu0 0.0
    %649 = vmatpush1.msra.mxu0 0.0
    %650 = vmatprep.subr.mxu0 0.0
    %651 = vmatpush1.msra.mxu0 0.0
    %652 = vmatprep.subr.mxu0 0.0
    %653 = vmatpush1.msra.mxu0 0.0
    %654 = vmatprep.subr.mxu0 0.0
    %655 = vmatpush1.msra.mxu0 0.0
    %656 = vmatprep.subr.mxu0 0.0
    %657 = vmatpush1.msra.mxu0 0.0
    %658 = vmatprep.subr.mxu0 0.0
    %659 = vmatpush1.msra.mxu0 0.0
    %660 = vmatprep.subr.mxu0 0.0
    %661 = vmatpush1.msra.mxu0 0.0
    %662 = vmatprep.subr.mxu0 0.0
    %663 = vmatpush1.msra.mxu0 0.0
    %664 = vmatprep.subr.mxu0 0.0
    %665 = vmatpush1.msra.mxu0 0.0
    %666 = vmatprep.subr.mxu0 0.0
    %667 = vmatpush1.msra.mxu0 0.0
    %668 = vmatprep.subr.mxu0 0.0
    %669 = vmatpush1.msra.mxu0 0.0
    %670 = vmatprep.subr.mxu0 0.0
    %671 = vmatpush1.msra.mxu0 0.0
    %672 = vmatprep.subr.mxu0 0.0
    %673 = vmatpush1.msra.mxu0 0.0
    %674 = vmatprep.subr.mxu0 0.0
    %675 = vmatpush1.msra.mxu0 0.0
    %676 = vmatprep.mubr.f32.mxu0 0.0
    %677 = vmatmul.mubr.f32.gmra.mrb[0].mxu0 %v540
    %v678 = vpop.f32.mrb[0].mxu0
    %v679 = vadd.f32 0.0, %v678
    %v680 = vpop.f32.mrb[0].mxu0
    %681 = vdwg.mxu0
    %s682 = smul.u32 0, 3
    %s683 = smul.addr %s682, 8
    %s684 = scalar_lea.vmem [#allocation6], %s683
    %v685 = vld [vmem:[%s684] sm:$0xff]
    %v686 = vld [vmem:[%s684 + $0x8] sm:$0xff]
    %v687 = vld [vmem:[%s684 + $0x10] sm:$0xff]
    %v688 = vadd.f32 %v685, %v608
    %v689 = vxor.u32 %v688, 2147483648
    %v690 = vmul.f32 %v689, 1.442695
    %v691 = vpow.pop %v690
    %v692 = vadd.f32 %v691, 1.0
    %v693 = vrcp.pop %v692
    %v694 = vmul.f32 1.0, %v693
    %v695 = vadd.f32 %v686, %v610
    %v696 = vxor.u32 %v695, 2147483648
    %v697 = vmul.f32 %v696, 1.442695
    %v698 = vpow.pop %v697
    %v699 = vadd.f32 %v698, 1.0
    %v700 = vrcp.pop %v699
    %v701 = vmul.f32 1.0, %v700
    %v703 = vlaneseq
    %v704 = vshrl.u32 %v703, 7
    %v705 = vsub.s32 0, %v704
    %v706 = vrot.slane %v539, %v705
    %v708 = vadd.f32 %v679, %v706
    %v709 = vmul.f32 %v694, %v708
    %v710 = vadd.f32 %v687, %v709
    %v711 = vtanh.pop %v710
    %v712 = vsub.f32 1.0, %v701
    %v713 = vmul.f32 %v712, %v711
    %v714 = vmul.f32 %v701, %v540
    %v715 = vadd.f32 %v713, %v714
    %716 = vst [vmem:[#allocation2] sm:$0xff] %v715
    %717 = vmatprep.subr.mxu0 %v492
    %718 = vmatpush1.msra.mxu0 %v491
    %719 = vmatprep.subr.mxu0 %v495
    %720 = vmatpush1.msra.mxu0 %v494
    %721 = vmatprep.subr.mxu0 %v498
    %722 = vmatpush1.msra.mxu0 %v497
    %723 = vmatprep.subr.mxu0 %v501
    %724 = vmatpush1.msra.mxu0 %v500
    %725 = vmatprep.subr.mxu0 %v504
    %726 = vmatpush1.msra.mxu0 %v503
    %727 = vmatprep.subr.mxu0 %v507
    %728 = vmatpush1.msra.mxu0 %v506
    %729 = vmatprep.subr.mxu0 %v510
    %730 = vmatpush1.msra.mxu0 %v509
    %731 = vmatprep.subr.mxu0 %v513
    %732 = vmatpush1.msra.mxu0 %v512
    %733 = vmatprep.subr.mxu0 %v516
    %734 = vmatpush1.msra.mxu0 %v515
    %735 = vmatprep.subr.mxu0 %v519
    %736 = vmatpush1.msra.mxu0 %v518
    %737 = vmatprep.subr.mxu0 %v522
    %738 = vmatpush1.msra.mxu0 %v521
    %739 = vmatprep.subr.mxu0 %v525
    %740 = vmatpush1.msra.mxu0 %v524
    %741 = vmatprep.subr.mxu0 %v528
    %742 = vmatpush1.msra.mxu0 %v527
    %743 = vmatprep.subr.mxu0 %v531
    %744 = vmatpush1.msra.mxu0 %v530
    %745 = vmatprep.subr.mxu0 %v534
    %746 = vmatpush1.msra.mxu0 %v533
    %747 = vmatprep.subr.mxu0 %v537
    %748 = vmatpush1.msra.mxu0 %v536
    %749 = vmatprep.subr.mxu0 0.0
    %750 = vmatpush1.msra.mxu0 0.0
    %751 = vmatprep.subr.mxu0 0.0
    %752 = vmatpush1.msra.mxu0 0.0
    %753 = vmatprep.subr.mxu0 0.0
    %754 = vmatpush1.msra.mxu0 0.0
    %755 = vmatprep.subr.mxu0 0.0
    %756 = vmatpush1.msra.mxu0 0.0
    %757 = vmatprep.subr.mxu0 0.0
    %758 = vmatpush1.msra.mxu0 0.0
    %759 = vmatprep.subr.mxu0 0.0
    %760 = vmatpush1.msra.mxu0 0.0
    %761 = vmatprep.subr.mxu0 0.0
    %762 = vmatpush1.msra.mxu0 0.0
    %763 = vmatprep.subr.mxu0 0.0
    %764 = vmatpush1.msra.mxu0 0.0
    %765 = vmatprep.subr.mxu0 0.0
    %766 = vmatpush1.msra.mxu0 0.0
    %767 = vmatprep.subr.mxu0 0.0
    %768 = vmatpush1.msra.mxu0 0.0
    %769 = vmatprep.subr.mxu0 0.0
    %770 = vmatpush1.msra.mxu0 0.0
    %771 = vmatprep.subr.mxu0 0.0
    %772 = vmatpush1.msra.mxu0 0.0
    %773 = vmatprep.subr.mxu0 0.0
    %774 = vmatpush1.msra.mxu0 0.0
    %775 = vmatprep.subr.mxu0 0.0
    %776 = vmatpush1.msra.mxu0 0.0
    %777 = vmatprep.subr.mxu0 0.0
    %778 = vmatpush1.msra.mxu0 0.0
    %779 = vmatprep.subr.mxu0 0.0
    %780 = vmatpush1.msra.mxu0 0.0
    %781 = vmatprep.mubr.f32.mxu0 0.0
    %782 = vmatmul.mubr.f32.gmra.mrb[0].mxu0 %v715
    %v783 = vpop.f32.mrb[0].mxu0
    %v784 = vadd.f32 0.0, %v783
    %v785 = vpop.f32.mrb[0].mxu0
    %v786 = vadd.f32 0.0, %v785
    %787 = vdwg.mxu0
    %788 = vmatprep.subr.mxu0 0.0
    %789 = vmatpush1.msra.mxu0 %v493
    %790 = vmatprep.subr.mxu0 0.0
    %791 = vmatpush1.msra.mxu0 %v496
    %792 = vmatprep.subr.mxu0 0.0
    %793 = vmatpush1.msra.mxu0 %v499
    %794 = vmatprep.subr.mxu0 0.0
    %795 = vmatpush1.msra.mxu0 %v502
    %796 = vmatprep.subr.mxu0 0.0
    %797 = vmatpush1.msra.mxu0 %v505
    %798 = vmatprep.subr.mxu0 0.0
    %799 = vmatpush1.msra.mxu0 %v508
    %800 = vmatprep.subr.mxu0 0.0
    %801 = vmatpush1.msra.mxu0 %v511
    %802 = vmatprep.subr.mxu0 0.0
    %803 = vmatpush1.msra.mxu0 %v514
    %804 = vmatprep.subr.mxu0 0.0
    %805 = vmatpush1.msra.mxu0 %v517
    %806 = vmatprep.subr.mxu0 0.0
    %807 = vmatpush1.msra.mxu0 %v520
    %808 = vmatprep.subr.mxu0 0.0
    %809 = vmatpush1.msra.mxu0 %v523
    %810 = vmatprep.subr.mxu0 0.0
    %811 = vmatpush1.msra.mxu0 %v526
    %812 = vmatprep.subr.mxu0 0.0
    %813 = vmatpush1.msra.mxu0 %v529
    %814 = vmatprep.subr.mxu0 0.0
    %815 = vmatpush1.msra.mxu0 %v532
    %816 = vmatprep.subr.mxu0 0.0
    %817 = vmatpush1.msra.mxu0 %v535
    %818 = vmatprep.subr.mxu0 0.0
    %819 = vmatpush1.msra.mxu0 %v538
    %820 = vmatprep.subr.mxu0 0.0
    %821 = vmatpush1.msra.mxu0 0.0
    %822 = vmatprep.subr.mxu0 0.0
    %823 = vmatpush1.msra.mxu0 0.0
    %824 = vmatprep.subr.mxu0 0.0
    %825 = vmatpush1.msra.mxu0 0.0
    %826 = vmatprep.subr.mxu0 0.0
    %827 = vmatpush1.msra.mxu0 0.0
    %828 = vmatprep.subr.mxu0 0.0
    %829 = vmatpush1.msra.mxu0 0.0
    %830 = vmatprep.subr.mxu0 0.0
    %831 = vmatpush1.msra.mxu0 0.0
    %832 = vmatprep.subr.mxu0 0.0
    %833 = vmatpush1.msra.mxu0 0.0
    %834 = vmatprep.subr.mxu0 0.0
    %835 = vmatpush1.msra.mxu0 0.0
    %836 = vmatprep.subr.mxu0 0.0
    %837 = vmatpush1.msra.mxu0 0.0
    %838 = vmatprep.subr.mxu0 0.0
    %839 = vmatpush1.msra.mxu0 0.0
    %840 = vmatprep.subr.mxu0 0.0
    %841 = vmatpush1.msra.mxu0 0.0
    %842 = vmatprep.subr.mxu0 0.0
    %843 = vmatpush1.msra.mxu0 0.0
    %844 = vmatprep.subr.mxu0 0.0
    %845 = vmatpush1.msra.mxu0 0.0
    %846 = vmatprep.subr.mxu0 0.0
    %847 = vmatpush1.msra.mxu0 0.0
    %848 = vmatprep.subr.mxu0 0.0
    %849 = vmatpush1.msra.mxu0 0.0
    %850 = vmatprep.subr.mxu0 0.0
    %851 = vmatpush1.msra.mxu0 0.0
    %852 = vmatprep.mubr.f32.mxu0 0.0
    %853 = vmatmul.mubr.f32.gmra.mrb[0].mxu0 %v715
    %v854 = vpop.f32.mrb[0].mxu0
    %v855 = vadd.f32 0.0, %v854
    %v856 = vpop.f32.mrb[0].mxu0
    %857 = vdwg.mxu0
    %s858 = smul.u32 1, 3
    %s859 = smul.addr %s858, 8
    %s860 = scalar_lea.vmem [#allocation6], %s859
    %v861 = vld [vmem:[%s860] sm:$0xff]
    %v862 = vld [vmem:[%s860 + $0x8] sm:$0xff]
    %v863 = vld [vmem:[%s860 + $0x10] sm:$0xff]
    %v864 = vadd.f32 %v861, %v784
    %v865 = vxor.u32 %v864, 2147483648
    %v866 = vmul.f32 %v865, 1.442695
    %v867 = vpow.pop %v866
    %v868 = vadd.f32 %v867, 1.0
    %v869 = vrcp.pop %v868
    %v870 = vmul.f32 1.0, %v869
    %v871 = vadd.f32 %v862, %v786
    %v872 = vxor.u32 %v871, 2147483648
    %v873 = vmul.f32 %v872, 1.442695
    %v874 = vpow.pop %v873
    %v875 = vadd.f32 %v874, 1.0
    %v876 = vrcp.pop %v875
    %v877 = vmul.f32 1.0, %v876
    %v878 = vadd.f32 %v855, %v706
    %v879 = vmul.f32 %v870, %v878
    %v880 = vadd.f32 %v863, %v879
    %v881 = vtanh.pop %v880
    %v882 = vsub.f32 1.0, %v877
    %v883 = vmul.f32 %v882, %v881
    %v884 = vmul.f32 %v877, %v715
    %v885 = vadd.f32 %v883, %v884
    %s886 = scalar_lea.vmem [#allocation2], 8
    %887 = vst [vmem:[%s886] sm:$0xff] %v885
    %888 = vmatprep.subr.mxu0 %v492
    %889 = vmatpush1.msra.mxu0 %v491
    %890 = vmatprep.subr.mxu0 %v495
    %891 = vmatpush1.msra.mxu0 %v494
    %892 = vmatprep.subr.mxu0 %v498
    %893 = vmatpush1.msra.mxu0 %v497
    %894 = vmatprep.subr.mxu0 %v501
    %895 = vmatpush1.msra.mxu0 %v500
    %896 = vmatprep.subr.mxu0 %v504
    %897 = vmatpush1.msra.mxu0 %v503
    %898 = vmatprep.subr.mxu0 %v507
    %899 = vmatpush1.msra.mxu0 %v506
    %900 = vmatprep.subr.mxu0 %v510
    %901 = vmatpush1.msra.mxu0 %v509
    %902 = vmatprep.subr.mxu0 %v513
    %903 = vmatpush1.msra.mxu0 %v512
    %904 = vmatprep.subr.mxu0 %v516
    %905 = vmatpush1.msra.mxu0 %v515
    %906 = vmatprep.subr.mxu0 %v519
    %907 = vmatpush1.msra.mxu0 %v518
    %908 = vmatprep.subr.mxu0 %v522
    %909 = vmatpush1.msra.mxu0 %v521
    %910 = vmatprep.subr.mxu0 %v525
    %911 = vmatpush1.msra.mxu0 %v524
    %912 = vmatprep.subr.mxu0 %v528
    %913 = vmatpush1.msra.mxu0 %v527
    %914 = vmatprep.subr.mxu0 %v531
    %915 = vmatpush1.msra.mxu0 %v530
    %916 = vmatprep.subr.mxu0 %v534
    %917 = vmatpush1.msra.mxu0 %v533
    %918 = vmatprep.subr.mxu0 %v537
    %919 = vmatpush1.msra.mxu0 %v536
    %920 = vmatprep.subr.mxu0 0.0
    %921 = vmatpush1.msra.mxu0 0.0
    %922 = vmatprep.subr.mxu0 0.0
    %923 = vmatpush1.msra.mxu0 0.0
    %924 = vmatprep.subr.mxu0 0.0
    %925 = vmatpush1.msra.mxu0 0.0
    %926 = vmatprep.subr.mxu0 0.0
    %927 = vmatpush1.msra.mxu0 0.0
    %928 = vmatprep.subr.mxu0 0.0
    %929 = vmatpush1.msra.mxu0 0.0
    %930 = vmatprep.subr.mxu0 0.0
    %931 = vmatpush1.msra.mxu0 0.0
    %932 = vmatprep.subr.mxu0 0.0
    %933 = vmatpush1.msra.mxu0 0.0
    %934 = vmatprep.subr.mxu0 0.0
    %935 = vmatpush1.msra.mxu0 0.0
    %936 = vmatprep.subr.mxu0 0.0
    %937 = vmatpush1.msra.mxu0 0.0
    %938 = vmatprep.subr.mxu0 0.0
    %939 = vmatpush1.msra.mxu0 0.0
    %940 = vmatprep.subr.mxu0 0.0
    %941 = vmatpush1.msra.mxu0 0.0
    %942 = vmatprep.subr.mxu0 0.0
    %943 = vmatpush1.msra.mxu0 0.0
    %944 = vmatprep.subr.mxu0 0.0
    %945 = vmatpush1.msra.mxu0 0.0
    %946 = vmatprep.subr.mxu0 0.0
    %947 = vmatpush1.msra.mxu0 0.0
    %948 = vmatprep.subr.mxu0 0.0
    %949 = vmatpush1.msra.mxu0 0.0
    %950 = vmatprep.subr.mxu0 0.0
    %951 = vmatpush1.msra.mxu0 0.0
    %952 = vmatprep.mubr.f32.mxu0 0.0
    %953 = vmatmul.mubr.f32.gmra.mrb[0].mxu0 %v885
    %v954 = vpop.f32.mrb[0].mxu0
    %v955 = vadd.f32 0.0, %v954
    %v956 = vpop.f32.mrb[0].mxu0
    %v957 = vadd.f32 0.0, %v956
    %958 = vdwg.mxu0
    %959 = vmatprep.subr.mxu0 0.0
    %960 = vmatpush1.msra.mxu0 %v493
    %961 = vmatprep.subr.mxu0 0.0
    %962 = vmatpush1.msra.mxu0 %v496
    %963 = vmatprep.subr.mxu0 0.0
    %964 = vmatpush1.msra.mxu0 %v499
    %965 = vmatprep.subr.mxu0 0.0
    %966 = vmatpush1.msra.mxu0 %v502
    %967 = vmatprep.subr.mxu0 0.0
    %968 = vmatpush1.msra.mxu0 %v505
    %969 = vmatprep.subr.mxu0 0.0
    %970 = vmatpush1.msra.mxu0 %v508
    %971 = vmatprep.subr.mxu0 0.0
    %972 = vmatpush1.msra.mxu0 %v511
    %973 = vmatprep.subr.mxu0 0.0
    %974 = vmatpush1.msra.mxu0 %v514
    %975 = vmatprep.subr.mxu0 0.0
    %976 = vmatpush1.msra.mxu0 %v517
    %977 = vmatprep.subr.mxu0 0.0
    %978 = vmatpush1.msra.mxu0 %v520
    %979 = vmatprep.subr.mxu0 0.0
    %980 = vmatpush1.msra.mxu0 %v523
    %981 = vmatprep.subr.mxu0 0.0
    %982 = vmatpush1.msra.mxu0 %v526
    %983 = vmatprep.subr.mxu0 0.0
    %984 = vmatpush1.msra.mxu0 %v529
    %985 = vmatprep.subr.mxu0 0.0
    %986 = vmatpush1.msra.mxu0 %v532
    %987 = vmatprep.subr.mxu0 0.0
    %988 = vmatpush1.msra.mxu0 %v535
    %989 = vmatprep.subr.mxu0 0.0
    %990 = vmatpush1.msra.mxu0 %v538
    %991 = vmatprep.subr.mxu0 0.0
    %992 = vmatpush1.msra.mxu0 0.0
    %993 = vmatprep.subr.mxu0 0.0
    %994 = vmatpush1.msra.mxu0 0.0
    %995 = vmatprep.subr.mxu0 0.0
    %996 = vmatpush1.msra.mxu0 0.0
    %997 = vmatprep.subr.mxu0 0.0
    %998 = vmatpush1.msra.mxu0 0.0
    %999 = vmatprep.subr.mxu0 0.0
    %1000 = vmatpush1.msra.mxu0 0.0
    %1001 = vmatprep.subr.mxu0 0.0
    %1002 = vmatpush1.msra.mxu0 0.0
    %1003 = vmatprep.subr.mxu0 0.0
    %1004 = vmatpush1.msra.mxu0 0.0
    %1005 = vmatprep.subr.mxu0 0.0
    %1006 = vmatpush1.msra.mxu0 0.0
    %1007 = vmatprep.subr.mxu0 0.0
    %1008 = vmatpush1.msra.mxu0 0.0
    %1009 = vmatprep.subr.mxu0 0.0
    %1010 = vmatpush1.msra.mxu0 0.0
    %1011 = vmatprep.subr.mxu0 0.0
    %1012 = vmatpush1.msra.mxu0 0.0
    %1013 = vmatprep.subr.mxu0 0.0
    %1014 = vmatpush1.msra.mxu0 0.0
    %1015 = vmatprep.subr.mxu0 0.0
    %1016 = vmatpush1.msra.mxu0 0.0
    %1017 = vmatprep.subr.mxu0 0.0
    %1018 = vmatpush1.msra.mxu0 0.0
    %1019 = vmatprep.subr.mxu0 0.0
    %1020 = vmatpush1.msra.mxu0 0.0
    %1021 = vmatprep.subr.mxu0 0.0
    %1022 = vmatpush1.msra.mxu0 0.0
    %1023 = vmatprep.mubr.f32.mxu0 0.0
    %1024 = vmatmul.mubr.f32.gmra.mrb[0].mxu0 %v885
    %v1025 = vpop.f32.mrb[0].mxu0
    %v1026 = vadd.f32 0.0, %v1025
    %v1027 = vpop.f32.mrb[0].mxu0
    %1028 = vdwg.mxu0
    %s1029 = smul.u32 2, 3
    %s1030 = smul.addr %s1029, 8
    %s1031 = scalar_lea.vmem [#allocation6], %s1030
    %v1032 = vld [vmem:[%s1031] sm:$0xff]
    %v1033 = vld [vmem:[%s1031 + $0x8] sm:$0xff]
    %v1034 = vld [vmem:[%s1031 + $0x10] sm:$0xff]
    %v1035 = vadd.f32 %v1032, %v955
    %v1036 = vxor.u32 %v1035, 2147483648
    %v1037 = vmul.f32 %v1036, 1.442695
    %v1038 = vpow.pop %v1037
    %v1039 = vadd.f32 %v1038, 1.0
    %v1040 = vrcp.pop %v1039
    %v1041 = vmul.f32 1.0, %v1040
    %v1042 = vadd.f32 %v1033, %v957
    %v1043 = vxor.u32 %v1042, 2147483648
    %v1044 = vmul.f32 %v1043, 1.442695
    %v1045 = vpow.pop %v1044
    %v1046 = vadd.f32 %v1045, 1.0
    %v1047 = vrcp.pop %v1046
    %v1048 = vmul.f32 1.0, %v1047
    %v1049 = vadd.f32 %v1026, %v706
    %v1050 = vmul.f32 %v1041, %v1049
    %v1051 = vadd.f32 %v1034, %v1050
    %v1052 = vtanh.pop %v1051
    %v1053 = vsub.f32 1.0, %v1048
    %v1054 = vmul.f32 %v1053, %v1052
    %v1055 = vmul.f32 %v1048, %v885
    %v1056 = vadd.f32 %v1054, %v1055
    %s1057 = scalar_lea.vmem [#allocation2], 16
    %1058 = vst [vmem:[%s1057] sm:$0xff] %v1056
    %1059 = vmatprep.subr.mxu0 %v492
    %1060 = vmatpush1.msra.mxu0 %v491
    %1061 = vmatprep.subr.mxu0 %v495
    %1062 = vmatpush1.msra.mxu0 %v494
    %1063 = vmatprep.subr.mxu0 %v498
    %1064 = vmatpush1.msra.mxu0 %v497
    %1065 = vmatprep.subr.mxu0 %v501
    %1066 = vmatpush1.msra.mxu0 %v500
    %1067 = vmatprep.subr.mxu0 %v504
    %1068 = vmatpush1.msra.mxu0 %v503
    %1069 = vmatprep.subr.mxu0 %v507
    %1070 = vmatpush1.msra.mxu0 %v506
    %1071 = vmatprep.subr.mxu0 %v510
    %1072 = vmatpush1.msra.mxu0 %v509
    %1073 = vmatprep.subr.mxu0 %v513
    %1074 = vmatpush1.msra.mxu0 %v512
    %1075 = vmatprep.subr.mxu0 %v516
    %1076 = vmatpush1.msra.mxu0 %v515
    %1077 = vmatprep.subr.mxu0 %v519
    %1078 = vmatpush1.msra.mxu0 %v518
    %1079 = vmatprep.subr.mxu0 %v522
    %1080 = vmatpush1.msra.mxu0 %v521
    %1081 = vmatprep.subr.mxu0 %v525
    %1082 = vmatpush1.msra.mxu0 %v524
    %1083 = vmatprep.subr.mxu0 %v528
    %1084 = vmatpush1.msra.mxu0 %v527
    %1085 = vmatprep.subr.mxu0 %v531
    %1086 = vmatpush1.msra.mxu0 %v530
    %1087 = vmatprep.subr.mxu0 %v534
    %1088 = vmatpush1.msra.mxu0 %v533
    %1089 = vmatprep.subr.mxu0 %v537
    %1090 = vmatpush1.msra.mxu0 %v536
    %1091 = vmatprep.subr.mxu0 0.0
    %1092 = vmatpush1.msra.mxu0 0.0
    %1093 = vmatprep.subr.mxu0 0.0
    %1094 = vmatpush1.msra.mxu0 0.0
    %1095 = vmatprep.subr.mxu0 0.0
    %1096 = vmatpush1.msra.mxu0 0.0
    %1097 = vmatprep.subr.mxu0 0.0
    %1098 = vmatpush1.msra.mxu0 0.0
    %1099 = vmatprep.subr.mxu0 0.0
    %1100 = vmatpush1.msra.mxu0 0.0
    %1101 = vmatprep.subr.mxu0 0.0
    %1102 = vmatpush1.msra.mxu0 0.0
    %1103 = vmatprep.subr.mxu0 0.0
    %1104 = vmatpush1.msra.mxu0 0.0
    %1105 = vmatprep.subr.mxu0 0.0
    %1106 = vmatpush1.msra.mxu0 0.0
    %1107 = vmatprep.subr.mxu0 0.0
    %1108 = vmatpush1.msra.mxu0 0.0
    %1109 = vmatprep.subr.mxu0 0.0
    %1110 = vmatpush1.msra.mxu0 0.0
    %1111 = vmatprep.subr.mxu0 0.0
    %1112 = vmatpush1.msra.mxu0 0.0
    %1113 = vmatprep.subr.mxu0 0.0
    %1114 = vmatpush1.msra.mxu0 0.0
    %1115 = vmatprep.subr.mxu0 0.0
    %1116 = vmatpush1.msra.mxu0 0.0
    %1117 = vmatprep.subr.mxu0 0.0
    %1118 = vmatpush1.msra.mxu0 0.0
    %1119 = vmatprep.subr.mxu0 0.0
    %1120 = vmatpush1.msra.mxu0 0.0
    %1121 = vmatprep.subr.mxu0 0.0
    %1122 = vmatpush1.msra.mxu0 0.0
    %1123 = vmatprep.mubr.f32.mxu0 0.0
    %1124 = vmatmul.mubr.f32.gmra.mrb[0].mxu0 %v1056
    %v1125 = vpop.f32.mrb[0].mxu0
    %v1126 = vadd.f32 0.0, %v1125
    %v1127 = vpop.f32.mrb[0].mxu0
    %v1128 = vadd.f32 0.0, %v1127
    %1129 = vdwg.mxu0
    %1130 = vmatprep.subr.mxu0 0.0
    %1131 = vmatpush1.msra.mxu0 %v493
    %1132 = vmatprep.subr.mxu0 0.0
    %1133 = vmatpush1.msra.mxu0 %v496
    %1134 = vmatprep.subr.mxu0 0.0
    %1135 = vmatpush1.msra.mxu0 %v499
    %1136 = vmatprep.subr.mxu0 0.0
    %1137 = vmatpush1.msra.mxu0 %v502
    %1138 = vmatprep.subr.mxu0 0.0
    %1139 = vmatpush1.msra.mxu0 %v505
    %1140 = vmatprep.subr.mxu0 0.0
    %1141 = vmatpush1.msra.mxu0 %v508
    %1142 = vmatprep.subr.mxu0 0.0
    %1143 = vmatpush1.msra.mxu0 %v511
    %1144 = vmatprep.subr.mxu0 0.0
    %1145 = vmatpush1.msra.mxu0 %v514
    %1146 = vmatprep.subr.mxu0 0.0
    %1147 = vmatpush1.msra.mxu0 %v517
    %1148 = vmatprep.subr.mxu0 0.0
    %1149 = vmatpush1.msra.mxu0 %v520
    %1150 = vmatprep.subr.mxu0 0.0
    %1151 = vmatpush1.msra.mxu0 %v523
    %1152 = vmatprep.subr.mxu0 0.0
    %1153 = vmatpush1.msra.mxu0 %v526
    %1154 = vmatprep.subr.mxu0 0.0
    %1155 = vmatpush1.msra.mxu0 %v529
    %1156 = vmatprep.subr.mxu0 0.0
    %1157 = vmatpush1.msra.mxu0 %v532
    %1158 = vmatprep.subr.mxu0 0.0
    %1159 = vmatpush1.msra.mxu0 %v535
    %1160 = vmatprep.subr.mxu0 0.0
    %1161 = vmatpush1.msra.mxu0 %v538
    %1162 = vmatprep.subr.mxu0 0.0
    %1163 = vmatpush1.msra.mxu0 0.0
    %1164 = vmatprep.subr.mxu0 0.0
    %1165 = vmatpush1.msra.mxu0 0.0
    %1166 = vmatprep.subr.mxu0 0.0
    %1167 = vmatpush1.msra.mxu0 0.0
    %1168 = vmatprep.subr.mxu0 0.0
    %1169 = vmatpush1.msra.mxu0 0.0
    %1170 = vmatprep.subr.mxu0 0.0
    %1171 = vmatpush1.msra.mxu0 0.0
    %1172 = vmatprep.subr.mxu0 0.0
    %1173 = vmatpush1.msra.mxu0 0.0
    %1174 = vmatprep.subr.mxu0 0.0
    %1175 = vmatpush1.msra.mxu0 0.0
    %1176 = vmatprep.subr.mxu0 0.0
    %1177 = vmatpush1.msra.mxu0 0.0
    %1178 = vmatprep.subr.mxu0 0.0
    %1179 = vmatpush1.msra.mxu0 0.0
    %1180 = vmatprep.subr.mxu0 0.0
    %1181 = vmatpush1.msra.mxu0 0.0
    %1182 = vmatprep.subr.mxu0 0.0
    %1183 = vmatpush1.msra.mxu0 0.0
    %1184 = vmatprep.subr.mxu0 0.0
    %1185 = vmatpush1.msra.mxu0 0.0
    %1186 = vmatprep.subr.mxu0 0.0
    %1187 = vmatpush1.msra.mxu0 0.0
    %1188 = vmatprep.subr.mxu0 0.0
    %1189 = vmatpush1.msra.mxu0 0.0
    %1190 = vmatprep.subr.mxu0 0.0
    %1191 = vmatpush1.msra.mxu0 0.0
    %1192 = vmatprep.subr.mxu0 0.0
    %1193 = vmatpush1.msra.mxu0 0.0
    %1194 = vmatprep.mubr.f32.mxu0 0.0
    %1195 = vmatmul.mubr.f32.gmra.mrb[0].mxu0 %v1056
    %v1196 = vpop.f32.mrb[0].mxu0
    %v1197 = vadd.f32 0.0, %v1196
    %v1198 = vpop.f32.mrb[0].mxu0
    %1199 = vdwg.mxu0
    %s1200 = smul.u32 3, 3
    %s1201 = smul.addr %s1200, 8
    %s1202 = scalar_lea.vmem [#allocation6], %s1201
    %v1203 = vld [vmem:[%s1202] sm:$0xff]
    %v1204 = vld [vmem:[%s1202 + $0x8] sm:$0xff]
    %v1205 = vld [vmem:[%s1202 + $0x10] sm:$0xff]
    %v1206 = vadd.f32 %v1203, %v1126
    %v1207 = vxor.u32 %v1206, 2147483648
    %v1208 = vmul.f32 %v1207, 1.442695
    %v1209 = vpow.pop %v1208
    %v1210 = vadd.f32 %v1209, 1.0
    %v1211 = vrcp.pop %v1210
    %v1212 = vmul.f32 1.0, %v1211
    %v1213 = vadd.f32 %v1204, %v1128
    %v1214 = vxor.u32 %v1213, 2147483648
    %v1215 = vmul.f32 %v1214, 1.442695
    %v1216 = vpow.pop %v1215
    %v1217 = vadd.f32 %v1216, 1.0
    %v1218 = vrcp.pop %v1217
    %v1219 = vmul.f32 1.0, %v1218
    %v1220 = vadd.f32 %v1197, %v706
    %v1221 = vmul.f32 %v1212, %v1220
    %v1222 = vadd.f32 %v1205, %v1221
    %v1223 = vtanh.pop %v1222
    %v1224 = vsub.f32 1.0, %v1219
    %v1225 = vmul.f32 %v1224, %v1223
    %v1226 = vmul.f32 %v1219, %v1056
    %v1227 = vadd.f32 %v1225, %v1226
    %s1228 = scalar_lea.vmem [#allocation2], 24
    %1229 = vst [vmem:[%s1228] sm:$0xff] %v1227
    %1230 = vmatprep.subr.mxu0 %v492
    %1231 = vmatpush1.msra.mxu0 %v491
    %1232 = vmatprep.subr.mxu0 %v495
    %1233 = vmatpush1.msra.mxu0 %v494
    %1234 = vmatprep.subr.mxu0 %v498
    %1235 = vmatpush1.msra.mxu0 %v497
    %1236 = vmatprep.subr.mxu0 %v501
    %1237 = vmatpush1.msra.mxu0 %v500
    %1238 = vmatprep.subr.mxu0 %v504
    %1239 = vmatpush1.msra.mxu0 %v503
    %1240 = vmatprep.subr.mxu0 %v507
    %1241 = vmatpush1.msra.mxu0 %v506
    %1242 = vmatprep.subr.mxu0 %v510
    %1243 = vmatpush1.msra.mxu0 %v509
    %1244 = vmatprep.subr.mxu0 %v513
    %1245 = vmatpush1.msra.mxu0 %v512
    %1246 = vmatprep.subr.mxu0 %v516
    %1247 = vmatpush1.msra.mxu0 %v515
    %1248 = vmatprep.subr.mxu0 %v519
    %1249 = vmatpush1.msra.mxu0 %v518
    %1250 = vmatprep.subr.mxu0 %v522
    %1251 = vmatpush1.msra.mxu0 %v521
    %1252 = vmatprep.subr.mxu0 %v525
    %1253 = vmatpush1.msra.mxu0 %v524
    %1254 = vmatprep.subr.mxu0 %v528
    %1255 = vmatpush1.msra.mxu0 %v527
    %1256 = vmatprep.subr.mxu0 %v531
    %1257 = vmatpush1.msra.mxu0 %v530
    %1258 = vmatprep.subr.mxu0 %v534
    %1259 = vmatpush1.msra.mxu0 %v533
    %1260 = vmatprep.subr.mxu0 %v537
    %1261 = vmatpush1.msra.mxu0 %v536
    %1262 = vmatprep.subr.mxu0 0.0
    %1263 = vmatpush1.msra.mxu0 0.0
    %1264 = vmatprep.subr.mxu0 0.0
    %1265 = vmatpush1.msra.mxu0 0.0
    %1266 = vmatprep.subr.mxu0 0.0
    %1267 = vmatpush1.msra.mxu0 0.0
    %1268 = vmatprep.subr.mxu0 0.0
    %1269 = vmatpush1.msra.mxu0 0.0
    %1270 = vmatprep.subr.mxu0 0.0
    %1271 = vmatpush1.msra.mxu0 0.0
    %1272 = vmatprep.subr.mxu0 0.0
    %1273 = vmatpush1.msra.mxu0 0.0
    %1274 = vmatprep.subr.mxu0 0.0
    %1275 = vmatpush1.msra.mxu0 0.0
    %1276 = vmatprep.subr.mxu0 0.0
    %1277 = vmatpush1.msra.mxu0 0.0
    %1278 = vmatprep.subr.mxu0 0.0
    %1279 = vmatpush1.msra.mxu0 0.0
    %1280 = vmatprep.subr.mxu0 0.0
    %1281 = vmatpush1.msra.mxu0 0.0
    %1282 = vmatprep.subr.mxu0 0.0
    %1283 = vmatpush1.msra.mxu0 0.0
    %1284 = vmatprep.subr.mxu0 0.0
    %1285 = vmatpush1.msra.mxu0 0.0
    %1286 = vmatprep.subr.mxu0 0.0
    %1287 = vmatpush1.msra.mxu0 0.0
    %1288 = vmatprep.subr.mxu0 0.0
    %1289 = vmatpush1.msra.mxu0 0.0
    %1290 = vmatprep.subr.mxu0 0.0
    %1291 = vmatpush1.msra.mxu0 0.0
    %1292 = vmatprep.subr.mxu0 0.0
    %1293 = vmatpush1.msra.mxu0 0.0
    %1294 = vmatprep.mubr.f32.mxu0 0.0
    %1295 = vmatmul.mubr.f32.gmra.mrb[0].mxu0 %v1227
    %v1296 = vpop.f32.mrb[0].mxu0
    %v1297 = vadd.f32 0.0, %v1296
    %v1298 = vpop.f32.mrb[0].mxu0
    %v1299 = vadd.f32 0.0, %v1298
    %1300 = vdwg.mxu0
    %1301 = vmatprep.subr.mxu0 0.0
    %1302 = vmatpush1.msra.mxu0 %v493
    %1303 = vmatprep.subr.mxu0 0.0
    %1304 = vmatpush1.msra.mxu0 %v496
    %1305 = vmatprep.subr.mxu0 0.0
    %1306 = vmatpush1.msra.mxu0 %v499
    %1307 = vmatprep.subr.mxu0 0.0
    %1308 = vmatpush1.msra.mxu0 %v502
    %1309 = vmatprep.subr.mxu0 0.0
    %1310 = vmatpush1.msra.mxu0 %v505
    %1311 = vmatprep.subr.mxu0 0.0
    %1312 = vmatpush1.msra.mxu0 %v508
    %1313 = vmatprep.subr.mxu0 0.0
    %1314 = vmatpush1.msra.mxu0 %v511
    %1315 = vmatprep.subr.mxu0 0.0
    %1316 = vmatpush1.msra.mxu0 %v514
    %1317 = vmatprep.subr.mxu0 0.0
    %1318 = vmatpush1.msra.mxu0 %v517
    %1319 = vmatprep.subr.mxu0 0.0
    %1320 = vmatpush1.msra.mxu0 %v520
    %1321 = vmatprep.subr.mxu0 0.0
    %1322 = vmatpush1.msra.mxu0 %v523
    %1323 = vmatprep.subr.mxu0 0.0
    %1324 = vmatpush1.msra.mxu0 %v526
    %1325 = vmatprep.subr.mxu0 0.0
    %1326 = vmatpush1.msra.mxu0 %v529
    %1327 = vmatprep.subr.mxu0 0.0
    %1328 = vmatpush1.msra.mxu0 %v532
    %1329 = vmatprep.subr.mxu0 0.0
    %1330 = vmatpush1.msra.mxu0 %v535
    %1331 = vmatprep.subr.mxu0 0.0
    %1332 = vmatpush1.msra.mxu0 %v538
    %1333 = vmatprep.subr.mxu0 0.0
    %1334 = vmatpush1.msra.mxu0 0.0
    %1335 = vmatprep.subr.mxu0 0.0
    %1336 = vmatpush1.msra.mxu0 0.0
    %1337 = vmatprep.subr.mxu0 0.0
    %1338 = vmatpush1.msra.mxu0 0.0
    %1339 = vmatprep.subr.mxu0 0.0
    %1340 = vmatpush1.msra.mxu0 0.0
    %1341 = vmatprep.subr.mxu0 0.0
    %1342 = vmatpush1.msra.mxu0 0.0
    %1343 = vmatprep.subr.mxu0 0.0
    %1344 = vmatpush1.msra.mxu0 0.0
    %1345 = vmatprep.subr.mxu0 0.0
    %1346 = vmatpush1.msra.mxu0 0.0
    %1347 = vmatprep.subr.mxu0 0.0
    %1348 = vmatpush1.msra.mxu0 0.0
    %1349 = vmatprep.subr.mxu0 0.0
    %1350 = vmatpush1.msra.mxu0 0.0
    %1351 = vmatprep.subr.mxu0 0.0
    %1352 = vmatpush1.msra.mxu0 0.0
    %1353 = vmatprep.subr.mxu0 0.0
    %1354 = vmatpush1.msra.mxu0 0.0
    %1355 = vmatprep.subr.mxu0 0.0
    %1356 = vmatpush1.msra.mxu0 0.0
    %1357 = vmatprep.subr.mxu0 0.0
    %1358 = vmatpush1.msra.mxu0 0.0
    %1359 = vmatprep.subr.mxu0 0.0
    %1360 = vmatpush1.msra.mxu0 0.0
    %1361 = vmatprep.subr.mxu0 0.0
    %1362 = vmatpush1.msra.mxu0 0.0
    %1363 = vmatprep.subr.mxu0 0.0
    %1364 = vmatpush1.msra.mxu0 0.0
    %1365 = vmatprep.mubr.f32.mxu0 0.0
    %1366 = vmatmul.mubr.f32.gmra.mrb[0].mxu0 %v1227
    %v1367 = vpop.f32.mrb[0].mxu0
    %v1368 = vadd.f32 0.0, %v1367
    %v1369 = vpop.f32.mrb[0].mxu0
    %1370 = vdwg.mxu0
    %s1371 = smul.u32 4, 3
    %s1372 = smul.addr %s1371, 8
    %s1373 = scalar_lea.vmem [#allocation6], %s1372
    %v1374 = vld [vmem:[%s1373] sm:$0xff]
    %v1375 = vld [vmem:[%s1373 + $0x8] sm:$0xff]
    %v1376 = vld [vmem:[%s1373 + $0x10] sm:$0xff]
    %v1377 = vadd.f32 %v1374, %v1297
    %v1378 = vxor.u32 %v1377, 2147483648
    %v1379 = vmul.f32 %v1378, 1.442695
    %v1380 = vpow.pop %v1379
    %v1381 = vadd.f32 %v1380, 1.0
    %v1382 = vrcp.pop %v1381
    %v1383 = vmul.f32 1.0, %v1382
    %v1384 = vadd.f32 %v1375, %v1299
    %v1385 = vxor.u32 %v1384, 2147483648
    %v1386 = vmul.f32 %v1385, 1.442695
    %v1387 = vpow.pop %v1386
    %v1388 = vadd.f32 %v1387, 1.0
    %v1389 = vrcp.pop %v1388
    %v1390 = vmul.f32 1.0, %v1389
    %v1391 = vadd.f32 %v1368, %v706
    %v1392 = vmul.f32 %v1383, %v1391
    %v1393 = vadd.f32 %v1376, %v1392
    %v1394 = vtanh.pop %v1393
    %v1395 = vsub.f32 1.0, %v1390
    %v1396 = vmul.f32 %v1395, %v1394
    %v1397 = vmul.f32 %v1390, %v1227
    %v1398 = vadd.f32 %v1396, %v1397
    %s1399 = scalar_lea.vmem [#allocation2], 32
    %1400 = vst [vmem:[%s1399] sm:$0xff] %v1398
    %1401 = vmatprep.subr.mxu0 %v492
    %1402 = vmatpush1.msra.mxu0 %v491
    %1403 = vmatprep.subr.mxu0 %v495
    %1404 = vmatpush1.msra.mxu0 %v494
    %1405 = vmatprep.subr.mxu0 %v498
    %1406 = vmatpush1.msra.mxu0 %v497
    %1407 = vmatprep.subr.mxu0 %v501
    %1408 = vmatpush1.msra.mxu0 %v500
    %1409 = vmatprep.subr.mxu0 %v504
    %1410 = vmatpush1.msra.mxu0 %v503
    %1411 = vmatprep.subr.mxu0 %v507
    %1412 = vmatpush1.msra.mxu0 %v506
    %1413 = vmatprep.subr.mxu0 %v510
    %1414 = vmatpush1.msra.mxu0 %v509
    %1415 = vmatprep.subr.mxu0 %v513
    %1416 = vmatpush1.msra.mxu0 %v512
    %1417 = vmatprep.subr.mxu0 %v516
    %1418 = vmatpush1.msra.mxu0 %v515
    %1419 = vmatprep.subr.mxu0 %v519
    %1420 = vmatpush1.msra.mxu0 %v518
    %1421 = vmatprep.subr.mxu0 %v522
    %1422 = vmatpush1.msra.mxu0 %v521
    %1423 = vmatprep.subr.mxu0 %v525
    %1424 = vmatpush1.msra.mxu0 %v524
    %1425 = vmatprep.subr.mxu0 %v528
    %1426 = vmatpush1.msra.mxu0 %v527
    %1427 = vmatprep.subr.mxu0 %v531
    %1428 = vmatpush1.msra.mxu0 %v530
    %1429 = vmatprep.subr.mxu0 %v534
    %1430 = vmatpush1.msra.mxu0 %v533
    %1431 = vmatprep.subr.mxu0 %v537
    %1432 = vmatpush1.msra.mxu0 %v536
    %1433 = vmatprep.subr.mxu0 0.0
    %1434 = vmatpush1.msra.mxu0 0.0
    %1435 = vmatprep.subr.mxu0 0.0
    %1436 = vmatpush1.msra.mxu0 0.0
    %1437 = vmatprep.subr.mxu0 0.0
    %1438 = vmatpush1.msra.mxu0 0.0
    %1439 = vmatprep.subr.mxu0 0.0
    %1440 = vmatpush1.msra.mxu0 0.0
    %1441 = vmatprep.subr.mxu0 0.0
    %1442 = vmatpush1.msra.mxu0 0.0
    %1443 = vmatprep.subr.mxu0 0.0
    %1444 = vmatpush1.msra.mxu0 0.0
    %1445 = vmatprep.subr.mxu0 0.0
    %1446 = vmatpush1.msra.mxu0 0.0
    %1447 = vmatprep.subr.mxu0 0.0
    %1448 = vmatpush1.msra.mxu0 0.0
    %1449 = vmatprep.subr.mxu0 0.0
    %1450 = vmatpush1.msra.mxu0 0.0
    %1451 = vmatprep.subr.mxu0 0.0
    %1452 = vmatpush1.msra.mxu0 0.0
    %1453 = vmatprep.subr.mxu0 0.0
    %1454 = vmatpush1.msra.mxu0 0.0
    %1455 = vmatprep.subr.mxu0 0.0
    %1456 = vmatpush1.msra.mxu0 0.0
    %1457 = vmatprep.subr.mxu0 0.0
    %1458 = vmatpush1.msra.mxu0 0.0
    %1459 = vmatprep.subr.mxu0 0.0
    %1460 = vmatpush1.msra.mxu0 0.0
    %1461 = vmatprep.subr.mxu0 0.0
    %1462 = vmatpush1.msra.mxu0 0.0
    %1463 = vmatprep.subr.mxu0 0.0
    %1464 = vmatpush1.msra.mxu0 0.0
    %1465 = vmatprep.mubr.f32.mxu0 0.0
    %1466 = vmatmul.mubr.f32.gmra.mrb[0].mxu0 %v1398
    %v1467 = vpop.f32.mrb[0].mxu0
    %v1468 = vadd.f32 0.0, %v1467
    %v1469 = vpop.f32.mrb[0].mxu0
    %v1470 = vadd.f32 0.0, %v1469
    %1471 = vdwg.mxu0
    %1472 = vmatprep.subr.mxu0 0.0
    %1473 = vmatpush1.msra.mxu0 %v493
    %1474 = vmatprep.subr.mxu0 0.0
    %1475 = vmatpush1.msra.mxu0 %v496
    %1476 = vmatprep.subr.mxu0 0.0
    %1477 = vmatpush1.msra.mxu0 %v499
    %1478 = vmatprep.subr.mxu0 0.0
    %1479 = vmatpush1.msra.mxu0 %v502
    %1480 = vmatprep.subr.mxu0 0.0
    %1481 = vmatpush1.msra.mxu0 %v505
    %1482 = vmatprep.subr.mxu0 0.0
    %1483 = vmatpush1.msra.mxu0 %v508
    %1484 = vmatprep.subr.mxu0 0.0
    %1485 = vmatpush1.msra.mxu0 %v511
    %1486 = vmatprep.subr.mxu0 0.0
    %1487 = vmatpush1.msra.mxu0 %v514
    %1488 = vmatprep.subr.mxu0 0.0
    %1489 = vmatpush1.msra.mxu0 %v517
    %1490 = vmatprep.subr.mxu0 0.0
    %1491 = vmatpush1.msra.mxu0 %v520
    %1492 = vmatprep.subr.mxu0 0.0
    %1493 = vmatpush1.msra.mxu0 %v523
    %1494 = vmatprep.subr.mxu0 0.0
    %1495 = vmatpush1.msra.mxu0 %v526
    %1496 = vmatprep.subr.mxu0 0.0
    %1497 = vmatpush1.msra.mxu0 %v529
    %1498 = vmatprep.subr.mxu0 0.0
    %1499 = vmatpush1.msra.mxu0 %v532
    %1500 = vmatprep.subr.mxu0 0.0
    %1501 = vmatpush1.msra.mxu0 %v535
    %1502 = vmatprep.subr.mxu0 0.0
    %1503 = vmatpush1.msra.mxu0 %v538
    %1504 = vmatprep.subr.mxu0 0.0
    %1505 = vmatpush1.msra.mxu0 0.0
    %1506 = vmatprep.subr.mxu0 0.0
    %1507 = vmatpush1.msra.mxu0 0.0
    %1508 = vmatprep.subr.mxu0 0.0
    %1509 = vmatpush1.msra.mxu0 0.0
    %1510 = vmatprep.subr.mxu0 0.0
    %1511 = vmatpush1.msra.mxu0 0.0
    %1512 = vmatprep.subr.mxu0 0.0
    %1513 = vmatpush1.msra.mxu0 0.0
    %1514 = vmatprep.subr.mxu0 0.0
    %1515 = vmatpush1.msra.mxu0 0.0
    %1516 = vmatprep.subr.mxu0 0.0
    %1517 = vmatpush1.msra.mxu0 0.0
    %1518 = vmatprep.subr.mxu0 0.0
    %1519 = vmatpush1.msra.mxu0 0.0
    %1520 = vmatprep.subr.mxu0 0.0
    %1521 = vmatpush1.msra.mxu0 0.0
    %1522 = vmatprep.subr.mxu0 0.0
    %1523 = vmatpush1.msra.mxu0 0.0
    %1524 = vmatprep.subr.mxu0 0.0
    %1525 = vmatpush1.msra.mxu0 0.0
    %1526 = vmatprep.subr.mxu0 0.0
    %1527 = vmatpush1.msra.mxu0 0.0
    %1528 = vmatprep.subr.mxu0 0.0
    %1529 = vmatpush1.msra.mxu0 0.0
    %1530 = vmatprep.subr.mxu0 0.0
    %1531 = vmatpush1.msra.mxu0 0.0
    %1532 = vmatprep.subr.mxu0 0.0
    %1533 = vmatpush1.msra.mxu0 0.0
    %1534 = vmatprep.subr.mxu0 0.0
    %1535 = vmatpush1.msra.mxu0 0.0
    %1536 = vmatprep.mubr.f32.mxu0 0.0
    %1537 = vmatmul.mubr.f32.gmra.mrb[0].mxu0 %v1398
    %v1538 = vpop.f32.mrb[0].mxu0
    %v1539 = vadd.f32 0.0, %v1538
    %v1540 = vpop.f32.mrb[0].mxu0
    %1541 = vdwg.mxu0
    %s1542 = smul.u32 5, 3
    %s1543 = smul.addr %s1542, 8
    %s1544 = scalar_lea.vmem [#allocation6], %s1543
    %v1545 = vld [vmem:[%s1544] sm:$0xff]
    %v1546 = vld [vmem:[%s1544 + $0x8] sm:$0xff]
    %v1547 = vld [vmem:[%s1544 + $0x10] sm:$0xff]
    %v1548 = vadd.f32 %v1545, %v1468
    %v1549 = vxor.u32 %v1548, 2147483648
    %v1550 = vmul.f32 %v1549, 1.442695
    %v1551 = vpow.pop %v1550
    %v1552 = vadd.f32 %v1551, 1.0
    %v1553 = vrcp.pop %v1552
    %v1554 = vmul.f32 1.0, %v1553
    %v1555 = vadd.f32 %v1546, %v1470
    %v1556 = vxor.u32 %v1555, 2147483648
    %v1557 = vmul.f32 %v1556, 1.442695
    %v1558 = vpow.pop %v1557
    %v1559 = vadd.f32 %v1558, 1.0
    %v1560 = vrcp.pop %v1559
    %v1561 = vmul.f32 1.0, %v1560
    %v1562 = vadd.f32 %v1539, %v706
    %v1563 = vmul.f32 %v1554, %v1562
    %v1564 = vadd.f32 %v1547, %v1563
    %v1565 = vtanh.pop %v1564
    %v1566 = vsub.f32 1.0, %v1561
    %v1567 = vmul.f32 %v1566, %v1565
    %v1568 = vmul.f32 %v1561, %v1398
    %v1569 = vadd.f32 %v1567, %v1568
    %s1570 = scalar_lea.vmem [#allocation2], 40
    %1571 = vst [vmem:[%s1570] sm:$0xff] %v1569
    %1572 = vmatprep.subr.mxu0 %v492
    %1573 = vmatpush1.msra.mxu0 %v491
    %1574 = vmatprep.subr.mxu0 %v495
    %1575 = vmatpush1.msra.mxu0 %v494
    %1576 = vmatprep.subr.mxu0 %v498
    %1577 = vmatpush1.msra.mxu0 %v497
    %1578 = vmatprep.subr.mxu0 %v501
    %1579 = vmatpush1.msra.mxu0 %v500
    %1580 = vmatprep.subr.mxu0 %v504
    %1581 = vmatpush1.msra.mxu0 %v503
    %1582 = vmatprep.subr.mxu0 %v507
    %1583 = vmatpush1.msra.mxu0 %v506
    %1584 = vmatprep.subr.mxu0 %v510
    %1585 = vmatpush1.msra.mxu0 %v509
    %1586 = vmatprep.subr.mxu0 %v513
    %1587 = vmatpush1.msra.mxu0 %v512
    %1588 = vmatprep.subr.mxu0 %v516
    %1589 = vmatpush1.msra.mxu0 %v515
    %1590 = vmatprep.subr.mxu0 %v519
    %1591 = vmatpush1.msra.mxu0 %v518
    %1592 = vmatprep.subr.mxu0 %v522
    %1593 = vmatpush1.msra.mxu0 %v521
    %1594 = vmatprep.subr.mxu0 %v525
    %1595 = vmatpush1.msra.mxu0 %v524
    %1596 = vmatprep.subr.mxu0 %v528
    %1597 = vmatpush1.msra.mxu0 %v527
    %1598 = vmatprep.subr.mxu0 %v531
    %1599 = vmatpush1.msra.mxu0 %v530
    %1600 = vmatprep.subr.mxu0 %v534
    %1601 = vmatpush1.msra.mxu0 %v533
    %1602 = vmatprep.subr.mxu0 %v537
    %1603 = vmatpush1.msra.mxu0 %v536
    %1604 = vmatprep.subr.mxu0 0.0
    %1605 = vmatpush1.msra.mxu0 0.0
    %1606 = vmatprep.subr.mxu0 0.0
    %1607 = vmatpush1.msra.mxu0 0.0
    %1608 = vmatprep.subr.mxu0 0.0
    %1609 = vmatpush1.msra.mxu0 0.0
    %1610 = vmatprep.subr.mxu0 0.0
    %1611 = vmatpush1.msra.mxu0 0.0
    %1612 = vmatprep.subr.mxu0 0.0
    %1613 = vmatpush1.msra.mxu0 0.0
    %1614 = vmatprep.subr.mxu0 0.0
    %1615 = vmatpush1.msra.mxu0 0.0
    %1616 = vmatprep.subr.mxu0 0.0
    %1617 = vmatpush1.msra.mxu0 0.0
    %1618 = vmatprep.subr.mxu0 0.0
    %1619 = vmatpush1.msra.mxu0 0.0
    %1620 = vmatprep.subr.mxu0 0.0
    %1621 = vmatpush1.msra.mxu0 0.0
    %1622 = vmatprep.subr.mxu0 0.0
    %1623 = vmatpush1.msra.mxu0 0.0
    %1624 = vmatprep.subr.mxu0 0.0
    %1625 = vmatpush1.msra.mxu0 0.0
    %1626 = vmatprep.subr.mxu0 0.0
    %1627 = vmatpush1.msra.mxu0 0.0
    %1628 = vmatprep.subr.mxu0 0.0
    %1629 = vmatpush1.msra.mxu0 0.0
    %1630 = vmatprep.subr.mxu0 0.0
    %1631 = vmatpush1.msra.mxu0 0.0
    %1632 = vmatprep.subr.mxu0 0.0
    %1633 = vmatpush1.msra.mxu0 0.0
    %1634 = vmatprep.subr.mxu0 0.0
    %1635 = vmatpush1.msra.mxu0 0.0
    %1636 = vmatprep.mubr.f32.mxu0 0.0
    %1637 = vmatmul.mubr.f32.gmra.mrb[0].mxu0 %v1569
    %v1638 = vpop.f32.mrb[0].mxu0
    %v1639 = vadd.f32 0.0, %v1638
    %v1640 = vpop.f32.mrb[0].mxu0
    %v1641 = vadd.f32 0.0, %v1640
    %1642 = vdwg.mxu0
    %1643 = vmatprep.subr.mxu0 0.0
    %1644 = vmatpush1.msra.mxu0 %v493
    %1645 = vmatprep.subr.mxu0 0.0
    %1646 = vmatpush1.msra.mxu0 %v496
    %1647 = vmatprep.subr.mxu0 0.0
    %1648 = vmatpush1.msra.mxu0 %v499
    %1649 = vmatprep.subr.mxu0 0.0
    %1650 = vmatpush1.msra.mxu0 %v502
    %1651 = vmatprep.subr.mxu0 0.0
    %1652 = vmatpush1.msra.mxu0 %v505
    %1653 = vmatprep.subr.mxu0 0.0
    %1654 = vmatpush1.msra.mxu0 %v508
    %1655 = vmatprep.subr.mxu0 0.0
    %1656 = vmatpush1.msra.mxu0 %v511
    %1657 = vmatprep.subr.mxu0 0.0
    %1658 = vmatpush1.msra.mxu0 %v514
    %1659 = vmatprep.subr.mxu0 0.0
    %1660 = vmatpush1.msra.mxu0 %v517
    %1661 = vmatprep.subr.mxu0 0.0
    %1662 = vmatpush1.msra.mxu0 %v520
    %1663 = vmatprep.subr.mxu0 0.0
    %1664 = vmatpush1.msra.mxu0 %v523
    %1665 = vmatprep.subr.mxu0 0.0
    %1666 = vmatpush1.msra.mxu0 %v526
    %1667 = vmatprep.subr.mxu0 0.0
    %1668 = vmatpush1.msra.mxu0 %v529
    %1669 = vmatprep.subr.mxu0 0.0
    %1670 = vmatpush1.msra.mxu0 %v532
    %1671 = vmatprep.subr.mxu0 0.0
    %1672 = vmatpush1.msra.mxu0 %v535
    %1673 = vmatprep.subr.mxu0 0.0
    %1674 = vmatpush1.msra.mxu0 %v538
    %1675 = vmatprep.subr.mxu0 0.0
    %1676 = vmatpush1.msra.mxu0 0.0
    %1677 = vmatprep.subr.mxu0 0.0
    %1678 = vmatpush1.msra.mxu0 0.0
    %1679 = vmatprep.subr.mxu0 0.0
    %1680 = vmatpush1.msra.mxu0 0.0
    %1681 = vmatprep.subr.mxu0 0.0
    %1682 = vmatpush1.msra.mxu0 0.0
    %1683 = vmatprep.subr.mxu0 0.0
    %1684 = vmatpush1.msra.mxu0 0.0
    %1685 = vmatprep.subr.mxu0 0.0
    %1686 = vmatpush1.msra.mxu0 0.0
    %1687 = vmatprep.subr.mxu0 0.0
    %1688 = vmatpush1.msra.mxu0 0.0
    %1689 = vmatprep.subr.mxu0 0.0
    %1690 = vmatpush1.msra.mxu0 0.0
    %1691 = vmatprep.subr.mxu0 0.0
    %1692 = vmatpush1.msra.mxu0 0.0
    %1693 = vmatprep.subr.mxu0 0.0
    %1694 = vmatpush1.msra.mxu0 0.0
    %1695 = vmatprep.subr.mxu0 0.0
    %1696 = vmatpush1.msra.mxu0 0.0
    %1697 = vmatprep.subr.mxu0 0.0
    %1698 = vmatpush1.msra.mxu0 0.0
    %1699 = vmatprep.subr.mxu0 0.0
    %1700 = vmatpush1.msra.mxu0 0.0
    %1701 = vmatprep.subr.mxu0 0.0
    %1702 = vmatpush1.msra.mxu0 0.0
    %1703 = vmatprep.subr.mxu0 0.0
    %1704 = vmatpush1.msra.mxu0 0.0
    %1705 = vmatprep.subr.mxu0 0.0
    %1706 = vmatpush1.msra.mxu0 0.0
    %1707 = vmatprep.mubr.f32.mxu0 0.0
    %1708 = vmatmul.mubr.f32.gmra.mrb[0].mxu0 %v1569
    %v1709 = vpop.f32.mrb[0].mxu0
    %v1710 = vadd.f32 0.0, %v1709
    %v1711 = vpop.f32.mrb[0].mxu0
    %1712 = vdwg.mxu0
    %s1713 = smul.u32 6, 3
    %s1714 = smul.addr %s1713, 8
    %s1715 = scalar_lea.vmem [#allocation6], %s1714
    %v1716 = vld [vmem:[%s1715] sm:$0xff]
    %v1717 = vld [vmem:[%s1715 + $0x8] sm:$0xff]
    %v1718 = vld [vmem:[%s1715 + $0x10] sm:$0xff]
    %v1719 = vadd.f32 %v1716, %v1639
    %v1720 = vxor.u32 %v1719, 2147483648
    %v1721 = vmul.f32 %v1720, 1.442695
    %v1722 = vpow.pop %v1721
    %v1723 = vadd.f32 %v1722, 1.0
    %v1724 = vrcp.pop %v1723
    %v1725 = vmul.f32 1.0, %v1724
    %v1726 = vadd.f32 %v1717, %v1641
    %v1727 = vxor.u32 %v1726, 2147483648
    %v1728 = vmul.f32 %v1727, 1.442695
    %v1729 = vpow.pop %v1728
    %v1730 = vadd.f32 %v1729, 1.0
    %v1731 = vrcp.pop %v1730
    %v1732 = vmul.f32 1.0, %v1731
    %v1733 = vadd.f32 %v1710, %v706
    %v1734 = vmul.f32 %v1725, %v1733
    %v1735 = vadd.f32 %v1718, %v1734
    %v1736 = vtanh.pop %v1735
    %v1737 = vsub.f32 1.0, %v1732
    %v1738 = vmul.f32 %v1737, %v1736
    %v1739 = vmul.f32 %v1732, %v1569
    %v1740 = vadd.f32 %v1738, %v1739
    %s1741 = scalar_lea.vmem [#allocation2], 48
    %1742 = vst [vmem:[%s1741] sm:$0xff] %v1740
    %1743 = vmatprep.subr.mxu0 %v492
    %1744 = vmatpush1.msra.mxu0 %v491
    %1745 = vmatprep.subr.mxu0 %v495
    %1746 = vmatpush1.msra.mxu0 %v494
    %1747 = vmatprep.subr.mxu0 %v498
    %1748 = vmatpush1.msra.mxu0 %v497
    %1749 = vmatprep.subr.mxu0 %v501
    %1750 = vmatpush1.msra.mxu0 %v500
    %1751 = vmatprep.subr.mxu0 %v504
    %1752 = vmatpush1.msra.mxu0 %v503
    %1753 = vmatprep.subr.mxu0 %v507
    %1754 = vmatpush1.msra.mxu0 %v506
    %1755 = vmatprep.subr.mxu0 %v510
    %1756 = vmatpush1.msra.mxu0 %v509
    %1757 = vmatprep.subr.mxu0 %v513
    %1758 = vmatpush1.msra.mxu0 %v512
    %1759 = vmatprep.subr.mxu0 %v516
    %1760 = vmatpush1.msra.mxu0 %v515
    %1761 = vmatprep.subr.mxu0 %v519
    %1762 = vmatpush1.msra.mxu0 %v518
    %1763 = vmatprep.subr.mxu0 %v522
    %1764 = vmatpush1.msra.mxu0 %v521
    %1765 = vmatprep.subr.mxu0 %v525
    %1766 = vmatpush1.msra.mxu0 %v524
    %1767 = vmatprep.subr.mxu0 %v528
    %1768 = vmatpush1.msra.mxu0 %v527
    %1769 = vmatprep.subr.mxu0 %v531
    %1770 = vmatpush1.msra.mxu0 %v530
    %1771 = vmatprep.subr.mxu0 %v534
    %1772 = vmatpush1.msra.mxu0 %v533
    %1773 = vmatprep.subr.mxu0 %v537
    %1774 = vmatpush1.msra.mxu0 %v536
    %1775 = vmatprep.subr.mxu0 0.0
    %1776 = vmatpush1.msra.mxu0 0.0
    %1777 = vmatprep.subr.mxu0 0.0
    %1778 = vmatpush1.msra.mxu0 0.0
    %1779 = vmatprep.subr.mxu0 0.0
    %1780 = vmatpush1.msra.mxu0 0.0
    %1781 = vmatprep.subr.mxu0 0.0
    %1782 = vmatpush1.msra.mxu0 0.0
    %1783 = vmatprep.subr.mxu0 0.0
    %1784 = vmatpush1.msra.mxu0 0.0
    %1785 = vmatprep.subr.mxu0 0.0
    %1786 = vmatpush1.msra.mxu0 0.0
    %1787 = vmatprep.subr.mxu0 0.0
    %1788 = vmatpush1.msra.mxu0 0.0
    %1789 = vmatprep.subr.mxu0 0.0
    %1790 = vmatpush1.msra.mxu0 0.0
    %1791 = vmatprep.subr.mxu0 0.0
    %1792 = vmatpush1.msra.mxu0 0.0
    %1793 = vmatprep.subr.mxu0 0.0
    %1794 = vmatpush1.msra.mxu0 0.0
    %1795 = vmatprep.subr.mxu0 0.0
    %1796 = vmatpush1.msra.mxu0 0.0
    %1797 = vmatprep.subr.mxu0 0.0
    %1798 = vmatpush1.msra.mxu0 0.0
    %1799 = vmatprep.subr.mxu0 0.0
    %1800 = vmatpush1.msra.mxu0 0.0
    %1801 = vmatprep.subr.mxu0 0.0
    %1802 = vmatpush1.msra.mxu0 0.0
    %1803 = vmatprep.subr.mxu0 0.0
    %1804 = vmatpush1.msra.mxu0 0.0
    %1805 = vmatprep.subr.mxu0 0.0
    %1806 = vmatpush1.msra.mxu0 0.0
    %1807 = vmatprep.mubr.f32.mxu0 0.0
    %1808 = vmatmul.mubr.f32.gmra.mrb[0].mxu0 %v1740
    %v1809 = vpop.f32.mrb[0].mxu0
    %v1810 = vadd.f32 0.0, %v1809
    %v1811 = vpop.f32.mrb[0].mxu0
    %v1812 = vadd.f32 0.0, %v1811
    %1813 = vdwg.mxu0
    %1814 = vmatprep.subr.mxu0 0.0
    %1815 = vmatpush1.msra.mxu0 %v493
    %1816 = vmatprep.subr.mxu0 0.0
    %1817 = vmatpush1.msra.mxu0 %v496
    %1818 = vmatprep.subr.mxu0 0.0
    %1819 = vmatpush1.msra.mxu0 %v499
    %1820 = vmatprep.subr.mxu0 0.0
    %1821 = vmatpush1.msra.mxu0 %v502
    %1822 = vmatprep.subr.mxu0 0.0
    %1823 = vmatpush1.msra.mxu0 %v505
    %1824 = vmatprep.subr.mxu0 0.0
    %1825 = vmatpush1.msra.mxu0 %v508
    %1826 = vmatprep.subr.mxu0 0.0
    %1827 = vmatpush1.msra.mxu0 %v511
    %1828 = vmatprep.subr.mxu0 0.0
    %1829 = vmatpush1.msra.mxu0 %v514
    %1830 = vmatprep.subr.mxu0 0.0
    %1831 = vmatpush1.msra.mxu0 %v517
    %1832 = vmatprep.subr.mxu0 0.0
    %1833 = vmatpush1.msra.mxu0 %v520
    %1834 = vmatprep.subr.mxu0 0.0
    %1835 = vmatpush1.msra.mxu0 %v523
    %1836 = vmatprep.subr.mxu0 0.0
    %1837 = vmatpush1.msra.mxu0 %v526
    %1838 = vmatprep.subr.mxu0 0.0
    %1839 = vmatpush1.msra.mxu0 %v529
    %1840 = vmatprep.subr.mxu0 0.0
    %1841 = vmatpush1.msra.mxu0 %v532
    %1842 = vmatprep.subr.mxu0 0.0
    %1843 = vmatpush1.msra.mxu0 %v535
    %1844 = vmatprep.subr.mxu0 0.0
    %1845 = vmatpush1.msra.mxu0 %v538
    %1846 = vmatprep.subr.mxu0 0.0
    %1847 = vmatpush1.msra.mxu0 0.0
    %1848 = vmatprep.subr.mxu0 0.0
    %1849 = vmatpush1.msra.mxu0 0.0
    %1850 = vmatprep.subr.mxu0 0.0
    %1851 = vmatpush1.msra.mxu0 0.0
    %1852 = vmatprep.subr.mxu0 0.0
    %1853 = vmatpush1.msra.mxu0 0.0
    %1854 = vmatprep.subr.mxu0 0.0
    %1855 = vmatpush1.msra.mxu0 0.0
    %1856 = vmatprep.subr.mxu0 0.0
    %1857 = vmatpush1.msra.mxu0 0.0
    %1858 = vmatprep.subr.mxu0 0.0
    %1859 = vmatpush1.msra.mxu0 0.0
    %1860 = vmatprep.subr.mxu0 0.0
    %1861 = vmatpush1.msra.mxu0 0.0
    %1862 = vmatprep.subr.mxu0 0.0
    %1863 = vmatpush1.msra.mxu0 0.0
    %1864 = vmatprep.subr.mxu0 0.0
    %1865 = vmatpush1.msra.mxu0 0.0
    %1866 = vmatprep.subr.mxu0 0.0
    %1867 = vmatpush1.msra.mxu0 0.0
    %1868 = vmatprep.subr.mxu0 0.0
    %1869 = vmatpush1.msra.mxu0 0.0
    %1870 = vmatprep.subr.mxu0 0.0
    %1871 = vmatpush1.msra.mxu0 0.0
    %1872 = vmatprep.subr.mxu0 0.0
    %1873 = vmatpush1.msra.mxu0 0.0
    %1874 = vmatprep.subr.mxu0 0.0
    %1875 = vmatpush1.msra.mxu0 0.0
    %1876 = vmatprep.subr.mxu0 0.0
    %1877 = vmatpush1.msra.mxu0 0.0
    %1878 = vmatprep.mubr.f32.mxu0 0.0
    %1879 = vmatmul.mubr.f32.gmra.mrb[0].mxu0 %v1740
    %v1880 = vpop.f32.mrb[0].mxu0
    %v1881 = vadd.f32 0.0, %v1880
    %v1882 = vpop.f32.mrb[0].mxu0
    %1883 = vdwg.mxu0
    %s1884 = smul.u32 7, 3
    %s1885 = smul.addr %s1884, 8
    %s1886 = scalar_lea.vmem [#allocation6], %s1885
    %v1887 = vld [vmem:[%s1886] sm:$0xff]
    %v1888 = vld [vmem:[%s1886 + $0x8] sm:$0xff]
    %v1889 = vld [vmem:[%s1886 + $0x10] sm:$0xff]
    %v1890 = vadd.f32 %v1887, %v1810
    %v1891 = vxor.u32 %v1890, 2147483648
    %v1892 = vmul.f32 %v1891, 1.442695
    %v1893 = vpow.pop %v1892
    %v1894 = vadd.f32 %v1893, 1.0
    %v1895 = vrcp.pop %v1894
    %v1896 = vmul.f32 1.0, %v1895
    %v1897 = vadd.f32 %v1888, %v1812
    %v1898 = vxor.u32 %v1897, 2147483648
    %v1899 = vmul.f32 %v1898, 1.442695
    %v1900 = vpow.pop %v1899
    %v1901 = vadd.f32 %v1900, 1.0
    %v1902 = vrcp.pop %v1901
    %v1903 = vmul.f32 1.0, %v1902
    %v1904 = vadd.f32 %v1881, %v706
    %v1905 = vmul.f32 %v1896, %v1904
    %v1906 = vadd.f32 %v1889, %v1905
    %v1907 = vtanh.pop %v1906
    %v1908 = vsub.f32 1.0, %v1903
    %v1909 = vmul.f32 %v1908, %v1907
    %v1910 = vmul.f32 %v1903, %v1740
    %v1911 = vadd.f32 %v1909, %v1910
    %s1912 = scalar_lea.vmem [#allocation2], 56
    %1913 = vst [vmem:[%s1912] sm:$0xff] %v1911
    %1914 = vst [vmem:[#allocation7] sm:$0xff] %v1911
    %v1915 = vld [vmem:[#allocation2] sm:$0xff]
    %v1916 = vld [vmem:[#allocation2 + $0x8] sm:$0xff]
    %v1917 = vld [vmem:[#allocation2 + $0x10] sm:$0xff]
    %v1918 = vld [vmem:[#allocation2 + $0x18] sm:$0xff]
    %v1919 = vld [vmem:[#allocation2 + $0x20] sm:$0xff]
    %v1920 = vld [vmem:[#allocation2 + $0x28] sm:$0xff]
    %v1921 = vld [vmem:[#allocation2 + $0x30] sm:$0xff]
    %v1922 = vld [vmem:[#allocation2 + $0x38] sm:$0xff]
    %v1923 = vld [vmem:[#allocation15] sm:$0xff]
    %v1924 = vld [vmem:[#allocation15 + $0x8] sm:$0xff]
    %v1925 = vld [vmem:[#allocation15 + $0x10] sm:$0xff]
    %v1926 = vld [vmem:[#allocation15 + $0x18] sm:$0xff]
    %v1927 = vld [vmem:[#allocation15 + $0x20] sm:$0xff]
    %v1928 = vld [vmem:[#allocation15 + $0x28] sm:$0xff]
    %v1929 = vld [vmem:[#allocation15 + $0x30] sm:$0xff]
    %v1930 = vld [vmem:[#allocation15 + $0x38] sm:$0xff]
    %v1931 = vld [vmem:[#allocation15 + $0x40] sm:$0xff]
    %v1932 = vld [vmem:[#allocation15 + $0x48] sm:$0xff]
    %v1933 = vld [vmem:[#allocation15 + $0x50] sm:$0xff]
    %v1934 = vld [vmem:[#allocation15 + $0x58] sm:$0xff]
    %v1935 = vld [vmem:[#allocation15 + $0x60] sm:$0xff]
    %v1936 = vld [vmem:[#allocation15 + $0x68] sm:$0xff]
    %v1937 = vld [vmem:[#allocation15 + $0x70] sm:$0xff]
    %v1938 = vld [vmem:[#allocation15 + $0x78] sm:$0xff]
    %v1939 = vld [vmem:[#allocation15 + $0x80] sm:$0xff]
    %v1940 = vld [vmem:[#allocation15 + $0x88] sm:$0xff]
    %v1941 = vld [vmem:[#allocation15 + $0x90] sm:$0xff]
    %v1942 = vld [vmem:[#allocation15 + $0x98] sm:$0xff]
    %v1943 = vld [vmem:[#allocation15 + $0xa0] sm:$0xff]
    %v1944 = vld [vmem:[#allocation15 + $0xa8] sm:$0xff]
    %v1945 = vld [vmem:[#allocation15 + $0xb0] sm:$0xff]
    %v1946 = vld [vmem:[#allocation15 + $0xb8] sm:$0xff]
    %v1947 = vld [vmem:[#allocation15 + $0xc0] sm:$0xff]
    %v1948 = vld [vmem:[#allocation15 + $0xc8] sm:$0xff]
    %v1949 = vld [vmem:[#allocation15 + $0xd0] sm:$0xff]
    %v1950 = vld [vmem:[#allocation15 + $0xd8] sm:$0xff]
    %v1951 = vld [vmem:[#allocation15 + $0xe0] sm:$0xff]
    %v1952 = vld [vmem:[#allocation15 + $0xe8] sm:$0xff]
    %v1953 = vld [vmem:[#allocation15 + $0xf0] sm:$0xff]
    %v1954 = vld [vmem:[#allocation15 + $0xf8] sm:$0xff]
    %v1955 = vld [vmem:[#allocation15 + $0x100] sm:$0xff]
    %v1956 = vld [vmem:[#allocation15 + $0x108] sm:$0xff]
    %v1957 = vld [vmem:[#allocation15 + $0x110] sm:$0xff]
    %v1958 = vld [vmem:[#allocation15 + $0x118] sm:$0xff]
    %v1959 = vld [vmem:[#allocation15 + $0x120] sm:$0xff]
    %v1960 = vld [vmem:[#allocation15 + $0x128] sm:$0xff]
    %v1961 = vld [vmem:[#allocation15 + $0x130] sm:$0xff]
    %v1962 = vld [vmem:[#allocation15 + $0x138] sm:$0xff]
    %v1963 = vld [vmem:[#allocation15 + $0x140] sm:$0xff]
    %v1964 = vld [vmem:[#allocation15 + $0x148] sm:$0xff]
    %v1965 = vld [vmem:[#allocation15 + $0x150] sm:$0xff]
    %v1966 = vld [vmem:[#allocation15 + $0x158] sm:$0xff]
    %v1967 = vld [vmem:[#allocation15 + $0x160] sm:$0xff]
    %v1968 = vld [vmem:[#allocation15 + $0x168] sm:$0xff]
    %v1969 = vld [vmem:[#allocation15 + $0x170] sm:$0xff]
    %v1970 = vld [vmem:[#allocation15 + $0x178] sm:$0xff]
    %v1971 = vld [vmem:[%s7] sm:$0x7]
    %v1973 = vlaneseq
    %v1974 = vshrl.u32 %v1973, 7
    %v1975 = vsub.s32 0, %v1974
    %v1976 = vrot.slane %v1971, %v1975
    %v1977 = vlaneseq
    %v1978 = vshrl.u32 %v1977, 7
    %v1979 = vsub.s32 1, %v1978
    %v1980 = vrot.slane %v1971, %v1979
    %v1981 = vlaneseq
    %v1982 = vshrl.u32 %v1981, 7
    %v1983 = vsub.s32 2, %v1982
    %v1984 = vrot.slane %v1971, %v1983
    %1988 = vmatprep.subr.mxu0 %v1924
    %1989 = vmatpush1.msra.mxu0 %v1923
    %1990 = vmatprep.subr.mxu0 %v1927
    %1991 = vmatpush1.msra.mxu0 %v1926
    %1992 = vmatprep.subr.mxu0 %v1930
    %1993 = vmatpush1.msra.mxu0 %v1929
    %1994 = vmatprep.subr.mxu0 %v1933
    %1995 = vmatpush1.msra.mxu0 %v1932
    %1996 = vmatprep.subr.mxu0 %v1936
    %1997 = vmatpush1.msra.mxu0 %v1935
    %1998 = vmatprep.subr.mxu0 %v1939
    %1999 = vmatpush1.msra.mxu0 %v1938
    %2000 = vmatprep.subr.mxu0 %v1942
    %2001 = vmatpush1.msra.mxu0 %v1941
    %2002 = vmatprep.subr.mxu0 %v1945
    %2003 = vmatpush1.msra.mxu0 %v1944
    %2004 = vmatprep.subr.mxu0 %v1948
    %2005 = vmatpush1.msra.mxu0 %v1947
    %2006 = vmatprep.subr.mxu0 %v1951
    %2007 = vmatpush1.msra.mxu0 %v1950
    %2008 = vmatprep.subr.mxu0 %v1954
    %2009 = vmatpush1.msra.mxu0 %v1953
    %2010 = vmatprep.subr.mxu0 %v1957
    %2011 = vmatpush1.msra.mxu0 %v1956
    %2012 = vmatprep.subr.mxu0 %v1960
    %2013 = vmatpush1.msra.mxu0 %v1959
    %2014 = vmatprep.subr.mxu0 %v1963
    %2015 = vmatpush1.msra.mxu0 %v1962
    %2016 = vmatprep.subr.mxu0 %v1966
    %2017 = vmatpush1.msra.mxu0 %v1965
    %2018 = vmatprep.subr.mxu0 %v1969
    %2019 = vmatpush1.msra.mxu0 %v1968
    %2020 = vmatprep.subr.mxu0 0.0
    %2021 = vmatpush1.msra.mxu0 0.0
    %2022 = vmatprep.subr.mxu0 0.0
    %2023 = vmatpush1.msra.mxu0 0.0
    %2024 = vmatprep.subr.mxu0 0.0
    %2025 = vmatpush1.msra.mxu0 0.0
    %2026 = vmatprep.subr.mxu0 0.0
    %2027 = vmatpush1.msra.mxu0 0.0
    %2028 = vmatprep.subr.mxu0 0.0
    %2029 = vmatpush1.msra.mxu0 0.0
    %2030 = vmatprep.subr.mxu0 0.0
    %2031 = vmatpush1.msra.mxu0 0.0
    %2032 = vmatprep.subr.mxu0 0.0
    %2033 = vmatpush1.msra.mxu0 0.0
    %2034 = vmatprep.subr.mxu0 0.0
    %2035 = vmatpush1.msra.mxu0 0.0
    %2036 = vmatprep.subr.mxu0 0.0
    %2037 = vmatpush1.msra.mxu0 0.0
    %2038 = vmatprep.subr.mxu0 0.0
    %2039 = vmatpush1.msra.mxu0 0.0
    %2040 = vmatprep.subr.mxu0 0.0
    %2041 = vmatpush1.msra.mxu0 0.0
    %2042 = vmatprep.subr.mxu0 0.0
    %2043 = vmatpush1.msra.mxu0 0.0
    %2044 = vmatprep.subr.mxu0 0.0
    %2045 = vmatpush1.msra.mxu0 0.0
    %2046 = vmatprep.subr.mxu0 0.0
    %2047 = vmatpush1.msra.mxu0 0.0
    %2048 = vmatprep.subr.mxu0 0.0
    %2049 = vmatpush1.msra.mxu0 0.0
    %2050 = vmatprep.subr.mxu0 0.0
    %2051 = vmatpush1.msra.mxu0 0.0
    %2052 = vmatprep.mubr.f32.mxu0 0.0
    %2053 = vmatmul.mubr.f32.gmra.mrb[0].mxu0 %v1915
    %v2054 = vpop.f32.mrb[0].mxu0
    %v2055 = vadd.f32 %v1976, %v2054
    %v2056 = vpop.f32.mrb[0].mxu0
    %v2057 = vadd.f32 %v1980, %v2056
    %2058 = vmatprep.mubr.f32.mxu0 0.0
    %2059 = vmatmul.mubr.f32.gmra.mrb[0].mxu0 %v1916
    %v2060 = vpop.f32.mrb[0].mxu0
    %v2061 = vadd.f32 %v1976, %v2060
    %v2062 = vpop.f32.mrb[0].mxu0
    %v2063 = vadd.f32 %v1980, %v2062
    %2064 = vmatprep.mubr.f32.mxu0 0.0
    %2065 = vmatmul.mubr.f32.gmra.mrb[0].mxu0 %v1917
    %v2066 = vpop.f32.mrb[0].mxu0
    %v2067 = vadd.f32 %v1976, %v2066
    %v2068 = vpop.f32.mrb[0].mxu0
    %v2069 = vadd.f32 %v1980, %v2068
    %2070 = vmatprep.mubr.f32.mxu0 0.0
    %2071 = vmatmul.mubr.f32.gmra.mrb[0].mxu0 %v1918
    %v2072 = vpop.f32.mrb[0].mxu0
    %v2073 = vadd.f32 %v1976, %v2072
    %v2074 = vpop.f32.mrb[0].mxu0
    %v2075 = vadd.f32 %v1980, %v2074
    %2076 = vmatprep.mubr.f32.mxu0 0.0
    %2077 = vmatmul.mubr.f32.gmra.mrb[0].mxu0 %v1919
    %v2078 = vpop.f32.mrb[0].mxu0
    %v2079 = vadd.f32 %v1976, %v2078
    %v2080 = vpop.f32.mrb[0].mxu0
    %v2081 = vadd.f32 %v1980, %v2080
    %2082 = vmatprep.mubr.f32.mxu0 0.0
    %2083 = vmatmul.mubr.f32.gmra.mrb[0].mxu0 %v1920
    %v2084 = vpop.f32.mrb[0].mxu0
    %v2085 = vadd.f32 %v1976, %v2084
    %v2086 = vpop.f32.mrb[0].mxu0
    %v2087 = vadd.f32 %v1980, %v2086
    %2088 = vmatprep.mubr.f32.mxu0 0.0
    %2089 = vmatmul.mubr.f32.gmra.mrb[0].mxu0 %v1921
    %v2090 = vpop.f32.mrb[0].mxu0
    %v2091 = vadd.f32 %v1976, %v2090
    %v2092 = vpop.f32.mrb[0].mxu0
    %v2093 = vadd.f32 %v1980, %v2092
    %2094 = vmatprep.mubr.f32.mxu0 0.0
    %2095 = vmatmul.mubr.f32.gmra.mrb[0].mxu0 %v1922
    %v2096 = vpop.f32.mrb[0].mxu0
    %v2097 = vadd.f32 %v1976, %v2096
    %v2098 = vpop.f32.mrb[0].mxu0
    %v2099 = vadd.f32 %v1980, %v2098
    %2100 = vdwg.mxu0
    %2101 = vmatprep.subr.mxu0 0.0
    %2102 = vmatpush1.msra.mxu0 %v1925
    %2103 = vmatprep.subr.mxu0 0.0
    %2104 = vmatpush1.msra.mxu0 %v1928
    %2105 = vmatprep.subr.mxu0 0.0
    %2106 = vmatpush1.msra.mxu0 %v1931
    %2107 = vmatprep.subr.mxu0 0.0
    %2108 = vmatpush1.msra.mxu0 %v1934
    %2109 = vmatprep.subr.mxu0 0.0
    %2110 = vmatpush1.msra.mxu0 %v1937
    %2111 = vmatprep.subr.mxu0 0.0
    %2112 = vmatpush1.msra.mxu0 %v1940
    %2113 = vmatprep.subr.mxu0 0.0
    %2114 = vmatpush1.msra.mxu0 %v1943
    %2115 = vmatprep.subr.mxu0 0.0
    %2116 = vmatpush1.msra.mxu0 %v1946
    %2117 = vmatprep.subr.mxu0 0.0
    %2118 = vmatpush1.msra.mxu0 %v1949
    %2119 = vmatprep.subr.mxu0 0.0
    %2120 = vmatpush1.msra.mxu0 %v1952
    %2121 = vmatprep.subr.mxu0 0.0
    %2122 = vmatpush1.msra.mxu0 %v1955
    %2123 = vmatprep.subr.mxu0 0.0
    %2124 = vmatpush1.msra.mxu0 %v1958
    %2125 = vmatprep.subr.mxu0 0.0
    %2126 = vmatpush1.msra.mxu0 %v1961
    %2127 = vmatprep.subr.mxu0 0.0
    %2128 = vmatpush1.msra.mxu0 %v1964
    %2129 = vmatprep.subr.mxu0 0.0
    %2130 = vmatpush1.msra.mxu0 %v1967
    %2131 = vmatprep.subr.mxu0 0.0
    %2132 = vmatpush1.msra.mxu0 %v1970
    %2133 = vmatprep.subr.mxu0 0.0
    %2134 = vmatpush1.msra.mxu0 0.0
    %2135 = vmatprep.subr.mxu0 0.0
    %2136 = vmatpush1.msra.mxu0 0.0
    %2137 = vmatprep.subr.mxu0 0.0
    %2138 = vmatpush1.msra.mxu0 0.0
    %2139 = vmatprep.subr.mxu0 0.0
    %2140 = vmatpush1.msra.mxu0 0.0
    %2141 = vmatprep.subr.mxu0 0.0
    %2142 = vmatpush1.msra.mxu0 0.0
    %2143 = vmatprep.subr.mxu0 0.0
    %2144 = vmatpush1.msra.mxu0 0.0
    %2145 = vmatprep.subr.mxu0 0.0
    %2146 = vmatpush1.msra.mxu0 0.0
    %2147 = vmatprep.subr.mxu0 0.0
    %2148 = vmatpush1.msra.mxu0 0.0
    %2149 = vmatprep.subr.mxu0 0.0
    %2150 = vmatpush1.msra.mxu0 0.0
    %2151 = vmatprep.subr.mxu0 0.0
    %2152 = vmatpush1.msra.mxu0 0.0
    %2153 = vmatprep.subr.mxu0 0.0
    %2154 = vmatpush1.msra.mxu0 0.0
    %2155 = vmatprep.subr.mxu0 0.0
    %2156 = vmatpush1.msra.mxu0 0.0
    %2157 = vmatprep.subr.mxu0 0.0
    %2158 = vmatpush1.msra.mxu0 0.0
    %2159 = vmatprep.subr.mxu0 0.0
    %2160 = vmatpush1.msra.mxu0 0.0
    %2161 = vmatprep.subr.mxu0 0.0
    %2162 = vmatpush1.msra.mxu0 0.0
    %2163 = vmatprep.subr.mxu0 0.0
    %2164 = vmatpush1.msra.mxu0 0.0
    %2165 = vmatprep.mubr.f32.mxu0 0.0
    %2166 = vmatmul.mubr.f32.gmra.mrb[0].mxu0 %v1915
    %v2167 = vpop.f32.mrb[0].mxu0
    %v2168 = vadd.f32 %v1984, %v2167
    %v2169 = vpop.f32.mrb[0].mxu0
    %2170 = vmatprep.mubr.f32.mxu0 0.0
    %2171 = vmatmul.mubr.f32.gmra.mrb[0].mxu0 %v1916
    %v2172 = vpop.f32.mrb[0].mxu0
    %v2173 = vadd.f32 %v1984, %v2172
    %v2174 = vpop.f32.mrb[0].mxu0
    %2175 = vmatprep.mubr.f32.mxu0 0.0
    %2176 = vmatmul.mubr.f32.gmra.mrb[0].mxu0 %v1917
    %v2177 = vpop.f32.mrb[0].mxu0
    %v2178 = vadd.f32 %v1984, %v2177
    %v2179 = vpop.f32.mrb[0].mxu0
    %2180 = vmatprep.mubr.f32.mxu0 0.0
    %2181 = vmatmul.mubr.f32.gmra.mrb[0].mxu0 %v1918
    %v2182 = vpop.f32.mrb[0].mxu0
    %v2183 = vadd.f32 %v1984, %v2182
    %v2184 = vpop.f32.mrb[0].mxu0
    %2185 = vmatprep.mubr.f32.mxu0 0.0
    %2186 = vmatmul.mubr.f32.gmra.mrb[0].mxu0 %v1919
    %v2187 = vpop.f32.mrb[0].mxu0
    %v2188 = vadd.f32 %v1984, %v2187
    %v2189 = vpop.f32.mrb[0].mxu0
    %2190 = vmatprep.mubr.f32.mxu0 0.0
    %2191 = vmatmul.mubr.f32.gmra.mrb[0].mxu0 %v1920
    %v2192 = vpop.f32.mrb[0].mxu0
    %v2193 = vadd.f32 %v1984, %v2192
    %v2194 = vpop.f32.mrb[0].mxu0
    %2195 = vmatprep.mubr.f32.mxu0 0.0
    %2196 = vmatmul.mubr.f32.gmra.mrb[0].mxu0 %v1921
    %v2197 = vpop.f32.mrb[0].mxu0
    %v2198 = vadd.f32 %v1984, %v2197
    %v2199 = vpop.f32.mrb[0].mxu0
    %2200 = vmatprep.mubr.f32.mxu0 0.0
    %2201 = vmatmul.mubr.f32.gmra.mrb[0].mxu0 %v1922
    %v2202 = vpop.f32.mrb[0].mxu0
    %v2203 = vadd.f32 %v1984, %v2202
    %v2204 = vpop.f32.mrb[0].mxu0
    %2205 = vdwg.mxu0
    %2206 = vst [vmem:[#allocation6] sm:$0xff] %v2055
    %2207 = vst [vmem:[#allocation6 + $0x8] sm:$0xff] %v2057
    %2208 = vst [vmem:[#allocation6 + $0x10] sm:$0xff] %v2168
    %2209 = vst [vmem:[#allocation6 + $0x18] sm:$0xff] %v2061
    %2210 = vst [vmem:[#allocation6 + $0x20] sm:$0xff] %v2063
    %2211 = vst [vmem:[#allocation6 + $0x28] sm:$0xff] %v2173
    %2212 = vst [vmem:[#allocation6 + $0x30] sm:$0xff] %v2067
    %2213 = vst [vmem:[#allocation6 + $0x38] sm:$0xff] %v2069
    %2214 = vst [vmem:[#allocation6 + $0x40] sm:$0xff] %v2178
    %2215 = vst [vmem:[#allocation6 + $0x48] sm:$0xff] %v2073
    %2216 = vst [vmem:[#allocation6 + $0x50] sm:$0xff] %v2075
    %2217 = vst [vmem:[#allocation6 + $0x58] sm:$0xff] %v2183
    %2218 = vst [vmem:[#allocation6 + $0x60] sm:$0xff] %v2079
    %2219 = vst [vmem:[#allocation6 + $0x68] sm:$0xff] %v2081
    %2220 = vst [vmem:[#allocation6 + $0x70] sm:$0xff] %v2188
    %2221 = vst [vmem:[#allocation6 + $0x78] sm:$0xff] %v2085
    %2222 = vst [vmem:[#allocation6 + $0x80] sm:$0xff] %v2087
    %2223 = vst [vmem:[#allocation6 + $0x88] sm:$0xff] %v2193
    %2224 = vst [vmem:[#allocation6 + $0x90] sm:$0xff] %v2091
    %2225 = vst [vmem:[#allocation6 + $0x98] sm:$0xff] %v2093
    %2226 = vst [vmem:[#allocation6 + $0xa0] sm:$0xff] %v2198
    %2227 = vst [vmem:[#allocation6 + $0xa8] sm:$0xff] %v2097
    %2228 = vst [vmem:[#allocation6 + $0xb0] sm:$0xff] %v2099
    %2229 = vst [vmem:[#allocation6 + $0xb8] sm:$0xff] %v2203
    %v2230 = vld [vmem:[#allocation16] sm:$0xff]
    %v2231 = vld [vmem:[#allocation16 + $0x8] sm:$0xff]
    %v2232 = vld [vmem:[#allocation16 + $0x10] sm:$0xff]
    %v2233 = vld [vmem:[#allocation16 + $0x18] sm:$0xff]
    %v2234 = vld [vmem:[#allocation16 + $0x20] sm:$0xff]
    %v2235 = vld [vmem:[#allocation16 + $0x28] sm:$0xff]
    %v2236 = vld [vmem:[#allocation16 + $0x30] sm:$0xff]
    %v2237 = vld [vmem:[#allocation16 + $0x38] sm:$0xff]
    %v2238 = vld [vmem:[#allocation16 + $0x40] sm:$0xff]
    %v2239 = vld [vmem:[#allocation16 + $0x48] sm:$0xff]
    %v2240 = vld [vmem:[#allocation16 + $0x50] sm:$0xff]
    %v2241 = vld [vmem:[#allocation16 + $0x58] sm:$0xff]
    %v2242 = vld [vmem:[#allocation16 + $0x60] sm:$0xff]
    %v2243 = vld [vmem:[#allocation16 + $0x68] sm:$0xff]
    %v2244 = vld [vmem:[#allocation16 + $0x70] sm:$0xff]
    %v2245 = vld [vmem:[#allocation16 + $0x78] sm:$0xff]
    %v2246 = vld [vmem:[#allocation16 + $0x80] sm:$0xff]
    %v2247 = vld [vmem:[#allocation16 + $0x88] sm:$0xff]
    %v2248 = vld [vmem:[#allocation16 + $0x90] sm:$0xff]
    %v2249 = vld [vmem:[#allocation16 + $0x98] sm:$0xff]
    %v2250 = vld [vmem:[#allocation16 + $0xa0] sm:$0xff]
    %v2251 = vld [vmem:[#allocation16 + $0xa8] sm:$0xff]
    %v2252 = vld [vmem:[#allocation16 + $0xb0] sm:$0xff]
    %v2253 = vld [vmem:[#allocation16 + $0xb8] sm:$0xff]
    %v2254 = vld [vmem:[#allocation16 + $0xc0] sm:$0xff]
    %v2255 = vld [vmem:[#allocation16 + $0xc8] sm:$0xff]
    %v2256 = vld [vmem:[#allocation16 + $0xd0] sm:$0xff]
    %v2257 = vld [vmem:[#allocation16 + $0xd8] sm:$0xff]
    %v2258 = vld [vmem:[#allocation16 + $0xe0] sm:$0xff]
    %v2259 = vld [vmem:[#allocation16 + $0xe8] sm:$0xff]
    %v2260 = vld [vmem:[#allocation16 + $0xf0] sm:$0xff]
    %v2261 = vld [vmem:[#allocation16 + $0xf8] sm:$0xff]
    %v2262 = vld [vmem:[#allocation16 + $0x100] sm:$0xff]
    %v2263 = vld [vmem:[#allocation16 + $0x108] sm:$0xff]
    %v2264 = vld [vmem:[#allocation16 + $0x110] sm:$0xff]
    %v2265 = vld [vmem:[#allocation16 + $0x118] sm:$0xff]
    %v2266 = vld [vmem:[#allocation16 + $0x120] sm:$0xff]
    %v2267 = vld [vmem:[#allocation16 + $0x128] sm:$0xff]
    %v2268 = vld [vmem:[#allocation16 + $0x130] sm:$0xff]
    %v2269 = vld [vmem:[#allocation16 + $0x138] sm:$0xff]
    %v2270 = vld [vmem:[#allocation16 + $0x140] sm:$0xff]
    %v2271 = vld [vmem:[#allocation16 + $0x148] sm:$0xff]
    %v2272 = vld [vmem:[#allocation16 + $0x150] sm:$0xff]
    %v2273 = vld [vmem:[#allocation16 + $0x158] sm:$0xff]
    %v2274 = vld [vmem:[#allocation16 + $0x160] sm:$0xff]
    %v2275 = vld [vmem:[#allocation16 + $0x168] sm:$0xff]
    %v2276 = vld [vmem:[#allocation16 + $0x170] sm:$0xff]
    %v2277 = vld [vmem:[#allocation16 + $0x178] sm:$0xff]
    %v2278 = vld [vmem:[%s8] sm:$0x1]
    %v2279 = vld [vmem:[#allocation8] sm:$0xff]
    %2280 = vmatprep.subr.mxu0 %v2231
    %2281 = vmatpush1.msra.mxu0 %v2230
    %2282 = vmatprep.subr.mxu0 %v2234
    %2283 = vmatpush1.msra.mxu0 %v2233
    %2284 = vmatprep.subr.mxu0 %v2237
    %2285 = vmatpush1.msra.mxu0 %v2236
    %2286 = vmatprep.subr.mxu0 %v2240
    %2287 = vmatpush1.msra.mxu0 %v2239
    %2288 = vmatprep.subr.mxu0 %v2243
    %2289 = vmatpush1.msra.mxu0 %v2242
    %2290 = vmatprep.subr.mxu0 %v2246
    %2291 = vmatpush1.msra.mxu0 %v2245
    %2292 = vmatprep.subr.mxu0 %v2249
    %2293 = vmatpush1.msra.mxu0 %v2248
    %2294 = vmatprep.subr.mxu0 %v2252
    %2295 = vmatpush1.msra.mxu0 %v2251
    %2296 = vmatprep.subr.mxu0 %v2255
    %2297 = vmatpush1.msra.mxu0 %v2254
    %2298 = vmatprep.subr.mxu0 %v2258
    %2299 = vmatpush1.msra.mxu0 %v2257
    %2300 = vmatprep.subr.mxu0 %v2261
    %2301 = vmatpush1.msra.mxu0 %v2260
    %2302 = vmatprep.subr.mxu0 %v2264
    %2303 = vmatpush1.msra.mxu0 %v2263
    %2304 = vmatprep.subr.mxu0 %v2267
    %2305 = vmatpush1.msra.mxu0 %v2266
    %2306 = vmatprep.subr.mxu0 %v2270
    %2307 = vmatpush1.msra.mxu0 %v2269
    %2308 = vmatprep.subr.mxu0 %v2273
    %2309 = vmatpush1.msra.mxu0 %v2272
    %2310 = vmatprep.subr.mxu0 %v2276
    %2311 = vmatpush1.msra.mxu0 %v2275
    %2312 = vmatprep.subr.mxu0 0.0
    %2313 = vmatpush1.msra.mxu0 0.0
    %2314 = vmatprep.subr.mxu0 0.0
    %2315 = vmatpush1.msra.mxu0 0.0
    %2316 = vmatprep.subr.mxu0 0.0
    %2317 = vmatpush1.msra.mxu0 0.0
    %2318 = vmatprep.subr.mxu0 0.0
    %2319 = vmatpush1.msra.mxu0 0.0
    %2320 = vmatprep.subr.mxu0 0.0
    %2321 = vmatpush1.msra.mxu0 0.0
    %2322 = vmatprep.subr.mxu0 0.0
    %2323 = vmatpush1.msra.mxu0 0.0
    %2324 = vmatprep.subr.mxu0 0.0
    %2325 = vmatpush1.msra.mxu0 0.0
    %2326 = vmatprep.subr.mxu0 0.0
    %2327 = vmatpush1.msra.mxu0 0.0
    %2328 = vmatprep.subr.mxu0 0.0
    %2329 = vmatpush1.msra.mxu0 0.0
    %2330 = vmatprep.subr.mxu0 0.0
    %2331 = vmatpush1.msra.mxu0 0.0
    %2332 = vmatprep.subr.mxu0 0.0
    %2333 = vmatpush1.msra.mxu0 0.0
    %2334 = vmatprep.subr.mxu0 0.0
    %2335 = vmatpush1.msra.mxu0 0.0
    %2336 = vmatprep.subr.mxu0 0.0
    %2337 = vmatpush1.msra.mxu0 0.0
    %2338 = vmatprep.subr.mxu0 0.0
    %2339 = vmatpush1.msra.mxu0 0.0
    %2340 = vmatprep.subr.mxu0 0.0
    %2341 = vmatpush1.msra.mxu0 0.0
    %2342 = vmatprep.subr.mxu0 0.0
    %2343 = vmatpush1.msra.mxu0 0.0
    %2344 = vmatprep.mubr.f32.mxu0 0.0
    %2345 = vmatmul.mubr.f32.gmra.mrb[0].mxu0 %v2279
    %v2346 = vpop.f32.mrb[0].mxu0
    %v2347 = vadd.f32 0.0, %v2346
    %v2348 = vpop.f32.mrb[0].mxu0
    %v2349 = vadd.f32 0.0, %v2348
    %2350 = vdwg.mxu0
    %2351 = vmatprep.subr.mxu0 0.0
    %2352 = vmatpush1.msra.mxu0 %v2232
    %2353 = vmatprep.subr.mxu0 0.0
    %2354 = vmatpush1.msra.mxu0 %v2235
    %2355 = vmatprep.subr.mxu0 0.0
    %2356 = vmatpush1.msra.mxu0 %v2238
    %2357 = vmatprep.subr.mxu0 0.0
    %2358 = vmatpush1.msra.mxu0 %v2241
    %2359 = vmatprep.subr.mxu0 0.0
    %2360 = vmatpush1.msra.mxu0 %v2244
    %2361 = vmatprep.subr.mxu0 0.0
    %2362 = vmatpush1.msra.mxu0 %v2247
    %2363 = vmatprep.subr.mxu0 0.0
    %2364 = vmatpush1.msra.mxu0 %v2250
    %2365 = vmatprep.subr.mxu0 0.0
    %2366 = vmatpush1.msra.mxu0 %v2253
    %2367 = vmatprep.subr.mxu0 0.0
    %2368 = vmatpush1.msra.mxu0 %v2256
    %2369 = vmatprep.subr.mxu0 0.0
    %2370 = vmatpush1.msra.mxu0 %v2259
    %2371 = vmatprep.subr.mxu0 0.0
    %2372 = vmatpush1.msra.mxu0 %v2262
    %2373 = vmatprep.subr.mxu0 0.0
    %2374 = vmatpush1.msra.mxu0 %v2265
    %2375 = vmatprep.subr.mxu0 0.0
    %2376 = vmatpush1.msra.mxu0 %v2268
    %2377 = vmatprep.subr.mxu0 0.0
    %2378 = vmatpush1.msra.mxu0 %v2271
    %2379 = vmatprep.subr.mxu0 0.0
    %2380 = vmatpush1.msra.mxu0 %v2274
    %2381 = vmatprep.subr.mxu0 0.0
    %2382 = vmatpush1.msra.mxu0 %v2277
    %2383 = vmatprep.subr.mxu0 0.0
    %2384 = vmatpush1.msra.mxu0 0.0
    %2385 = vmatprep.subr.mxu0 0.0
    %2386 = vmatpush1.msra.mxu0 0.0
    %2387 = vmatprep.subr.mxu0 0.0
    %2388 = vmatpush1.msra.mxu0 0.0
    %2389 = vmatprep.subr.mxu0 0.0
    %2390 = vmatpush1.msra.mxu0 0.0
    %2391 = vmatprep.subr.mxu0 0.0
    %2392 = vmatpush1.msra.mxu0 0.0
    %2393 = vmatprep.subr.mxu0 0.0
    %2394 = vmatpush1.msra.mxu0 0.0
    %2395 = vmatprep.subr.mxu0 0.0
    %2396 = vmatpush1.msra.mxu0 0.0
    %2397 = vmatprep.subr.mxu0 0.0
    %2398 = vmatpush1.msra.mxu0 0.0
    %2399 = vmatprep.subr.mxu0 0.0
    %2400 = vmatpush1.msra.mxu0 0.0
    %2401 = vmatprep.subr.mxu0 0.0
    %2402 = vmatpush1.msra.mxu0 0.0
    %2403 = vmatprep.subr.mxu0 0.0
    %2404 = vmatpush1.msra.mxu0 0.0
    %2405 = vmatprep.subr.mxu0 0.0
    %2406 = vmatpush1.msra.mxu0 0.0
    %2407 = vmatprep.subr.mxu0 0.0
    %2408 = vmatpush1.msra.mxu0 0.0
    %2409 = vmatprep.subr.mxu0 0.0
    %2410 = vmatpush1.msra.mxu0 0.0
    %2411 = vmatprep.subr.mxu0 0.0
    %2412 = vmatpush1.msra.mxu0 0.0
    %2413 = vmatprep.subr.mxu0 0.0
    %2414 = vmatpush1.msra.mxu0 0.0
    %2415 = vmatprep.mubr.f32.mxu0 0.0
    %2416 = vmatmul.mubr.f32.gmra.mrb[0].mxu0 %v2279
    %v2417 = vpop.f32.mrb[0].mxu0
    %v2418 = vadd.f32 0.0, %v2417
    %v2419 = vpop.f32.mrb[0].mxu0
    %2420 = vdwg.mxu0
    %v2421 = vld [vmem:[%s684] sm:$0xff]
    %v2422 = vld [vmem:[%s684 + $0x8] sm:$0xff]
    %v2423 = vld [vmem:[%s684 + $0x10] sm:$0xff]
    %v2424 = vadd.f32 %v2421, %v2347
    %v2425 = vxor.u32 %v2424, 2147483648
    %v2426 = vmul.f32 %v2425, 1.442695
    %v2427 = vpow.pop %v2426
    %v2428 = vadd.f32 %v2427, 1.0
    %v2429 = vrcp.pop %v2428
    %v2430 = vmul.f32 1.0, %v2429
    %v2431 = vadd.f32 %v2422, %v2349
    %v2432 = vxor.u32 %v2431, 2147483648
    %v2433 = vmul.f32 %v2432, 1.442695
    %v2434 = vpow.pop %v2433
    %v2435 = vadd.f32 %v2434, 1.0
    %v2436 = vrcp.pop %v2435
    %v2437 = vmul.f32 1.0, %v2436
    %v2439 = vlaneseq
    %v2440 = vshrl.u32 %v2439, 7
    %v2441 = vsub.s32 0, %v2440
    %v2442 = vrot.slane %v2278, %v2441
    %v2444 = vadd.f32 %v2418, %v2442
    %v2445 = vmul.f32 %v2430, %v2444
    %v2446 = vadd.f32 %v2423, %v2445
    %v2447 = vtanh.pop %v2446
    %v2448 = vsub.f32 1.0, %v2437
    %v2449 = vmul.f32 %v2448, %v2447
    %v2450 = vmul.f32 %v2437, %v2279
    %v2451 = vadd.f32 %v2449, %v2450
    %2452 = vst [vmem:[#allocation3] sm:$0xff] %v2451
    %2453 = vmatprep.subr.mxu0 %v2231
    %2454 = vmatpush1.msra.mxu0 %v2230
    %2455 = vmatprep.subr.mxu0 %v2234
    %2456 = vmatpush1.msra.mxu0 %v2233
    %2457 = vmatprep.subr.mxu0 %v2237
    %2458 = vmatpush1.msra.mxu0 %v2236
    %2459 = vmatprep.subr.mxu0 %v2240
    %2460 = vmatpush1.msra.mxu0 %v2239
    %2461 = vmatprep.subr.mxu0 %v2243
    %2462 = vmatpush1.msra.mxu0 %v2242
    %2463 = vmatprep.subr.mxu0 %v2246
    %2464 = vmatpush1.msra.mxu0 %v2245
    %2465 = vmatprep.subr.mxu0 %v2249
    %2466 = vmatpush1.msra.mxu0 %v2248
    %2467 = vmatprep.subr.mxu0 %v2252
    %2468 = vmatpush1.msra.mxu0 %v2251
    %2469 = vmatprep.subr.mxu0 %v2255
    %2470 = vmatpush1.msra.mxu0 %v2254
    %2471 = vmatprep.subr.mxu0 %v2258
    %2472 = vmatpush1.msra.mxu0 %v2257
    %2473 = vmatprep.subr.mxu0 %v2261
    %2474 = vmatpush1.msra.mxu0 %v2260
    %2475 = vmatprep.subr.mxu0 %v2264
    %2476 = vmatpush1.msra.mxu0 %v2263
    %2477 = vmatprep.subr.mxu0 %v2267
    %2478 = vmatpush1.msra.mxu0 %v2266
    %2479 = vmatprep.subr.mxu0 %v2270
    %2480 = vmatpush1.msra.mxu0 %v2269
    %2481 = vmatprep.subr.mxu0 %v2273
    %2482 = vmatpush1.msra.mxu0 %v2272
    %2483 = vmatprep.subr.mxu0 %v2276
    %2484 = vmatpush1.msra.mxu0 %v2275
    %2485 = vmatprep.subr.mxu0 0.0
    %2486 = vmatpush1.msra.mxu0 0.0
    %2487 = vmatprep.subr.mxu0 0.0
    %2488 = vmatpush1.msra.mxu0 0.0
    %2489 = vmatprep.subr.mxu0 0.0
    %2490 = vmatpush1.msra.mxu0 0.0
    %2491 = vmatprep.subr.mxu0 0.0
    %2492 = vmatpush1.msra.mxu0 0.0
    %2493 = vmatprep.subr.mxu0 0.0
    %2494 = vmatpush1.msra.mxu0 0.0
    %2495 = vmatprep.subr.mxu0 0.0
    %2496 = vmatpush1.msra.mxu0 0.0
    %2497 = vmatprep.subr.mxu0 0.0
    %2498 = vmatpush1.msra.mxu0 0.0
    %2499 = vmatprep.subr.mxu0 0.0
    %2500 = vmatpush1.msra.mxu0 0.0
    %2501 = vmatprep.subr.mxu0 0.0
    %2502 = vmatpush1.msra.mxu0 0.0
    %2503 = vmatprep.subr.mxu0 0.0
    %2504 = vmatpush1.msra.mxu0 0.0
    %2505 = vmatprep.subr.mxu0 0.0
    %2506 = vmatpush1.msra.mxu0 0.0
    %2507 = vmatprep.subr.mxu0 0.0
    %2508 = vmatpush1.msra.mxu0 0.0
    %2509 = vmatprep.subr.mxu0 0.0
    %2510 = vmatpush1.msra.mxu0 0.0
    %2511 = vmatprep.subr.mxu0 0.0
    %2512 = vmatpush1.msra.mxu0 0.0
    %2513 = vmatprep.subr.mxu0 0.0
    %2514 = vmatpush1.msra.mxu0 0.0
    %2515 = vmatprep.subr.mxu0 0.0
    %2516 = vmatpush1.msra.mxu0 0.0
    %2517 = vmatprep.mubr.f32.mxu0 0.0
    %2518 = vmatmul.mubr.f32.gmra.mrb[0].mxu0 %v2451
    %v2519 = vpop.f32.mrb[0].mxu0
    %v2520 = vadd.f32 0.0, %v2519
    %v2521 = vpop.f32.mrb[0].mxu0
    %v2522 = vadd.f32 0.0, %v2521
    %2523 = vdwg.mxu0
    %2524 = vmatprep.subr.mxu0 0.0
    %2525 = vmatpush1.msra.mxu0 %v2232
    %2526 = vmatprep.subr.mxu0 0.0
    %2527 = vmatpush1.msra.mxu0 %v2235
    %2528 = vmatprep.subr.mxu0 0.0
    %2529 = vmatpush1.msra.mxu0 %v2238
    %2530 = vmatprep.subr.mxu0 0.0
    %2531 = vmatpush1.msra.mxu0 %v2241
    %2532 = vmatprep.subr.mxu0 0.0
    %2533 = vmatpush1.msra.mxu0 %v2244
    %2534 = vmatprep.subr.mxu0 0.0
    %2535 = vmatpush1.msra.mxu0 %v2247
    %2536 = vmatprep.subr.mxu0 0.0
    %2537 = vmatpush1.msra.mxu0 %v2250
    %2538 = vmatprep.subr.mxu0 0.0
    %2539 = vmatpush1.msra.mxu0 %v2253
    %2540 = vmatprep.subr.mxu0 0.0
    %2541 = vmatpush1.msra.mxu0 %v2256
    %2542 = vmatprep.subr.mxu0 0.0
    %2543 = vmatpush1.msra.mxu0 %v2259
    %2544 = vmatprep.subr.mxu0 0.0
    %2545 = vmatpush1.msra.mxu0 %v2262
    %2546 = vmatprep.subr.mxu0 0.0
    %2547 = vmatpush1.msra.mxu0 %v2265
    %2548 = vmatprep.subr.mxu0 0.0
    %2549 = vmatpush1.msra.mxu0 %v2268
    %2550 = vmatprep.subr.mxu0 0.0
    %2551 = vmatpush1.msra.mxu0 %v2271
    %2552 = vmatprep.subr.mxu0 0.0
    %2553 = vmatpush1.msra.mxu0 %v2274
    %2554 = vmatprep.subr.mxu0 0.0
    %2555 = vmatpush1.msra.mxu0 %v2277
    %2556 = vmatprep.subr.mxu0 0.0
    %2557 = vmatpush1.msra.mxu0 0.0
    %2558 = vmatprep.subr.mxu0 0.0
    %2559 = vmatpush1.msra.mxu0 0.0
    %2560 = vmatprep.subr.mxu0 0.0
    %2561 = vmatpush1.msra.mxu0 0.0
    %2562 = vmatprep.subr.mxu0 0.0
    %2563 = vmatpush1.msra.mxu0 0.0
    %2564 = vmatprep.subr.mxu0 0.0
    %2565 = vmatpush1.msra.mxu0 0.0
    %2566 = vmatprep.subr.mxu0 0.0
    %2567 = vmatpush1.msra.mxu0 0.0
    %2568 = vmatprep.subr.mxu0 0.0
    %2569 = vmatpush1.msra.mxu0 0.0
    %2570 = vmatprep.subr.mxu0 0.0
    %2571 = vmatpush1.msra.mxu0 0.0
    %2572 = vmatprep.subr.mxu0 0.0
    %2573 = vmatpush1.msra.mxu0 0.0
    %2574 = vmatprep.subr.mxu0 0.0
    %2575 = vmatpush1.msra.mxu0 0.0
    %2576 = vmatprep.subr.mxu0 0.0
    %2577 = vmatpush1.msra.mxu0 0.0
    %2578 = vmatprep.subr.mxu0 0.0
    %2579 = vmatpush1.msra.mxu0 0.0
    %2580 = vmatprep.subr.mxu0 0.0
    %2581 = vmatpush1.msra.mxu0 0.0
    %2582 = vmatprep.subr.mxu0 0.0
    %2583 = vmatpush1.msra.mxu0 0.0
    %2584 = vmatprep.subr.mxu0 0.0
    %2585 = vmatpush1.msra.mxu0 0.0
    %2586 = vmatprep.subr.mxu0 0.0
    %2587 = vmatpush1.msra.mxu0 0.0
    %2588 = vmatprep.mubr.f32.mxu0 0.0
    %2589 = vmatmul.mubr.f32.gmra.mrb[0].mxu0 %v2451
    %v2590 = vpop.f32.mrb[0].mxu0
    %v2591 = vadd.f32 0.0, %v2590
    %v2592 = vpop.f32.mrb[0].mxu0
    %2593 = vdwg.mxu0
    %v2594 = vld [vmem:[%s860] sm:$0xff]
    %v2595 = vld [vmem:[%s860 + $0x8] sm:$0xff]
    %v2596 = vld [vmem:[%s860 + $0x10] sm:$0xff]
    %v2597 = vadd.f32 %v2594, %v2520
    %v2598 = vxor.u32 %v2597, 2147483648
    %v2599 = vmul.f32 %v2598, 1.442695
    %v2600 = vpow.pop %v2599
    %v2601 = vadd.f32 %v2600, 1.0
    %v2602 = vrcp.pop %v2601
    %v2603 = vmul.f32 1.0, %v2602
    %v2604 = vadd.f32 %v2595, %v2522
    %v2605 = vxor.u32 %v2604, 2147483648
    %v2606 = vmul.f32 %v2605, 1.442695
    %v2607 = vpow.pop %v2606
    %v2608 = vadd.f32 %v2607, 1.0
    %v2609 = vrcp.pop %v2608
    %v2610 = vmul.f32 1.0, %v2609
    %v2611 = vadd.f32 %v2591, %v2442
    %v2612 = vmul.f32 %v2603, %v2611
    %v2613 = vadd.f32 %v2596, %v2612
    %v2614 = vtanh.pop %v2613
    %v2615 = vsub.f32 1.0, %v2610
    %v2616 = vmul.f32 %v2615, %v2614
    %v2617 = vmul.f32 %v2610, %v2451
    %v2618 = vadd.f32 %v2616, %v2617
    %s2619 = scalar_lea.vmem [#allocation3], 8
    %2620 = vst [vmem:[%s2619] sm:$0xff] %v2618
    %2621 = vmatprep.subr.mxu0 %v2231
    %2622 = vmatpush1.msra.mxu0 %v2230
    %2623 = vmatprep.subr.mxu0 %v2234
    %2624 = vmatpush1.msra.mxu0 %v2233
    %2625 = vmatprep.subr.mxu0 %v2237
    %2626 = vmatpush1.msra.mxu0 %v2236
    %2627 = vmatprep.subr.mxu0 %v2240
    %2628 = vmatpush1.msra.mxu0 %v2239
    %2629 = vmatprep.subr.mxu0 %v2243
    %2630 = vmatpush1.msra.mxu0 %v2242
    %2631 = vmatprep.subr.mxu0 %v2246
    %2632 = vmatpush1.msra.mxu0 %v2245
    %2633 = vmatprep.subr.mxu0 %v2249
    %2634 = vmatpush1.msra.mxu0 %v2248
    %2635 = vmatprep.subr.mxu0 %v2252
    %2636 = vmatpush1.msra.mxu0 %v2251
    %2637 = vmatprep.subr.mxu0 %v2255
    %2638 = vmatpush1.msra.mxu0 %v2254
    %2639 = vmatprep.subr.mxu0 %v2258
    %2640 = vmatpush1.msra.mxu0 %v2257
    %2641 = vmatprep.subr.mxu0 %v2261
    %2642 = vmatpush1.msra.mxu0 %v2260
    %2643 = vmatprep.subr.mxu0 %v2264
    %2644 = vmatpush1.msra.mxu0 %v2263
    %2645 = vmatprep.subr.mxu0 %v2267
    %2646 = vmatpush1.msra.mxu0 %v2266
    %2647 = vmatprep.subr.mxu0 %v2270
    %2648 = vmatpush1.msra.mxu0 %v2269
    %2649 = vmatprep.subr.mxu0 %v2273
    %2650 = vmatpush1.msra.mxu0 %v2272
    %2651 = vmatprep.subr.mxu0 %v2276
    %2652 = vmatpush1.msra.mxu0 %v2275
    %2653 = vmatprep.subr.mxu0 0.0
    %2654 = vmatpush1.msra.mxu0 0.0
    %2655 = vmatprep.subr.mxu0 0.0
    %2656 = vmatpush1.msra.mxu0 0.0
    %2657 = vmatprep.subr.mxu0 0.0
    %2658 = vmatpush1.msra.mxu0 0.0
    %2659 = vmatprep.subr.mxu0 0.0
    %2660 = vmatpush1.msra.mxu0 0.0
    %2661 = vmatprep.subr.mxu0 0.0
    %2662 = vmatpush1.msra.mxu0 0.0
    %2663 = vmatprep.subr.mxu0 0.0
    %2664 = vmatpush1.msra.mxu0 0.0
    %2665 = vmatprep.subr.mxu0 0.0
    %2666 = vmatpush1.msra.mxu0 0.0
    %2667 = vmatprep.subr.mxu0 0.0
    %2668 = vmatpush1.msra.mxu0 0.0
    %2669 = vmatprep.subr.mxu0 0.0
    %2670 = vmatpush1.msra.mxu0 0.0
    %2671 = vmatprep.subr.mxu0 0.0
    %2672 = vmatpush1.msra.mxu0 0.0
    %2673 = vmatprep.subr.mxu0 0.0
    %2674 = vmatpush1.msra.mxu0 0.0
    %2675 = vmatprep.subr.mxu0 0.0
    %2676 = vmatpush1.msra.mxu0 0.0
    %2677 = vmatprep.subr.mxu0 0.0
    %2678 = vmatpush1.msra.mxu0 0.0
    %2679 = vmatprep.subr.mxu0 0.0
    %2680 = vmatpush1.msra.mxu0 0.0
    %2681 = vmatprep.subr.mxu0 0.0
    %2682 = vmatpush1.msra.mxu0 0.0
    %2683 = vmatprep.subr.mxu0 0.0
    %2684 = vmatpush1.msra.mxu0 0.0
    %2685 = vmatprep.mubr.f32.mxu0 0.0
    %2686 = vmatmul.mubr.f32.gmra.mrb[0].mxu0 %v2618
    %v2687 = vpop.f32.mrb[0].mxu0
    %v2688 = vadd.f32 0.0, %v2687
    %v2689 = vpop.f32.mrb[0].mxu0
    %v2690 = vadd.f32 0.0, %v2689
    %2691 = vdwg.mxu0
    %2692 = vmatprep.subr.mxu0 0.0
    %2693 = vmatpush1.msra.mxu0 %v2232
    %2694 = vmatprep.subr.mxu0 0.0
    %2695 = vmatpush1.msra.mxu0 %v2235
    %2696 = vmatprep.subr.mxu0 0.0
    %2697 = vmatpush1.msra.mxu0 %v2238
    %2698 = vmatprep.subr.mxu0 0.0
    %2699 = vmatpush1.msra.mxu0 %v2241
    %2700 = vmatprep.subr.mxu0 0.0
    %2701 = vmatpush1.msra.mxu0 %v2244
    %2702 = vmatprep.subr.mxu0 0.0
    %2703 = vmatpush1.msra.mxu0 %v2247
    %2704 = vmatprep.subr.mxu0 0.0
    %2705 = vmatpush1.msra.mxu0 %v2250
    %2706 = vmatprep.subr.mxu0 0.0
    %2707 = vmatpush1.msra.mxu0 %v2253
    %2708 = vmatprep.subr.mxu0 0.0
    %2709 = vmatpush1.msra.mxu0 %v2256
    %2710 = vmatprep.subr.mxu0 0.0
    %2711 = vmatpush1.msra.mxu0 %v2259
    %2712 = vmatprep.subr.mxu0 0.0
    %2713 = vmatpush1.msra.mxu0 %v2262
    %2714 = vmatprep.subr.mxu0 0.0
    %2715 = vmatpush1.msra.mxu0 %v2265
    %2716 = vmatprep.subr.mxu0 0.0
    %2717 = vmatpush1.msra.mxu0 %v2268
    %2718 = vmatprep.subr.mxu0 0.0
    %2719 = vmatpush1.msra.mxu0 %v2271
    %2720 = vmatprep.subr.mxu0 0.0
    %2721 = vmatpush1.msra.mxu0 %v2274
    %2722 = vmatprep.subr.mxu0 0.0
    %2723 = vmatpush1.msra.mxu0 %v2277
    %2724 = vmatprep.subr.mxu0 0.0
    %2725 = vmatpush1.msra.mxu0 0.0
    %2726 = vmatprep.subr.mxu0 0.0
    %2727 = vmatpush1.msra.mxu0 0.0
    %2728 = vmatprep.subr.mxu0 0.0
    %2729 = vmatpush1.msra.mxu0 0.0
    %2730 = vmatprep.subr.mxu0 0.0
    %2731 = vmatpush1.msra.mxu0 0.0
    %2732 = vmatprep.subr.mxu0 0.0
    %2733 = vmatpush1.msra.mxu0 0.0
    %2734 = vmatprep.subr.mxu0 0.0
    %2735 = vmatpush1.msra.mxu0 0.0
    %2736 = vmatprep.subr.mxu0 0.0
    %2737 = vmatpush1.msra.mxu0 0.0
    %2738 = vmatprep.subr.mxu0 0.0
    %2739 = vmatpush1.msra.mxu0 0.0
    %2740 = vmatprep.subr.mxu0 0.0
    %2741 = vmatpush1.msra.mxu0 0.0
    %2742 = vmatprep.subr.mxu0 0.0
    %2743 = vmatpush1.msra.mxu0 0.0
    %2744 = vmatprep.subr.mxu0 0.0
    %2745 = vmatpush1.msra.mxu0 0.0
    %2746 = vmatprep.subr.mxu0 0.0
    %2747 = vmatpush1.msra.mxu0 0.0
    %2748 = vmatprep.subr.mxu0 0.0
    %2749 = vmatpush1.msra.mxu0 0.0
    %2750 = vmatprep.subr.mxu0 0.0
    %2751 = vmatpush1.msra.mxu0 0.0
    %2752 = vmatprep.subr.mxu0 0.0
    %2753 = vmatpush1.msra.mxu0 0.0
    %2754 = vmatprep.subr.mxu0 0.0
    %2755 = vmatpush1.msra.mxu0 0.0
    %2756 = vmatprep.mubr.f32.mxu0 0.0
    %2757 = vmatmul.mubr.f32.gmra.mrb[0].mxu0 %v2618
    %v2758 = vpop.f32.mrb[0].mxu0
    %v2759 = vadd.f32 0.0, %v2758
    %v2760 = vpop.f32.mrb[0].mxu0
    %2761 = vdwg.mxu0
    %v2762 = vld [vmem:[%s1031] sm:$0xff]
    %v2763 = vld [vmem:[%s1031 + $0x8] sm:$0xff]
    %v2764 = vld [vmem:[%s1031 + $0x10] sm:$0xff]
    %v2765 = vadd.f32 %v2762, %v2688
    %v2766 = vxor.u32 %v2765, 2147483648
    %v2767 = vmul.f32 %v2766, 1.442695
    %v2768 = vpow.pop %v2767
    %v2769 = vadd.f32 %v2768, 1.0
    %v2770 = vrcp.pop %v2769
    %v2771 = vmul.f32 1.0, %v2770
    %v2772 = vadd.f32 %v2763, %v2690
    %v2773 = vxor.u32 %v2772, 2147483648
    %v2774 = vmul.f32 %v2773, 1.442695
    %v2775 = vpow.pop %v2774
    %v2776 = vadd.f32 %v2775, 1.0
    %v2777 = vrcp.pop %v2776
    %v2778 = vmul.f32 1.0, %v2777
    %v2779 = vadd.f32 %v2759, %v2442
    %v2780 = vmul.f32 %v2771, %v2779
    %v2781 = vadd.f32 %v2764, %v2780
    %v2782 = vtanh.pop %v2781
    %v2783 = vsub.f32 1.0, %v2778
    %v2784 = vmul.f32 %v2783, %v2782
    %v2785 = vmul.f32 %v2778, %v2618
    %v2786 = vadd.f32 %v2784, %v2785
    %s2787 = scalar_lea.vmem [#allocation3], 16
    %2788 = vst [vmem:[%s2787] sm:$0xff] %v2786
    %2789 = vmatprep.subr.mxu0 %v2231
    %2790 = vmatpush1.msra.mxu0 %v2230
    %2791 = vmatprep.subr.mxu0 %v2234
    %2792 = vmatpush1.msra.mxu0 %v2233
    %2793 = vmatprep.subr.mxu0 %v2237
    %2794 = vmatpush1.msra.mxu0 %v2236
    %2795 = vmatprep.subr.mxu0 %v2240
    %2796 = vmatpush1.msra.mxu0 %v2239
    %2797 = vmatprep.subr.mxu0 %v2243
    %2798 = vmatpush1.msra.mxu0 %v2242
    %2799 = vmatprep.subr.mxu0 %v2246
    %2800 = vmatpush1.msra.mxu0 %v2245
    %2801 = vmatprep.subr.mxu0 %v2249
    %2802 = vmatpush1.msra.mxu0 %v2248
    %2803 = vmatprep.subr.mxu0 %v2252
    %2804 = vmatpush1.msra.mxu0 %v2251
    %2805 = vmatprep.subr.mxu0 %v2255
    %2806 = vmatpush1.msra.mxu0 %v2254
    %2807 = vmatprep.subr.mxu0 %v2258
    %2808 = vmatpush1.msra.mxu0 %v2257
    %2809 = vmatprep.subr.mxu0 %v2261
    %2810 = vmatpush1.msra.mxu0 %v2260
    %2811 = vmatprep.subr.mxu0 %v2264
    %2812 = vmatpush1.msra.mxu0 %v2263
    %2813 = vmatprep.subr.mxu0 %v2267
    %2814 = vmatpush1.msra.mxu0 %v2266
    %2815 = vmatprep.subr.mxu0 %v2270
    %2816 = vmatpush1.msra.mxu0 %v2269
    %2817 = vmatprep.subr.mxu0 %v2273
    %2818 = vmatpush1.msra.mxu0 %v2272
    %2819 = vmatprep.subr.mxu0 %v2276
    %2820 = vmatpush1.msra.mxu0 %v2275
    %2821 = vmatprep.subr.mxu0 0.0
    %2822 = vmatpush1.msra.mxu0 0.0
    %2823 = vmatprep.subr.mxu0 0.0
    %2824 = vmatpush1.msra.mxu0 0.0
    %2825 = vmatprep.subr.mxu0 0.0
    %2826 = vmatpush1.msra.mxu0 0.0
    %2827 = vmatprep.subr.mxu0 0.0
    %2828 = vmatpush1.msra.mxu0 0.0
    %2829 = vmatprep.subr.mxu0 0.0
    %2830 = vmatpush1.msra.mxu0 0.0
    %2831 = vmatprep.subr.mxu0 0.0
    %2832 = vmatpush1.msra.mxu0 0.0
    %2833 = vmatprep.subr.mxu0 0.0
    %2834 = vmatpush1.msra.mxu0 0.0
    %2835 = vmatprep.subr.mxu0 0.0
    %2836 = vmatpush1.msra.mxu0 0.0
    %2837 = vmatprep.subr.mxu0 0.0
    %2838 = vmatpush1.msra.mxu0 0.0
    %2839 = vmatprep.subr.mxu0 0.0
    %2840 = vmatpush1.msra.mxu0 0.0
    %2841 = vmatprep.subr.mxu0 0.0
    %2842 = vmatpush1.msra.mxu0 0.0
    %2843 = vmatprep.subr.mxu0 0.0
    %2844 = vmatpush1.msra.mxu0 0.0
    %2845 = vmatprep.subr.mxu0 0.0
    %2846 = vmatpush1.msra.mxu0 0.0
    %2847 = vmatprep.subr.mxu0 0.0
    %2848 = vmatpush1.msra.mxu0 0.0
    %2849 = vmatprep.subr.mxu0 0.0
    %2850 = vmatpush1.msra.mxu0 0.0
    %2851 = vmatprep.subr.mxu0 0.0
    %2852 = vmatpush1.msra.mxu0 0.0
    %2853 = vmatprep.mubr.f32.mxu0 0.0
    %2854 = vmatmul.mubr.f32.gmra.mrb[0].mxu0 %v2786
    %v2855 = vpop.f32.mrb[0].mxu0
    %v2856 = vadd.f32 0.0, %v2855
    %v2857 = vpop.f32.mrb[0].mxu0
    %v2858 = vadd.f32 0.0, %v2857
    %2859 = vdwg.mxu0
    %2860 = vmatprep.subr.mxu0 0.0
    %2861 = vmatpush1.msra.mxu0 %v2232
    %2862 = vmatprep.subr.mxu0 0.0
    %2863 = vmatpush1.msra.mxu0 %v2235
    %2864 = vmatprep.subr.mxu0 0.0
    %2865 = vmatpush1.msra.mxu0 %v2238
    %2866 = vmatprep.subr.mxu0 0.0
    %2867 = vmatpush1.msra.mxu0 %v2241
    %2868 = vmatprep.subr.mxu0 0.0
    %2869 = vmatpush1.msra.mxu0 %v2244
    %2870 = vmatprep.subr.mxu0 0.0
    %2871 = vmatpush1.msra.mxu0 %v2247
    %2872 = vmatprep.subr.mxu0 0.0
    %2873 = vmatpush1.msra.mxu0 %v2250
    %2874 = vmatprep.subr.mxu0 0.0
    %2875 = vmatpush1.msra.mxu0 %v2253
    %2876 = vmatprep.subr.mxu0 0.0
    %2877 = vmatpush1.msra.mxu0 %v2256
    %2878 = vmatprep.subr.mxu0 0.0
    %2879 = vmatpush1.msra.mxu0 %v2259
    %2880 = vmatprep.subr.mxu0 0.0
    %2881 = vmatpush1.msra.mxu0 %v2262
    %2882 = vmatprep.subr.mxu0 0.0
    %2883 = vmatpush1.msra.mxu0 %v2265
    %2884 = vmatprep.subr.mxu0 0.0
    %2885 = vmatpush1.msra.mxu0 %v2268
    %2886 = vmatprep.subr.mxu0 0.0
    %2887 = vmatpush1.msra.mxu0 %v2271
    %2888 = vmatprep.subr.mxu0 0.0
    %2889 = vmatpush1.msra.mxu0 %v2274
    %2890 = vmatprep.subr.mxu0 0.0
    %2891 = vmatpush1.msra.mxu0 %v2277
    %2892 = vmatprep.subr.mxu0 0.0
    %2893 = vmatpush1.msra.mxu0 0.0
    %2894 = vmatprep.subr.mxu0 0.0
    %2895 = vmatpush1.msra.mxu0 0.0
    %2896 = vmatprep.subr.mxu0 0.0
    %2897 = vmatpush1.msra.mxu0 0.0
    %2898 = vmatprep.subr.mxu0 0.0
    %2899 = vmatpush1.msra.mxu0 0.0
    %2900 = vmatprep.subr.mxu0 0.0
    %2901 = vmatpush1.msra.mxu0 0.0
    %2902 = vmatprep.subr.mxu0 0.0
    %2903 = vmatpush1.msra.mxu0 0.0
    %2904 = vmatprep.subr.mxu0 0.0
    %2905 = vmatpush1.msra.mxu0 0.0
    %2906 = vmatprep.subr.mxu0 0.0
    %2907 = vmatpush1.msra.mxu0 0.0
    %2908 = vmatprep.subr.mxu0 0.0
    %2909 = vmatpush1.msra.mxu0 0.0
    %2910 = vmatprep.subr.mxu0 0.0
    %2911 = vmatpush1.msra.mxu0 0.0
    %2912 = vmatprep.subr.mxu0 0.0
    %2913 = vmatpush1.msra.mxu0 0.0
    %2914 = vmatprep.subr.mxu0 0.0
    %2915 = vmatpush1.msra.mxu0 0.0
    %2916 = vmatprep.subr.mxu0 0.0
    %2917 = vmatpush1.msra.mxu0 0.0
    %2918 = vmatprep.subr.mxu0 0.0
    %2919 = vmatpush1.msra.mxu0 0.0
    %2920 = vmatprep.subr.mxu0 0.0
    %2921 = vmatpush1.msra.mxu0 0.0
    %2922 = vmatprep.subr.mxu0 0.0
    %2923 = vmatpush1.msra.mxu0 0.0
    %2924 = vmatprep.mubr.f32.mxu0 0.0
    %2925 = vmatmul.mubr.f32.gmra.mrb[0].mxu0 %v2786
    %v2926 = vpop.f32.mrb[0].mxu0
    %v2927 = vadd.f32 0.0, %v2926
    %v2928 = vpop.f32.mrb[0].mxu0
    %2929 = vdwg.mxu0
    %v2930 = vld [vmem:[%s1202] sm:$0xff]
    %v2931 = vld [vmem:[%s1202 + $0x8] sm:$0xff]
    %v2932 = vld [vmem:[%s1202 + $0x10] sm:$0xff]
    %v2933 = vadd.f32 %v2930, %v2856
    %v2934 = vxor.u32 %v2933, 2147483648
    %v2935 = vmul.f32 %v2934, 1.442695
    %v2936 = vpow.pop %v2935
    %v2937 = vadd.f32 %v2936, 1.0
    %v2938 = vrcp.pop %v2937
    %v2939 = vmul.f32 1.0, %v2938
    %v2940 = vadd.f32 %v2931, %v2858
    %v2941 = vxor.u32 %v2940, 2147483648
    %v2942 = vmul.f32 %v2941, 1.442695
    %v2943 = vpow.pop %v2942
    %v2944 = vadd.f32 %v2943, 1.0
    %v2945 = vrcp.pop %v2944
    %v2946 = vmul.f32 1.0, %v2945
    %v2947 = vadd.f32 %v2927, %v2442
    %v2948 = vmul.f32 %v2939, %v2947
    %v2949 = vadd.f32 %v2932, %v2948
    %v2950 = vtanh.pop %v2949
    %v2951 = vsub.f32 1.0, %v2946
    %v2952 = vmul.f32 %v2951, %v2950
    %v2953 = vmul.f32 %v2946, %v2786
    %v2954 = vadd.f32 %v2952, %v2953
    %s2955 = scalar_lea.vmem [#allocation3], 24
    %2956 = vst [vmem:[%s2955] sm:$0xff] %v2954
    %2957 = vmatprep.subr.mxu0 %v2231
    %2958 = vmatpush1.msra.mxu0 %v2230
    %2959 = vmatprep.subr.mxu0 %v2234
    %2960 = vmatpush1.msra.mxu0 %v2233
    %2961 = vmatprep.subr.mxu0 %v2237
    %2962 = vmatpush1.msra.mxu0 %v2236
    %2963 = vmatprep.subr.mxu0 %v2240
    %2964 = vmatpush1.msra.mxu0 %v2239
    %2965 = vmatprep.subr.mxu0 %v2243
    %2966 = vmatpush1.msra.mxu0 %v2242
    %2967 = vmatprep.subr.mxu0 %v2246
    %2968 = vmatpush1.msra.mxu0 %v2245
    %2969 = vmatprep.subr.mxu0 %v2249
    %2970 = vmatpush1.msra.mxu0 %v2248
    %2971 = vmatprep.subr.mxu0 %v2252
    %2972 = vmatpush1.msra.mxu0 %v2251
    %2973 = vmatprep.subr.mxu0 %v2255
    %2974 = vmatpush1.msra.mxu0 %v2254
    %2975 = vmatprep.subr.mxu0 %v2258
    %2976 = vmatpush1.msra.mxu0 %v2257
    %2977 = vmatprep.subr.mxu0 %v2261
    %2978 = vmatpush1.msra.mxu0 %v2260
    %2979 = vmatprep.subr.mxu0 %v2264
    %2980 = vmatpush1.msra.mxu0 %v2263
    %2981 = vmatprep.subr.mxu0 %v2267
    %2982 = vmatpush1.msra.mxu0 %v2266
    %2983 = vmatprep.subr.mxu0 %v2270
    %2984 = vmatpush1.msra.mxu0 %v2269
    %2985 = vmatprep.subr.mxu0 %v2273
    %2986 = vmatpush1.msra.mxu0 %v2272
    %2987 = vmatprep.subr.mxu0 %v2276
    %2988 = vmatpush1.msra.mxu0 %v2275
    %2989 = vmatprep.subr.mxu0 0.0
    %2990 = vmatpush1.msra.mxu0 0.0
    %2991 = vmatprep.subr.mxu0 0.0
    %2992 = vmatpush1.msra.mxu0 0.0
    %2993 = vmatprep.subr.mxu0 0.0
    %2994 = vmatpush1.msra.mxu0 0.0
    %2995 = vmatprep.subr.mxu0 0.0
    %2996 = vmatpush1.msra.mxu0 0.0
    %2997 = vmatprep.subr.mxu0 0.0
    %2998 = vmatpush1.msra.mxu0 0.0
    %2999 = vmatprep.subr.mxu0 0.0
    %3000 = vmatpush1.msra.mxu0 0.0
    %3001 = vmatprep.subr.mxu0 0.0
    %3002 = vmatpush1.msra.mxu0 0.0
    %3003 = vmatprep.subr.mxu0 0.0
    %3004 = vmatpush1.msra.mxu0 0.0
    %3005 = vmatprep.subr.mxu0 0.0
    %3006 = vmatpush1.msra.mxu0 0.0
    %3007 = vmatprep.subr.mxu0 0.0
    %3008 = vmatpush1.msra.mxu0 0.0
    %3009 = vmatprep.subr.mxu0 0.0
    %3010 = vmatpush1.msra.mxu0 0.0
    %3011 = vmatprep.subr.mxu0 0.0
    %3012 = vmatpush1.msra.mxu0 0.0
    %3013 = vmatprep.subr.mxu0 0.0
    %3014 = vmatpush1.msra.mxu0 0.0
    %3015 = vmatprep.subr.mxu0 0.0
    %3016 = vmatpush1.msra.mxu0 0.0
    %3017 = vmatprep.subr.mxu0 0.0
    %3018 = vmatpush1.msra.mxu0 0.0
    %3019 = vmatprep.subr.mxu0 0.0
    %3020 = vmatpush1.msra.mxu0 0.0
    %3021 = vmatprep.mubr.f32.mxu0 0.0
    %3022 = vmatmul.mubr.f32.gmra.mrb[0].mxu0 %v2954
    %v3023 = vpop.f32.mrb[0].mxu0
    %v3024 = vadd.f32 0.0, %v3023
    %v3025 = vpop.f32.mrb[0].mxu0
    %v3026 = vadd.f32 0.0, %v3025
    %3027 = vdwg.mxu0
    %3028 = vmatprep.subr.mxu0 0.0
    %3029 = vmatpush1.msra.mxu0 %v2232
    %3030 = vmatprep.subr.mxu0 0.0
    %3031 = vmatpush1.msra.mxu0 %v2235
    %3032 = vmatprep.subr.mxu0 0.0
    %3033 = vmatpush1.msra.mxu0 %v2238
    %3034 = vmatprep.subr.mxu0 0.0
    %3035 = vmatpush1.msra.mxu0 %v2241
    %3036 = vmatprep.subr.mxu0 0.0
    %3037 = vmatpush1.msra.mxu0 %v2244
    %3038 = vmatprep.subr.mxu0 0.0
    %3039 = vmatpush1.msra.mxu0 %v2247
    %3040 = vmatprep.subr.mxu0 0.0
    %3041 = vmatpush1.msra.mxu0 %v2250
    %3042 = vmatprep.subr.mxu0 0.0
    %3043 = vmatpush1.msra.mxu0 %v2253
    %3044 = vmatprep.subr.mxu0 0.0
    %3045 = vmatpush1.msra.mxu0 %v2256
    %3046 = vmatprep.subr.mxu0 0.0
    %3047 = vmatpush1.msra.mxu0 %v2259
    %3048 = vmatprep.subr.mxu0 0.0
    %3049 = vmatpush1.msra.mxu0 %v2262
    %3050 = vmatprep.subr.mxu0 0.0
    %3051 = vmatpush1.msra.mxu0 %v2265
    %3052 = vmatprep.subr.mxu0 0.0
    %3053 = vmatpush1.msra.mxu0 %v2268
    %3054 = vmatprep.subr.mxu0 0.0
    %3055 = vmatpush1.msra.mxu0 %v2271
    %3056 = vmatprep.subr.mxu0 0.0
    %3057 = vmatpush1.msra.mxu0 %v2274
    %3058 = vmatprep.subr.mxu0 0.0
    %3059 = vmatpush1.msra.mxu0 %v2277
    %3060 = vmatprep.subr.mxu0 0.0
    %3061 = vmatpush1.msra.mxu0 0.0
    %3062 = vmatprep.subr.mxu0 0.0
    %3063 = vmatpush1.msra.mxu0 0.0
    %3064 = vmatprep.subr.mxu0 0.0
    %3065 = vmatpush1.msra.mxu0 0.0
    %3066 = vmatprep.subr.mxu0 0.0
    %3067 = vmatpush1.msra.mxu0 0.0
    %3068 = vmatprep.subr.mxu0 0.0
    %3069 = vmatpush1.msra.mxu0 0.0
    %3070 = vmatprep.subr.mxu0 0.0
    %3071 = vmatpush1.msra.mxu0 0.0
    %3072 = vmatprep.subr.mxu0 0.0
    %3073 = vmatpush1.msra.mxu0 0.0
    %3074 = vmatprep.subr.mxu0 0.0
    %3075 = vmatpush1.msra.mxu0 0.0
    %3076 = vmatprep.subr.mxu0 0.0
    %3077 = vmatpush1.msra.mxu0 0.0
    %3078 = vmatprep.subr.mxu0 0.0
    %3079 = vmatpush1.msra.mxu0 0.0
    %3080 = vmatprep.subr.mxu0 0.0
    %3081 = vmatpush1.msra.mxu0 0.0
    %3082 = vmatprep.subr.mxu0 0.0
    %3083 = vmatpush1.msra.mxu0 0.0
    %3084 = vmatprep.subr.mxu0 0.0
    %3085 = vmatpush1.msra.mxu0 0.0
    %3086 = vmatprep.subr.mxu0 0.0
    %3087 = vmatpush1.msra.mxu0 0.0
    %3088 = vmatprep.subr.mxu0 0.0
    %3089 = vmatpush1.msra.mxu0 0.0
    %3090 = vmatprep.subr.mxu0 0.0
    %3091 = vmatpush1.msra.mxu0 0.0
    %3092 = vmatprep.mubr.f32.mxu0 0.0
    %3093 = vmatmul.mubr.f32.gmra.mrb[0].mxu0 %v2954
    %v3094 = vpop.f32.mrb[0].mxu0
    %v3095 = vadd.f32 0.0, %v3094
    %v3096 = vpop.f32.mrb[0].mxu0
    %3097 = vdwg.mxu0
    %v3098 = vld [vmem:[%s1373] sm:$0xff]
    %v3099 = vld [vmem:[%s1373 + $0x8] sm:$0xff]
    %v3100 = vld [vmem:[%s1373 + $0x10] sm:$0xff]
    %v3101 = vadd.f32 %v3098, %v3024
    %v3102 = vxor.u32 %v3101, 2147483648
    %v3103 = vmul.f32 %v3102, 1.442695
    %v3104 = vpow.pop %v3103
    %v3105 = vadd.f32 %v3104, 1.0
    %v3106 = vrcp.pop %v3105
    %v3107 = vmul.f32 1.0, %v3106
    %v3108 = vadd.f32 %v3099, %v3026
    %v3109 = vxor.u32 %v3108, 2147483648
    %v3110 = vmul.f32 %v3109, 1.442695
    %v3111 = vpow.pop %v3110
    %v3112 = vadd.f32 %v3111, 1.0
    %v3113 = vrcp.pop %v3112
    %v3114 = vmul.f32 1.0, %v3113
    %v3115 = vadd.f32 %v3095, %v2442
    %v3116 = vmul.f32 %v3107, %v3115
    %v3117 = vadd.f32 %v3100, %v3116
    %v3118 = vtanh.pop %v3117
    %v3119 = vsub.f32 1.0, %v3114
    %v3120 = vmul.f32 %v3119, %v3118
    %v3121 = vmul.f32 %v3114, %v2954
    %v3122 = vadd.f32 %v3120, %v3121
    %s3123 = scalar_lea.vmem [#allocation3], 32
    %3124 = vst [vmem:[%s3123] sm:$0xff] %v3122
    %3125 = vmatprep.subr.mxu0 %v2231
    %3126 = vmatpush1.msra.mxu0 %v2230
    %3127 = vmatprep.subr.mxu0 %v2234
    %3128 = vmatpush1.msra.mxu0 %v2233
    %3129 = vmatprep.subr.mxu0 %v2237
    %3130 = vmatpush1.msra.mxu0 %v2236
    %3131 = vmatprep.subr.mxu0 %v2240
    %3132 = vmatpush1.msra.mxu0 %v2239
    %3133 = vmatprep.subr.mxu0 %v2243
    %3134 = vmatpush1.msra.mxu0 %v2242
    %3135 = vmatprep.subr.mxu0 %v2246
    %3136 = vmatpush1.msra.mxu0 %v2245
    %3137 = vmatprep.subr.mxu0 %v2249
    %3138 = vmatpush1.msra.mxu0 %v2248
    %3139 = vmatprep.subr.mxu0 %v2252
    %3140 = vmatpush1.msra.mxu0 %v2251
    %3141 = vmatprep.subr.mxu0 %v2255
    %3142 = vmatpush1.msra.mxu0 %v2254
    %3143 = vmatprep.subr.mxu0 %v2258
    %3144 = vmatpush1.msra.mxu0 %v2257
    %3145 = vmatprep.subr.mxu0 %v2261
    %3146 = vmatpush1.msra.mxu0 %v2260
    %3147 = vmatprep.subr.mxu0 %v2264
    %3148 = vmatpush1.msra.mxu0 %v2263
    %3149 = vmatprep.subr.mxu0 %v2267
    %3150 = vmatpush1.msra.mxu0 %v2266
    %3151 = vmatprep.subr.mxu0 %v2270
    %3152 = vmatpush1.msra.mxu0 %v2269
    %3153 = vmatprep.subr.mxu0 %v2273
    %3154 = vmatpush1.msra.mxu0 %v2272
    %3155 = vmatprep.subr.mxu0 %v2276
    %3156 = vmatpush1.msra.mxu0 %v2275
    %3157 = vmatprep.subr.mxu0 0.0
    %3158 = vmatpush1.msra.mxu0 0.0
    %3159 = vmatprep.subr.mxu0 0.0
    %3160 = vmatpush1.msra.mxu0 0.0
    %3161 = vmatprep.subr.mxu0 0.0
    %3162 = vmatpush1.msra.mxu0 0.0
    %3163 = vmatprep.subr.mxu0 0.0
    %3164 = vmatpush1.msra.mxu0 0.0
    %3165 = vmatprep.subr.mxu0 0.0
    %3166 = vmatpush1.msra.mxu0 0.0
    %3167 = vmatprep.subr.mxu0 0.0
    %3168 = vmatpush1.msra.mxu0 0.0
    %3169 = vmatprep.subr.mxu0 0.0
    %3170 = vmatpush1.msra.mxu0 0.0
    %3171 = vmatprep.subr.mxu0 0.0
    %3172 = vmatpush1.msra.mxu0 0.0
    %3173 = vmatprep.subr.mxu0 0.0
    %3174 = vmatpush1.msra.mxu0 0.0
    %3175 = vmatprep.subr.mxu0 0.0
    %3176 = vmatpush1.msra.mxu0 0.0
    %3177 = vmatprep.subr.mxu0 0.0
    %3178 = vmatpush1.msra.mxu0 0.0
    %3179 = vmatprep.subr.mxu0 0.0
    %3180 = vmatpush1.msra.mxu0 0.0
    %3181 = vmatprep.subr.mxu0 0.0
    %3182 = vmatpush1.msra.mxu0 0.0
    %3183 = vmatprep.subr.mxu0 0.0
    %3184 = vmatpush1.msra.mxu0 0.0
    %3185 = vmatprep.subr.mxu0 0.0
    %3186 = vmatpush1.msra.mxu0 0.0
    %3187 = vmatprep.subr.mxu0 0.0
    %3188 = vmatpush1.msra.mxu0 0.0
    %3189 = vmatprep.mubr.f32.mxu0 0.0
    %3190 = vmatmul.mubr.f32.gmra.mrb[0].mxu0 %v3122
    %v3191 = vpop.f32.mrb[0].mxu0
    %v3192 = vadd.f32 0.0, %v3191
    %v3193 = vpop.f32.mrb[0].mxu0
    %v3194 = vadd.f32 0.0, %v3193
    %3195 = vdwg.mxu0
    %3196 = vmatprep.subr.mxu0 0.0
    %3197 = vmatpush1.msra.mxu0 %v2232
    %3198 = vmatprep.subr.mxu0 0.0
    %3199 = vmatpush1.msra.mxu0 %v2235
    %3200 = vmatprep.subr.mxu0 0.0
    %3201 = vmatpush1.msra.mxu0 %v2238
    %3202 = vmatprep.subr.mxu0 0.0
    %3203 = vmatpush1.msra.mxu0 %v2241
    %3204 = vmatprep.subr.mxu0 0.0
    %3205 = vmatpush1.msra.mxu0 %v2244
    %3206 = vmatprep.subr.mxu0 0.0
    %3207 = vmatpush1.msra.mxu0 %v2247
    %3208 = vmatprep.subr.mxu0 0.0
    %3209 = vmatpush1.msra.mxu0 %v2250
    %3210 = vmatprep.subr.mxu0 0.0
    %3211 = vmatpush1.msra.mxu0 %v2253
    %3212 = vmatprep.subr.mxu0 0.0
    %3213 = vmatpush1.msra.mxu0 %v2256
    %3214 = vmatprep.subr.mxu0 0.0
    %3215 = vmatpush1.msra.mxu0 %v2259
    %3216 = vmatprep.subr.mxu0 0.0
    %3217 = vmatpush1.msra.mxu0 %v2262
    %3218 = vmatprep.subr.mxu0 0.0
    %3219 = vmatpush1.msra.mxu0 %v2265
    %3220 = vmatprep.subr.mxu0 0.0
    %3221 = vmatpush1.msra.mxu0 %v2268
    %3222 = vmatprep.subr.mxu0 0.0
    %3223 = vmatpush1.msra.mxu0 %v2271
    %3224 = vmatprep.subr.mxu0 0.0
    %3225 = vmatpush1.msra.mxu0 %v2274
    %3226 = vmatprep.subr.mxu0 0.0
    %3227 = vmatpush1.msra.mxu0 %v2277
    %3228 = vmatprep.subr.mxu0 0.0
    %3229 = vmatpush1.msra.mxu0 0.0
    %3230 = vmatprep.subr.mxu0 0.0
    %3231 = vmatpush1.msra.mxu0 0.0
    %3232 = vmatprep.subr.mxu0 0.0
    %3233 = vmatpush1.msra.mxu0 0.0
    %3234 = vmatprep.subr.mxu0 0.0
    %3235 = vmatpush1.msra.mxu0 0.0
    %3236 = vmatprep.subr.mxu0 0.0
    %3237 = vmatpush1.msra.mxu0 0.0
    %3238 = vmatprep.subr.mxu0 0.0
    %3239 = vmatpush1.msra.mxu0 0.0
    %3240 = vmatprep.subr.mxu0 0.0
    %3241 = vmatpush1.msra.mxu0 0.0
    %3242 = vmatprep.subr.mxu0 0.0
    %3243 = vmatpush1.msra.mxu0 0.0
    %3244 = vmatprep.subr.mxu0 0.0
    %3245 = vmatpush1.msra.mxu0 0.0
    %3246 = vmatprep.subr.mxu0 0.0
    %3247 = vmatpush1.msra.mxu0 0.0
    %3248 = vmatprep.subr.mxu0 0.0
    %3249 = vmatpush1.msra.mxu0 0.0
    %3250 = vmatprep.subr.mxu0 0.0
    %3251 = vmatpush1.msra.mxu0 0.0
    %3252 = vmatprep.subr.mxu0 0.0
    %3253 = vmatpush1.msra.mxu0 0.0
    %3254 = vmatprep.subr.mxu0 0.0
    %3255 = vmatpush1.msra.mxu0 0.0
    %3256 = vmatprep.subr.mxu0 0.0
    %3257 = vmatpush1.msra.mxu0 0.0
    %3258 = vmatprep.subr.mxu0 0.0
    %3259 = vmatpush1.msra.mxu0 0.0
    %3260 = vmatprep.mubr.f32.mxu0 0.0
    %3261 = vmatmul.mubr.f32.gmra.mrb[0].mxu0 %v3122
    %v3262 = vpop.f32.mrb[0].mxu0
    %v3263 = vadd.f32 0.0, %v3262
    %v3264 = vpop.f32.mrb[0].mxu0
    %3265 = vdwg.mxu0
    %v3266 = vld [vmem:[%s1544] sm:$0xff]
    %v3267 = vld [vmem:[%s1544 + $0x8] sm:$0xff]
    %v3268 = vld [vmem:[%s1544 + $0x10] sm:$0xff]
    %v3269 = vadd.f32 %v3266, %v3192
    %v3270 = vxor.u32 %v3269, 2147483648
    %v3271 = vmul.f32 %v3270, 1.442695
    %v3272 = vpow.pop %v3271
    %v3273 = vadd.f32 %v3272, 1.0
    %v3274 = vrcp.pop %v3273
    %v3275 = vmul.f32 1.0, %v3274
    %v3276 = vadd.f32 %v3267, %v3194
    %v3277 = vxor.u32 %v3276, 2147483648
    %v3278 = vmul.f32 %v3277, 1.442695
    %v3279 = vpow.pop %v3278
    %v3280 = vadd.f32 %v3279, 1.0
    %v3281 = vrcp.pop %v3280
    %v3282 = vmul.f32 1.0, %v3281
    %v3283 = vadd.f32 %v3263, %v2442
    %v3284 = vmul.f32 %v3275, %v3283
    %v3285 = vadd.f32 %v3268, %v3284
    %v3286 = vtanh.pop %v3285
    %v3287 = vsub.f32 1.0, %v3282
    %v3288 = vmul.f32 %v3287, %v3286
    %v3289 = vmul.f32 %v3282, %v3122
    %v3290 = vadd.f32 %v3288, %v3289
    %s3291 = scalar_lea.vmem [#allocation3], 40
    %3292 = vst [vmem:[%s3291] sm:$0xff] %v3290
    %3293 = vmatprep.subr.mxu0 %v2231
    %3294 = vmatpush1.msra.mxu0 %v2230
    %3295 = vmatprep.subr.mxu0 %v2234
    %3296 = vmatpush1.msra.mxu0 %v2233
    %3297 = vmatprep.subr.mxu0 %v2237
    %3298 = vmatpush1.msra.mxu0 %v2236
    %3299 = vmatprep.subr.mxu0 %v2240
    %3300 = vmatpush1.msra.mxu0 %v2239
    %3301 = vmatprep.subr.mxu0 %v2243
    %3302 = vmatpush1.msra.mxu0 %v2242
    %3303 = vmatprep.subr.mxu0 %v2246
    %3304 = vmatpush1.msra.mxu0 %v2245
    %3305 = vmatprep.subr.mxu0 %v2249
    %3306 = vmatpush1.msra.mxu0 %v2248
    %3307 = vmatprep.subr.mxu0 %v2252
    %3308 = vmatpush1.msra.mxu0 %v2251
    %3309 = vmatprep.subr.mxu0 %v2255
    %3310 = vmatpush1.msra.mxu0 %v2254
    %3311 = vmatprep.subr.mxu0 %v2258
    %3312 = vmatpush1.msra.mxu0 %v2257
    %3313 = vmatprep.subr.mxu0 %v2261
    %3314 = vmatpush1.msra.mxu0 %v2260
    %3315 = vmatprep.subr.mxu0 %v2264
    %3316 = vmatpush1.msra.mxu0 %v2263
    %3317 = vmatprep.subr.mxu0 %v2267
    %3318 = vmatpush1.msra.mxu0 %v2266
    %3319 = vmatprep.subr.mxu0 %v2270
    %3320 = vmatpush1.msra.mxu0 %v2269
    %3321 = vmatprep.subr.mxu0 %v2273
    %3322 = vmatpush1.msra.mxu0 %v2272
    %3323 = vmatprep.subr.mxu0 %v2276
    %3324 = vmatpush1.msra.mxu0 %v2275
    %3325 = vmatprep.subr.mxu0 0.0
    %3326 = vmatpush1.msra.mxu0 0.0
    %3327 = vmatprep.subr.mxu0 0.0
    %3328 = vmatpush1.msra.mxu0 0.0
    %3329 = vmatprep.subr.mxu0 0.0
    %3330 = vmatpush1.msra.mxu0 0.0
    %3331 = vmatprep.subr.mxu0 0.0
    %3332 = vmatpush1.msra.mxu0 0.0
    %3333 = vmatprep.subr.mxu0 0.0
    %3334 = vmatpush1.msra.mxu0 0.0
    %3335 = vmatprep.subr.mxu0 0.0
    %3336 = vmatpush1.msra.mxu0 0.0
    %3337 = vmatprep.subr.mxu0 0.0
    %3338 = vmatpush1.msra.mxu0 0.0
    %3339 = vmatprep.subr.mxu0 0.0
    %3340 = vmatpush1.msra.mxu0 0.0
    %3341 = vmatprep.subr.mxu0 0.0
    %3342 = vmatpush1.msra.mxu0 0.0
    %3343 = vmatprep.subr.mxu0 0.0
    %3344 = vmatpush1.msra.mxu0 0.0
    %3345 = vmatprep.subr.mxu0 0.0
    %3346 = vmatpush1.msra.mxu0 0.0
    %3347 = vmatprep.subr.mxu0 0.0
    %3348 = vmatpush1.msra.mxu0 0.0
    %3349 = vmatprep.subr.mxu0 0.0
    %3350 = vmatpush1.msra.mxu0 0.0
    %3351 = vmatprep.subr.mxu0 0.0
    %3352 = vmatpush1.msra.mxu0 0.0
    %3353 = vmatprep.subr.mxu0 0.0
    %3354 = vmatpush1.msra.mxu0 0.0
    %3355 = vmatprep.subr.mxu0 0.0
    %3356 = vmatpush1.msra.mxu0 0.0
    %3357 = vmatprep.mubr.f32.mxu0 0.0
    %3358 = vmatmul.mubr.f32.gmra.mrb[0].mxu0 %v3290
    %v3359 = vpop.f32.mrb[0].mxu0
    %v3360 = vadd.f32 0.0, %v3359
    %v3361 = vpop.f32.mrb[0].mxu0
    %v3362 = vadd.f32 0.0, %v3361
    %3363 = vdwg.mxu0
    %3364 = vmatprep.subr.mxu0 0.0
    %3365 = vmatpush1.msra.mxu0 %v2232
    %3366 = vmatprep.subr.mxu0 0.0
    %3367 = vmatpush1.msra.mxu0 %v2235
    %3368 = vmatprep.subr.mxu0 0.0
    %3369 = vmatpush1.msra.mxu0 %v2238
    %3370 = vmatprep.subr.mxu0 0.0
    %3371 = vmatpush1.msra.mxu0 %v2241
    %3372 = vmatprep.subr.mxu0 0.0
    %3373 = vmatpush1.msra.mxu0 %v2244
    %3374 = vmatprep.subr.mxu0 0.0
    %3375 = vmatpush1.msra.mxu0 %v2247
    %3376 = vmatprep.subr.mxu0 0.0
    %3377 = vmatpush1.msra.mxu0 %v2250
    %3378 = vmatprep.subr.mxu0 0.0
    %3379 = vmatpush1.msra.mxu0 %v2253
    %3380 = vmatprep.subr.mxu0 0.0
    %3381 = vmatpush1.msra.mxu0 %v2256
    %3382 = vmatprep.subr.mxu0 0.0
    %3383 = vmatpush1.msra.mxu0 %v2259
    %3384 = vmatprep.subr.mxu0 0.0
    %3385 = vmatpush1.msra.mxu0 %v2262
    %3386 = vmatprep.subr.mxu0 0.0
    %3387 = vmatpush1.msra.mxu0 %v2265
    %3388 = vmatprep.subr.mxu0 0.0
    %3389 = vmatpush1.msra.mxu0 %v2268
    %3390 = vmatprep.subr.mxu0 0.0
    %3391 = vmatpush1.msra.mxu0 %v2271
    %3392 = vmatprep.subr.mxu0 0.0
    %3393 = vmatpush1.msra.mxu0 %v2274
    %3394 = vmatprep.subr.mxu0 0.0
    %3395 = vmatpush1.msra.mxu0 %v2277
    %3396 = vmatprep.subr.mxu0 0.0
    %3397 = vmatpush1.msra.mxu0 0.0
    %3398 = vmatprep.subr.mxu0 0.0
    %3399 = vmatpush1.msra.mxu0 0.0
    %3400 = vmatprep.subr.mxu0 0.0
    %3401 = vmatpush1.msra.mxu0 0.0
    %3402 = vmatprep.subr.mxu0 0.0
    %3403 = vmatpush1.msra.mxu0 0.0
    %3404 = vmatprep.subr.mxu0 0.0
    %3405 = vmatpush1.msra.mxu0 0.0
    %3406 = vmatprep.subr.mxu0 0.0
    %3407 = vmatpush1.msra.mxu0 0.0
    %3408 = vmatprep.subr.mxu0 0.0
    %3409 = vmatpush1.msra.mxu0 0.0
    %3410 = vmatprep.subr.mxu0 0.0
    %3411 = vmatpush1.msra.mxu0 0.0
    %3412 = vmatprep.subr.mxu0 0.0
    %3413 = vmatpush1.msra.mxu0 0.0
    %3414 = vmatprep.subr.mxu0 0.0
    %3415 = vmatpush1.msra.mxu0 0.0
    %3416 = vmatprep.subr.mxu0 0.0
    %3417 = vmatpush1.msra.mxu0 0.0
    %3418 = vmatprep.subr.mxu0 0.0
    %3419 = vmatpush1.msra.mxu0 0.0
    %3420 = vmatprep.subr.mxu0 0.0
    %3421 = vmatpush1.msra.mxu0 0.0
    %3422 = vmatprep.subr.mxu0 0.0
    %3423 = vmatpush1.msra.mxu0 0.0
    %3424 = vmatprep.subr.mxu0 0.0
    %3425 = vmatpush1.msra.mxu0 0.0
    %3426 = vmatprep.subr.mxu0 0.0
    %3427 = vmatpush1.msra.mxu0 0.0
    %3428 = vmatprep.mubr.f32.mxu0 0.0
    %3429 = vmatmul.mubr.f32.gmra.mrb[0].mxu0 %v3290
    %v3430 = vpop.f32.mrb[0].mxu0
    %v3431 = vadd.f32 0.0, %v3430
    %v3432 = vpop.f32.mrb[0].mxu0
    %3433 = vdwg.mxu0
    %v3434 = vld [vmem:[%s1715] sm:$0xff]
    %v3435 = vld [vmem:[%s1715 + $0x8] sm:$0xff]
    %v3436 = vld [vmem:[%s1715 + $0x10] sm:$0xff]
    %v3437 = vadd.f32 %v3434, %v3360
    %v3438 = vxor.u32 %v3437, 2147483648
    %v3439 = vmul.f32 %v3438, 1.442695
    %v3440 = vpow.pop %v3439
    %v3441 = vadd.f32 %v3440, 1.0
    %v3442 = vrcp.pop %v3441
    %v3443 = vmul.f32 1.0, %v3442
    %v3444 = vadd.f32 %v3435, %v3362
    %v3445 = vxor.u32 %v3444, 2147483648
    %v3446 = vmul.f32 %v3445, 1.442695
    %v3447 = vpow.pop %v3446
    %v3448 = vadd.f32 %v3447, 1.0
    %v3449 = vrcp.pop %v3448
    %v3450 = vmul.f32 1.0, %v3449
    %v3451 = vadd.f32 %v3431, %v2442
    %v3452 = vmul.f32 %v3443, %v3451
    %v3453 = vadd.f32 %v3436, %v3452
    %v3454 = vtanh.pop %v3453
    %v3455 = vsub.f32 1.0, %v3450
    %v3456 = vmul.f32 %v3455, %v3454
    %v3457 = vmul.f32 %v3450, %v3290
    %v3458 = vadd.f32 %v3456, %v3457
    %s3459 = scalar_lea.vmem [#allocation3], 48
    %3460 = vst [vmem:[%s3459] sm:$0xff] %v3458
    %3461 = vmatprep.subr.mxu0 %v2231
    %3462 = vmatpush1.msra.mxu0 %v2230
    %3463 = vmatprep.subr.mxu0 %v2234
    %3464 = vmatpush1.msra.mxu0 %v2233
    %3465 = vmatprep.subr.mxu0 %v2237
    %3466 = vmatpush1.msra.mxu0 %v2236
    %3467 = vmatprep.subr.mxu0 %v2240
    %3468 = vmatpush1.msra.mxu0 %v2239
    %3469 = vmatprep.subr.mxu0 %v2243
    %3470 = vmatpush1.msra.mxu0 %v2242
    %3471 = vmatprep.subr.mxu0 %v2246
    %3472 = vmatpush1.msra.mxu0 %v2245
    %3473 = vmatprep.subr.mxu0 %v2249
    %3474 = vmatpush1.msra.mxu0 %v2248
    %3475 = vmatprep.subr.mxu0 %v2252
    %3476 = vmatpush1.msra.mxu0 %v2251
    %3477 = vmatprep.subr.mxu0 %v2255
    %3478 = vmatpush1.msra.mxu0 %v2254
    %3479 = vmatprep.subr.mxu0 %v2258
    %3480 = vmatpush1.msra.mxu0 %v2257
    %3481 = vmatprep.subr.mxu0 %v2261
    %3482 = vmatpush1.msra.mxu0 %v2260
    %3483 = vmatprep.subr.mxu0 %v2264
    %3484 = vmatpush1.msra.mxu0 %v2263
    %3485 = vmatprep.subr.mxu0 %v2267
    %3486 = vmatpush1.msra.mxu0 %v2266
    %3487 = vmatprep.subr.mxu0 %v2270
    %3488 = vmatpush1.msra.mxu0 %v2269
    %3489 = vmatprep.subr.mxu0 %v2273
    %3490 = vmatpush1.msra.mxu0 %v2272
    %3491 = vmatprep.subr.mxu0 %v2276
    %3492 = vmatpush1.msra.mxu0 %v2275
    %3493 = vmatprep.subr.mxu0 0.0
    %3494 = vmatpush1.msra.mxu0 0.0
    %3495 = vmatprep.subr.mxu0 0.0
    %3496 = vmatpush1.msra.mxu0 0.0
    %3497 = vmatprep.subr.mxu0 0.0
    %3498 = vmatpush1.msra.mxu0 0.0
    %3499 = vmatprep.subr.mxu0 0.0
    %3500 = vmatpush1.msra.mxu0 0.0
    %3501 = vmatprep.subr.mxu0 0.0
    %3502 = vmatpush1.msra.mxu0 0.0
    %3503 = vmatprep.subr.mxu0 0.0
    %3504 = vmatpush1.msra.mxu0 0.0
    %3505 = vmatprep.subr.mxu0 0.0
    %3506 = vmatpush1.msra.mxu0 0.0
    %3507 = vmatprep.subr.mxu0 0.0
    %3508 = vmatpush1.msra.mxu0 0.0
    %3509 = vmatprep.subr.mxu0 0.0
    %3510 = vmatpush1.msra.mxu0 0.0
    %3511 = vmatprep.subr.mxu0 0.0
    %3512 = vmatpush1.msra.mxu0 0.0
    %3513 = vmatprep.subr.mxu0 0.0
    %3514 = vmatpush1.msra.mxu0 0.0
    %3515 = vmatprep.subr.mxu0 0.0
    %3516 = vmatpush1.msra.mxu0 0.0
    %3517 = vmatprep.subr.mxu0 0.0
    %3518 = vmatpush1.msra.mxu0 0.0
    %3519 = vmatprep.subr.mxu0 0.0
    %3520 = vmatpush1.msra.mxu0 0.0
    %3521 = vmatprep.subr.mxu0 0.0
    %3522 = vmatpush1.msra.mxu0 0.0
    %3523 = vmatprep.subr.mxu0 0.0
    %3524 = vmatpush1.msra.mxu0 0.0
    %3525 = vmatprep.mubr.f32.mxu0 0.0
    %3526 = vmatmul.mubr.f32.gmra.mrb[0].mxu0 %v3458
    %v3527 = vpop.f32.mrb[0].mxu0
    %v3528 = vadd.f32 0.0, %v3527
    %v3529 = vpop.f32.mrb[0].mxu0
    %v3530 = vadd.f32 0.0, %v3529
    %3531 = vdwg.mxu0
    %3532 = vmatprep.subr.mxu0 0.0
    %3533 = vmatpush1.msra.mxu0 %v2232
    %3534 = vmatprep.subr.mxu0 0.0
    %3535 = vmatpush1.msra.mxu0 %v2235
    %3536 = vmatprep.subr.mxu0 0.0
    %3537 = vmatpush1.msra.mxu0 %v2238
    %3538 = vmatprep.subr.mxu0 0.0
    %3539 = vmatpush1.msra.mxu0 %v2241
    %3540 = vmatprep.subr.mxu0 0.0
    %3541 = vmatpush1.msra.mxu0 %v2244
    %3542 = vmatprep.subr.mxu0 0.0
    %3543 = vmatpush1.msra.mxu0 %v2247
    %3544 = vmatprep.subr.mxu0 0.0
    %3545 = vmatpush1.msra.mxu0 %v2250
    %3546 = vmatprep.subr.mxu0 0.0
    %3547 = vmatpush1.msra.mxu0 %v2253
    %3548 = vmatprep.subr.mxu0 0.0
    %3549 = vmatpush1.msra.mxu0 %v2256
    %3550 = vmatprep.subr.mxu0 0.0
    %3551 = vmatpush1.msra.mxu0 %v2259
    %3552 = vmatprep.subr.mxu0 0.0
    %3553 = vmatpush1.msra.mxu0 %v2262
    %3554 = vmatprep.subr.mxu0 0.0
    %3555 = vmatpush1.msra.mxu0 %v2265
    %3556 = vmatprep.subr.mxu0 0.0
    %3557 = vmatpush1.msra.mxu0 %v2268
    %3558 = vmatprep.subr.mxu0 0.0
    %3559 = vmatpush1.msra.mxu0 %v2271
    %3560 = vmatprep.subr.mxu0 0.0
    %3561 = vmatpush1.msra.mxu0 %v2274
    %3562 = vmatprep.subr.mxu0 0.0
    %3563 = vmatpush1.msra.mxu0 %v2277
    %3564 = vmatprep.subr.mxu0 0.0
    %3565 = vmatpush1.msra.mxu0 0.0
    %3566 = vmatprep.subr.mxu0 0.0
    %3567 = vmatpush1.msra.mxu0 0.0
    %3568 = vmatprep.subr.mxu0 0.0
    %3569 = vmatpush1.msra.mxu0 0.0
    %3570 = vmatprep.subr.mxu0 0.0
    %3571 = vmatpush1.msra.mxu0 0.0
    %3572 = vmatprep.subr.mxu0 0.0
    %3573 = vmatpush1.msra.mxu0 0.0
    %3574 = vmatprep.subr.mxu0 0.0
    %3575 = vmatpush1.msra.mxu0 0.0
    %3576 = vmatprep.subr.mxu0 0.0
    %3577 = vmatpush1.msra.mxu0 0.0
    %3578 = vmatprep.subr.mxu0 0.0
    %3579 = vmatpush1.msra.mxu0 0.0
    %3580 = vmatprep.subr.mxu0 0.0
    %3581 = vmatpush1.msra.mxu0 0.0
    %3582 = vmatprep.subr.mxu0 0.0
    %3583 = vmatpush1.msra.mxu0 0.0
    %3584 = vmatprep.subr.mxu0 0.0
    %3585 = vmatpush1.msra.mxu0 0.0
    %3586 = vmatprep.subr.mxu0 0.0
    %3587 = vmatpush1.msra.mxu0 0.0
    %3588 = vmatprep.subr.mxu0 0.0
    %3589 = vmatpush1.msra.mxu0 0.0
    %3590 = vmatprep.subr.mxu0 0.0
    %3591 = vmatpush1.msra.mxu0 0.0
    %3592 = vmatprep.subr.mxu0 0.0
    %3593 = vmatpush1.msra.mxu0 0.0
    %3594 = vmatprep.subr.mxu0 0.0
    %3595 = vmatpush1.msra.mxu0 0.0
    %3596 = vmatprep.mubr.f32.mxu0 0.0
    %3597 = vmatmul.mubr.f32.gmra.mrb[0].mxu0 %v3458
    %v3598 = vpop.f32.mrb[0].mxu0
    %v3599 = vadd.f32 0.0, %v3598
    %v3600 = vpop.f32.mrb[0].mxu0
    %3601 = vdwg.mxu0
    %v3602 = vld [vmem:[%s1886] sm:$0xff]
    %v3603 = vld [vmem:[%s1886 + $0x8] sm:$0xff]
    %v3604 = vld [vmem:[%s1886 + $0x10] sm:$0xff]
    %v3605 = vadd.f32 %v3602, %v3528
    %v3606 = vxor.u32 %v3605, 2147483648
    %v3607 = vmul.f32 %v3606, 1.442695
    %v3608 = vpow.pop %v3607
    %v3609 = vadd.f32 %v3608, 1.0
    %v3610 = vrcp.pop %v3609
    %v3611 = vmul.f32 1.0, %v3610
    %v3612 = vadd.f32 %v3603, %v3530
    %v3613 = vxor.u32 %v3612, 2147483648
    %v3614 = vmul.f32 %v3613, 1.442695
    %v3615 = vpow.pop %v3614
    %v3616 = vadd.f32 %v3615, 1.0
    %v3617 = vrcp.pop %v3616
    %v3618 = vmul.f32 1.0, %v3617
    %v3619 = vadd.f32 %v3599, %v2442
    %v3620 = vmul.f32 %v3611, %v3619
    %v3621 = vadd.f32 %v3604, %v3620
    %v3622 = vtanh.pop %v3621
    %v3623 = vsub.f32 1.0, %v3618
    %v3624 = vmul.f32 %v3623, %v3622
    %v3625 = vmul.f32 %v3618, %v3458
    %v3626 = vadd.f32 %v3624, %v3625
    %s3627 = scalar_lea.vmem [#allocation3], 56
    %3628 = vst [vmem:[%s3627] sm:$0xff] %v3626
    %3629 = vst [vmem:[#allocation8] sm:$0xff] %v3626
    %v3630 = vld [vmem:[#allocation3] sm:$0xff]
    %v3631 = vld [vmem:[#allocation3 + $0x8] sm:$0xff]
    %v3632 = vld [vmem:[#allocation3 + $0x10] sm:$0xff]
    %v3633 = vld [vmem:[#allocation3 + $0x18] sm:$0xff]
    %v3634 = vld [vmem:[#allocation3 + $0x20] sm:$0xff]
    %v3635 = vld [vmem:[#allocation3 + $0x28] sm:$0xff]
    %v3636 = vld [vmem:[#allocation3 + $0x30] sm:$0xff]
    %v3637 = vld [vmem:[#allocation3 + $0x38] sm:$0xff]
    %v3638 = vld [vmem:[#allocation18] sm:$0xff]
    %v3639 = vld [vmem:[#allocation18 + $0x8] sm:$0xff]
    %v3640 = vld [vmem:[#allocation18 + $0x10] sm:$0xff]
    %v3641 = vld [vmem:[#allocation18 + $0x18] sm:$0xff]
    %v3642 = vld [vmem:[#allocation18 + $0x20] sm:$0xff]
    %v3643 = vld [vmem:[#allocation18 + $0x28] sm:$0xff]
    %v3644 = vld [vmem:[#allocation18 + $0x30] sm:$0xff]
    %v3645 = vld [vmem:[#allocation18 + $0x38] sm:$0xff]
    %v3646 = vld [vmem:[#allocation18 + $0x40] sm:$0xff]
    %v3647 = vld [vmem:[#allocation18 + $0x48] sm:$0xff]
    %v3648 = vld [vmem:[#allocation18 + $0x50] sm:$0xff]
    %v3649 = vld [vmem:[#allocation18 + $0x58] sm:$0xff]
    %v3650 = vld [vmem:[#allocation18 + $0x60] sm:$0xff]
    %v3651 = vld [vmem:[#allocation18 + $0x68] sm:$0xff]
    %v3652 = vld [vmem:[#allocation18 + $0x70] sm:$0xff]
    %v3653 = vld [vmem:[#allocation18 + $0x78] sm:$0xff]
    %v3654 = vld [vmem:[#allocation18 + $0x80] sm:$0xff]
    %v3655 = vld [vmem:[#allocation18 + $0x88] sm:$0xff]
    %v3656 = vld [vmem:[#allocation18 + $0x90] sm:$0xff]
    %v3657 = vld [vmem:[#allocation18 + $0x98] sm:$0xff]
    %v3658 = vld [vmem:[#allocation18 + $0xa0] sm:$0xff]
    %v3659 = vld [vmem:[#allocation18 + $0xa8] sm:$0xff]
    %v3660 = vld [vmem:[#allocation18 + $0xb0] sm:$0xff]
    %v3661 = vld [vmem:[#allocation18 + $0xb8] sm:$0xff]
    %v3662 = vld [vmem:[#allocation18 + $0xc0] sm:$0xff]
    %v3663 = vld [vmem:[#allocation18 + $0xc8] sm:$0xff]
    %v3664 = vld [vmem:[#allocation18 + $0xd0] sm:$0xff]
    %v3665 = vld [vmem:[#allocation18 + $0xd8] sm:$0xff]
    %v3666 = vld [vmem:[#allocation18 + $0xe0] sm:$0xff]
    %v3667 = vld [vmem:[#allocation18 + $0xe8] sm:$0xff]
    %v3668 = vld [vmem:[#allocation18 + $0xf0] sm:$0xff]
    %v3669 = vld [vmem:[#allocation18 + $0xf8] sm:$0xff]
    %v3670 = vld [vmem:[#allocation18 + $0x100] sm:$0xff]
    %v3671 = vld [vmem:[#allocation18 + $0x108] sm:$0xff]
    %v3672 = vld [vmem:[#allocation18 + $0x110] sm:$0xff]
    %v3673 = vld [vmem:[#allocation18 + $0x118] sm:$0xff]
    %v3674 = vld [vmem:[#allocation18 + $0x120] sm:$0xff]
    %v3675 = vld [vmem:[#allocation18 + $0x128] sm:$0xff]
    %v3676 = vld [vmem:[#allocation18 + $0x130] sm:$0xff]
    %v3677 = vld [vmem:[#allocation18 + $0x138] sm:$0xff]
    %v3678 = vld [vmem:[#allocation18 + $0x140] sm:$0xff]
    %v3679 = vld [vmem:[#allocation18 + $0x148] sm:$0xff]
    %v3680 = vld [vmem:[#allocation18 + $0x150] sm:$0xff]
    %v3681 = vld [vmem:[#allocation18 + $0x158] sm:$0xff]
    %v3682 = vld [vmem:[#allocation18 + $0x160] sm:$0xff]
    %v3683 = vld [vmem:[#allocation18 + $0x168] sm:$0xff]
    %v3684 = vld [vmem:[#allocation18 + $0x170] sm:$0xff]
    %v3685 = vld [vmem:[#allocation18 + $0x178] sm:$0xff]
    %v3686 = vld [vmem:[%s11] sm:$0x7]
    %v3688 = vlaneseq
    %v3689 = vshrl.u32 %v3688, 7
    %v3690 = vsub.s32 0, %v3689
    %v3691 = vrot.slane %v3686, %v3690
    %v3692 = vlaneseq
    %v3693 = vshrl.u32 %v3692, 7
    %v3694 = vsub.s32 1, %v3693
    %v3695 = vrot.slane %v3686, %v3694
    %v3696 = vlaneseq
    %v3697 = vshrl.u32 %v3696, 7
    %v3698 = vsub.s32 2, %v3697
    %v3699 = vrot.slane %v3686, %v3698
    %3703 = vmatprep.subr.mxu0 %v3639
    %3704 = vmatpush1.msra.mxu0 %v3638
    %3705 = vmatprep.subr.mxu0 %v3642
    %3706 = vmatpush1.msra.mxu0 %v3641
    %3707 = vmatprep.subr.mxu0 %v3645
    %3708 = vmatpush1.msra.mxu0 %v3644
    %3709 = vmatprep.subr.mxu0 %v3648
    %3710 = vmatpush1.msra.mxu0 %v3647
    %3711 = vmatprep.subr.mxu0 %v3651
    %3712 = vmatpush1.msra.mxu0 %v3650
    %3713 = vmatprep.subr.mxu0 %v3654
    %3714 = vmatpush1.msra.mxu0 %v3653
    %3715 = vmatprep.subr.mxu0 %v3657
    %3716 = vmatpush1.msra.mxu0 %v3656
    %3717 = vmatprep.subr.mxu0 %v3660
    %3718 = vmatpush1.msra.mxu0 %v3659
    %3719 = vmatprep.subr.mxu0 %v3663
    %3720 = vmatpush1.msra.mxu0 %v3662
    %3721 = vmatprep.subr.mxu0 %v3666
    %3722 = vmatpush1.msra.mxu0 %v3665
    %3723 = vmatprep.subr.mxu0 %v3669
    %3724 = vmatpush1.msra.mxu0 %v3668
    %3725 = vmatprep.subr.mxu0 %v3672
    %3726 = vmatpush1.msra.mxu0 %v3671
    %3727 = vmatprep.subr.mxu0 %v3675
    %3728 = vmatpush1.msra.mxu0 %v3674
    %3729 = vmatprep.subr.mxu0 %v3678
    %3730 = vmatpush1.msra.mxu0 %v3677
    %3731 = vmatprep.subr.mxu0 %v3681
    %3732 = vmatpush1.msra.mxu0 %v3680
    %3733 = vmatprep.subr.mxu0 %v3684
    %3734 = vmatpush1.msra.mxu0 %v3683
    %3735 = vmatprep.subr.mxu0 0.0
    %3736 = vmatpush1.msra.mxu0 0.0
    %3737 = vmatprep.subr.mxu0 0.0
    %3738 = vmatpush1.msra.mxu0 0.0
    %3739 = vmatprep.subr.mxu0 0.0
    %3740 = vmatpush1.msra.mxu0 0.0
    %3741 = vmatprep.subr.mxu0 0.0
    %3742 = vmatpush1.msra.mxu0 0.0
    %3743 = vmatprep.subr.mxu0 0.0
    %3744 = vmatpush1.msra.mxu0 0.0
    %3745 = vmatprep.subr.mxu0 0.0
    %3746 = vmatpush1.msra.mxu0 0.0
    %3747 = vmatprep.subr.mxu0 0.0
    %3748 = vmatpush1.msra.mxu0 0.0
    %3749 = vmatprep.subr.mxu0 0.0
    %3750 = vmatpush1.msra.mxu0 0.0
    %3751 = vmatprep.subr.mxu0 0.0
    %3752 = vmatpush1.msra.mxu0 0.0
    %3753 = vmatprep.subr.mxu0 0.0
    %3754 = vmatpush1.msra.mxu0 0.0
    %3755 = vmatprep.subr.mxu0 0.0
    %3756 = vmatpush1.msra.mxu0 0.0
    %3757 = vmatprep.subr.mxu0 0.0
    %3758 = vmatpush1.msra.mxu0 0.0
    %3759 = vmatprep.subr.mxu0 0.0
    %3760 = vmatpush1.msra.mxu0 0.0
    %3761 = vmatprep.subr.mxu0 0.0
    %3762 = vmatpush1.msra.mxu0 0.0
    %3763 = vmatprep.subr.mxu0 0.0
    %3764 = vmatpush1.msra.mxu0 0.0
    %3765 = vmatprep.subr.mxu0 0.0
    %3766 = vmatpush1.msra.mxu0 0.0
    %3767 = vmatprep.mubr.f32.mxu0 0.0
    %3768 = vmatmul.mubr.f32.gmra.mrb[0].mxu0 %v3630
    %v3769 = vpop.f32.mrb[0].mxu0
    %v3770 = vadd.f32 %v3691, %v3769
    %v3771 = vpop.f32.mrb[0].mxu0
    %v3772 = vadd.f32 %v3695, %v3771
    %3773 = vmatprep.mubr.f32.mxu0 0.0
    %3774 = vmatmul.mubr.f32.gmra.mrb[0].mxu0 %v3631
    %v3775 = vpop.f32.mrb[0].mxu0
    %v3776 = vadd.f32 %v3691, %v3775
    %v3777 = vpop.f32.mrb[0].mxu0
    %v3778 = vadd.f32 %v3695, %v3777
    %3779 = vmatprep.mubr.f32.mxu0 0.0
    %3780 = vmatmul.mubr.f32.gmra.mrb[0].mxu0 %v3632
    %v3781 = vpop.f32.mrb[0].mxu0
    %v3782 = vadd.f32 %v3691, %v3781
    %v3783 = vpop.f32.mrb[0].mxu0
    %v3784 = vadd.f32 %v3695, %v3783
    %3785 = vmatprep.mubr.f32.mxu0 0.0
    %3786 = vmatmul.mubr.f32.gmra.mrb[0].mxu0 %v3633
    %v3787 = vpop.f32.mrb[0].mxu0
    %v3788 = vadd.f32 %v3691, %v3787
    %v3789 = vpop.f32.mrb[0].mxu0
    %v3790 = vadd.f32 %v3695, %v3789
    %3791 = vmatprep.mubr.f32.mxu0 0.0
    %3792 = vmatmul.mubr.f32.gmra.mrb[0].mxu0 %v3634
    %v3793 = vpop.f32.mrb[0].mxu0
    %v3794 = vadd.f32 %v3691, %v3793
    %v3795 = vpop.f32.mrb[0].mxu0
    %v3796 = vadd.f32 %v3695, %v3795
    %3797 = vmatprep.mubr.f32.mxu0 0.0
    %3798 = vmatmul.mubr.f32.gmra.mrb[0].mxu0 %v3635
    %v3799 = vpop.f32.mrb[0].mxu0
    %v3800 = vadd.f32 %v3691, %v3799
    %v3801 = vpop.f32.mrb[0].mxu0
    %v3802 = vadd.f32 %v3695, %v3801
    %3803 = vmatprep.mubr.f32.mxu0 0.0
    %3804 = vmatmul.mubr.f32.gmra.mrb[0].mxu0 %v3636
    %v3805 = vpop.f32.mrb[0].mxu0
    %v3806 = vadd.f32 %v3691, %v3805
    %v3807 = vpop.f32.mrb[0].mxu0
    %v3808 = vadd.f32 %v3695, %v3807
    %3809 = vmatprep.mubr.f32.mxu0 0.0
    %3810 = vmatmul.mubr.f32.gmra.mrb[0].mxu0 %v3637
    %v3811 = vpop.f32.mrb[0].mxu0
    %v3812 = vadd.f32 %v3691, %v3811
    %v3813 = vpop.f32.mrb[0].mxu0
    %v3814 = vadd.f32 %v3695, %v3813
    %3815 = vdwg.mxu0
    %3816 = vmatprep.subr.mxu0 0.0
    %3817 = vmatpush1.msra.mxu0 %v3640
    %3818 = vmatprep.subr.mxu0 0.0
    %3819 = vmatpush1.msra.mxu0 %v3643
    %3820 = vmatprep.subr.mxu0 0.0
    %3821 = vmatpush1.msra.mxu0 %v3646
    %3822 = vmatprep.subr.mxu0 0.0
    %3823 = vmatpush1.msra.mxu0 %v3649
    %3824 = vmatprep.subr.mxu0 0.0
    %3825 = vmatpush1.msra.mxu0 %v3652
    %3826 = vmatprep.subr.mxu0 0.0
    %3827 = vmatpush1.msra.mxu0 %v3655
    %3828 = vmatprep.subr.mxu0 0.0
    %3829 = vmatpush1.msra.mxu0 %v3658
    %3830 = vmatprep.subr.mxu0 0.0
    %3831 = vmatpush1.msra.mxu0 %v3661
    %3832 = vmatprep.subr.mxu0 0.0
    %3833 = vmatpush1.msra.mxu0 %v3664
    %3834 = vmatprep.subr.mxu0 0.0
    %3835 = vmatpush1.msra.mxu0 %v3667
    %3836 = vmatprep.subr.mxu0 0.0
    %3837 = vmatpush1.msra.mxu0 %v3670
    %3838 = vmatprep.subr.mxu0 0.0
    %3839 = vmatpush1.msra.mxu0 %v3673
    %3840 = vmatprep.subr.mxu0 0.0
    %3841 = vmatpush1.msra.mxu0 %v3676
    %3842 = vmatprep.subr.mxu0 0.0
    %3843 = vmatpush1.msra.mxu0 %v3679
    %3844 = vmatprep.subr.mxu0 0.0
    %3845 = vmatpush1.msra.mxu0 %v3682
    %3846 = vmatprep.subr.mxu0 0.0
    %3847 = vmatpush1.msra.mxu0 %v3685
    %3848 = vmatprep.subr.mxu0 0.0
    %3849 = vmatpush1.msra.mxu0 0.0
    %3850 = vmatprep.subr.mxu0 0.0
    %3851 = vmatpush1.msra.mxu0 0.0
    %3852 = vmatprep.subr.mxu0 0.0
    %3853 = vmatpush1.msra.mxu0 0.0
    %3854 = vmatprep.subr.mxu0 0.0
    %3855 = vmatpush1.msra.mxu0 0.0
    %3856 = vmatprep.subr.mxu0 0.0
    %3857 = vmatpush1.msra.mxu0 0.0
    %3858 = vmatprep.subr.mxu0 0.0
    %3859 = vmatpush1.msra.mxu0 0.0
    %3860 = vmatprep.subr.mxu0 0.0
    %3861 = vmatpush1.msra.mxu0 0.0
    %3862 = vmatprep.subr.mxu0 0.0
    %3863 = vmatpush1.msra.mxu0 0.0
    %3864 = vmatprep.subr.mxu0 0.0
    %3865 = vmatpush1.msra.mxu0 0.0
    %3866 = vmatprep.subr.mxu0 0.0
    %3867 = vmatpush1.msra.mxu0 0.0
    %3868 = vmatprep.subr.mxu0 0.0
    %3869 = vmatpush1.msra.mxu0 0.0
    %3870 = vmatprep.subr.mxu0 0.0
    %3871 = vmatpush1.msra.mxu0 0.0
    %3872 = vmatprep.subr.mxu0 0.0
    %3873 = vmatpush1.msra.mxu0 0.0
    %3874 = vmatprep.subr.mxu0 0.0
    %3875 = vmatpush1.msra.mxu0 0.0
    %3876 = vmatprep.subr.mxu0 0.0
    %3877 = vmatpush1.msra.mxu0 0.0
    %3878 = vmatprep.subr.mxu0 0.0
    %3879 = vmatpush1.msra.mxu0 0.0
    %3880 = vmatprep.mubr.f32.mxu0 0.0
    %3881 = vmatmul.mubr.f32.gmra.mrb[0].mxu0 %v3630
    %v3882 = vpop.f32.mrb[0].mxu0
    %v3883 = vadd.f32 %v3699, %v3882
    %v3884 = vpop.f32.mrb[0].mxu0
    %3885 = vmatprep.mubr.f32.mxu0 0.0
    %3886 = vmatmul.mubr.f32.gmra.mrb[0].mxu0 %v3631
    %v3887 = vpop.f32.mrb[0].mxu0
    %v3888 = vadd.f32 %v3699, %v3887
    %v3889 = vpop.f32.mrb[0].mxu0
    %3890 = vmatprep.mubr.f32.mxu0 0.0
    %3891 = vmatmul.mubr.f32.gmra.mrb[0].mxu0 %v3632
    %v3892 = vpop.f32.mrb[0].mxu0
    %v3893 = vadd.f32 %v3699, %v3892
    %v3894 = vpop.f32.mrb[0].mxu0
    %3895 = vmatprep.mubr.f32.mxu0 0.0
    %3896 = vmatmul.mubr.f32.gmra.mrb[0].mxu0 %v3633
    %v3897 = vpop.f32.mrb[0].mxu0
    %v3898 = vadd.f32 %v3699, %v3897
    %v3899 = vpop.f32.mrb[0].mxu0
    %3900 = vmatprep.mubr.f32.mxu0 0.0
    %3901 = vmatmul.mubr.f32.gmra.mrb[0].mxu0 %v3634
    %v3902 = vpop.f32.mrb[0].mxu0
    %v3903 = vadd.f32 %v3699, %v3902
    %v3904 = vpop.f32.mrb[0].mxu0
    %3905 = vmatprep.mubr.f32.mxu0 0.0
    %3906 = vmatmul.mubr.f32.gmra.mrb[0].mxu0 %v3635
    %v3907 = vpop.f32.mrb[0].mxu0
    %v3908 = vadd.f32 %v3699, %v3907
    %v3909 = vpop.f32.mrb[0].mxu0
    %3910 = vmatprep.mubr.f32.mxu0 0.0
    %3911 = vmatmul.mubr.f32.gmra.mrb[0].mxu0 %v3636
    %v3912 = vpop.f32.mrb[0].mxu0
    %v3913 = vadd.f32 %v3699, %v3912
    %v3914 = vpop.f32.mrb[0].mxu0
    %3915 = vmatprep.mubr.f32.mxu0 0.0
    %3916 = vmatmul.mubr.f32.gmra.mrb[0].mxu0 %v3637
    %v3917 = vpop.f32.mrb[0].mxu0
    %v3918 = vadd.f32 %v3699, %v3917
    %v3919 = vpop.f32.mrb[0].mxu0
    %3920 = vdwg.mxu0
    %3921 = vst [vmem:[#allocation6] sm:$0xff] %v3770
    %3922 = vst [vmem:[#allocation6 + $0x8] sm:$0xff] %v3772
    %3923 = vst [vmem:[#allocation6 + $0x10] sm:$0xff] %v3883
    %3924 = vst [vmem:[#allocation6 + $0x18] sm:$0xff] %v3776
    %3925 = vst [vmem:[#allocation6 + $0x20] sm:$0xff] %v3778
    %3926 = vst [vmem:[#allocation6 + $0x28] sm:$0xff] %v3888
    %3927 = vst [vmem:[#allocation6 + $0x30] sm:$0xff] %v3782
    %3928 = vst [vmem:[#allocation6 + $0x38] sm:$0xff] %v3784
    %3929 = vst [vmem:[#allocation6 + $0x40] sm:$0xff] %v3893
    %3930 = vst [vmem:[#allocation6 + $0x48] sm:$0xff] %v3788
    %3931 = vst [vmem:[#allocation6 + $0x50] sm:$0xff] %v3790
    %3932 = vst [vmem:[#allocation6 + $0x58] sm:$0xff] %v3898
    %3933 = vst [vmem:[#allocation6 + $0x60] sm:$0xff] %v3794
    %3934 = vst [vmem:[#allocation6 + $0x68] sm:$0xff] %v3796
    %3935 = vst [vmem:[#allocation6 + $0x70] sm:$0xff] %v3903
    %3936 = vst [vmem:[#allocation6 + $0x78] sm:$0xff] %v3800
    %3937 = vst [vmem:[#allocation6 + $0x80] sm:$0xff] %v3802
    %3938 = vst [vmem:[#allocation6 + $0x88] sm:$0xff] %v3908
    %3939 = vst [vmem:[#allocation6 + $0x90] sm:$0xff] %v3806
    %3940 = vst [vmem:[#allocation6 + $0x98] sm:$0xff] %v3808
    %3941 = vst [vmem:[#allocation6 + $0xa0] sm:$0xff] %v3913
    %3942 = vst [vmem:[#allocation6 + $0xa8] sm:$0xff] %v3812
    %3943 = vst [vmem:[#allocation6 + $0xb0] sm:$0xff] %v3814
    %3944 = vst [vmem:[#allocation6 + $0xb8] sm:$0xff] %v3918
    %v3945 = vld [vmem:[#allocation19] sm:$0xff]
    %v3946 = vld [vmem:[#allocation19 + $0x8] sm:$0xff]
    %v3947 = vld [vmem:[#allocation19 + $0x10] sm:$0xff]
    %v3948 = vld [vmem:[#allocation19 + $0x18] sm:$0xff]
    %v3949 = vld [vmem:[#allocation19 + $0x20] sm:$0xff]
    %v3950 = vld [vmem:[#allocation19 + $0x28] sm:$0xff]
    %v3951 = vld [vmem:[#allocation19 + $0x30] sm:$0xff]
    %v3952 = vld [vmem:[#allocation19 + $0x38] sm:$0xff]
    %v3953 = vld [vmem:[#allocation19 + $0x40] sm:$0xff]
    %v3954 = vld [vmem:[#allocation19 + $0x48] sm:$0xff]
    %v3955 = vld [vmem:[#allocation19 + $0x50] sm:$0xff]
    %v3956 = vld [vmem:[#allocation19 + $0x58] sm:$0xff]
    %v3957 = vld [vmem:[#allocation19 + $0x60] sm:$0xff]
    %v3958 = vld [vmem:[#allocation19 + $0x68] sm:$0xff]
    %v3959 = vld [vmem:[#allocation19 + $0x70] sm:$0xff]
    %v3960 = vld [vmem:[#allocation19 + $0x78] sm:$0xff]
    %v3961 = vld [vmem:[#allocation19 + $0x80] sm:$0xff]
    %v3962 = vld [vmem:[#allocation19 + $0x88] sm:$0xff]
    %v3963 = vld [vmem:[#allocation19 + $0x90] sm:$0xff]
    %v3964 = vld [vmem:[#allocation19 + $0x98] sm:$0xff]
    %v3965 = vld [vmem:[#allocation19 + $0xa0] sm:$0xff]
    %v3966 = vld [vmem:[#allocation19 + $0xa8] sm:$0xff]
    %v3967 = vld [vmem:[#allocation19 + $0xb0] sm:$0xff]
    %v3968 = vld [vmem:[#allocation19 + $0xb8] sm:$0xff]
    %v3969 = vld [vmem:[#allocation19 + $0xc0] sm:$0xff]
    %v3970 = vld [vmem:[#allocation19 + $0xc8] sm:$0xff]
    %v3971 = vld [vmem:[#allocation19 + $0xd0] sm:$0xff]
    %v3972 = vld [vmem:[#allocation19 + $0xd8] sm:$0xff]
    %v3973 = vld [vmem:[#allocation19 + $0xe0] sm:$0xff]
    %v3974 = vld [vmem:[#allocation19 + $0xe8] sm:$0xff]
    %v3975 = vld [vmem:[#allocation19 + $0xf0] sm:$0xff]
    %v3976 = vld [vmem:[#allocation19 + $0xf8] sm:$0xff]
    %v3977 = vld [vmem:[#allocation19 + $0x100] sm:$0xff]
    %v3978 = vld [vmem:[#allocation19 + $0x108] sm:$0xff]
    %v3979 = vld [vmem:[#allocation19 + $0x110] sm:$0xff]
    %v3980 = vld [vmem:[#allocation19 + $0x118] sm:$0xff]
    %v3981 = vld [vmem:[#allocation19 + $0x120] sm:$0xff]
    %v3982 = vld [vmem:[#allocation19 + $0x128] sm:$0xff]
    %v3983 = vld [vmem:[#allocation19 + $0x130] sm:$0xff]
    %v3984 = vld [vmem:[#allocation19 + $0x138] sm:$0xff]
    %v3985 = vld [vmem:[#allocation19 + $0x140] sm:$0xff]
    %v3986 = vld [vmem:[#allocation19 + $0x148] sm:$0xff]
    %v3987 = vld [vmem:[#allocation19 + $0x150] sm:$0xff]
    %v3988 = vld [vmem:[#allocation19 + $0x158] sm:$0xff]
    %v3989 = vld [vmem:[#allocation19 + $0x160] sm:$0xff]
    %v3990 = vld [vmem:[#allocation19 + $0x168] sm:$0xff]
    %v3991 = vld [vmem:[#allocation19 + $0x170] sm:$0xff]
    %v3992 = vld [vmem:[#allocation19 + $0x178] sm:$0xff]
    %v3993 = vld [vmem:[%s12] sm:$0x1]
    %v3994 = vld [vmem:[#allocation9] sm:$0xff]
    %3995 = vmatprep.subr.mxu0 %v3946
    %3996 = vmatpush1.msra.mxu0 %v3945
    %3997 = vmatprep.subr.mxu0 %v3949
    %3998 = vmatpush1.msra.mxu0 %v3948
    %3999 = vmatprep.subr.mxu0 %v3952
    %4000 = vmatpush1.msra.mxu0 %v3951
    %4001 = vmatprep.subr.mxu0 %v3955
    %4002 = vmatpush1.msra.mxu0 %v3954
    %4003 = vmatprep.subr.mxu0 %v3958
    %4004 = vmatpush1.msra.mxu0 %v3957
    %4005 = vmatprep.subr.mxu0 %v3961
    %4006 = vmatpush1.msra.mxu0 %v3960
    %4007 = vmatprep.subr.mxu0 %v3964
    %4008 = vmatpush1.msra.mxu0 %v3963
    %4009 = vmatprep.subr.mxu0 %v3967
    %4010 = vmatpush1.msra.mxu0 %v3966
    %4011 = vmatprep.subr.mxu0 %v3970
    %4012 = vmatpush1.msra.mxu0 %v3969
    %4013 = vmatprep.subr.mxu0 %v3973
    %4014 = vmatpush1.msra.mxu0 %v3972
    %4015 = vmatprep.subr.mxu0 %v3976
    %4016 = vmatpush1.msra.mxu0 %v3975
    %4017 = vmatprep.subr.mxu0 %v3979
    %4018 = vmatpush1.msra.mxu0 %v3978
    %4019 = vmatprep.subr.mxu0 %v3982
    %4020 = vmatpush1.msra.mxu0 %v3981
    %4021 = vmatprep.subr.mxu0 %v3985
    %4022 = vmatpush1.msra.mxu0 %v3984
    %4023 = vmatprep.subr.mxu0 %v3988
    %4024 = vmatpush1.msra.mxu0 %v3987
    %4025 = vmatprep.subr.mxu0 %v3991
    %4026 = vmatpush1.msra.mxu0 %v3990
    %4027 = vmatprep.subr.mxu0 0.0
    %4028 = vmatpush1.msra.mxu0 0.0
    %4029 = vmatprep.subr.mxu0 0.0
    %4030 = vmatpush1.msra.mxu0 0.0
    %4031 = vmatprep.subr.mxu0 0.0
    %4032 = vmatpush1.msra.mxu0 0.0
    %4033 = vmatprep.subr.mxu0 0.0
    %4034 = vmatpush1.msra.mxu0 0.0
    %4035 = vmatprep.subr.mxu0 0.0
    %4036 = vmatpush1.msra.mxu0 0.0
    %4037 = vmatprep.subr.mxu0 0.0
    %4038 = vmatpush1.msra.mxu0 0.0
    %4039 = vmatprep.subr.mxu0 0.0
    %4040 = vmatpush1.msra.mxu0 0.0
    %4041 = vmatprep.subr.mxu0 0.0
    %4042 = vmatpush1.msra.mxu0 0.0
    %4043 = vmatprep.subr.mxu0 0.0
    %4044 = vmatpush1.msra.mxu0 0.0
    %4045 = vmatprep.subr.mxu0 0.0
    %4046 = vmatpush1.msra.mxu0 0.0
    %4047 = vmatprep.subr.mxu0 0.0
    %4048 = vmatpush1.msra.mxu0 0.0
    %4049 = vmatprep.subr.mxu0 0.0
    %4050 = vmatpush1.msra.mxu0 0.0
    %4051 = vmatprep.subr.mxu0 0.0
    %4052 = vmatpush1.msra.mxu0 0.0
    %4053 = vmatprep.subr.mxu0 0.0
    %4054 = vmatpush1.msra.mxu0 0.0
    %4055 = vmatprep.subr.mxu0 0.0
    %4056 = vmatpush1.msra.mxu0 0.0
    %4057 = vmatprep.subr.mxu0 0.0
    %4058 = vmatpush1.msra.mxu0 0.0
    %4059 = vmatprep.mubr.f32.mxu0 0.0
    %4060 = vmatmul.mubr.f32.gmra.mrb[0].mxu0 %v3994
    %v4061 = vpop.f32.mrb[0].mxu0
    %v4062 = vadd.f32 0.0, %v4061
    %v4063 = vpop.f32.mrb[0].mxu0
    %v4064 = vadd.f32 0.0, %v4063
    %4065 = vdwg.mxu0
    %4066 = vmatprep.subr.mxu0 0.0
    %4067 = vmatpush1.msra.mxu0 %v3947
    %4068 = vmatprep.subr.mxu0 0.0
    %4069 = vmatpush1.msra.mxu0 %v3950
    %4070 = vmatprep.subr.mxu0 0.0
    %4071 = vmatpush1.msra.mxu0 %v3953
    %4072 = vmatprep.subr.mxu0 0.0
    %4073 = vmatpush1.msra.mxu0 %v3956
    %4074 = vmatprep.subr.mxu0 0.0
    %4075 = vmatpush1.msra.mxu0 %v3959
    %4076 = vmatprep.subr.mxu0 0.0
    %4077 = vmatpush1.msra.mxu0 %v3962
    %4078 = vmatprep.subr.mxu0 0.0
    %4079 = vmatpush1.msra.mxu0 %v3965
    %4080 = vmatprep.subr.mxu0 0.0
    %4081 = vmatpush1.msra.mxu0 %v3968
    %4082 = vmatprep.subr.mxu0 0.0
    %4083 = vmatpush1.msra.mxu0 %v3971
    %4084 = vmatprep.subr.mxu0 0.0
    %4085 = vmatpush1.msra.mxu0 %v3974
    %4086 = vmatprep.subr.mxu0 0.0
    %4087 = vmatpush1.msra.mxu0 %v3977
    %4088 = vmatprep.subr.mxu0 0.0
    %4089 = vmatpush1.msra.mxu0 %v3980
    %4090 = vmatprep.subr.mxu0 0.0
    %4091 = vmatpush1.msra.mxu0 %v3983
    %4092 = vmatprep.subr.mxu0 0.0
    %4093 = vmatpush1.msra.mxu0 %v3986
    %4094 = vmatprep.subr.mxu0 0.0
    %4095 = vmatpush1.msra.mxu0 %v3989
    %4096 = vmatprep.subr.mxu0 0.0
    %4097 = vmatpush1.msra.mxu0 %v3992
    %4098 = vmatprep.subr.mxu0 0.0
    %4099 = vmatpush1.msra.mxu0 0.0
    %4100 = vmatprep.subr.mxu0 0.0
    %4101 = vmatpush1.msra.mxu0 0.0
    %4102 = vmatprep.subr.mxu0 0.0
    %4103 = vmatpush1.msra.mxu0 0.0
    %4104 = vmatprep.subr.mxu0 0.0
    %4105 = vmatpush1.msra.mxu0 0.0
    %4106 = vmatprep.subr.mxu0 0.0
    %4107 = vmatpush1.msra.mxu0 0.0
    %4108 = vmatprep.subr.mxu0 0.0
    %4109 = vmatpush1.msra.mxu0 0.0
    %4110 = vmatprep.subr.mxu0 0.0
    %4111 = vmatpush1.msra.mxu0 0.0
    %4112 = vmatprep.subr.mxu0 0.0
    %4113 = vmatpush1.msra.mxu0 0.0
    %4114 = vmatprep.subr.mxu0 0.0
    %4115 = vmatpush1.msra.mxu0 0.0
    %4116 = vmatprep.subr.mxu0 0.0
    %4117 = vmatpush1.msra.mxu0 0.0
    %4118 = vmatprep.subr.mxu0 0.0
    %4119 = vmatpush1.msra.mxu0 0.0
    %4120 = vmatprep.subr.mxu0 0.0
    %4121 = vmatpush1.msra.mxu0 0.0
    %4122 = vmatprep.subr.mxu0 0.0
    %4123 = vmatpush1.msra.mxu0 0.0
    %4124 = vmatprep.subr.mxu0 0.0
    %4125 = vmatpush1.msra.mxu0 0.0
    %4126 = vmatprep.subr.mxu0 0.0
    %4127 = vmatpush1.msra.mxu0 0.0
    %4128 = vmatprep.subr.mxu0 0.0
    %4129 = vmatpush1.msra.mxu0 0.0
    %4130 = vmatprep.mubr.f32.mxu0 0.0
    %4131 = vmatmul.mubr.f32.gmra.mrb[0].mxu0 %v3994
    %v4132 = vpop.f32.mrb[0].mxu0
    %v4133 = vadd.f32 0.0, %v4132
    %v4134 = vpop.f32.mrb[0].mxu0
    %4135 = vdwg.mxu0
    %v4136 = vld [vmem:[%s684] sm:$0xff]
    %v4137 = vld [vmem:[%s684 + $0x8] sm:$0xff]
    %v4138 = vld [vmem:[%s684 + $0x10] sm:$0xff]
    %v4139 = vadd.f32 %v4136, %v4062
    %v4140 = vxor.u32 %v4139, 2147483648
    %v4141 = vmul.f32 %v4140, 1.442695
    %v4142 = vpow.pop %v4141
    %v4143 = vadd.f32 %v4142, 1.0
    %v4144 = vrcp.pop %v4143
    %v4145 = vmul.f32 1.0, %v4144
    %v4146 = vadd.f32 %v4137, %v4064
    %v4147 = vxor.u32 %v4146, 2147483648
    %v4148 = vmul.f32 %v4147, 1.442695
    %v4149 = vpow.pop %v4148
    %v4150 = vadd.f32 %v4149, 1.0
    %v4151 = vrcp.pop %v4150
    %v4152 = vmul.f32 1.0, %v4151
    %v4154 = vlaneseq
    %v4155 = vshrl.u32 %v4154, 7
    %v4156 = vsub.s32 0, %v4155
    %v4157 = vrot.slane %v3993, %v4156
    %v4159 = vadd.f32 %v4133, %v4157
    %v4160 = vmul.f32 %v4145, %v4159
    %v4161 = vadd.f32 %v4138, %v4160
    %v4162 = vtanh.pop %v4161
    %v4163 = vsub.f32 1.0, %v4152
    %v4164 = vmul.f32 %v4163, %v4162
    %v4165 = vmul.f32 %v4152, %v3994
    %v4166 = vadd.f32 %v4164, %v4165
    %4167 = vst [vmem:[#allocation4] sm:$0xff] %v4166
    %4168 = vmatprep.subr.mxu0 %v3946
    %4169 = vmatpush1.msra.mxu0 %v3945
    %4170 = vmatprep.subr.mxu0 %v3949
    %4171 = vmatpush1.msra.mxu0 %v3948
    %4172 = vmatprep.subr.mxu0 %v3952
    %4173 = vmatpush1.msra.mxu0 %v3951
    %4174 = vmatprep.subr.mxu0 %v3955
    %4175 = vmatpush1.msra.mxu0 %v3954
    %4176 = vmatprep.subr.mxu0 %v3958
    %4177 = vmatpush1.msra.mxu0 %v3957
    %4178 = vmatprep.subr.mxu0 %v3961
    %4179 = vmatpush1.msra.mxu0 %v3960
    %4180 = vmatprep.subr.mxu0 %v3964
    %4181 = vmatpush1.msra.mxu0 %v3963
    %4182 = vmatprep.subr.mxu0 %v3967
    %4183 = vmatpush1.msra.mxu0 %v3966
    %4184 = vmatprep.subr.mxu0 %v3970
    %4185 = vmatpush1.msra.mxu0 %v3969
    %4186 = vmatprep.subr.mxu0 %v3973
    %4187 = vmatpush1.msra.mxu0 %v3972
    %4188 = vmatprep.subr.mxu0 %v3976
    %4189 = vmatpush1.msra.mxu0 %v3975
    %4190 = vmatprep.subr.mxu0 %v3979
    %4191 = vmatpush1.msra.mxu0 %v3978
    %4192 = vmatprep.subr.mxu0 %v3982
    %4193 = vmatpush1.msra.mxu0 %v3981
    %4194 = vmatprep.subr.mxu0 %v3985
    %4195 = vmatpush1.msra.mxu0 %v3984
    %4196 = vmatprep.subr.mxu0 %v3988
    %4197 = vmatpush1.msra.mxu0 %v3987
    %4198 = vmatprep.subr.mxu0 %v3991
    %4199 = vmatpush1.msra.mxu0 %v3990
    %4200 = vmatprep.subr.mxu0 0.0
    %4201 = vmatpush1.msra.mxu0 0.0
    %4202 = vmatprep.subr.mxu0 0.0
    %4203 = vmatpush1.msra.mxu0 0.0
    %4204 = vmatprep.subr.mxu0 0.0
    %4205 = vmatpush1.msra.mxu0 0.0
    %4206 = vmatprep.subr.mxu0 0.0
    %4207 = vmatpush1.msra.mxu0 0.0
    %4208 = vmatprep.subr.mxu0 0.0
    %4209 = vmatpush1.msra.mxu0 0.0
    %4210 = vmatprep.subr.mxu0 0.0
    %4211 = vmatpush1.msra.mxu0 0.0
    %4212 = vmatprep.subr.mxu0 0.0
    %4213 = vmatpush1.msra.mxu0 0.0
    %4214 = vmatprep.subr.mxu0 0.0
    %4215 = vmatpush1.msra.mxu0 0.0
    %4216 = vmatprep.subr.mxu0 0.0
    %4217 = vmatpush1.msra.mxu0 0.0
    %4218 = vmatprep.subr.mxu0 0.0
    %4219 = vmatpush1.msra.mxu0 0.0
    %4220 = vmatprep.subr.mxu0 0.0
    %4221 = vmatpush1.msra.mxu0 0.0
    %4222 = vmatprep.subr.mxu0 0.0
    %4223 = vmatpush1.msra.mxu0 0.0
    %4224 = vmatprep.subr.mxu0 0.0
    %4225 = vmatpush1.msra.mxu0 0.0
    %4226 = vmatprep.subr.mxu0 0.0
    %4227 = vmatpush1.msra.mxu0 0.0
    %4228 = vmatprep.subr.mxu0 0.0
    %4229 = vmatpush1.msra.mxu0 0.0
    %4230 = vmatprep.subr.mxu0 0.0
    %4231 = vmatpush1.msra.mxu0 0.0
    %4232 = vmatprep.mubr.f32.mxu0 0.0
    %4233 = vmatmul.mubr.f32.gmra.mrb[0].mxu0 %v4166
    %v4234 = vpop.f32.mrb[0].mxu0
    %v4235 = vadd.f32 0.0, %v4234
    %v4236 = vpop.f32.mrb[0].mxu0
    %v4237 = vadd.f32 0.0, %v4236
    %4238 = vdwg.mxu0
    %4239 = vmatprep.subr.mxu0 0.0
    %4240 = vmatpush1.msra.mxu0 %v3947
    %4241 = vmatprep.subr.mxu0 0.0
    %4242 = vmatpush1.msra.mxu0 %v3950
    %4243 = vmatprep.subr.mxu0 0.0
    %4244 = vmatpush1.msra.mxu0 %v3953
    %4245 = vmatprep.subr.mxu0 0.0
    %4246 = vmatpush1.msra.mxu0 %v3956
    %4247 = vmatprep.subr.mxu0 0.0
    %4248 = vmatpush1.msra.mxu0 %v3959
    %4249 = vmatprep.subr.mxu0 0.0
    %4250 = vmatpush1.msra.mxu0 %v3962
    %4251 = vmatprep.subr.mxu0 0.0
    %4252 = vmatpush1.msra.mxu0 %v3965
    %4253 = vmatprep.subr.mxu0 0.0
    %4254 = vmatpush1.msra.mxu0 %v3968
    %4255 = vmatprep.subr.mxu0 0.0
    %4256 = vmatpush1.msra.mxu0 %v3971
    %4257 = vmatprep.subr.mxu0 0.0
    %4258 = vmatpush1.msra.mxu0 %v3974
    %4259 = vmatprep.subr.mxu0 0.0
    %4260 = vmatpush1.msra.mxu0 %v3977
    %4261 = vmatprep.subr.mxu0 0.0
    %4262 = vmatpush1.msra.mxu0 %v3980
    %4263 = vmatprep.subr.mxu0 0.0
    %4264 = vmatpush1.msra.mxu0 %v3983
    %4265 = vmatprep.subr.mxu0 0.0
    %4266 = vmatpush1.msra.mxu0 %v3986
    %4267 = vmatprep.subr.mxu0 0.0
    %4268 = vmatpush1.msra.mxu0 %v3989
    %4269 = vmatprep.subr.mxu0 0.0
    %4270 = vmatpush1.msra.mxu0 %v3992
    %4271 = vmatprep.subr.mxu0 0.0
    %4272 = vmatpush1.msra.mxu0 0.0
    %4273 = vmatprep.subr.mxu0 0.0
    %4274 = vmatpush1.msra.mxu0 0.0
    %4275 = vmatprep.subr.mxu0 0.0
    %4276 = vmatpush1.msra.mxu0 0.0
    %4277 = vmatprep.subr.mxu0 0.0
    %4278 = vmatpush1.msra.mxu0 0.0
    %4279 = vmatprep.subr.mxu0 0.0
    %4280 = vmatpush1.msra.mxu0 0.0
    %4281 = vmatprep.subr.mxu0 0.0
    %4282 = vmatpush1.msra.mxu0 0.0
    %4283 = vmatprep.subr.mxu0 0.0
    %4284 = vmatpush1.msra.mxu0 0.0
    %4285 = vmatprep.subr.mxu0 0.0
    %4286 = vmatpush1.msra.mxu0 0.0
    %4287 = vmatprep.subr.mxu0 0.0
    %4288 = vmatpush1.msra.mxu0 0.0
    %4289 = vmatprep.subr.mxu0 0.0
    %4290 = vmatpush1.msra.mxu0 0.0
    %4291 = vmatprep.subr.mxu0 0.0
    %4292 = vmatpush1.msra.mxu0 0.0
    %4293 = vmatprep.subr.mxu0 0.0
    %4294 = vmatpush1.msra.mxu0 0.0
    %4295 = vmatprep.subr.mxu0 0.0
    %4296 = vmatpush1.msra.mxu0 0.0
    %4297 = vmatprep.subr.mxu0 0.0
    %4298 = vmatpush1.msra.mxu0 0.0
    %4299 = vmatprep.subr.mxu0 0.0
    %4300 = vmatpush1.msra.mxu0 0.0
    %4301 = vmatprep.subr.mxu0 0.0
    %4302 = vmatpush1.msra.mxu0 0.0
    %4303 = vmatprep.mubr.f32.mxu0 0.0
    %4304 = vmatmul.mubr.f32.gmra.mrb[0].mxu0 %v4166
    %v4305 = vpop.f32.mrb[0].mxu0
    %v4306 = vadd.f32 0.0, %v4305
    %v4307 = vpop.f32.mrb[0].mxu0
    %4308 = vdwg.mxu0
    %v4309 = vld [vmem:[%s860] sm:$0xff]
    %v4310 = vld [vmem:[%s860 + $0x8] sm:$0xff]
    %v4311 = vld [vmem:[%s860 + $0x10] sm:$0xff]
    %v4312 = vadd.f32 %v4309, %v4235
    %v4313 = vxor.u32 %v4312, 2147483648
    %v4314 = vmul.f32 %v4313, 1.442695
    %v4315 = vpow.pop %v4314
    %v4316 = vadd.f32 %v4315, 1.0
    %v4317 = vrcp.pop %v4316
    %v4318 = vmul.f32 1.0, %v4317
    %v4319 = vadd.f32 %v4310, %v4237
    %v4320 = vxor.u32 %v4319, 2147483648
    %v4321 = vmul.f32 %v4320, 1.442695
    %v4322 = vpow.pop %v4321
    %v4323 = vadd.f32 %v4322, 1.0
    %v4324 = vrcp.pop %v4323
    %v4325 = vmul.f32 1.0, %v4324
    %v4326 = vadd.f32 %v4306, %v4157
    %v4327 = vmul.f32 %v4318, %v4326
    %v4328 = vadd.f32 %v4311, %v4327
    %v4329 = vtanh.pop %v4328
    %v4330 = vsub.f32 1.0, %v4325
    %v4331 = vmul.f32 %v4330, %v4329
    %v4332 = vmul.f32 %v4325, %v4166
    %v4333 = vadd.f32 %v4331, %v4332
    %s4334 = scalar_lea.vmem [#allocation4], 8
    %4335 = vst [vmem:[%s4334] sm:$0xff] %v4333
    %4336 = vmatprep.subr.mxu0 %v3946
    %4337 = vmatpush1.msra.mxu0 %v3945
    %4338 = vmatprep.subr.mxu0 %v3949
    %4339 = vmatpush1.msra.mxu0 %v3948
    %4340 = vmatprep.subr.mxu0 %v3952
    %4341 = vmatpush1.msra.mxu0 %v3951
    %4342 = vmatprep.subr.mxu0 %v3955
    %4343 = vmatpush1.msra.mxu0 %v3954
    %4344 = vmatprep.subr.mxu0 %v3958
    %4345 = vmatpush1.msra.mxu0 %v3957
    %4346 = vmatprep.subr.mxu0 %v3961
    %4347 = vmatpush1.msra.mxu0 %v3960
    %4348 = vmatprep.subr.mxu0 %v3964
    %4349 = vmatpush1.msra.mxu0 %v3963
    %4350 = vmatprep.subr.mxu0 %v3967
    %4351 = vmatpush1.msra.mxu0 %v3966
    %4352 = vmatprep.subr.mxu0 %v3970
    %4353 = vmatpush1.msra.mxu0 %v3969
    %4354 = vmatprep.subr.mxu0 %v3973
    %4355 = vmatpush1.msra.mxu0 %v3972
    %4356 = vmatprep.subr.mxu0 %v3976
    %4357 = vmatpush1.msra.mxu0 %v3975
    %4358 = vmatprep.subr.mxu0 %v3979
    %4359 = vmatpush1.msra.mxu0 %v3978
    %4360 = vmatprep.subr.mxu0 %v3982
    %4361 = vmatpush1.msra.mxu0 %v3981
    %4362 = vmatprep.subr.mxu0 %v3985
    %4363 = vmatpush1.msra.mxu0 %v3984
    %4364 = vmatprep.subr.mxu0 %v3988
    %4365 = vmatpush1.msra.mxu0 %v3987
    %4366 = vmatprep.subr.mxu0 %v3991
    %4367 = vmatpush1.msra.mxu0 %v3990
    %4368 = vmatprep.subr.mxu0 0.0
    %4369 = vmatpush1.msra.mxu0 0.0
    %4370 = vmatprep.subr.mxu0 0.0
    %4371 = vmatpush1.msra.mxu0 0.0
    %4372 = vmatprep.subr.mxu0 0.0
    %4373 = vmatpush1.msra.mxu0 0.0
    %4374 = vmatprep.subr.mxu0 0.0
    %4375 = vmatpush1.msra.mxu0 0.0
    %4376 = vmatprep.subr.mxu0 0.0
    %4377 = vmatpush1.msra.mxu0 0.0
    %4378 = vmatprep.subr.mxu0 0.0
    %4379 = vmatpush1.msra.mxu0 0.0
    %4380 = vmatprep.subr.mxu0 0.0
    %4381 = vmatpush1.msra.mxu0 0.0
    %4382 = vmatprep.subr.mxu0 0.0
    %4383 = vmatpush1.msra.mxu0 0.0
    %4384 = vmatprep.subr.mxu0 0.0
    %4385 = vmatpush1.msra.mxu0 0.0
    %4386 = vmatprep.subr.mxu0 0.0
    %4387 = vmatpush1.msra.mxu0 0.0
    %4388 = vmatprep.subr.mxu0 0.0
    %4389 = vmatpush1.msra.mxu0 0.0
    %4390 = vmatprep.subr.mxu0 0.0
    %4391 = vmatpush1.msra.mxu0 0.0
    %4392 = vmatprep.subr.mxu0 0.0
    %4393 = vmatpush1.msra.mxu0 0.0
    %4394 = vmatprep.subr.mxu0 0.0
    %4395 = vmatpush1.msra.mxu0 0.0
    %4396 = vmatprep.subr.mxu0 0.0
    %4397 = vmatpush1.msra.mxu0 0.0
    %4398 = vmatprep.subr.mxu0 0.0
    %4399 = vmatpush1.msra.mxu0 0.0
    %4400 = vmatprep.mubr.f32.mxu0 0.0
    %4401 = vmatmul.mubr.f32.gmra.mrb[0].mxu0 %v4333
    %v4402 = vpop.f32.mrb[0].mxu0
    %v4403 = vadd.f32 0.0, %v4402
    %v4404 = vpop.f32.mrb[0].mxu0
    %v4405 = vadd.f32 0.0, %v4404
    %4406 = vdwg.mxu0
    %4407 = vmatprep.subr.mxu0 0.0
    %4408 = vmatpush1.msra.mxu0 %v3947
    %4409 = vmatprep.subr.mxu0 0.0
    %4410 = vmatpush1.msra.mxu0 %v3950
    %4411 = vmatprep.subr.mxu0 0.0
    %4412 = vmatpush1.msra.mxu0 %v3953
    %4413 = vmatprep.subr.mxu0 0.0
    %4414 = vmatpush1.msra.mxu0 %v3956
    %4415 = vmatprep.subr.mxu0 0.0
    %4416 = vmatpush1.msra.mxu0 %v3959
    %4417 = vmatprep.subr.mxu0 0.0
    %4418 = vmatpush1.msra.mxu0 %v3962
    %4419 = vmatprep.subr.mxu0 0.0
    %4420 = vmatpush1.msra.mxu0 %v3965
    %4421 = vmatprep.subr.mxu0 0.0
    %4422 = vmatpush1.msra.mxu0 %v3968
    %4423 = vmatprep.subr.mxu0 0.0
    %4424 = vmatpush1.msra.mxu0 %v3971
    %4425 = vmatprep.subr.mxu0 0.0
    %4426 = vmatpush1.msra.mxu0 %v3974
    %4427 = vmatprep.subr.mxu0 0.0
    %4428 = vmatpush1.msra.mxu0 %v3977
    %4429 = vmatprep.subr.mxu0 0.0
    %4430 = vmatpush1.msra.mxu0 %v3980
    %4431 = vmatprep.subr.mxu0 0.0
    %4432 = vmatpush1.msra.mxu0 %v3983
    %4433 = vmatprep.subr.mxu0 0.0
    %4434 = vmatpush1.msra.mxu0 %v3986
    %4435 = vmatprep.subr.mxu0 0.0
    %4436 = vmatpush1.msra.mxu0 %v3989
    %4437 = vmatprep.subr.mxu0 0.0
    %4438 = vmatpush1.msra.mxu0 %v3992
    %4439 = vmatprep.subr.mxu0 0.0
    %4440 = vmatpush1.msra.mxu0 0.0
    %4441 = vmatprep.subr.mxu0 0.0
    %4442 = vmatpush1.msra.mxu0 0.0
    %4443 = vmatprep.subr.mxu0 0.0
    %4444 = vmatpush1.msra.mxu0 0.0
    %4445 = vmatprep.subr.mxu0 0.0
    %4446 = vmatpush1.msra.mxu0 0.0
    %4447 = vmatprep.subr.mxu0 0.0
    %4448 = vmatpush1.msra.mxu0 0.0
    %4449 = vmatprep.subr.mxu0 0.0
    %4450 = vmatpush1.msra.mxu0 0.0
    %4451 = vmatprep.subr.mxu0 0.0
    %4452 = vmatpush1.msra.mxu0 0.0
    %4453 = vmatprep.subr.mxu0 0.0
    %4454 = vmatpush1.msra.mxu0 0.0
    %4455 = vmatprep.subr.mxu0 0.0
    %4456 = vmatpush1.msra.mxu0 0.0
    %4457 = vmatprep.subr.mxu0 0.0
    %4458 = vmatpush1.msra.mxu0 0.0
    %4459 = vmatprep.subr.mxu0 0.0
    %4460 = vmatpush1.msra.mxu0 0.0
    %4461 = vmatprep.subr.mxu0 0.0
    %4462 = vmatpush1.msra.mxu0 0.0
    %4463 = vmatprep.subr.mxu0 0.0
    %4464 = vmatpush1.msra.mxu0 0.0
    %4465 = vmatprep.subr.mxu0 0.0
    %4466 = vmatpush1.msra.mxu0 0.0
    %4467 = vmatprep.subr.mxu0 0.0
    %4468 = vmatpush1.msra.mxu0 0.0
    %4469 = vmatprep.subr.mxu0 0.0
    %4470 = vmatpush1.msra.mxu0 0.0
    %4471 = vmatprep.mubr.f32.mxu0 0.0
    %4472 = vmatmul.mubr.f32.gmra.mrb[0].mxu0 %v4333
    %v4473 = vpop.f32.mrb[0].mxu0
    %v4474 = vadd.f32 0.0, %v4473
    %v4475 = vpop.f32.mrb[0].mxu0
    %4476 = vdwg.mxu0
    %v4477 = vld [vmem:[%s1031] sm:$0xff]
    %v4478 = vld [vmem:[%s1031 + $0x8] sm:$0xff]
    %v4479 = vld [vmem:[%s1031 + $0x10] sm:$0xff]
    %v4480 = vadd.f32 %v4477, %v4403
    %v4481 = vxor.u32 %v4480, 2147483648
    %v4482 = vmul.f32 %v4481, 1.442695
    %v4483 = vpow.pop %v4482
    %v4484 = vadd.f32 %v4483, 1.0
    %v4485 = vrcp.pop %v4484
    %v4486 = vmul.f32 1.0, %v4485
    %v4487 = vadd.f32 %v4478, %v4405
    %v4488 = vxor.u32 %v4487, 2147483648
    %v4489 = vmul.f32 %v4488, 1.442695
    %v4490 = vpow.pop %v4489
    %v4491 = vadd.f32 %v4490, 1.0
    %v4492 = vrcp.pop %v4491
    %v4493 = vmul.f32 1.0, %v4492
    %v4494 = vadd.f32 %v4474, %v4157
    %v4495 = vmul.f32 %v4486, %v4494
    %v4496 = vadd.f32 %v4479, %v4495
    %v4497 = vtanh.pop %v4496
    %v4498 = vsub.f32 1.0, %v4493
    %v4499 = vmul.f32 %v4498, %v4497
    %v4500 = vmul.f32 %v4493, %v4333
    %v4501 = vadd.f32 %v4499, %v4500
    %s4502 = scalar_lea.vmem [#allocation4], 16
    %4503 = vst [vmem:[%s4502] sm:$0xff] %v4501
    %4504 = vmatprep.subr.mxu0 %v3946
    %4505 = vmatpush1.msra.mxu0 %v3945
    %4506 = vmatprep.subr.mxu0 %v3949
    %4507 = vmatpush1.msra.mxu0 %v3948
    %4508 = vmatprep.subr.mxu0 %v3952
    %4509 = vmatpush1.msra.mxu0 %v3951
    %4510 = vmatprep.subr.mxu0 %v3955
    %4511 = vmatpush1.msra.mxu0 %v3954
    %4512 = vmatprep.subr.mxu0 %v3958
    %4513 = vmatpush1.msra.mxu0 %v3957
    %4514 = vmatprep.subr.mxu0 %v3961
    %4515 = vmatpush1.msra.mxu0 %v3960
    %4516 = vmatprep.subr.mxu0 %v3964
    %4517 = vmatpush1.msra.mxu0 %v3963
    %4518 = vmatprep.subr.mxu0 %v3967
    %4519 = vmatpush1.msra.mxu0 %v3966
    %4520 = vmatprep.subr.mxu0 %v3970
    %4521 = vmatpush1.msra.mxu0 %v3969
    %4522 = vmatprep.subr.mxu0 %v3973
    %4523 = vmatpush1.msra.mxu0 %v3972
    %4524 = vmatprep.subr.mxu0 %v3976
    %4525 = vmatpush1.msra.mxu0 %v3975
    %4526 = vmatprep.subr.mxu0 %v3979
    %4527 = vmatpush1.msra.mxu0 %v3978
    %4528 = vmatprep.subr.mxu0 %v3982
    %4529 = vmatpush1.msra.mxu0 %v3981
    %4530 = vmatprep.subr.mxu0 %v3985
    %4531 = vmatpush1.msra.mxu0 %v3984
    %4532 = vmatprep.subr.mxu0 %v3988
    %4533 = vmatpush1.msra.mxu0 %v3987
    %4534 = vmatprep.subr.mxu0 %v3991
    %4535 = vmatpush1.msra.mxu0 %v3990
    %4536 = vmatprep.subr.mxu0 0.0
    %4537 = vmatpush1.msra.mxu0 0.0
    %4538 = vmatprep.subr.mxu0 0.0
    %4539 = vmatpush1.msra.mxu0 0.0
    %4540 = vmatprep.subr.mxu0 0.0
    %4541 = vmatpush1.msra.mxu0 0.0
    %4542 = vmatprep.subr.mxu0 0.0
    %4543 = vmatpush1.msra.mxu0 0.0
    %4544 = vmatprep.subr.mxu0 0.0
    %4545 = vmatpush1.msra.mxu0 0.0
    %4546 = vmatprep.subr.mxu0 0.0
    %4547 = vmatpush1.msra.mxu0 0.0
    %4548 = vmatprep.subr.mxu0 0.0
    %4549 = vmatpush1.msra.mxu0 0.0
    %4550 = vmatprep.subr.mxu0 0.0
    %4551 = vmatpush1.msra.mxu0 0.0
    %4552 = vmatprep.subr.mxu0 0.0
    %4553 = vmatpush1.msra.mxu0 0.0
    %4554 = vmatprep.subr.mxu0 0.0
    %4555 = vmatpush1.msra.mxu0 0.0
    %4556 = vmatprep.subr.mxu0 0.0
    %4557 = vmatpush1.msra.mxu0 0.0
    %4558 = vmatprep.subr.mxu0 0.0
    %4559 = vmatpush1.msra.mxu0 0.0
    %4560 = vmatprep.subr.mxu0 0.0
    %4561 = vmatpush1.msra.mxu0 0.0
    %4562 = vmatprep.subr.mxu0 0.0
    %4563 = vmatpush1.msra.mxu0 0.0
    %4564 = vmatprep.subr.mxu0 0.0
    %4565 = vmatpush1.msra.mxu0 0.0
    %4566 = vmatprep.subr.mxu0 0.0
    %4567 = vmatpush1.msra.mxu0 0.0
    %4568 = vmatprep.mubr.f32.mxu0 0.0
    %4569 = vmatmul.mubr.f32.gmra.mrb[0].mxu0 %v4501
    %v4570 = vpop.f32.mrb[0].mxu0
    %v4571 = vadd.f32 0.0, %v4570
    %v4572 = vpop.f32.mrb[0].mxu0
    %v4573 = vadd.f32 0.0, %v4572
    %4574 = vdwg.mxu0
    %4575 = vmatprep.subr.mxu0 0.0
    %4576 = vmatpush1.msra.mxu0 %v3947
    %4577 = vmatprep.subr.mxu0 0.0
    %4578 = vmatpush1.msra.mxu0 %v3950
    %4579 = vmatprep.subr.mxu0 0.0
    %4580 = vmatpush1.msra.mxu0 %v3953
    %4581 = vmatprep.subr.mxu0 0.0
    %4582 = vmatpush1.msra.mxu0 %v3956
    %4583 = vmatprep.subr.mxu0 0.0
    %4584 = vmatpush1.msra.mxu0 %v3959
    %4585 = vmatprep.subr.mxu0 0.0
    %4586 = vmatpush1.msra.mxu0 %v3962
    %4587 = vmatprep.subr.mxu0 0.0
    %4588 = vmatpush1.msra.mxu0 %v3965
    %4589 = vmatprep.subr.mxu0 0.0
    %4590 = vmatpush1.msra.mxu0 %v3968
    %4591 = vmatprep.subr.mxu0 0.0
    %4592 = vmatpush1.msra.mxu0 %v3971
    %4593 = vmatprep.subr.mxu0 0.0
    %4594 = vmatpush1.msra.mxu0 %v3974
    %4595 = vmatprep.subr.mxu0 0.0
    %4596 = vmatpush1.msra.mxu0 %v3977
    %4597 = vmatprep.subr.mxu0 0.0
    %4598 = vmatpush1.msra.mxu0 %v3980
    %4599 = vmatprep.subr.mxu0 0.0
    %4600 = vmatpush1.msra.mxu0 %v3983
    %4601 = vmatprep.subr.mxu0 0.0
    %4602 = vmatpush1.msra.mxu0 %v3986
    %4603 = vmatprep.subr.mxu0 0.0
    %4604 = vmatpush1.msra.mxu0 %v3989
    %4605 = vmatprep.subr.mxu0 0.0
    %4606 = vmatpush1.msra.mxu0 %v3992
    %4607 = vmatprep.subr.mxu0 0.0
    %4608 = vmatpush1.msra.mxu0 0.0
    %4609 = vmatprep.subr.mxu0 0.0
    %4610 = vmatpush1.msra.mxu0 0.0
    %4611 = vmatprep.subr.mxu0 0.0
    %4612 = vmatpush1.msra.mxu0 0.0
    %4613 = vmatprep.subr.mxu0 0.0
    %4614 = vmatpush1.msra.mxu0 0.0
    %4615 = vmatprep.subr.mxu0 0.0
    %4616 = vmatpush1.msra.mxu0 0.0
    %4617 = vmatprep.subr.mxu0 0.0
    %4618 = vmatpush1.msra.mxu0 0.0
    %4619 = vmatprep.subr.mxu0 0.0
    %4620 = vmatpush1.msra.mxu0 0.0
    %4621 = vmatprep.subr.mxu0 0.0
    %4622 = vmatpush1.msra.mxu0 0.0
    %4623 = vmatprep.subr.mxu0 0.0
    %4624 = vmatpush1.msra.mxu0 0.0
    %4625 = vmatprep.subr.mxu0 0.0
    %4626 = vmatpush1.msra.mxu0 0.0
    %4627 = vmatprep.subr.mxu0 0.0
    %4628 = vmatpush1.msra.mxu0 0.0
    %4629 = vmatprep.subr.mxu0 0.0
    %4630 = vmatpush1.msra.mxu0 0.0
    %4631 = vmatprep.subr.mxu0 0.0
    %4632 = vmatpush1.msra.mxu0 0.0
    %4633 = vmatprep.subr.mxu0 0.0
    %4634 = vmatpush1.msra.mxu0 0.0
    %4635 = vmatprep.subr.mxu0 0.0
    %4636 = vmatpush1.msra.mxu0 0.0
    %4637 = vmatprep.subr.mxu0 0.0
    %4638 = vmatpush1.msra.mxu0 0.0
    %4639 = vmatprep.mubr.f32.mxu0 0.0
    %4640 = vmatmul.mubr.f32.gmra.mrb[0].mxu0 %v4501
    %v4641 = vpop.f32.mrb[0].mxu0
    %v4642 = vadd.f32 0.0, %v4641
    %v4643 = vpop.f32.mrb[0].mxu0
    %4644 = vdwg.mxu0
    %v4645 = vld [vmem:[%s1202] sm:$0xff]
    %v4646 = vld [vmem:[%s1202 + $0x8] sm:$0xff]
    %v4647 = vld [vmem:[%s1202 + $0x10] sm:$0xff]
    %v4648 = vadd.f32 %v4645, %v4571
    %v4649 = vxor.u32 %v4648, 2147483648
    %v4650 = vmul.f32 %v4649, 1.442695
    %v4651 = vpow.pop %v4650
    %v4652 = vadd.f32 %v4651, 1.0
    %v4653 = vrcp.pop %v4652
    %v4654 = vmul.f32 1.0, %v4653
    %v4655 = vadd.f32 %v4646, %v4573
    %v4656 = vxor.u32 %v4655, 2147483648
    %v4657 = vmul.f32 %v4656, 1.442695
    %v4658 = vpow.pop %v4657
    %v4659 = vadd.f32 %v4658, 1.0
    %v4660 = vrcp.pop %v4659
    %v4661 = vmul.f32 1.0, %v4660
    %v4662 = vadd.f32 %v4642, %v4157
    %v4663 = vmul.f32 %v4654, %v4662
    %v4664 = vadd.f32 %v4647, %v4663
    %v4665 = vtanh.pop %v4664
    %v4666 = vsub.f32 1.0, %v4661
    %v4667 = vmul.f32 %v4666, %v4665
    %v4668 = vmul.f32 %v4661, %v4501
    %v4669 = vadd.f32 %v4667, %v4668
    %s4670 = scalar_lea.vmem [#allocation4], 24
    %4671 = vst [vmem:[%s4670] sm:$0xff] %v4669
    %4672 = vmatprep.subr.mxu0 %v3946
    %4673 = vmatpush1.msra.mxu0 %v3945
    %4674 = vmatprep.subr.mxu0 %v3949
    %4675 = vmatpush1.msra.mxu0 %v3948
    %4676 = vmatprep.subr.mxu0 %v3952
    %4677 = vmatpush1.msra.mxu0 %v3951
    %4678 = vmatprep.subr.mxu0 %v3955
    %4679 = vmatpush1.msra.mxu0 %v3954
    %4680 = vmatprep.subr.mxu0 %v3958
    %4681 = vmatpush1.msra.mxu0 %v3957
    %4682 = vmatprep.subr.mxu0 %v3961
    %4683 = vmatpush1.msra.mxu0 %v3960
    %4684 = vmatprep.subr.mxu0 %v3964
    %4685 = vmatpush1.msra.mxu0 %v3963
    %4686 = vmatprep.subr.mxu0 %v3967
    %4687 = vmatpush1.msra.mxu0 %v3966
    %4688 = vmatprep.subr.mxu0 %v3970
    %4689 = vmatpush1.msra.mxu0 %v3969
    %4690 = vmatprep.subr.mxu0 %v3973
    %4691 = vmatpush1.msra.mxu0 %v3972
    %4692 = vmatprep.subr.mxu0 %v3976
    %4693 = vmatpush1.msra.mxu0 %v3975
    %4694 = vmatprep.subr.mxu0 %v3979
    %4695 = vmatpush1.msra.mxu0 %v3978
    %4696 = vmatprep.subr.mxu0 %v3982
    %4697 = vmatpush1.msra.mxu0 %v3981
    %4698 = vmatprep.subr.mxu0 %v3985
    %4699 = vmatpush1.msra.mxu0 %v3984
    %4700 = vmatprep.subr.mxu0 %v3988
    %4701 = vmatpush1.msra.mxu0 %v3987
    %4702 = vmatprep.subr.mxu0 %v3991
    %4703 = vmatpush1.msra.mxu0 %v3990
    %4704 = vmatprep.subr.mxu0 0.0
    %4705 = vmatpush1.msra.mxu0 0.0
    %4706 = vmatprep.subr.mxu0 0.0
    %4707 = vmatpush1.msra.mxu0 0.0
    %4708 = vmatprep.subr.mxu0 0.0
    %4709 = vmatpush1.msra.mxu0 0.0
    %4710 = vmatprep.subr.mxu0 0.0
    %4711 = vmatpush1.msra.mxu0 0.0
    %4712 = vmatprep.subr.mxu0 0.0
    %4713 = vmatpush1.msra.mxu0 0.0
    %4714 = vmatprep.subr.mxu0 0.0
    %4715 = vmatpush1.msra.mxu0 0.0
    %4716 = vmatprep.subr.mxu0 0.0
    %4717 = vmatpush1.msra.mxu0 0.0
    %4718 = vmatprep.subr.mxu0 0.0
    %4719 = vmatpush1.msra.mxu0 0.0
    %4720 = vmatprep.subr.mxu0 0.0
    %4721 = vmatpush1.msra.mxu0 0.0
    %4722 = vmatprep.subr.mxu0 0.0
    %4723 = vmatpush1.msra.mxu0 0.0
    %4724 = vmatprep.subr.mxu0 0.0
    %4725 = vmatpush1.msra.mxu0 0.0
    %4726 = vmatprep.subr.mxu0 0.0
    %4727 = vmatpush1.msra.mxu0 0.0
    %4728 = vmatprep.subr.mxu0 0.0
    %4729 = vmatpush1.msra.mxu0 0.0
    %4730 = vmatprep.subr.mxu0 0.0
    %4731 = vmatpush1.msra.mxu0 0.0
    %4732 = vmatprep.subr.mxu0 0.0
    %4733 = vmatpush1.msra.mxu0 0.0
    %4734 = vmatprep.subr.mxu0 0.0
    %4735 = vmatpush1.msra.mxu0 0.0
    %4736 = vmatprep.mubr.f32.mxu0 0.0
    %4737 = vmatmul.mubr.f32.gmra.mrb[0].mxu0 %v4669
    %v4738 = vpop.f32.mrb[0].mxu0
    %v4739 = vadd.f32 0.0, %v4738
    %v4740 = vpop.f32.mrb[0].mxu0
    %v4741 = vadd.f32 0.0, %v4740
    %4742 = vdwg.mxu0
    %4743 = vmatprep.subr.mxu0 0.0
    %4744 = vmatpush1.msra.mxu0 %v3947
    %4745 = vmatprep.subr.mxu0 0.0
    %4746 = vmatpush1.msra.mxu0 %v3950
    %4747 = vmatprep.subr.mxu0 0.0
    %4748 = vmatpush1.msra.mxu0 %v3953
    %4749 = vmatprep.subr.mxu0 0.0
    %4750 = vmatpush1.msra.mxu0 %v3956
    %4751 = vmatprep.subr.mxu0 0.0
    %4752 = vmatpush1.msra.mxu0 %v3959
    %4753 = vmatprep.subr.mxu0 0.0
    %4754 = vmatpush1.msra.mxu0 %v3962
    %4755 = vmatprep.subr.mxu0 0.0
    %4756 = vmatpush1.msra.mxu0 %v3965
    %4757 = vmatprep.subr.mxu0 0.0
    %4758 = vmatpush1.msra.mxu0 %v3968
    %4759 = vmatprep.subr.mxu0 0.0
    %4760 = vmatpush1.msra.mxu0 %v3971
    %4761 = vmatprep.subr.mxu0 0.0
    %4762 = vmatpush1.msra.mxu0 %v3974
    %4763 = vmatprep.subr.mxu0 0.0
    %4764 = vmatpush1.msra.mxu0 %v3977
    %4765 = vmatprep.subr.mxu0 0.0
    %4766 = vmatpush1.msra.mxu0 %v3980
    %4767 = vmatprep.subr.mxu0 0.0
    %4768 = vmatpush1.msra.mxu0 %v3983
    %4769 = vmatprep.subr.mxu0 0.0
    %4770 = vmatpush1.msra.mxu0 %v3986
    %4771 = vmatprep.subr.mxu0 0.0
    %4772 = vmatpush1.msra.mxu0 %v3989
    %4773 = vmatprep.subr.mxu0 0.0
    %4774 = vmatpush1.msra.mxu0 %v3992
    %4775 = vmatprep.subr.mxu0 0.0
    %4776 = vmatpush1.msra.mxu0 0.0
    %4777 = vmatprep.subr.mxu0 0.0
    %4778 = vmatpush1.msra.mxu0 0.0
    %4779 = vmatprep.subr.mxu0 0.0
    %4780 = vmatpush1.msra.mxu0 0.0
    %4781 = vmatprep.subr.mxu0 0.0
    %4782 = vmatpush1.msra.mxu0 0.0
    %4783 = vmatprep.subr.mxu0 0.0
    %4784 = vmatpush1.msra.mxu0 0.0
    %4785 = vmatprep.subr.mxu0 0.0
    %4786 = vmatpush1.msra.mxu0 0.0
    %4787 = vmatprep.subr.mxu0 0.0
    %4788 = vmatpush1.msra.mxu0 0.0
    %4789 = vmatprep.subr.mxu0 0.0
    %4790 = vmatpush1.msra.mxu0 0.0
    %4791 = vmatprep.subr.mxu0 0.0
    %4792 = vmatpush1.msra.mxu0 0.0
    %4793 = vmatprep.subr.mxu0 0.0
    %4794 = vmatpush1.msra.mxu0 0.0
    %4795 = vmatprep.subr.mxu0 0.0
    %4796 = vmatpush1.msra.mxu0 0.0
    %4797 = vmatprep.subr.mxu0 0.0
    %4798 = vmatpush1.msra.mxu0 0.0
    %4799 = vmatprep.subr.mxu0 0.0
    %4800 = vmatpush1.msra.mxu0 0.0
    %4801 = vmatprep.subr.mxu0 0.0
    %4802 = vmatpush1.msra.mxu0 0.0
    %4803 = vmatprep.subr.mxu0 0.0
    %4804 = vmatpush1.msra.mxu0 0.0
    %4805 = vmatprep.subr.mxu0 0.0
    %4806 = vmatpush1.msra.mxu0 0.0
    %4807 = vmatprep.mubr.f32.mxu0 0.0
    %4808 = vmatmul.mubr.f32.gmra.mrb[0].mxu0 %v4669
    %v4809 = vpop.f32.mrb[0].mxu0
    %v4810 = vadd.f32 0.0, %v4809
    %v4811 = vpop.f32.mrb[0].mxu0
    %4812 = vdwg.mxu0
    %v4813 = vld [vmem:[%s1373] sm:$0xff]
    %v4814 = vld [vmem:[%s1373 + $0x8] sm:$0xff]
    %v4815 = vld [vmem:[%s1373 + $0x10] sm:$0xff]
    %v4816 = vadd.f32 %v4813, %v4739
    %v4817 = vxor.u32 %v4816, 2147483648
    %v4818 = vmul.f32 %v4817, 1.442695
    %v4819 = vpow.pop %v4818
    %v4820 = vadd.f32 %v4819, 1.0
    %v4821 = vrcp.pop %v4820
    %v4822 = vmul.f32 1.0, %v4821
    %v4823 = vadd.f32 %v4814, %v4741
    %v4824 = vxor.u32 %v4823, 2147483648
    %v4825 = vmul.f32 %v4824, 1.442695
    %v4826 = vpow.pop %v4825
    %v4827 = vadd.f32 %v4826, 1.0
    %v4828 = vrcp.pop %v4827
    %v4829 = vmul.f32 1.0, %v4828
    %v4830 = vadd.f32 %v4810, %v4157
    %v4831 = vmul.f32 %v4822, %v4830
    %v4832 = vadd.f32 %v4815, %v4831
    %v4833 = vtanh.pop %v4832
    %v4834 = vsub.f32 1.0, %v4829
    %v4835 = vmul.f32 %v4834, %v4833
    %v4836 = vmul.f32 %v4829, %v4669
    %v4837 = vadd.f32 %v4835, %v4836
    %s4838 = scalar_lea.vmem [#allocation4], 32
    %4839 = vst [vmem:[%s4838] sm:$0xff] %v4837
    %4840 = vmatprep.subr.mxu0 %v3946
    %4841 = vmatpush1.msra.mxu0 %v3945
    %4842 = vmatprep.subr.mxu0 %v3949
    %4843 = vmatpush1.msra.mxu0 %v3948
    %4844 = vmatprep.subr.mxu0 %v3952
    %4845 = vmatpush1.msra.mxu0 %v3951
    %4846 = vmatprep.subr.mxu0 %v3955
    %4847 = vmatpush1.msra.mxu0 %v3954
    %4848 = vmatprep.subr.mxu0 %v3958
    %4849 = vmatpush1.msra.mxu0 %v3957
    %4850 = vmatprep.subr.mxu0 %v3961
    %4851 = vmatpush1.msra.mxu0 %v3960
    %4852 = vmatprep.subr.mxu0 %v3964
    %4853 = vmatpush1.msra.mxu0 %v3963
    %4854 = vmatprep.subr.mxu0 %v3967
    %4855 = vmatpush1.msra.mxu0 %v3966
    %4856 = vmatprep.subr.mxu0 %v3970
    %4857 = vmatpush1.msra.mxu0 %v3969
    %4858 = vmatprep.subr.mxu0 %v3973
    %4859 = vmatpush1.msra.mxu0 %v3972
    %4860 = vmatprep.subr.mxu0 %v3976
    %4861 = vmatpush1.msra.mxu0 %v3975
    %4862 = vmatprep.subr.mxu0 %v3979
    %4863 = vmatpush1.msra.mxu0 %v3978
    %4864 = vmatprep.subr.mxu0 %v3982
    %4865 = vmatpush1.msra.mxu0 %v3981
    %4866 = vmatprep.subr.mxu0 %v3985
    %4867 = vmatpush1.msra.mxu0 %v3984
    %4868 = vmatprep.subr.mxu0 %v3988
    %4869 = vmatpush1.msra.mxu0 %v3987
    %4870 = vmatprep.subr.mxu0 %v3991
    %4871 = vmatpush1.msra.mxu0 %v3990
    %4872 = vmatprep.subr.mxu0 0.0
    %4873 = vmatpush1.msra.mxu0 0.0
    %4874 = vmatprep.subr.mxu0 0.0
    %4875 = vmatpush1.msra.mxu0 0.0
    %4876 = vmatprep.subr.mxu0 0.0
    %4877 = vmatpush1.msra.mxu0 0.0
    %4878 = vmatprep.subr.mxu0 0.0
    %4879 = vmatpush1.msra.mxu0 0.0
    %4880 = vmatprep.subr.mxu0 0.0
    %4881 = vmatpush1.msra.mxu0 0.0
    %4882 = vmatprep.subr.mxu0 0.0
    %4883 = vmatpush1.msra.mxu0 0.0
    %4884 = vmatprep.subr.mxu0 0.0
    %4885 = vmatpush1.msra.mxu0 0.0
    %4886 = vmatprep.subr.mxu0 0.0
    %4887 = vmatpush1.msra.mxu0 0.0
    %4888 = vmatprep.subr.mxu0 0.0
    %4889 = vmatpush1.msra.mxu0 0.0
    %4890 = vmatprep.subr.mxu0 0.0
    %4891 = vmatpush1.msra.mxu0 0.0
    %4892 = vmatprep.subr.mxu0 0.0
    %4893 = vmatpush1.msra.mxu0 0.0
    %4894 = vmatprep.subr.mxu0 0.0
    %4895 = vmatpush1.msra.mxu0 0.0
    %4896 = vmatprep.subr.mxu0 0.0
    %4897 = vmatpush1.msra.mxu0 0.0
    %4898 = vmatprep.subr.mxu0 0.0
    %4899 = vmatpush1.msra.mxu0 0.0
    %4900 = vmatprep.subr.mxu0 0.0
    %4901 = vmatpush1.msra.mxu0 0.0
    %4902 = vmatprep.subr.mxu0 0.0
    %4903 = vmatpush1.msra.mxu0 0.0
    %4904 = vmatprep.mubr.f32.mxu0 0.0
    %4905 = vmatmul.mubr.f32.gmra.mrb[0].mxu0 %v4837
    %v4906 = vpop.f32.mrb[0].mxu0
    %v4907 = vadd.f32 0.0, %v4906
    %v4908 = vpop.f32.mrb[0].mxu0
    %v4909 = vadd.f32 0.0, %v4908
    %4910 = vdwg.mxu0
    %4911 = vmatprep.subr.mxu0 0.0
    %4912 = vmatpush1.msra.mxu0 %v3947
    %4913 = vmatprep.subr.mxu0 0.0
    %4914 = vmatpush1.msra.mxu0 %v3950
    %4915 = vmatprep.subr.mxu0 0.0
    %4916 = vmatpush1.msra.mxu0 %v3953
    %4917 = vmatprep.subr.mxu0 0.0
    %4918 = vmatpush1.msra.mxu0 %v3956
    %4919 = vmatprep.subr.mxu0 0.0
    %4920 = vmatpush1.msra.mxu0 %v3959
    %4921 = vmatprep.subr.mxu0 0.0
    %4922 = vmatpush1.msra.mxu0 %v3962
    %4923 = vmatprep.subr.mxu0 0.0
    %4924 = vmatpush1.msra.mxu0 %v3965
    %4925 = vmatprep.subr.mxu0 0.0
    %4926 = vmatpush1.msra.mxu0 %v3968
    %4927 = vmatprep.subr.mxu0 0.0
    %4928 = vmatpush1.msra.mxu0 %v3971
    %4929 = vmatprep.subr.mxu0 0.0
    %4930 = vmatpush1.msra.mxu0 %v3974
    %4931 = vmatprep.subr.mxu0 0.0
    %4932 = vmatpush1.msra.mxu0 %v3977
    %4933 = vmatprep.subr.mxu0 0.0
    %4934 = vmatpush1.msra.mxu0 %v3980
    %4935 = vmatprep.subr.mxu0 0.0
    %4936 = vmatpush1.msra.mxu0 %v3983
    %4937 = vmatprep.subr.mxu0 0.0
    %4938 = vmatpush1.msra.mxu0 %v3986
    %4939 = vmatprep.subr.mxu0 0.0
    %4940 = vmatpush1.msra.mxu0 %v3989
    %4941 = vmatprep.subr.mxu0 0.0
    %4942 = vmatpush1.msra.mxu0 %v3992
    %4943 = vmatprep.subr.mxu0 0.0
    %4944 = vmatpush1.msra.mxu0 0.0
    %4945 = vmatprep.subr.mxu0 0.0
    %4946 = vmatpush1.msra.mxu0 0.0
    %4947 = vmatprep.subr.mxu0 0.0
    %4948 = vmatpush1.msra.mxu0 0.0
    %4949 = vmatprep.subr.mxu0 0.0
    %4950 = vmatpush1.msra.mxu0 0.0
    %4951 = vmatprep.subr.mxu0 0.0
    %4952 = vmatpush1.msra.mxu0 0.0
    %4953 = vmatprep.subr.mxu0 0.0
    %4954 = vmatpush1.msra.mxu0 0.0
    %4955 = vmatprep.subr.mxu0 0.0
    %4956 = vmatpush1.msra.mxu0 0.0
    %4957 = vmatprep.subr.mxu0 0.0
    %4958 = vmatpush1.msra.mxu0 0.0
    %4959 = vmatprep.subr.mxu0 0.0
    %4960 = vmatpush1.msra.mxu0 0.0
    %4961 = vmatprep.subr.mxu0 0.0
    %4962 = vmatpush1.msra.mxu0 0.0
    %4963 = vmatprep.subr.mxu0 0.0
    %4964 = vmatpush1.msra.mxu0 0.0
    %4965 = vmatprep.subr.mxu0 0.0
    %4966 = vmatpush1.msra.mxu0 0.0
    %4967 = vmatprep.subr.mxu0 0.0
    %4968 = vmatpush1.msra.mxu0 0.0
    %4969 = vmatprep.subr.mxu0 0.0
    %4970 = vmatpush1.msra.mxu0 0.0
    %4971 = vmatprep.subr.mxu0 0.0
    %4972 = vmatpush1.msra.mxu0 0.0
    %4973 = vmatprep.subr.mxu0 0.0
    %4974 = vmatpush1.msra.mxu0 0.0
    %4975 = vmatprep.mubr.f32.mxu0 0.0
    %4976 = vmatmul.mubr.f32.gmra.mrb[0].mxu0 %v4837
    %v4977 = vpop.f32.mrb[0].mxu0
    %v4978 = vadd.f32 0.0, %v4977
    %v4979 = vpop.f32.mrb[0].mxu0
    %4980 = vdwg.mxu0
    %v4981 = vld [vmem:[%s1544] sm:$0xff]
    %v4982 = vld [vmem:[%s1544 + $0x8] sm:$0xff]
    %v4983 = vld [vmem:[%s1544 + $0x10] sm:$0xff]
    %v4984 = vadd.f32 %v4981, %v4907
    %v4985 = vxor.u32 %v4984, 2147483648
    %v4986 = vmul.f32 %v4985, 1.442695
    %v4987 = vpow.pop %v4986
    %v4988 = vadd.f32 %v4987, 1.0
    %v4989 = vrcp.pop %v4988
    %v4990 = vmul.f32 1.0, %v4989
    %v4991 = vadd.f32 %v4982, %v4909
    %v4992 = vxor.u32 %v4991, 2147483648
    %v4993 = vmul.f32 %v4992, 1.442695
    %v4994 = vpow.pop %v4993
    %v4995 = vadd.f32 %v4994, 1.0
    %v4996 = vrcp.pop %v4995
    %v4997 = vmul.f32 1.0, %v4996
    %v4998 = vadd.f32 %v4978, %v4157
    %v4999 = vmul.f32 %v4990, %v4998
    %v5000 = vadd.f32 %v4983, %v4999
    %v5001 = vtanh.pop %v5000
    %v5002 = vsub.f32 1.0, %v4997
    %v5003 = vmul.f32 %v5002, %v5001
    %v5004 = vmul.f32 %v4997, %v4837
    %v5005 = vadd.f32 %v5003, %v5004
    %s5006 = scalar_lea.vmem [#allocation4], 40
    %5007 = vst [vmem:[%s5006] sm:$0xff] %v5005
    %5008 = vmatprep.subr.mxu0 %v3946
    %5009 = vmatpush1.msra.mxu0 %v3945
    %5010 = vmatprep.subr.mxu0 %v3949
    %5011 = vmatpush1.msra.mxu0 %v3948
    %5012 = vmatprep.subr.mxu0 %v3952
    %5013 = vmatpush1.msra.mxu0 %v3951
    %5014 = vmatprep.subr.mxu0 %v3955
    %5015 = vmatpush1.msra.mxu0 %v3954
    %5016 = vmatprep.subr.mxu0 %v3958
    %5017 = vmatpush1.msra.mxu0 %v3957
    %5018 = vmatprep.subr.mxu0 %v3961
    %5019 = vmatpush1.msra.mxu0 %v3960
    %5020 = vmatprep.subr.mxu0 %v3964
    %5021 = vmatpush1.msra.mxu0 %v3963
    %5022 = vmatprep.subr.mxu0 %v3967
    %5023 = vmatpush1.msra.mxu0 %v3966
    %5024 = vmatprep.subr.mxu0 %v3970
    %5025 = vmatpush1.msra.mxu0 %v3969
    %5026 = vmatprep.subr.mxu0 %v3973
    %5027 = vmatpush1.msra.mxu0 %v3972
    %5028 = vmatprep.subr.mxu0 %v3976
    %5029 = vmatpush1.msra.mxu0 %v3975
    %5030 = vmatprep.subr.mxu0 %v3979
    %5031 = vmatpush1.msra.mxu0 %v3978
    %5032 = vmatprep.subr.mxu0 %v3982
    %5033 = vmatpush1.msra.mxu0 %v3981
    %5034 = vmatprep.subr.mxu0 %v3985
    %5035 = vmatpush1.msra.mxu0 %v3984
    %5036 = vmatprep.subr.mxu0 %v3988
    %5037 = vmatpush1.msra.mxu0 %v3987
    %5038 = vmatprep.subr.mxu0 %v3991
    %5039 = vmatpush1.msra.mxu0 %v3990
    %5040 = vmatprep.subr.mxu0 0.0
    %5041 = vmatpush1.msra.mxu0 0.0
    %5042 = vmatprep.subr.mxu0 0.0
    %5043 = vmatpush1.msra.mxu0 0.0
    %5044 = vmatprep.subr.mxu0 0.0
    %5045 = vmatpush1.msra.mxu0 0.0
    %5046 = vmatprep.subr.mxu0 0.0
    %5047 = vmatpush1.msra.mxu0 0.0
    %5048 = vmatprep.subr.mxu0 0.0
    %5049 = vmatpush1.msra.mxu0 0.0
    %5050 = vmatprep.subr.mxu0 0.0
    %5051 = vmatpush1.msra.mxu0 0.0
    %5052 = vmatprep.subr.mxu0 0.0
    %5053 = vmatpush1.msra.mxu0 0.0
    %5054 = vmatprep.subr.mxu0 0.0
    %5055 = vmatpush1.msra.mxu0 0.0
    %5056 = vmatprep.subr.mxu0 0.0
    %5057 = vmatpush1.msra.mxu0 0.0
    %5058 = vmatprep.subr.mxu0 0.0
    %5059 = vmatpush1.msra.mxu0 0.0
    %5060 = vmatprep.subr.mxu0 0.0
    %5061 = vmatpush1.msra.mxu0 0.0
    %5062 = vmatprep.subr.mxu0 0.0
    %5063 = vmatpush1.msra.mxu0 0.0
    %5064 = vmatprep.subr.mxu0 0.0
    %5065 = vmatpush1.msra.mxu0 0.0
    %5066 = vmatprep.subr.mxu0 0.0
    %5067 = vmatpush1.msra.mxu0 0.0
    %5068 = vmatprep.subr.mxu0 0.0
    %5069 = vmatpush1.msra.mxu0 0.0
    %5070 = vmatprep.subr.mxu0 0.0
    %5071 = vmatpush1.msra.mxu0 0.0
    %5072 = vmatprep.mubr.f32.mxu0 0.0
    %5073 = vmatmul.mubr.f32.gmra.mrb[0].mxu0 %v5005
    %v5074 = vpop.f32.mrb[0].mxu0
    %v5075 = vadd.f32 0.0, %v5074
    %v5076 = vpop.f32.mrb[0].mxu0
    %v5077 = vadd.f32 0.0, %v5076
    %5078 = vdwg.mxu0
    %5079 = vmatprep.subr.mxu0 0.0
    %5080 = vmatpush1.msra.mxu0 %v3947
    %5081 = vmatprep.subr.mxu0 0.0
    %5082 = vmatpush1.msra.mxu0 %v3950
    %5083 = vmatprep.subr.mxu0 0.0
    %5084 = vmatpush1.msra.mxu0 %v3953
    %5085 = vmatprep.subr.mxu0 0.0
    %5086 = vmatpush1.msra.mxu0 %v3956
    %5087 = vmatprep.subr.mxu0 0.0
    %5088 = vmatpush1.msra.mxu0 %v3959
    %5089 = vmatprep.subr.mxu0 0.0
    %5090 = vmatpush1.msra.mxu0 %v3962
    %5091 = vmatprep.subr.mxu0 0.0
    %5092 = vmatpush1.msra.mxu0 %v3965
    %5093 = vmatprep.subr.mxu0 0.0
    %5094 = vmatpush1.msra.mxu0 %v3968
    %5095 = vmatprep.subr.mxu0 0.0
    %5096 = vmatpush1.msra.mxu0 %v3971
    %5097 = vmatprep.subr.mxu0 0.0
    %5098 = vmatpush1.msra.mxu0 %v3974
    %5099 = vmatprep.subr.mxu0 0.0
    %5100 = vmatpush1.msra.mxu0 %v3977
    %5101 = vmatprep.subr.mxu0 0.0
    %5102 = vmatpush1.msra.mxu0 %v3980
    %5103 = vmatprep.subr.mxu0 0.0
    %5104 = vmatpush1.msra.mxu0 %v3983
    %5105 = vmatprep.subr.mxu0 0.0
    %5106 = vmatpush1.msra.mxu0 %v3986
    %5107 = vmatprep.subr.mxu0 0.0
    %5108 = vmatpush1.msra.mxu0 %v3989
    %5109 = vmatprep.subr.mxu0 0.0
    %5110 = vmatpush1.msra.mxu0 %v3992
    %5111 = vmatprep.subr.mxu0 0.0
    %5112 = vmatpush1.msra.mxu0 0.0
    %5113 = vmatprep.subr.mxu0 0.0
    %5114 = vmatpush1.msra.mxu0 0.0
    %5115 = vmatprep.subr.mxu0 0.0
    %5116 = vmatpush1.msra.mxu0 0.0
    %5117 = vmatprep.subr.mxu0 0.0
    %5118 = vmatpush1.msra.mxu0 0.0
    %5119 = vmatprep.subr.mxu0 0.0
    %5120 = vmatpush1.msra.mxu0 0.0
    %5121 = vmatprep.subr.mxu0 0.0
    %5122 = vmatpush1.msra.mxu0 0.0
    %5123 = vmatprep.subr.mxu0 0.0
    %5124 = vmatpush1.msra.mxu0 0.0
    %5125 = vmatprep.subr.mxu0 0.0
    %5126 = vmatpush1.msra.mxu0 0.0
    %5127 = vmatprep.subr.mxu0 0.0
    %5128 = vmatpush1.msra.mxu0 0.0
    %5129 = vmatprep.subr.mxu0 0.0
    %5130 = vmatpush1.msra.mxu0 0.0
    %5131 = vmatprep.subr.mxu0 0.0
    %5132 = vmatpush1.msra.mxu0 0.0
    %5133 = vmatprep.subr.mxu0 0.0
    %5134 = vmatpush1.msra.mxu0 0.0
    %5135 = vmatprep.subr.mxu0 0.0
    %5136 = vmatpush1.msra.mxu0 0.0
    %5137 = vmatprep.subr.mxu0 0.0
    %5138 = vmatpush1.msra.mxu0 0.0
    %5139 = vmatprep.subr.mxu0 0.0
    %5140 = vmatpush1.msra.mxu0 0.0
    %5141 = vmatprep.subr.mxu0 0.0
    %5142 = vmatpush1.msra.mxu0 0.0
    %5143 = vmatprep.mubr.f32.mxu0 0.0
    %5144 = vmatmul.mubr.f32.gmra.mrb[0].mxu0 %v5005
    %v5145 = vpop.f32.mrb[0].mxu0
    %v5146 = vadd.f32 0.0, %v5145
    %v5147 = vpop.f32.mrb[0].mxu0
    %5148 = vdwg.mxu0
    %v5149 = vld [vmem:[%s1715] sm:$0xff]
    %v5150 = vld [vmem:[%s1715 + $0x8] sm:$0xff]
    %v5151 = vld [vmem:[%s1715 + $0x10] sm:$0xff]
    %v5152 = vadd.f32 %v5149, %v5075
    %v5153 = vxor.u32 %v5152, 2147483648
    %v5154 = vmul.f32 %v5153, 1.442695
    %v5155 = vpow.pop %v5154
    %v5156 = vadd.f32 %v5155, 1.0
    %v5157 = vrcp.pop %v5156
    %v5158 = vmul.f32 1.0, %v5157
    %v5159 = vadd.f32 %v5150, %v5077
    %v5160 = vxor.u32 %v5159, 2147483648
    %v5161 = vmul.f32 %v5160, 1.442695
    %v5162 = vpow.pop %v5161
    %v5163 = vadd.f32 %v5162, 1.0
    %v5164 = vrcp.pop %v5163
    %v5165 = vmul.f32 1.0, %v5164
    %v5166 = vadd.f32 %v5146, %v4157
    %v5167 = vmul.f32 %v5158, %v5166
    %v5168 = vadd.f32 %v5151, %v5167
    %v5169 = vtanh.pop %v5168
    %v5170 = vsub.f32 1.0, %v5165
    %v5171 = vmul.f32 %v5170, %v5169
    %v5172 = vmul.f32 %v5165, %v5005
    %v5173 = vadd.f32 %v5171, %v5172
    %s5174 = scalar_lea.vmem [#allocation4], 48
    %5175 = vst [vmem:[%s5174] sm:$0xff] %v5173
    %5176 = vmatprep.subr.mxu0 %v3946
    %5177 = vmatpush1.msra.mxu0 %v3945
    %5178 = vmatprep.subr.mxu0 %v3949
    %5179 = vmatpush1.msra.mxu0 %v3948
    %5180 = vmatprep.subr.mxu0 %v3952
    %5181 = vmatpush1.msra.mxu0 %v3951
    %5182 = vmatprep.subr.mxu0 %v3955
    %5183 = vmatpush1.msra.mxu0 %v3954
    %5184 = vmatprep.subr.mxu0 %v3958
    %5185 = vmatpush1.msra.mxu0 %v3957
    %5186 = vmatprep.subr.mxu0 %v3961
    %5187 = vmatpush1.msra.mxu0 %v3960
    %5188 = vmatprep.subr.mxu0 %v3964
    %5189 = vmatpush1.msra.mxu0 %v3963
    %5190 = vmatprep.subr.mxu0 %v3967
    %5191 = vmatpush1.msra.mxu0 %v3966
    %5192 = vmatprep.subr.mxu0 %v3970
    %5193 = vmatpush1.msra.mxu0 %v3969
    %5194 = vmatprep.subr.mxu0 %v3973
    %5195 = vmatpush1.msra.mxu0 %v3972
    %5196 = vmatprep.subr.mxu0 %v3976
    %5197 = vmatpush1.msra.mxu0 %v3975
    %5198 = vmatprep.subr.mxu0 %v3979
    %5199 = vmatpush1.msra.mxu0 %v3978
    %5200 = vmatprep.subr.mxu0 %v3982
    %5201 = vmatpush1.msra.mxu0 %v3981
    %5202 = vmatprep.subr.mxu0 %v3985
    %5203 = vmatpush1.msra.mxu0 %v3984
    %5204 = vmatprep.subr.mxu0 %v3988
    %5205 = vmatpush1.msra.mxu0 %v3987
    %5206 = vmatprep.subr.mxu0 %v3991
    %5207 = vmatpush1.msra.mxu0 %v3990
    %5208 = vmatprep.subr.mxu0 0.0
    %5209 = vmatpush1.msra.mxu0 0.0
    %5210 = vmatprep.subr.mxu0 0.0
    %5211 = vmatpush1.msra.mxu0 0.0
    %5212 = vmatprep.subr.mxu0 0.0
    %5213 = vmatpush1.msra.mxu0 0.0
    %5214 = vmatprep.subr.mxu0 0.0
    %5215 = vmatpush1.msra.mxu0 0.0
    %5216 = vmatprep.subr.mxu0 0.0
    %5217 = vmatpush1.msra.mxu0 0.0
    %5218 = vmatprep.subr.mxu0 0.0
    %5219 = vmatpush1.msra.mxu0 0.0
    %5220 = vmatprep.subr.mxu0 0.0
    %5221 = vmatpush1.msra.mxu0 0.0
    %5222 = vmatprep.subr.mxu0 0.0
    %5223 = vmatpush1.msra.mxu0 0.0
    %5224 = vmatprep.subr.mxu0 0.0
    %5225 = vmatpush1.msra.mxu0 0.0
    %5226 = vmatprep.subr.mxu0 0.0
    %5227 = vmatpush1.msra.mxu0 0.0
    %5228 = vmatprep.subr.mxu0 0.0
    %5229 = vmatpush1.msra.mxu0 0.0
    %5230 = vmatprep.subr.mxu0 0.0
    %5231 = vmatpush1.msra.mxu0 0.0
    %5232 = vmatprep.subr.mxu0 0.0
    %5233 = vmatpush1.msra.mxu0 0.0
    %5234 = vmatprep.subr.mxu0 0.0
    %5235 = vmatpush1.msra.mxu0 0.0
    %5236 = vmatprep.subr.mxu0 0.0
    %5237 = vmatpush1.msra.mxu0 0.0
    %5238 = vmatprep.subr.mxu0 0.0
    %5239 = vmatpush1.msra.mxu0 0.0
    %5240 = vmatprep.mubr.f32.mxu0 0.0
    %5241 = vmatmul.mubr.f32.gmra.mrb[0].mxu0 %v5173
    %v5242 = vpop.f32.mrb[0].mxu0
    %v5243 = vadd.f32 0.0, %v5242
    %v5244 = vpop.f32.mrb[0].mxu0
    %v5245 = vadd.f32 0.0, %v5244
    %5246 = vdwg.mxu0
    %5247 = vmatprep.subr.mxu0 0.0
    %5248 = vmatpush1.msra.mxu0 %v3947
    %5249 = vmatprep.subr.mxu0 0.0
    %5250 = vmatpush1.msra.mxu0 %v3950
    %5251 = vmatprep.subr.mxu0 0.0
    %5252 = vmatpush1.msra.mxu0 %v3953
    %5253 = vmatprep.subr.mxu0 0.0
    %5254 = vmatpush1.msra.mxu0 %v3956
    %5255 = vmatprep.subr.mxu0 0.0
    %5256 = vmatpush1.msra.mxu0 %v3959
    %5257 = vmatprep.subr.mxu0 0.0
    %5258 = vmatpush1.msra.mxu0 %v3962
    %5259 = vmatprep.subr.mxu0 0.0
    %5260 = vmatpush1.msra.mxu0 %v3965
    %5261 = vmatprep.subr.mxu0 0.0
    %5262 = vmatpush1.msra.mxu0 %v3968
    %5263 = vmatprep.subr.mxu0 0.0
    %5264 = vmatpush1.msra.mxu0 %v3971
    %5265 = vmatprep.subr.mxu0 0.0
    %5266 = vmatpush1.msra.mxu0 %v3974
    %5267 = vmatprep.subr.mxu0 0.0
    %5268 = vmatpush1.msra.mxu0 %v3977
    %5269 = vmatprep.subr.mxu0 0.0
    %5270 = vmatpush1.msra.mxu0 %v3980
    %5271 = vmatprep.subr.mxu0 0.0
    %5272 = vmatpush1.msra.mxu0 %v3983
    %5273 = vmatprep.subr.mxu0 0.0
    %5274 = vmatpush1.msra.mxu0 %v3986
    %5275 = vmatprep.subr.mxu0 0.0
    %5276 = vmatpush1.msra.mxu0 %v3989
    %5277 = vmatprep.subr.mxu0 0.0
    %5278 = vmatpush1.msra.mxu0 %v3992
    %5279 = vmatprep.subr.mxu0 0.0
    %5280 = vmatpush1.msra.mxu0 0.0
    %5281 = vmatprep.subr.mxu0 0.0
    %5282 = vmatpush1.msra.mxu0 0.0
    %5283 = vmatprep.subr.mxu0 0.0
    %5284 = vmatpush1.msra.mxu0 0.0
    %5285 = vmatprep.subr.mxu0 0.0
    %5286 = vmatpush1.msra.mxu0 0.0
    %5287 = vmatprep.subr.mxu0 0.0
    %5288 = vmatpush1.msra.mxu0 0.0
    %5289 = vmatprep.subr.mxu0 0.0
    %5290 = vmatpush1.msra.mxu0 0.0
    %5291 = vmatprep.subr.mxu0 0.0
    %5292 = vmatpush1.msra.mxu0 0.0
    %5293 = vmatprep.subr.mxu0 0.0
    %5294 = vmatpush1.msra.mxu0 0.0
    %5295 = vmatprep.subr.mxu0 0.0
    %5296 = vmatpush1.msra.mxu0 0.0
    %5297 = vmatprep.subr.mxu0 0.0
    %5298 = vmatpush1.msra.mxu0 0.0
    %5299 = vmatprep.subr.mxu0 0.0
    %5300 = vmatpush1.msra.mxu0 0.0
    %5301 = vmatprep.subr.mxu0 0.0
    %5302 = vmatpush1.msra.mxu0 0.0
    %5303 = vmatprep.subr.mxu0 0.0
    %5304 = vmatpush1.msra.mxu0 0.0
    %5305 = vmatprep.subr.mxu0 0.0
    %5306 = vmatpush1.msra.mxu0 0.0
    %5307 = vmatprep.subr.mxu0 0.0
    %5308 = vmatpush1.msra.mxu0 0.0
    %5309 = vmatprep.subr.mxu0 0.0
    %5310 = vmatpush1.msra.mxu0 0.0
    %5311 = vmatprep.mubr.f32.mxu0 0.0
    %5312 = vmatmul.mubr.f32.gmra.mrb[0].mxu0 %v5173
    %v5313 = vpop.f32.mrb[0].mxu0
    %v5314 = vadd.f32 0.0, %v5313
    %v5315 = vpop.f32.mrb[0].mxu0
    %5316 = vdwg.mxu0
    %v5317 = vld [vmem:[%s1886] sm:$0xff]
    %v5318 = vld [vmem:[%s1886 + $0x8] sm:$0xff]
    %v5319 = vld [vmem:[%s1886 + $0x10] sm:$0xff]
    %v5320 = vadd.f32 %v5317, %v5243
    %v5321 = vxor.u32 %v5320, 2147483648
    %v5322 = vmul.f32 %v5321, 1.442695
    %v5323 = vpow.pop %v5322
    %v5324 = vadd.f32 %v5323, 1.0
    %v5325 = vrcp.pop %v5324
    %v5326 = vmul.f32 1.0, %v5325
    %v5327 = vadd.f32 %v5318, %v5245
    %v5328 = vxor.u32 %v5327, 2147483648
    %v5329 = vmul.f32 %v5328, 1.442695
    %v5330 = vpow.pop %v5329
    %v5331 = vadd.f32 %v5330, 1.0
    %v5332 = vrcp.pop %v5331
    %v5333 = vmul.f32 1.0, %v5332
    %v5334 = vadd.f32 %v5314, %v4157
    %v5335 = vmul.f32 %v5326, %v5334
    %v5336 = vadd.f32 %v5319, %v5335
    %v5337 = vtanh.pop %v5336
    %v5338 = vsub.f32 1.0, %v5333
    %v5339 = vmul.f32 %v5338, %v5337
    %v5340 = vmul.f32 %v5333, %v5173
    %v5341 = vadd.f32 %v5339, %v5340
    %s5342 = scalar_lea.vmem [#allocation4], 56
    %5343 = vst [vmem:[%s5342] sm:$0xff] %v5341
    %5344 = vst [vmem:[#allocation9] sm:$0xff] %v5341
    %v5345 = vld [vmem:[#allocation4] sm:$0xff]
    %v5346 = vld [vmem:[#allocation4 + $0x8] sm:$0xff]
    %v5347 = vld [vmem:[#allocation4 + $0x10] sm:$0xff]
    %v5348 = vld [vmem:[#allocation4 + $0x18] sm:$0xff]
    %v5349 = vld [vmem:[#allocation4 + $0x20] sm:$0xff]
    %v5350 = vld [vmem:[#allocation4 + $0x28] sm:$0xff]
    %v5351 = vld [vmem:[#allocation4 + $0x30] sm:$0xff]
    %v5352 = vld [vmem:[#allocation4 + $0x38] sm:$0xff]
    %v5353 = vld [vmem:[#allocation21] sm:$0xff]
    %v5354 = vld [vmem:[#allocation21 + $0x8] sm:$0xff]
    %v5355 = vld [vmem:[#allocation21 + $0x10] sm:$0xff]
    %v5356 = vld [vmem:[#allocation21 + $0x18] sm:$0xff]
    %v5357 = vld [vmem:[#allocation21 + $0x20] sm:$0xff]
    %v5358 = vld [vmem:[#allocation21 + $0x28] sm:$0xff]
    %v5359 = vld [vmem:[#allocation21 + $0x30] sm:$0xff]
    %v5360 = vld [vmem:[#allocation21 + $0x38] sm:$0xff]
    %v5361 = vld [vmem:[#allocation21 + $0x40] sm:$0xff]
    %v5362 = vld [vmem:[#allocation21 + $0x48] sm:$0xff]
    %v5363 = vld [vmem:[#allocation21 + $0x50] sm:$0xff]
    %v5364 = vld [vmem:[#allocation21 + $0x58] sm:$0xff]
    %v5365 = vld [vmem:[#allocation21 + $0x60] sm:$0xff]
    %v5366 = vld [vmem:[#allocation21 + $0x68] sm:$0xff]
    %v5367 = vld [vmem:[#allocation21 + $0x70] sm:$0xff]
    %v5368 = vld [vmem:[#allocation21 + $0x78] sm:$0xff]
    %v5369 = vld [vmem:[#allocation21 + $0x80] sm:$0xff]
    %v5370 = vld [vmem:[#allocation21 + $0x88] sm:$0xff]
    %v5371 = vld [vmem:[#allocation21 + $0x90] sm:$0xff]
    %v5372 = vld [vmem:[#allocation21 + $0x98] sm:$0xff]
    %v5373 = vld [vmem:[#allocation21 + $0xa0] sm:$0xff]
    %v5374 = vld [vmem:[#allocation21 + $0xa8] sm:$0xff]
    %v5375 = vld [vmem:[#allocation21 + $0xb0] sm:$0xff]
    %v5376 = vld [vmem:[#allocation21 + $0xb8] sm:$0xff]
    %v5377 = vld [vmem:[#allocation21 + $0xc0] sm:$0xff]
    %v5378 = vld [vmem:[#allocation21 + $0xc8] sm:$0xff]
    %v5379 = vld [vmem:[#allocation21 + $0xd0] sm:$0xff]
    %v5380 = vld [vmem:[#allocation21 + $0xd8] sm:$0xff]
    %v5381 = vld [vmem:[#allocation21 + $0xe0] sm:$0xff]
    %v5382 = vld [vmem:[#allocation21 + $0xe8] sm:$0xff]
    %v5383 = vld [vmem:[#allocation21 + $0xf0] sm:$0xff]
    %v5384 = vld [vmem:[#allocation21 + $0xf8] sm:$0xff]
    %v5385 = vld [vmem:[#allocation21 + $0x100] sm:$0xff]
    %v5386 = vld [vmem:[#allocation21 + $0x108] sm:$0xff]
    %v5387 = vld [vmem:[#allocation21 + $0x110] sm:$0xff]
    %v5388 = vld [vmem:[#allocation21 + $0x118] sm:$0xff]
    %v5389 = vld [vmem:[#allocation21 + $0x120] sm:$0xff]
    %v5390 = vld [vmem:[#allocation21 + $0x128] sm:$0xff]
    %v5391 = vld [vmem:[#allocation21 + $0x130] sm:$0xff]
    %v5392 = vld [vmem:[#allocation21 + $0x138] sm:$0xff]
    %v5393 = vld [vmem:[#allocation21 + $0x140] sm:$0xff]
    %v5394 = vld [vmem:[#allocation21 + $0x148] sm:$0xff]
    %v5395 = vld [vmem:[#allocation21 + $0x150] sm:$0xff]
    %v5396 = vld [vmem:[#allocation21 + $0x158] sm:$0xff]
    %v5397 = vld [vmem:[#allocation21 + $0x160] sm:$0xff]
    %v5398 = vld [vmem:[#allocation21 + $0x168] sm:$0xff]
    %v5399 = vld [vmem:[#allocation21 + $0x170] sm:$0xff]
    %v5400 = vld [vmem:[#allocation21 + $0x178] sm:$0xff]
    %v5401 = vld [vmem:[%s15] sm:$0x7]
    %v5403 = vlaneseq
    %v5404 = vshrl.u32 %v5403, 7
    %v5405 = vsub.s32 0, %v5404
    %v5406 = vrot.slane %v5401, %v5405
    %v5407 = vlaneseq
    %v5408 = vshrl.u32 %v5407, 7
    %v5409 = vsub.s32 1, %v5408
    %v5410 = vrot.slane %v5401, %v5409
    %v5411 = vlaneseq
    %v5412 = vshrl.u32 %v5411, 7
    %v5413 = vsub.s32 2, %v5412
    %v5414 = vrot.slane %v5401, %v5413
    %5418 = vmatprep.subr.mxu0 %v5354
    %5419 = vmatpush1.msra.mxu0 %v5353
    %5420 = vmatprep.subr.mxu0 %v5357
    %5421 = vmatpush1.msra.mxu0 %v5356
    %5422 = vmatprep.subr.mxu0 %v5360
    %5423 = vmatpush1.msra.mxu0 %v5359
    %5424 = vmatprep.subr.mxu0 %v5363
    %5425 = vmatpush1.msra.mxu0 %v5362
    %5426 = vmatprep.subr.mxu0 %v5366
    %5427 = vmatpush1.msra.mxu0 %v5365
    %5428 = vmatprep.subr.mxu0 %v5369
    %5429 = vmatpush1.msra.mxu0 %v5368
    %5430 = vmatprep.subr.mxu0 %v5372
    %5431 = vmatpush1.msra.mxu0 %v5371
    %5432 = vmatprep.subr.mxu0 %v5375
    %5433 = vmatpush1.msra.mxu0 %v5374
    %5434 = vmatprep.subr.mxu0 %v5378
    %5435 = vmatpush1.msra.mxu0 %v5377
    %5436 = vmatprep.subr.mxu0 %v5381
    %5437 = vmatpush1.msra.mxu0 %v5380
    %5438 = vmatprep.subr.mxu0 %v5384
    %5439 = vmatpush1.msra.mxu0 %v5383
    %5440 = vmatprep.subr.mxu0 %v5387
    %5441 = vmatpush1.msra.mxu0 %v5386
    %5442 = vmatprep.subr.mxu0 %v5390
    %5443 = vmatpush1.msra.mxu0 %v5389
    %5444 = vmatprep.subr.mxu0 %v5393
    %5445 = vmatpush1.msra.mxu0 %v5392
    %5446 = vmatprep.subr.mxu0 %v5396
    %5447 = vmatpush1.msra.mxu0 %v5395
    %5448 = vmatprep.subr.mxu0 %v5399
    %5449 = vmatpush1.msra.mxu0 %v5398
    %5450 = vmatprep.subr.mxu0 0.0
    %5451 = vmatpush1.msra.mxu0 0.0
    %5452 = vmatprep.subr.mxu0 0.0
    %5453 = vmatpush1.msra.mxu0 0.0
    %5454 = vmatprep.subr.mxu0 0.0
    %5455 = vmatpush1.msra.mxu0 0.0
    %5456 = vmatprep.subr.mxu0 0.0
    %5457 = vmatpush1.msra.mxu0 0.0
    %5458 = vmatprep.subr.mxu0 0.0
    %5459 = vmatpush1.msra.mxu0 0.0
    %5460 = vmatprep.subr.mxu0 0.0
    %5461 = vmatpush1.msra.mxu0 0.0
    %5462 = vmatprep.subr.mxu0 0.0
    %5463 = vmatpush1.msra.mxu0 0.0
    %5464 = vmatprep.subr.mxu0 0.0
    %5465 = vmatpush1.msra.mxu0 0.0
    %5466 = vmatprep.subr.mxu0 0.0
    %5467 = vmatpush1.msra.mxu0 0.0
    %5468 = vmatprep.subr.mxu0 0.0
    %5469 = vmatpush1.msra.mxu0 0.0
    %5470 = vmatprep.subr.mxu0 0.0
    %5471 = vmatpush1.msra.mxu0 0.0
    %5472 = vmatprep.subr.mxu0 0.0
    %5473 = vmatpush1.msra.mxu0 0.0
    %5474 = vmatprep.subr.mxu0 0.0
    %5475 = vmatpush1.msra.mxu0 0.0
    %5476 = vmatprep.subr.mxu0 0.0
    %5477 = vmatpush1.msra.mxu0 0.0
    %5478 = vmatprep.subr.mxu0 0.0
    %5479 = vmatpush1.msra.mxu0 0.0
    %5480 = vmatprep.subr.mxu0 0.0
    %5481 = vmatpush1.msra.mxu0 0.0
    %5482 = vmatprep.mubr.f32.mxu0 0.0
    %5483 = vmatmul.mubr.f32.gmra.mrb[0].mxu0 %v5345
    %v5484 = vpop.f32.mrb[0].mxu0
    %v5485 = vadd.f32 %v5406, %v5484
    %v5486 = vpop.f32.mrb[0].mxu0
    %v5487 = vadd.f32 %v5410, %v5486
    %5488 = vmatprep.mubr.f32.mxu0 0.0
    %5489 = vmatmul.mubr.f32.gmra.mrb[0].mxu0 %v5346
    %v5490 = vpop.f32.mrb[0].mxu0
    %v5491 = vadd.f32 %v5406, %v5490
    %v5492 = vpop.f32.mrb[0].mxu0
    %v5493 = vadd.f32 %v5410, %v5492
    %5494 = vmatprep.mubr.f32.mxu0 0.0
    %5495 = vmatmul.mubr.f32.gmra.mrb[0].mxu0 %v5347
    %v5496 = vpop.f32.mrb[0].mxu0
    %v5497 = vadd.f32 %v5406, %v5496
    %v5498 = vpop.f32.mrb[0].mxu0
    %v5499 = vadd.f32 %v5410, %v5498
    %5500 = vmatprep.mubr.f32.mxu0 0.0
    %5501 = vmatmul.mubr.f32.gmra.mrb[0].mxu0 %v5348
    %v5502 = vpop.f32.mrb[0].mxu0
    %v5503 = vadd.f32 %v5406, %v5502
    %v5504 = vpop.f32.mrb[0].mxu0
    %v5505 = vadd.f32 %v5410, %v5504
    %5506 = vmatprep.mubr.f32.mxu0 0.0
    %5507 = vmatmul.mubr.f32.gmra.mrb[0].mxu0 %v5349
    %v5508 = vpop.f32.mrb[0].mxu0
    %v5509 = vadd.f32 %v5406, %v5508
    %v5510 = vpop.f32.mrb[0].mxu0
    %v5511 = vadd.f32 %v5410, %v5510
    %5512 = vmatprep.mubr.f32.mxu0 0.0
    %5513 = vmatmul.mubr.f32.gmra.mrb[0].mxu0 %v5350
    %v5514 = vpop.f32.mrb[0].mxu0
    %v5515 = vadd.f32 %v5406, %v5514
    %v5516 = vpop.f32.mrb[0].mxu0
    %v5517 = vadd.f32 %v5410, %v5516
    %5518 = vmatprep.mubr.f32.mxu0 0.0
    %5519 = vmatmul.mubr.f32.gmra.mrb[0].mxu0 %v5351
    %v5520 = vpop.f32.mrb[0].mxu0
    %v5521 = vadd.f32 %v5406, %v5520
    %v5522 = vpop.f32.mrb[0].mxu0
    %v5523 = vadd.f32 %v5410, %v5522
    %5524 = vmatprep.mubr.f32.mxu0 0.0
    %5525 = vmatmul.mubr.f32.gmra.mrb[0].mxu0 %v5352
    %v5526 = vpop.f32.mrb[0].mxu0
    %v5527 = vadd.f32 %v5406, %v5526
    %v5528 = vpop.f32.mrb[0].mxu0
    %v5529 = vadd.f32 %v5410, %v5528
    %5530 = vdwg.mxu0
    %5531 = vmatprep.subr.mxu0 0.0
    %5532 = vmatpush1.msra.mxu0 %v5355
    %5533 = vmatprep.subr.mxu0 0.0
    %5534 = vmatpush1.msra.mxu0 %v5358
    %5535 = vmatprep.subr.mxu0 0.0
    %5536 = vmatpush1.msra.mxu0 %v5361
    %5537 = vmatprep.subr.mxu0 0.0
    %5538 = vmatpush1.msra.mxu0 %v5364
    %5539 = vmatprep.subr.mxu0 0.0
    %5540 = vmatpush1.msra.mxu0 %v5367
    %5541 = vmatprep.subr.mxu0 0.0
    %5542 = vmatpush1.msra.mxu0 %v5370
    %5543 = vmatprep.subr.mxu0 0.0
    %5544 = vmatpush1.msra.mxu0 %v5373
    %5545 = vmatprep.subr.mxu0 0.0
    %5546 = vmatpush1.msra.mxu0 %v5376
    %5547 = vmatprep.subr.mxu0 0.0
    %5548 = vmatpush1.msra.mxu0 %v5379
    %5549 = vmatprep.subr.mxu0 0.0
    %5550 = vmatpush1.msra.mxu0 %v5382
    %5551 = vmatprep.subr.mxu0 0.0
    %5552 = vmatpush1.msra.mxu0 %v5385
    %5553 = vmatprep.subr.mxu0 0.0
    %5554 = vmatpush1.msra.mxu0 %v5388
    %5555 = vmatprep.subr.mxu0 0.0
    %5556 = vmatpush1.msra.mxu0 %v5391
    %5557 = vmatprep.subr.mxu0 0.0
    %5558 = vmatpush1.msra.mxu0 %v5394
    %5559 = vmatprep.subr.mxu0 0.0
    %5560 = vmatpush1.msra.mxu0 %v5397
    %5561 = vmatprep.subr.mxu0 0.0
    %5562 = vmatpush1.msra.mxu0 %v5400
    %5563 = vmatprep.subr.mxu0 0.0
    %5564 = vmatpush1.msra.mxu0 0.0
    %5565 = vmatprep.subr.mxu0 0.0
    %5566 = vmatpush1.msra.mxu0 0.0
    %5567 = vmatprep.subr.mxu0 0.0
    %5568 = vmatpush1.msra.mxu0 0.0
    %5569 = vmatprep.subr.mxu0 0.0
    %5570 = vmatpush1.msra.mxu0 0.0
    %5571 = vmatprep.subr.mxu0 0.0
    %5572 = vmatpush1.msra.mxu0 0.0
    %5573 = vmatprep.subr.mxu0 0.0
    %5574 = vmatpush1.msra.mxu0 0.0
    %5575 = vmatprep.subr.mxu0 0.0
    %5576 = vmatpush1.msra.mxu0 0.0
    %5577 = vmatprep.subr.mxu0 0.0
    %5578 = vmatpush1.msra.mxu0 0.0
    %5579 = vmatprep.subr.mxu0 0.0
    %5580 = vmatpush1.msra.mxu0 0.0
    %5581 = vmatprep.subr.mxu0 0.0
    %5582 = vmatpush1.msra.mxu0 0.0
    %5583 = vmatprep.subr.mxu0 0.0
    %5584 = vmatpush1.msra.mxu0 0.0
    %5585 = vmatprep.subr.mxu0 0.0
    %5586 = vmatpush1.msra.mxu0 0.0
    %5587 = vmatprep.subr.mxu0 0.0
    %5588 = vmatpush1.msra.mxu0 0.0
    %5589 = vmatprep.subr.mxu0 0.0
    %5590 = vmatpush1.msra.mxu0 0.0
    %5591 = vmatprep.subr.mxu0 0.0
    %5592 = vmatpush1.msra.mxu0 0.0
    %5593 = vmatprep.subr.mxu0 0.0
    %5594 = vmatpush1.msra.mxu0 0.0
    %5595 = vmatprep.mubr.f32.mxu0 0.0
    %5596 = vmatmul.mubr.f32.gmra.mrb[0].mxu0 %v5345
    %v5597 = vpop.f32.mrb[0].mxu0
    %v5598 = vadd.f32 %v5414, %v5597
    %v5599 = vpop.f32.mrb[0].mxu0
    %5600 = vmatprep.mubr.f32.mxu0 0.0
    %5601 = vmatmul.mubr.f32.gmra.mrb[0].mxu0 %v5346
    %v5602 = vpop.f32.mrb[0].mxu0
    %v5603 = vadd.f32 %v5414, %v5602
    %v5604 = vpop.f32.mrb[0].mxu0
    %5605 = vmatprep.mubr.f32.mxu0 0.0
    %5606 = vmatmul.mubr.f32.gmra.mrb[0].mxu0 %v5347
    %v5607 = vpop.f32.mrb[0].mxu0
    %v5608 = vadd.f32 %v5414, %v5607
    %v5609 = vpop.f32.mrb[0].mxu0
    %5610 = vmatprep.mubr.f32.mxu0 0.0
    %5611 = vmatmul.mubr.f32.gmra.mrb[0].mxu0 %v5348
    %v5612 = vpop.f32.mrb[0].mxu0
    %v5613 = vadd.f32 %v5414, %v5612
    %v5614 = vpop.f32.mrb[0].mxu0
    %5615 = vmatprep.mubr.f32.mxu0 0.0
    %5616 = vmatmul.mubr.f32.gmra.mrb[0].mxu0 %v5349
    %v5617 = vpop.f32.mrb[0].mxu0
    %v5618 = vadd.f32 %v5414, %v5617
    %v5619 = vpop.f32.mrb[0].mxu0
    %5620 = vmatprep.mubr.f32.mxu0 0.0
    %5621 = vmatmul.mubr.f32.gmra.mrb[0].mxu0 %v5350
    %v5622 = vpop.f32.mrb[0].mxu0
    %v5623 = vadd.f32 %v5414, %v5622
    %v5624 = vpop.f32.mrb[0].mxu0
    %5625 = vmatprep.mubr.f32.mxu0 0.0
    %5626 = vmatmul.mubr.f32.gmra.mrb[0].mxu0 %v5351
    %v5627 = vpop.f32.mrb[0].mxu0
    %v5628 = vadd.f32 %v5414, %v5627
    %v5629 = vpop.f32.mrb[0].mxu0
    %5630 = vmatprep.mubr.f32.mxu0 0.0
    %5631 = vmatmul.mubr.f32.gmra.mrb[0].mxu0 %v5352
    %v5632 = vpop.f32.mrb[0].mxu0
    %v5633 = vadd.f32 %v5414, %v5632
    %v5634 = vpop.f32.mrb[0].mxu0
    %5635 = vdwg.mxu0
    %5636 = vst [vmem:[#allocation6] sm:$0xff] %v5485
    %5637 = vst [vmem:[#allocation6 + $0x8] sm:$0xff] %v5487
    %5638 = vst [vmem:[#allocation6 + $0x10] sm:$0xff] %v5598
    %5639 = vst [vmem:[#allocation6 + $0x18] sm:$0xff] %v5491
    %5640 = vst [vmem:[#allocation6 + $0x20] sm:$0xff] %v5493
    %5641 = vst [vmem:[#allocation6 + $0x28] sm:$0xff] %v5603
    %5642 = vst [vmem:[#allocation6 + $0x30] sm:$0xff] %v5497
    %5643 = vst [vmem:[#allocation6 + $0x38] sm:$0xff] %v5499
    %5644 = vst [vmem:[#allocation6 + $0x40] sm:$0xff] %v5608
    %5645 = vst [vmem:[#allocation6 + $0x48] sm:$0xff] %v5503
    %5646 = vst [vmem:[#allocation6 + $0x50] sm:$0xff] %v5505
    %5647 = vst [vmem:[#allocation6 + $0x58] sm:$0xff] %v5613
    %5648 = vst [vmem:[#allocation6 + $0x60] sm:$0xff] %v5509
    %5649 = vst [vmem:[#allocation6 + $0x68] sm:$0xff] %v5511
    %5650 = vst [vmem:[#allocation6 + $0x70] sm:$0xff] %v5618
    %5651 = vst [vmem:[#allocation6 + $0x78] sm:$0xff] %v5515
    %5652 = vst [vmem:[#allocation6 + $0x80] sm:$0xff] %v5517
    %5653 = vst [vmem:[#allocation6 + $0x88] sm:$0xff] %v5623
    %5654 = vst [vmem:[#allocation6 + $0x90] sm:$0xff] %v5521
    %5655 = vst [vmem:[#allocation6 + $0x98] sm:$0xff] %v5523
    %5656 = vst [vmem:[#allocation6 + $0xa0] sm:$0xff] %v5628
    %5657 = vst [vmem:[#allocation6 + $0xa8] sm:$0xff] %v5527
    %5658 = vst [vmem:[#allocation6 + $0xb0] sm:$0xff] %v5529
    %5659 = vst [vmem:[#allocation6 + $0xb8] sm:$0xff] %v5633
    %v5660 = vld [vmem:[#allocation22] sm:$0xff]
    %v5661 = vld [vmem:[#allocation22 + $0x8] sm:$0xff]
    %v5662 = vld [vmem:[#allocation22 + $0x10] sm:$0xff]
    %v5663 = vld [vmem:[#allocation22 + $0x18] sm:$0xff]
    %v5664 = vld [vmem:[#allocation22 + $0x20] sm:$0xff]
    %v5665 = vld [vmem:[#allocation22 + $0x28] sm:$0xff]
    %v5666 = vld [vmem:[#allocation22 + $0x30] sm:$0xff]
    %v5667 = vld [vmem:[#allocation22 + $0x38] sm:$0xff]
    %v5668 = vld [vmem:[#allocation22 + $0x40] sm:$0xff]
    %v5669 = vld [vmem:[#allocation22 + $0x48] sm:$0xff]
    %v5670 = vld [vmem:[#allocation22 + $0x50] sm:$0xff]
    %v5671 = vld [vmem:[#allocation22 + $0x58] sm:$0xff]
    %v5672 = vld [vmem:[#allocation22 + $0x60] sm:$0xff]
    %v5673 = vld [vmem:[#allocation22 + $0x68] sm:$0xff]
    %v5674 = vld [vmem:[#allocation22 + $0x70] sm:$0xff]
    %v5675 = vld [vmem:[#allocation22 + $0x78] sm:$0xff]
    %v5676 = vld [vmem:[#allocation22 + $0x80] sm:$0xff]
    %v5677 = vld [vmem:[#allocation22 + $0x88] sm:$0xff]
    %v5678 = vld [vmem:[#allocation22 + $0x90] sm:$0xff]
    %v5679 = vld [vmem:[#allocation22 + $0x98] sm:$0xff]
    %v5680 = vld [vmem:[#allocation22 + $0xa0] sm:$0xff]
    %v5681 = vld [vmem:[#allocation22 + $0xa8] sm:$0xff]
    %v5682 = vld [vmem:[#allocation22 + $0xb0] sm:$0xff]
    %v5683 = vld [vmem:[#allocation22 + $0xb8] sm:$0xff]
    %v5684 = vld [vmem:[#allocation22 + $0xc0] sm:$0xff]
    %v5685 = vld [vmem:[#allocation22 + $0xc8] sm:$0xff]
    %v5686 = vld [vmem:[#allocation22 + $0xd0] sm:$0xff]
    %v5687 = vld [vmem:[#allocation22 + $0xd8] sm:$0xff]
    %v5688 = vld [vmem:[#allocation22 + $0xe0] sm:$0xff]
    %v5689 = vld [vmem:[#allocation22 + $0xe8] sm:$0xff]
    %v5690 = vld [vmem:[#allocation22 + $0xf0] sm:$0xff]
    %v5691 = vld [vmem:[#allocation22 + $0xf8] sm:$0xff]
    %v5692 = vld [vmem:[#allocation22 + $0x100] sm:$0xff]
    %v5693 = vld [vmem:[#allocation22 + $0x108] sm:$0xff]
    %v5694 = vld [vmem:[#allocation22 + $0x110] sm:$0xff]
    %v5695 = vld [vmem:[#allocation22 + $0x118] sm:$0xff]
    %v5696 = vld [vmem:[#allocation22 + $0x120] sm:$0xff]
    %v5697 = vld [vmem:[#allocation22 + $0x128] sm:$0xff]
    %v5698 = vld [vmem:[#allocation22 + $0x130] sm:$0xff]
    %v5699 = vld [vmem:[#allocation22 + $0x138] sm:$0xff]
    %v5700 = vld [vmem:[#allocation22 + $0x140] sm:$0xff]
    %v5701 = vld [vmem:[#allocation22 + $0x148] sm:$0xff]
    %v5702 = vld [vmem:[#allocation22 + $0x150] sm:$0xff]
    %v5703 = vld [vmem:[#allocation22 + $0x158] sm:$0xff]
    %v5704 = vld [vmem:[#allocation22 + $0x160] sm:$0xff]
    %v5705 = vld [vmem:[#allocation22 + $0x168] sm:$0xff]
    %v5706 = vld [vmem:[#allocation22 + $0x170] sm:$0xff]
    %v5707 = vld [vmem:[#allocation22 + $0x178] sm:$0xff]
    %v5708 = vld [vmem:[%s16] sm:$0x1]
    %v5709 = vld [vmem:[#allocation10] sm:$0xff]
    %5710 = vmatprep.subr.mxu0 %v5661
    %5711 = vmatpush1.msra.mxu0 %v5660
    %5712 = vmatprep.subr.mxu0 %v5664
    %5713 = vmatpush1.msra.mxu0 %v5663
    %5714 = vmatprep.subr.mxu0 %v5667
    %5715 = vmatpush1.msra.mxu0 %v5666
    %5716 = vmatprep.subr.mxu0 %v5670
    %5717 = vmatpush1.msra.mxu0 %v5669
    %5718 = vmatprep.subr.mxu0 %v5673
    %5719 = vmatpush1.msra.mxu0 %v5672
    %5720 = vmatprep.subr.mxu0 %v5676
    %5721 = vmatpush1.msra.mxu0 %v5675
    %5722 = vmatprep.subr.mxu0 %v5679
    %5723 = vmatpush1.msra.mxu0 %v5678
    %5724 = vmatprep.subr.mxu0 %v5682
    %5725 = vmatpush1.msra.mxu0 %v5681
    %5726 = vmatprep.subr.mxu0 %v5685
    %5727 = vmatpush1.msra.mxu0 %v5684
    %5728 = vmatprep.subr.mxu0 %v5688
    %5729 = vmatpush1.msra.mxu0 %v5687
    %5730 = vmatprep.subr.mxu0 %v5691
    %5731 = vmatpush1.msra.mxu0 %v5690
    %5732 = vmatprep.subr.mxu0 %v5694
    %5733 = vmatpush1.msra.mxu0 %v5693
    %5734 = vmatprep.subr.mxu0 %v5697
    %5735 = vmatpush1.msra.mxu0 %v5696
    %5736 = vmatprep.subr.mxu0 %v5700
    %5737 = vmatpush1.msra.mxu0 %v5699
    %5738 = vmatprep.subr.mxu0 %v5703
    %5739 = vmatpush1.msra.mxu0 %v5702
    %5740 = vmatprep.subr.mxu0 %v5706
    %5741 = vmatpush1.msra.mxu0 %v5705
    %5742 = vmatprep.subr.mxu0 0.0
    %5743 = vmatpush1.msra.mxu0 0.0
    %5744 = vmatprep.subr.mxu0 0.0
    %5745 = vmatpush1.msra.mxu0 0.0
    %5746 = vmatprep.subr.mxu0 0.0
    %5747 = vmatpush1.msra.mxu0 0.0
    %5748 = vmatprep.subr.mxu0 0.0
    %5749 = vmatpush1.msra.mxu0 0.0
    %5750 = vmatprep.subr.mxu0 0.0
    %5751 = vmatpush1.msra.mxu0 0.0
    %5752 = vmatprep.subr.mxu0 0.0
    %5753 = vmatpush1.msra.mxu0 0.0
    %5754 = vmatprep.subr.mxu0 0.0
    %5755 = vmatpush1.msra.mxu0 0.0
    %5756 = vmatprep.subr.mxu0 0.0
    %5757 = vmatpush1.msra.mxu0 0.0
    %5758 = vmatprep.subr.mxu0 0.0
    %5759 = vmatpush1.msra.mxu0 0.0
    %5760 = vmatprep.subr.mxu0 0.0
    %5761 = vmatpush1.msra.mxu0 0.0
    %5762 = vmatprep.subr.mxu0 0.0
    %5763 = vmatpush1.msra.mxu0 0.0
    %5764 = vmatprep.subr.mxu0 0.0
    %5765 = vmatpush1.msra.mxu0 0.0
    %5766 = vmatprep.subr.mxu0 0.0
    %5767 = vmatpush1.msra.mxu0 0.0
    %5768 = vmatprep.subr.mxu0 0.0
    %5769 = vmatpush1.msra.mxu0 0.0
    %5770 = vmatprep.subr.mxu0 0.0
    %5771 = vmatpush1.msra.mxu0 0.0
    %5772 = vmatprep.subr.mxu0 0.0
    %5773 = vmatpush1.msra.mxu0 0.0
    %5774 = vmatprep.mubr.f32.mxu0 0.0
    %5775 = vmatmul.mubr.f32.gmra.mrb[0].mxu0 %v5709
    %v5776 = vpop.f32.mrb[0].mxu0
    %v5777 = vadd.f32 0.0, %v5776
    %v5778 = vpop.f32.mrb[0].mxu0
    %v5779 = vadd.f32 0.0, %v5778
    %5780 = vdwg.mxu0
    %5781 = vmatprep.subr.mxu0 0.0
    %5782 = vmatpush1.msra.mxu0 %v5662
    %5783 = vmatprep.subr.mxu0 0.0
    %5784 = vmatpush1.msra.mxu0 %v5665
    %5785 = vmatprep.subr.mxu0 0.0
    %5786 = vmatpush1.msra.mxu0 %v5668
    %5787 = vmatprep.subr.mxu0 0.0
    %5788 = vmatpush1.msra.mxu0 %v5671
    %5789 = vmatprep.subr.mxu0 0.0
    %5790 = vmatpush1.msra.mxu0 %v5674
    %5791 = vmatprep.subr.mxu0 0.0
    %5792 = vmatpush1.msra.mxu0 %v5677
    %5793 = vmatprep.subr.mxu0 0.0
    %5794 = vmatpush1.msra.mxu0 %v5680
    %5795 = vmatprep.subr.mxu0 0.0
    %5796 = vmatpush1.msra.mxu0 %v5683
    %5797 = vmatprep.subr.mxu0 0.0
    %5798 = vmatpush1.msra.mxu0 %v5686
    %5799 = vmatprep.subr.mxu0 0.0
    %5800 = vmatpush1.msra.mxu0 %v5689
    %5801 = vmatprep.subr.mxu0 0.0
    %5802 = vmatpush1.msra.mxu0 %v5692
    %5803 = vmatprep.subr.mxu0 0.0
    %5804 = vmatpush1.msra.mxu0 %v5695
    %5805 = vmatprep.subr.mxu0 0.0
    %5806 = vmatpush1.msra.mxu0 %v5698
    %5807 = vmatprep.subr.mxu0 0.0
    %5808 = vmatpush1.msra.mxu0 %v5701
    %5809 = vmatprep.subr.mxu0 0.0
    %5810 = vmatpush1.msra.mxu0 %v5704
    %5811 = vmatprep.subr.mxu0 0.0
    %5812 = vmatpush1.msra.mxu0 %v5707
    %5813 = vmatprep.subr.mxu0 0.0
    %5814 = vmatpush1.msra.mxu0 0.0
    %5815 = vmatprep.subr.mxu0 0.0
    %5816 = vmatpush1.msra.mxu0 0.0
    %5817 = vmatprep.subr.mxu0 0.0
    %5818 = vmatpush1.msra.mxu0 0.0
    %5819 = vmatprep.subr.mxu0 0.0
    %5820 = vmatpush1.msra.mxu0 0.0
    %5821 = vmatprep.subr.mxu0 0.0
    %5822 = vmatpush1.msra.mxu0 0.0
    %5823 = vmatprep.subr.mxu0 0.0
    %5824 = vmatpush1.msra.mxu0 0.0
    %5825 = vmatprep.subr.mxu0 0.0
    %5826 = vmatpush1.msra.mxu0 0.0
    %5827 = vmatprep.subr.mxu0 0.0
    %5828 = vmatpush1.msra.mxu0 0.0
    %5829 = vmatprep.subr.mxu0 0.0
    %5830 = vmatpush1.msra.mxu0 0.0
    %5831 = vmatprep.subr.mxu0 0.0
    %5832 = vmatpush1.msra.mxu0 0.0
    %5833 = vmatprep.subr.mxu0 0.0
    %5834 = vmatpush1.msra.mxu0 0.0
    %5835 = vmatprep.subr.mxu0 0.0
    %5836 = vmatpush1.msra.mxu0 0.0
    %5837 = vmatprep.subr.mxu0 0.0
    %5838 = vmatpush1.msra.mxu0 0.0
    %5839 = vmatprep.subr.mxu0 0.0
    %5840 = vmatpush1.msra.mxu0 0.0
    %5841 = vmatprep.subr.mxu0 0.0
    %5842 = vmatpush1.msra.mxu0 0.0
    %5843 = vmatprep.subr.mxu0 0.0
    %5844 = vmatpush1.msra.mxu0 0.0
    %5845 = vmatprep.mubr.f32.mxu0 0.0
    %5846 = vmatmul.mubr.f32.gmra.mrb[0].mxu0 %v5709
    %v5847 = vpop.f32.mrb[0].mxu0
    %v5848 = vadd.f32 0.0, %v5847
    %v5849 = vpop.f32.mrb[0].mxu0
    %5850 = vdwg.mxu0
    %v5851 = vld [vmem:[%s684] sm:$0xff]
    %v5852 = vld [vmem:[%s684 + $0x8] sm:$0xff]
    %v5853 = vld [vmem:[%s684 + $0x10] sm:$0xff]
    %v5854 = vadd.f32 %v5851, %v5777
    %v5855 = vxor.u32 %v5854, 2147483648
    %v5856 = vmul.f32 %v5855, 1.442695
    %v5857 = vpow.pop %v5856
    %v5858 = vadd.f32 %v5857, 1.0
    %v5859 = vrcp.pop %v5858
    %v5860 = vmul.f32 1.0, %v5859
    %v5861 = vadd.f32 %v5852, %v5779
    %v5862 = vxor.u32 %v5861, 2147483648
    %v5863 = vmul.f32 %v5862, 1.442695
    %v5864 = vpow.pop %v5863
    %v5865 = vadd.f32 %v5864, 1.0
    %v5866 = vrcp.pop %v5865
    %v5867 = vmul.f32 1.0, %v5866
    %v5869 = vlaneseq
    %v5870 = vshrl.u32 %v5869, 7
    %v5871 = vsub.s32 0, %v5870
    %v5872 = vrot.slane %v5708, %v5871
    %v5874 = vadd.f32 %v5848, %v5872
    %v5875 = vmul.f32 %v5860, %v5874
    %v5876 = vadd.f32 %v5853, %v5875
    %v5877 = vtanh.pop %v5876
    %v5878 = vsub.f32 1.0, %v5867
    %v5879 = vmul.f32 %v5878, %v5877
    %v5880 = vmul.f32 %v5867, %v5709
    %v5881 = vadd.f32 %v5879, %v5880
    %5882 = vst [vmem:[#allocation5] sm:$0xff] %v5881
    %5883 = vmatprep.subr.mxu0 %v5661
    %5884 = vmatpush1.msra.mxu0 %v5660
    %5885 = vmatprep.subr.mxu0 %v5664
    %5886 = vmatpush1.msra.mxu0 %v5663
    %5887 = vmatprep.subr.mxu0 %v5667
    %5888 = vmatpush1.msra.mxu0 %v5666
    %5889 = vmatprep.subr.mxu0 %v5670
    %5890 = vmatpush1.msra.mxu0 %v5669
    %5891 = vmatprep.subr.mxu0 %v5673
    %5892 = vmatpush1.msra.mxu0 %v5672
    %5893 = vmatprep.subr.mxu0 %v5676
    %5894 = vmatpush1.msra.mxu0 %v5675
    %5895 = vmatprep.subr.mxu0 %v5679
    %5896 = vmatpush1.msra.mxu0 %v5678
    %5897 = vmatprep.subr.mxu0 %v5682
    %5898 = vmatpush1.msra.mxu0 %v5681
    %5899 = vmatprep.subr.mxu0 %v5685
    %5900 = vmatpush1.msra.mxu0 %v5684
    %5901 = vmatprep.subr.mxu0 %v5688
    %5902 = vmatpush1.msra.mxu0 %v5687
    %5903 = vmatprep.subr.mxu0 %v5691
    %5904 = vmatpush1.msra.mxu0 %v5690
    %5905 = vmatprep.subr.mxu0 %v5694
    %5906 = vmatpush1.msra.mxu0 %v5693
    %5907 = vmatprep.subr.mxu0 %v5697
    %5908 = vmatpush1.msra.mxu0 %v5696
    %5909 = vmatprep.subr.mxu0 %v5700
    %5910 = vmatpush1.msra.mxu0 %v5699
    %5911 = vmatprep.subr.mxu0 %v5703
    %5912 = vmatpush1.msra.mxu0 %v5702
    %5913 = vmatprep.subr.mxu0 %v5706
    %5914 = vmatpush1.msra.mxu0 %v5705
    %5915 = vmatprep.subr.mxu0 0.0
    %5916 = vmatpush1.msra.mxu0 0.0
    %5917 = vmatprep.subr.mxu0 0.0
    %5918 = vmatpush1.msra.mxu0 0.0
    %5919 = vmatprep.subr.mxu0 0.0
    %5920 = vmatpush1.msra.mxu0 0.0
    %5921 = vmatprep.subr.mxu0 0.0
    %5922 = vmatpush1.msra.mxu0 0.0
    %5923 = vmatprep.subr.mxu0 0.0
    %5924 = vmatpush1.msra.mxu0 0.0
    %5925 = vmatprep.subr.mxu0 0.0
    %5926 = vmatpush1.msra.mxu0 0.0
    %5927 = vmatprep.subr.mxu0 0.0
    %5928 = vmatpush1.msra.mxu0 0.0
    %5929 = vmatprep.subr.mxu0 0.0
    %5930 = vmatpush1.msra.mxu0 0.0
    %5931 = vmatprep.subr.mxu0 0.0
    %5932 = vmatpush1.msra.mxu0 0.0
    %5933 = vmatprep.subr.mxu0 0.0
    %5934 = vmatpush1.msra.mxu0 0.0
    %5935 = vmatprep.subr.mxu0 0.0
    %5936 = vmatpush1.msra.mxu0 0.0
    %5937 = vmatprep.subr.mxu0 0.0
    %5938 = vmatpush1.msra.mxu0 0.0
    %5939 = vmatprep.subr.mxu0 0.0
    %5940 = vmatpush1.msra.mxu0 0.0
    %5941 = vmatprep.subr.mxu0 0.0
    %5942 = vmatpush1.msra.mxu0 0.0
    %5943 = vmatprep.subr.mxu0 0.0
    %5944 = vmatpush1.msra.mxu0 0.0
    %5945 = vmatprep.subr.mxu0 0.0
    %5946 = vmatpush1.msra.mxu0 0.0
    %5947 = vmatprep.mubr.f32.mxu0 0.0
    %5948 = vmatmul.mubr.f32.gmra.mrb[0].mxu0 %v5881
    %v5949 = vpop.f32.mrb[0].mxu0
    %v5950 = vadd.f32 0.0, %v5949
    %v5951 = vpop.f32.mrb[0].mxu0
    %v5952 = vadd.f32 0.0, %v5951
    %5953 = vdwg.mxu0
    %5954 = vmatprep.subr.mxu0 0.0
    %5955 = vmatpush1.msra.mxu0 %v5662
    %5956 = vmatprep.subr.mxu0 0.0
    %5957 = vmatpush1.msra.mxu0 %v5665
    %5958 = vmatprep.subr.mxu0 0.0
    %5959 = vmatpush1.msra.mxu0 %v5668
    %5960 = vmatprep.subr.mxu0 0.0
    %5961 = vmatpush1.msra.mxu0 %v5671
    %5962 = vmatprep.subr.mxu0 0.0
    %5963 = vmatpush1.msra.mxu0 %v5674
    %5964 = vmatprep.subr.mxu0 0.0
    %5965 = vmatpush1.msra.mxu0 %v5677
    %5966 = vmatprep.subr.mxu0 0.0
    %5967 = vmatpush1.msra.mxu0 %v5680
    %5968 = vmatprep.subr.mxu0 0.0
    %5969 = vmatpush1.msra.mxu0 %v5683
    %5970 = vmatprep.subr.mxu0 0.0
    %5971 = vmatpush1.msra.mxu0 %v5686
    %5972 = vmatprep.subr.mxu0 0.0
    %5973 = vmatpush1.msra.mxu0 %v5689
    %5974 = vmatprep.subr.mxu0 0.0
    %5975 = vmatpush1.msra.mxu0 %v5692
    %5976 = vmatprep.subr.mxu0 0.0
    %5977 = vmatpush1.msra.mxu0 %v5695
    %5978 = vmatprep.subr.mxu0 0.0
    %5979 = vmatpush1.msra.mxu0 %v5698
    %5980 = vmatprep.subr.mxu0 0.0
    %5981 = vmatpush1.msra.mxu0 %v5701
    %5982 = vmatprep.subr.mxu0 0.0
    %5983 = vmatpush1.msra.mxu0 %v5704
    %5984 = vmatprep.subr.mxu0 0.0
    %5985 = vmatpush1.msra.mxu0 %v5707
    %5986 = vmatprep.subr.mxu0 0.0
    %5987 = vmatpush1.msra.mxu0 0.0
    %5988 = vmatprep.subr.mxu0 0.0
    %5989 = vmatpush1.msra.mxu0 0.0
    %5990 = vmatprep.subr.mxu0 0.0
    %5991 = vmatpush1.msra.mxu0 0.0
    %5992 = vmatprep.subr.mxu0 0.0
    %5993 = vmatpush1.msra.mxu0 0.0
    %5994 = vmatprep.subr.mxu0 0.0
    %5995 = vmatpush1.msra.mxu0 0.0
    %5996 = vmatprep.subr.mxu0 0.0
    %5997 = vmatpush1.msra.mxu0 0.0
    %5998 = vmatprep.subr.mxu0 0.0
    %5999 = vmatpush1.msra.mxu0 0.0
    %6000 = vmatprep.subr.mxu0 0.0
    %6001 = vmatpush1.msra.mxu0 0.0
    %6002 = vmatprep.subr.mxu0 0.0
    %6003 = vmatpush1.msra.mxu0 0.0
    %6004 = vmatprep.subr.mxu0 0.0
    %6005 = vmatpush1.msra.mxu0 0.0
    %6006 = vmatprep.subr.mxu0 0.0
    %6007 = vmatpush1.msra.mxu0 0.0
    %6008 = vmatprep.subr.mxu0 0.0
    %6009 = vmatpush1.msra.mxu0 0.0
    %6010 = vmatprep.subr.mxu0 0.0
    %6011 = vmatpush1.msra.mxu0 0.0
    %6012 = vmatprep.subr.mxu0 0.0
    %6013 = vmatpush1.msra.mxu0 0.0
    %6014 = vmatprep.subr.mxu0 0.0
    %6015 = vmatpush1.msra.mxu0 0.0
    %6016 = vmatprep.subr.mxu0 0.0
    %6017 = vmatpush1.msra.mxu0 0.0
    %6018 = vmatprep.mubr.f32.mxu0 0.0
    %6019 = vmatmul.mubr.f32.gmra.mrb[0].mxu0 %v5881
    %v6020 = vpop.f32.mrb[0].mxu0
    %v6021 = vadd.f32 0.0, %v6020
    %v6022 = vpop.f32.mrb[0].mxu0
    %6023 = vdwg.mxu0
    %v6024 = vld [vmem:[%s860] sm:$0xff]
    %v6025 = vld [vmem:[%s860 + $0x8] sm:$0xff]
    %v6026 = vld [vmem:[%s860 + $0x10] sm:$0xff]
    %v6027 = vadd.f32 %v6024, %v5950
    %v6028 = vxor.u32 %v6027, 2147483648
    %v6029 = vmul.f32 %v6028, 1.442695
    %v6030 = vpow.pop %v6029
    %v6031 = vadd.f32 %v6030, 1.0
    %v6032 = vrcp.pop %v6031
    %v6033 = vmul.f32 1.0, %v6032
    %v6034 = vadd.f32 %v6025, %v5952
    %v6035 = vxor.u32 %v6034, 2147483648
    %v6036 = vmul.f32 %v6035, 1.442695
    %v6037 = vpow.pop %v6036
    %v6038 = vadd.f32 %v6037, 1.0
    %v6039 = vrcp.pop %v6038
    %v6040 = vmul.f32 1.0, %v6039
    %v6041 = vadd.f32 %v6021, %v5872
    %v6042 = vmul.f32 %v6033, %v6041
    %v6043 = vadd.f32 %v6026, %v6042
    %v6044 = vtanh.pop %v6043
    %v6045 = vsub.f32 1.0, %v6040
    %v6046 = vmul.f32 %v6045, %v6044
    %v6047 = vmul.f32 %v6040, %v5881
    %v6048 = vadd.f32 %v6046, %v6047
    %s6049 = scalar_lea.vmem [#allocation5], 8
    %6050 = vst [vmem:[%s6049] sm:$0xff] %v6048
    %6051 = vmatprep.subr.mxu0 %v5661
    %6052 = vmatpush1.msra.mxu0 %v5660
    %6053 = vmatprep.subr.mxu0 %v5664
    %6054 = vmatpush1.msra.mxu0 %v5663
    %6055 = vmatprep.subr.mxu0 %v5667
    %6056 = vmatpush1.msra.mxu0 %v5666
    %6057 = vmatprep.subr.mxu0 %v5670
    %6058 = vmatpush1.msra.mxu0 %v5669
    %6059 = vmatprep.subr.mxu0 %v5673
    %6060 = vmatpush1.msra.mxu0 %v5672
    %6061 = vmatprep.subr.mxu0 %v5676
    %6062 = vmatpush1.msra.mxu0 %v5675
    %6063 = vmatprep.subr.mxu0 %v5679
    %6064 = vmatpush1.msra.mxu0 %v5678
    %6065 = vmatprep.subr.mxu0 %v5682
    %6066 = vmatpush1.msra.mxu0 %v5681
    %6067 = vmatprep.subr.mxu0 %v5685
    %6068 = vmatpush1.msra.mxu0 %v5684
    %6069 = vmatprep.subr.mxu0 %v5688
    %6070 = vmatpush1.msra.mxu0 %v5687
    %6071 = vmatprep.subr.mxu0 %v5691
    %6072 = vmatpush1.msra.mxu0 %v5690
    %6073 = vmatprep.subr.mxu0 %v5694
    %6074 = vmatpush1.msra.mxu0 %v5693
    %6075 = vmatprep.subr.mxu0 %v5697
    %6076 = vmatpush1.msra.mxu0 %v5696
    %6077 = vmatprep.subr.mxu0 %v5700
    %6078 = vmatpush1.msra.mxu0 %v5699
    %6079 = vmatprep.subr.mxu0 %v5703
    %6080 = vmatpush1.msra.mxu0 %v5702
    %6081 = vmatprep.subr.mxu0 %v5706
    %6082 = vmatpush1.msra.mxu0 %v5705
    %6083 = vmatprep.subr.mxu0 0.0
    %6084 = vmatpush1.msra.mxu0 0.0
    %6085 = vmatprep.subr.mxu0 0.0
    %6086 = vmatpush1.msra.mxu0 0.0
    %6087 = vmatprep.subr.mxu0 0.0
    %6088 = vmatpush1.msra.mxu0 0.0
    %6089 = vmatprep.subr.mxu0 0.0
    %6090 = vmatpush1.msra.mxu0 0.0
    %6091 = vmatprep.subr.mxu0 0.0
    %6092 = vmatpush1.msra.mxu0 0.0
    %6093 = vmatprep.subr.mxu0 0.0
    %6094 = vmatpush1.msra.mxu0 0.0
    %6095 = vmatprep.subr.mxu0 0.0
    %6096 = vmatpush1.msra.mxu0 0.0
    %6097 = vmatprep.subr.mxu0 0.0
    %6098 = vmatpush1.msra.mxu0 0.0
    %6099 = vmatprep.subr.mxu0 0.0
    %6100 = vmatpush1.msra.mxu0 0.0
    %6101 = vmatprep.subr.mxu0 0.0
    %6102 = vmatpush1.msra.mxu0 0.0
    %6103 = vmatprep.subr.mxu0 0.0
    %6104 = vmatpush1.msra.mxu0 0.0
    %6105 = vmatprep.subr.mxu0 0.0
    %6106 = vmatpush1.msra.mxu0 0.0
    %6107 = vmatprep.subr.mxu0 0.0
    %6108 = vmatpush1.msra.mxu0 0.0
    %6109 = vmatprep.subr.mxu0 0.0
    %6110 = vmatpush1.msra.mxu0 0.0
    %6111 = vmatprep.subr.mxu0 0.0
    %6112 = vmatpush1.msra.mxu0 0.0
    %6113 = vmatprep.subr.mxu0 0.0
    %6114 = vmatpush1.msra.mxu0 0.0
    %6115 = vmatprep.mubr.f32.mxu0 0.0
    %6116 = vmatmul.mubr.f32.gmra.mrb[0].mxu0 %v6048
    %v6117 = vpop.f32.mrb[0].mxu0
    %v6118 = vadd.f32 0.0, %v6117
    %v6119 = vpop.f32.mrb[0].mxu0
    %v6120 = vadd.f32 0.0, %v6119
    %6121 = vdwg.mxu0
    %6122 = vmatprep.subr.mxu0 0.0
    %6123 = vmatpush1.msra.mxu0 %v5662
    %6124 = vmatprep.subr.mxu0 0.0
    %6125 = vmatpush1.msra.mxu0 %v5665
    %6126 = vmatprep.subr.mxu0 0.0
    %6127 = vmatpush1.msra.mxu0 %v5668
    %6128 = vmatprep.subr.mxu0 0.0
    %6129 = vmatpush1.msra.mxu0 %v5671
    %6130 = vmatprep.subr.mxu0 0.0
    %6131 = vmatpush1.msra.mxu0 %v5674
    %6132 = vmatprep.subr.mxu0 0.0
    %6133 = vmatpush1.msra.mxu0 %v5677
    %6134 = vmatprep.subr.mxu0 0.0
    %6135 = vmatpush1.msra.mxu0 %v5680
    %6136 = vmatprep.subr.mxu0 0.0
    %6137 = vmatpush1.msra.mxu0 %v5683
    %6138 = vmatprep.subr.mxu0 0.0
    %6139 = vmatpush1.msra.mxu0 %v5686
    %6140 = vmatprep.subr.mxu0 0.0
    %6141 = vmatpush1.msra.mxu0 %v5689
    %6142 = vmatprep.subr.mxu0 0.0
    %6143 = vmatpush1.msra.mxu0 %v5692
    %6144 = vmatprep.subr.mxu0 0.0
    %6145 = vmatpush1.msra.mxu0 %v5695
    %6146 = vmatprep.subr.mxu0 0.0
    %6147 = vmatpush1.msra.mxu0 %v5698
    %6148 = vmatprep.subr.mxu0 0.0
    %6149 = vmatpush1.msra.mxu0 %v5701
    %6150 = vmatprep.subr.mxu0 0.0
    %6151 = vmatpush1.msra.mxu0 %v5704
    %6152 = vmatprep.subr.mxu0 0.0
    %6153 = vmatpush1.msra.mxu0 %v5707
    %6154 = vmatprep.subr.mxu0 0.0
    %6155 = vmatpush1.msra.mxu0 0.0
    %6156 = vmatprep.subr.mxu0 0.0
    %6157 = vmatpush1.msra.mxu0 0.0
    %6158 = vmatprep.subr.mxu0 0.0
    %6159 = vmatpush1.msra.mxu0 0.0
    %6160 = vmatprep.subr.mxu0 0.0
    %6161 = vmatpush1.msra.mxu0 0.0
    %6162 = vmatprep.subr.mxu0 0.0
    %6163 = vmatpush1.msra.mxu0 0.0
    %6164 = vmatprep.subr.mxu0 0.0
    %6165 = vmatpush1.msra.mxu0 0.0
    %6166 = vmatprep.subr.mxu0 0.0
    %6167 = vmatpush1.msra.mxu0 0.0
    %6168 = vmatprep.subr.mxu0 0.0
    %6169 = vmatpush1.msra.mxu0 0.0
    %6170 = vmatprep.subr.mxu0 0.0
    %6171 = vmatpush1.msra.mxu0 0.0
    %6172 = vmatprep.subr.mxu0 0.0
    %6173 = vmatpush1.msra.mxu0 0.0
    %6174 = vmatprep.subr.mxu0 0.0
    %6175 = vmatpush1.msra.mxu0 0.0
    %6176 = vmatprep.subr.mxu0 0.0
    %6177 = vmatpush1.msra.mxu0 0.0
    %6178 = vmatprep.subr.mxu0 0.0
    %6179 = vmatpush1.msra.mxu0 0.0
    %6180 = vmatprep.subr.mxu0 0.0
    %6181 = vmatpush1.msra.mxu0 0.0
    %6182 = vmatprep.subr.mxu0 0.0
    %6183 = vmatpush1.msra.mxu0 0.0
    %6184 = vmatprep.subr.mxu0 0.0
    %6185 = vmatpush1.msra.mxu0 0.0
    %6186 = vmatprep.mubr.f32.mxu0 0.0
    %6187 = vmatmul.mubr.f32.gmra.mrb[0].mxu0 %v6048
    %v6188 = vpop.f32.mrb[0].mxu0
    %v6189 = vadd.f32 0.0, %v6188
    %v6190 = vpop.f32.mrb[0].mxu0
    %6191 = vdwg.mxu0
    %v6192 = vld [vmem:[%s1031] sm:$0xff]
    %v6193 = vld [vmem:[%s1031 + $0x8] sm:$0xff]
    %v6194 = vld [vmem:[%s1031 + $0x10] sm:$0xff]
    %v6195 = vadd.f32 %v6192, %v6118
    %v6196 = vxor.u32 %v6195, 2147483648
    %v6197 = vmul.f32 %v6196, 1.442695
    %v6198 = vpow.pop %v6197
    %v6199 = vadd.f32 %v6198, 1.0
    %v6200 = vrcp.pop %v6199
    %v6201 = vmul.f32 1.0, %v6200
    %v6202 = vadd.f32 %v6193, %v6120
    %v6203 = vxor.u32 %v6202, 2147483648
    %v6204 = vmul.f32 %v6203, 1.442695
    %v6205 = vpow.pop %v6204
    %v6206 = vadd.f32 %v6205, 1.0
    %v6207 = vrcp.pop %v6206
    %v6208 = vmul.f32 1.0, %v6207
    %v6209 = vadd.f32 %v6189, %v5872
    %v6210 = vmul.f32 %v6201, %v6209
    %v6211 = vadd.f32 %v6194, %v6210
    %v6212 = vtanh.pop %v6211
    %v6213 = vsub.f32 1.0, %v6208
    %v6214 = vmul.f32 %v6213, %v6212
    %v6215 = vmul.f32 %v6208, %v6048
    %v6216 = vadd.f32 %v6214, %v6215
    %s6217 = scalar_lea.vmem [#allocation5], 16
    %6218 = vst [vmem:[%s6217] sm:$0xff] %v6216
    %6219 = vmatprep.subr.mxu0 %v5661
    %6220 = vmatpush1.msra.mxu0 %v5660
    %6221 = vmatprep.subr.mxu0 %v5664
    %6222 = vmatpush1.msra.mxu0 %v5663
    %6223 = vmatprep.subr.mxu0 %v5667
    %6224 = vmatpush1.msra.mxu0 %v5666
    %6225 = vmatprep.subr.mxu0 %v5670
    %6226 = vmatpush1.msra.mxu0 %v5669
    %6227 = vmatprep.subr.mxu0 %v5673
    %6228 = vmatpush1.msra.mxu0 %v5672
    %6229 = vmatprep.subr.mxu0 %v5676
    %6230 = vmatpush1.msra.mxu0 %v5675
    %6231 = vmatprep.subr.mxu0 %v5679
    %6232 = vmatpush1.msra.mxu0 %v5678
    %6233 = vmatprep.subr.mxu0 %v5682
    %6234 = vmatpush1.msra.mxu0 %v5681
    %6235 = vmatprep.subr.mxu0 %v5685
    %6236 = vmatpush1.msra.mxu0 %v5684
    %6237 = vmatprep.subr.mxu0 %v5688
    %6238 = vmatpush1.msra.mxu0 %v5687
    %6239 = vmatprep.subr.mxu0 %v5691
    %6240 = vmatpush1.msra.mxu0 %v5690
    %6241 = vmatprep.subr.mxu0 %v5694
    %6242 = vmatpush1.msra.mxu0 %v5693
    %6243 = vmatprep.subr.mxu0 %v5697
    %6244 = vmatpush1.msra.mxu0 %v5696
    %6245 = vmatprep.subr.mxu0 %v5700
    %6246 = vmatpush1.msra.mxu0 %v5699
    %6247 = vmatprep.subr.mxu0 %v5703
    %6248 = vmatpush1.msra.mxu0 %v5702
    %6249 = vmatprep.subr.mxu0 %v5706
    %6250 = vmatpush1.msra.mxu0 %v5705
    %6251 = vmatprep.subr.mxu0 0.0
    %6252 = vmatpush1.msra.mxu0 0.0
    %6253 = vmatprep.subr.mxu0 0.0
    %6254 = vmatpush1.msra.mxu0 0.0
    %6255 = vmatprep.subr.mxu0 0.0
    %6256 = vmatpush1.msra.mxu0 0.0
    %6257 = vmatprep.subr.mxu0 0.0
    %6258 = vmatpush1.msra.mxu0 0.0
    %6259 = vmatprep.subr.mxu0 0.0
    %6260 = vmatpush1.msra.mxu0 0.0
    %6261 = vmatprep.subr.mxu0 0.0
    %6262 = vmatpush1.msra.mxu0 0.0
    %6263 = vmatprep.subr.mxu0 0.0
    %6264 = vmatpush1.msra.mxu0 0.0
    %6265 = vmatprep.subr.mxu0 0.0
    %6266 = vmatpush1.msra.mxu0 0.0
    %6267 = vmatprep.subr.mxu0 0.0
    %6268 = vmatpush1.msra.mxu0 0.0
    %6269 = vmatprep.subr.mxu0 0.0
    %6270 = vmatpush1.msra.mxu0 0.0
    %6271 = vmatprep.subr.mxu0 0.0
    %6272 = vmatpush1.msra.mxu0 0.0
    %6273 = vmatprep.subr.mxu0 0.0
    %6274 = vmatpush1.msra.mxu0 0.0
    %6275 = vmatprep.subr.mxu0 0.0
    %6276 = vmatpush1.msra.mxu0 0.0
    %6277 = vmatprep.subr.mxu0 0.0
    %6278 = vmatpush1.msra.mxu0 0.0
    %6279 = vmatprep.subr.mxu0 0.0
    %6280 = vmatpush1.msra.mxu0 0.0
    %6281 = vmatprep.subr.mxu0 0.0
    %6282 = vmatpush1.msra.mxu0 0.0
    %6283 = vmatprep.mubr.f32.mxu0 0.0
    %6284 = vmatmul.mubr.f32.gmra.mrb[0].mxu0 %v6216
    %v6285 = vpop.f32.mrb[0].mxu0
    %v6286 = vadd.f32 0.0, %v6285
    %v6287 = vpop.f32.mrb[0].mxu0
    %v6288 = vadd.f32 0.0, %v6287
    %6289 = vdwg.mxu0
    %6290 = vmatprep.subr.mxu0 0.0
    %6291 = vmatpush1.msra.mxu0 %v5662
    %6292 = vmatprep.subr.mxu0 0.0
    %6293 = vmatpush1.msra.mxu0 %v5665
    %6294 = vmatprep.subr.mxu0 0.0
    %6295 = vmatpush1.msra.mxu0 %v5668
    %6296 = vmatprep.subr.mxu0 0.0
    %6297 = vmatpush1.msra.mxu0 %v5671
    %6298 = vmatprep.subr.mxu0 0.0
    %6299 = vmatpush1.msra.mxu0 %v5674
    %6300 = vmatprep.subr.mxu0 0.0
    %6301 = vmatpush1.msra.mxu0 %v5677
    %6302 = vmatprep.subr.mxu0 0.0
    %6303 = vmatpush1.msra.mxu0 %v5680
    %6304 = vmatprep.subr.mxu0 0.0
    %6305 = vmatpush1.msra.mxu0 %v5683
    %6306 = vmatprep.subr.mxu0 0.0
    %6307 = vmatpush1.msra.mxu0 %v5686
    %6308 = vmatprep.subr.mxu0 0.0
    %6309 = vmatpush1.msra.mxu0 %v5689
    %6310 = vmatprep.subr.mxu0 0.0
    %6311 = vmatpush1.msra.mxu0 %v5692
    %6312 = vmatprep.subr.mxu0 0.0
    %6313 = vmatpush1.msra.mxu0 %v5695
    %6314 = vmatprep.subr.mxu0 0.0
    %6315 = vmatpush1.msra.mxu0 %v5698
    %6316 = vmatprep.subr.mxu0 0.0
    %6317 = vmatpush1.msra.mxu0 %v5701
    %6318 = vmatprep.subr.mxu0 0.0
    %6319 = vmatpush1.msra.mxu0 %v5704
    %6320 = vmatprep.subr.mxu0 0.0
    %6321 = vmatpush1.msra.mxu0 %v5707
    %6322 = vmatprep.subr.mxu0 0.0
    %6323 = vmatpush1.msra.mxu0 0.0
    %6324 = vmatprep.subr.mxu0 0.0
    %6325 = vmatpush1.msra.mxu0 0.0
    %6326 = vmatprep.subr.mxu0 0.0
    %6327 = vmatpush1.msra.mxu0 0.0
    %6328 = vmatprep.subr.mxu0 0.0
    %6329 = vmatpush1.msra.mxu0 0.0
    %6330 = vmatprep.subr.mxu0 0.0
    %6331 = vmatpush1.msra.mxu0 0.0
    %6332 = vmatprep.subr.mxu0 0.0
    %6333 = vmatpush1.msra.mxu0 0.0
    %6334 = vmatprep.subr.mxu0 0.0
    %6335 = vmatpush1.msra.mxu0 0.0
    %6336 = vmatprep.subr.mxu0 0.0
    %6337 = vmatpush1.msra.mxu0 0.0
    %6338 = vmatprep.subr.mxu0 0.0
    %6339 = vmatpush1.msra.mxu0 0.0
    %6340 = vmatprep.subr.mxu0 0.0
    %6341 = vmatpush1.msra.mxu0 0.0
    %6342 = vmatprep.subr.mxu0 0.0
    %6343 = vmatpush1.msra.mxu0 0.0
    %6344 = vmatprep.subr.mxu0 0.0
    %6345 = vmatpush1.msra.mxu0 0.0
    %6346 = vmatprep.subr.mxu0 0.0
    %6347 = vmatpush1.msra.mxu0 0.0
    %6348 = vmatprep.subr.mxu0 0.0
    %6349 = vmatpush1.msra.mxu0 0.0
    %6350 = vmatprep.subr.mxu0 0.0
    %6351 = vmatpush1.msra.mxu0 0.0
    %6352 = vmatprep.subr.mxu0 0.0
    %6353 = vmatpush1.msra.mxu0 0.0
    %6354 = vmatprep.mubr.f32.mxu0 0.0
    %6355 = vmatmul.mubr.f32.gmra.mrb[0].mxu0 %v6216
    %v6356 = vpop.f32.mrb[0].mxu0
    %v6357 = vadd.f32 0.0, %v6356
    %v6358 = vpop.f32.mrb[0].mxu0
    %6359 = vdwg.mxu0
    %v6360 = vld [vmem:[%s1202] sm:$0xff]
    %v6361 = vld [vmem:[%s1202 + $0x8] sm:$0xff]
    %v6362 = vld [vmem:[%s1202 + $0x10] sm:$0xff]
    %v6363 = vadd.f32 %v6360, %v6286
    %v6364 = vxor.u32 %v6363, 2147483648
    %v6365 = vmul.f32 %v6364, 1.442695
    %v6366 = vpow.pop %v6365
    %v6367 = vadd.f32 %v6366, 1.0
    %v6368 = vrcp.pop %v6367
    %v6369 = vmul.f32 1.0, %v6368
    %v6370 = vadd.f32 %v6361, %v6288
    %v6371 = vxor.u32 %v6370, 2147483648
    %v6372 = vmul.f32 %v6371, 1.442695
    %v6373 = vpow.pop %v6372
    %v6374 = vadd.f32 %v6373, 1.0
    %v6375 = vrcp.pop %v6374
    %v6376 = vmul.f32 1.0, %v6375
    %v6377 = vadd.f32 %v6357, %v5872
    %v6378 = vmul.f32 %v6369, %v6377
    %v6379 = vadd.f32 %v6362, %v6378
    %v6380 = vtanh.pop %v6379
    %v6381 = vsub.f32 1.0, %v6376
    %v6382 = vmul.f32 %v6381, %v6380
    %v6383 = vmul.f32 %v6376, %v6216
    %v6384 = vadd.f32 %v6382, %v6383
    %s6385 = scalar_lea.vmem [#allocation5], 24
    %6386 = vst [vmem:[%s6385] sm:$0xff] %v6384
    %6387 = vmatprep.subr.mxu0 %v5661
    %6388 = vmatpush1.msra.mxu0 %v5660
    %6389 = vmatprep.subr.mxu0 %v5664
    %6390 = vmatpush1.msra.mxu0 %v5663
    %6391 = vmatprep.subr.mxu0 %v5667
    %6392 = vmatpush1.msra.mxu0 %v5666
    %6393 = vmatprep.subr.mxu0 %v5670
    %6394 = vmatpush1.msra.mxu0 %v5669
    %6395 = vmatprep.subr.mxu0 %v5673
    %6396 = vmatpush1.msra.mxu0 %v5672
    %6397 = vmatprep.subr.mxu0 %v5676
    %6398 = vmatpush1.msra.mxu0 %v5675
    %6399 = vmatprep.subr.mxu0 %v5679
    %6400 = vmatpush1.msra.mxu0 %v5678
    %6401 = vmatprep.subr.mxu0 %v5682
    %6402 = vmatpush1.msra.mxu0 %v5681
    %6403 = vmatprep.subr.mxu0 %v5685
    %6404 = vmatpush1.msra.mxu0 %v5684
    %6405 = vmatprep.subr.mxu0 %v5688
    %6406 = vmatpush1.msra.mxu0 %v5687
    %6407 = vmatprep.subr.mxu0 %v5691
    %6408 = vmatpush1.msra.mxu0 %v5690
    %6409 = vmatprep.subr.mxu0 %v5694
    %6410 = vmatpush1.msra.mxu0 %v5693
    %6411 = vmatprep.subr.mxu0 %v5697
    %6412 = vmatpush1.msra.mxu0 %v5696
    %6413 = vmatprep.subr.mxu0 %v5700
    %6414 = vmatpush1.msra.mxu0 %v5699
    %6415 = vmatprep.subr.mxu0 %v5703
    %6416 = vmatpush1.msra.mxu0 %v5702
    %6417 = vmatprep.subr.mxu0 %v5706
    %6418 = vmatpush1.msra.mxu0 %v5705
    %6419 = vmatprep.subr.mxu0 0.0
    %6420 = vmatpush1.msra.mxu0 0.0
    %6421 = vmatprep.subr.mxu0 0.0
    %6422 = vmatpush1.msra.mxu0 0.0
    %6423 = vmatprep.subr.mxu0 0.0
    %6424 = vmatpush1.msra.mxu0 0.0
    %6425 = vmatprep.subr.mxu0 0.0
    %6426 = vmatpush1.msra.mxu0 0.0
    %6427 = vmatprep.subr.mxu0 0.0
    %6428 = vmatpush1.msra.mxu0 0.0
    %6429 = vmatprep.subr.mxu0 0.0
    %6430 = vmatpush1.msra.mxu0 0.0
    %6431 = vmatprep.subr.mxu0 0.0
    %6432 = vmatpush1.msra.mxu0 0.0
    %6433 = vmatprep.subr.mxu0 0.0
    %6434 = vmatpush1.msra.mxu0 0.0
    %6435 = vmatprep.subr.mxu0 0.0
    %6436 = vmatpush1.msra.mxu0 0.0
    %6437 = vmatprep.subr.mxu0 0.0
    %6438 = vmatpush1.msra.mxu0 0.0
    %6439 = vmatprep.subr.mxu0 0.0
    %6440 = vmatpush1.msra.mxu0 0.0
    %6441 = vmatprep.subr.mxu0 0.0
    %6442 = vmatpush1.msra.mxu0 0.0
    %6443 = vmatprep.subr.mxu0 0.0
    %6444 = vmatpush1.msra.mxu0 0.0
    %6445 = vmatprep.subr.mxu0 0.0
    %6446 = vmatpush1.msra.mxu0 0.0
    %6447 = vmatprep.subr.mxu0 0.0
    %6448 = vmatpush1.msra.mxu0 0.0
    %6449 = vmatprep.subr.mxu0 0.0
    %6450 = vmatpush1.msra.mxu0 0.0
    %6451 = vmatprep.mubr.f32.mxu0 0.0
    %6452 = vmatmul.mubr.f32.gmra.mrb[0].mxu0 %v6384
    %v6453 = vpop.f32.mrb[0].mxu0
    %v6454 = vadd.f32 0.0, %v6453
    %v6455 = vpop.f32.mrb[0].mxu0
    %v6456 = vadd.f32 0.0, %v6455
    %6457 = vdwg.mxu0
    %6458 = vmatprep.subr.mxu0 0.0
    %6459 = vmatpush1.msra.mxu0 %v5662
    %6460 = vmatprep.subr.mxu0 0.0
    %6461 = vmatpush1.msra.mxu0 %v5665
    %6462 = vmatprep.subr.mxu0 0.0
    %6463 = vmatpush1.msra.mxu0 %v5668
    %6464 = vmatprep.subr.mxu0 0.0
    %6465 = vmatpush1.msra.mxu0 %v5671
    %6466 = vmatprep.subr.mxu0 0.0
    %6467 = vmatpush1.msra.mxu0 %v5674
    %6468 = vmatprep.subr.mxu0 0.0
    %6469 = vmatpush1.msra.mxu0 %v5677
    %6470 = vmatprep.subr.mxu0 0.0
    %6471 = vmatpush1.msra.mxu0 %v5680
    %6472 = vmatprep.subr.mxu0 0.0
    %6473 = vmatpush1.msra.mxu0 %v5683
    %6474 = vmatprep.subr.mxu0 0.0
    %6475 = vmatpush1.msra.mxu0 %v5686
    %6476 = vmatprep.subr.mxu0 0.0
    %6477 = vmatpush1.msra.mxu0 %v5689
    %6478 = vmatprep.subr.mxu0 0.0
    %6479 = vmatpush1.msra.mxu0 %v5692
    %6480 = vmatprep.subr.mxu0 0.0
    %6481 = vmatpush1.msra.mxu0 %v5695
    %6482 = vmatprep.subr.mxu0 0.0
    %6483 = vmatpush1.msra.mxu0 %v5698
    %6484 = vmatprep.subr.mxu0 0.0
    %6485 = vmatpush1.msra.mxu0 %v5701
    %6486 = vmatprep.subr.mxu0 0.0
    %6487 = vmatpush1.msra.mxu0 %v5704
    %6488 = vmatprep.subr.mxu0 0.0
    %6489 = vmatpush1.msra.mxu0 %v5707
    %6490 = vmatprep.subr.mxu0 0.0
    %6491 = vmatpush1.msra.mxu0 0.0
    %6492 = vmatprep.subr.mxu0 0.0
    %6493 = vmatpush1.msra.mxu0 0.0
    %6494 = vmatprep.subr.mxu0 0.0
    %6495 = vmatpush1.msra.mxu0 0.0
    %6496 = vmatprep.subr.mxu0 0.0
    %6497 = vmatpush1.msra.mxu0 0.0
    %6498 = vmatprep.subr.mxu0 0.0
    %6499 = vmatpush1.msra.mxu0 0.0
    %6500 = vmatprep.subr.mxu0 0.0
    %6501 = vmatpush1.msra.mxu0 0.0
    %6502 = vmatprep.subr.mxu0 0.0
    %6503 = vmatpush1.msra.mxu0 0.0
    %6504 = vmatprep.subr.mxu0 0.0
    %6505 = vmatpush1.msra.mxu0 0.0
    %6506 = vmatprep.subr.mxu0 0.0
    %6507 = vmatpush1.msra.mxu0 0.0
    %6508 = vmatprep.subr.mxu0 0.0
    %6509 = vmatpush1.msra.mxu0 0.0
    %6510 = vmatprep.subr.mxu0 0.0
    %6511 = vmatpush1.msra.mxu0 0.0
    %6512 = vmatprep.subr.mxu0 0.0
    %6513 = vmatpush1.msra.mxu0 0.0
    %6514 = vmatprep.subr.mxu0 0.0
    %6515 = vmatpush1.msra.mxu0 0.0
    %6516 = vmatprep.subr.mxu0 0.0
    %6517 = vmatpush1.msra.mxu0 0.0
    %6518 = vmatprep.subr.mxu0 0.0
    %6519 = vmatpush1.msra.mxu0 0.0
    %6520 = vmatprep.subr.mxu0 0.0
    %6521 = vmatpush1.msra.mxu0 0.0
    %6522 = vmatprep.mubr.f32.mxu0 0.0
    %6523 = vmatmul.mubr.f32.gmra.mrb[0].mxu0 %v6384
    %v6524 = vpop.f32.mrb[0].mxu0
    %v6525 = vadd.f32 0.0, %v6524
    %v6526 = vpop.f32.mrb[0].mxu0
    %6527 = vdwg.mxu0
    %v6528 = vld [vmem:[%s1373] sm:$0xff]
    %v6529 = vld [vmem:[%s1373 + $0x8] sm:$0xff]
    %v6530 = vld [vmem:[%s1373 + $0x10] sm:$0xff]
    %v6531 = vadd.f32 %v6528, %v6454
    %v6532 = vxor.u32 %v6531, 2147483648
    %v6533 = vmul.f32 %v6532, 1.442695
    %v6534 = vpow.pop %v6533
    %v6535 = vadd.f32 %v6534, 1.0
    %v6536 = vrcp.pop %v6535
    %v6537 = vmul.f32 1.0, %v6536
    %v6538 = vadd.f32 %v6529, %v6456
    %v6539 = vxor.u32 %v6538, 2147483648
    %v6540 = vmul.f32 %v6539, 1.442695
    %v6541 = vpow.pop %v6540
    %v6542 = vadd.f32 %v6541, 1.0
    %v6543 = vrcp.pop %v6542
    %v6544 = vmul.f32 1.0, %v6543
    %v6545 = vadd.f32 %v6525, %v5872
    %v6546 = vmul.f32 %v6537, %v6545
    %v6547 = vadd.f32 %v6530, %v6546
    %v6548 = vtanh.pop %v6547
    %v6549 = vsub.f32 1.0, %v6544
    %v6550 = vmul.f32 %v6549, %v6548
    %v6551 = vmul.f32 %v6544, %v6384
    %v6552 = vadd.f32 %v6550, %v6551
    %s6553 = scalar_lea.vmem [#allocation5], 32
    %6554 = vst [vmem:[%s6553] sm:$0xff] %v6552
    %6555 = vmatprep.subr.mxu0 %v5661
    %6556 = vmatpush1.msra.mxu0 %v5660
    %6557 = vmatprep.subr.mxu0 %v5664
    %6558 = vmatpush1.msra.mxu0 %v5663
    %6559 = vmatprep.subr.mxu0 %v5667
    %6560 = vmatpush1.msra.mxu0 %v5666
    %6561 = vmatprep.subr.mxu0 %v5670
    %6562 = vmatpush1.msra.mxu0 %v5669
    %6563 = vmatprep.subr.mxu0 %v5673
    %6564 = vmatpush1.msra.mxu0 %v5672
    %6565 = vmatprep.subr.mxu0 %v5676
    %6566 = vmatpush1.msra.mxu0 %v5675
    %6567 = vmatprep.subr.mxu0 %v5679
    %6568 = vmatpush1.msra.mxu0 %v5678
    %6569 = vmatprep.subr.mxu0 %v5682
    %6570 = vmatpush1.msra.mxu0 %v5681
    %6571 = vmatprep.subr.mxu0 %v5685
    %6572 = vmatpush1.msra.mxu0 %v5684
    %6573 = vmatprep.subr.mxu0 %v5688
    %6574 = vmatpush1.msra.mxu0 %v5687
    %6575 = vmatprep.subr.mxu0 %v5691
    %6576 = vmatpush1.msra.mxu0 %v5690
    %6577 = vmatprep.subr.mxu0 %v5694
    %6578 = vmatpush1.msra.mxu0 %v5693
    %6579 = vmatprep.subr.mxu0 %v5697
    %6580 = vmatpush1.msra.mxu0 %v5696
    %6581 = vmatprep.subr.mxu0 %v5700
    %6582 = vmatpush1.msra.mxu0 %v5699
    %6583 = vmatprep.subr.mxu0 %v5703
    %6584 = vmatpush1.msra.mxu0 %v5702
    %6585 = vmatprep.subr.mxu0 %v5706
    %6586 = vmatpush1.msra.mxu0 %v5705
    %6587 = vmatprep.subr.mxu0 0.0
    %6588 = vmatpush1.msra.mxu0 0.0
    %6589 = vmatprep.subr.mxu0 0.0
    %6590 = vmatpush1.msra.mxu0 0.0
    %6591 = vmatprep.subr.mxu0 0.0
    %6592 = vmatpush1.msra.mxu0 0.0
    %6593 = vmatprep.subr.mxu0 0.0
    %6594 = vmatpush1.msra.mxu0 0.0
    %6595 = vmatprep.subr.mxu0 0.0
    %6596 = vmatpush1.msra.mxu0 0.0
    %6597 = vmatprep.subr.mxu0 0.0
    %6598 = vmatpush1.msra.mxu0 0.0
    %6599 = vmatprep.subr.mxu0 0.0
    %6600 = vmatpush1.msra.mxu0 0.0
    %6601 = vmatprep.subr.mxu0 0.0
    %6602 = vmatpush1.msra.mxu0 0.0
    %6603 = vmatprep.subr.mxu0 0.0
    %6604 = vmatpush1.msra.mxu0 0.0
    %6605 = vmatprep.subr.mxu0 0.0
    %6606 = vmatpush1.msra.mxu0 0.0
    %6607 = vmatprep.subr.mxu0 0.0
    %6608 = vmatpush1.msra.mxu0 0.0
    %6609 = vmatprep.subr.mxu0 0.0
    %6610 = vmatpush1.msra.mxu0 0.0
    %6611 = vmatprep.subr.mxu0 0.0
    %6612 = vmatpush1.msra.mxu0 0.0
    %6613 = vmatprep.subr.mxu0 0.0
    %6614 = vmatpush1.msra.mxu0 0.0
    %6615 = vmatprep.subr.mxu0 0.0
    %6616 = vmatpush1.msra.mxu0 0.0
    %6617 = vmatprep.subr.mxu0 0.0
    %6618 = vmatpush1.msra.mxu0 0.0
    %6619 = vmatprep.mubr.f32.mxu0 0.0
    %6620 = vmatmul.mubr.f32.gmra.mrb[0].mxu0 %v6552
    %v6621 = vpop.f32.mrb[0].mxu0
    %v6622 = vadd.f32 0.0, %v6621
    %v6623 = vpop.f32.mrb[0].mxu0
    %v6624 = vadd.f32 0.0, %v6623
    %6625 = vdwg.mxu0
    %6626 = vmatprep.subr.mxu0 0.0
    %6627 = vmatpush1.msra.mxu0 %v5662
    %6628 = vmatprep.subr.mxu0 0.0
    %6629 = vmatpush1.msra.mxu0 %v5665
    %6630 = vmatprep.subr.mxu0 0.0
    %6631 = vmatpush1.msra.mxu0 %v5668
    %6632 = vmatprep.subr.mxu0 0.0
    %6633 = vmatpush1.msra.mxu0 %v5671
    %6634 = vmatprep.subr.mxu0 0.0
    %6635 = vmatpush1.msra.mxu0 %v5674
    %6636 = vmatprep.subr.mxu0 0.0
    %6637 = vmatpush1.msra.mxu0 %v5677
    %6638 = vmatprep.subr.mxu0 0.0
    %6639 = vmatpush1.msra.mxu0 %v5680
    %6640 = vmatprep.subr.mxu0 0.0
    %6641 = vmatpush1.msra.mxu0 %v5683
    %6642 = vmatprep.subr.mxu0 0.0
    %6643 = vmatpush1.msra.mxu0 %v5686
    %6644 = vmatprep.subr.mxu0 0.0
    %6645 = vmatpush1.msra.mxu0 %v5689
    %6646 = vmatprep.subr.mxu0 0.0
    %6647 = vmatpush1.msra.mxu0 %v5692
    %6648 = vmatprep.subr.mxu0 0.0
    %6649 = vmatpush1.msra.mxu0 %v5695
    %6650 = vmatprep.subr.mxu0 0.0
    %6651 = vmatpush1.msra.mxu0 %v5698
    %6652 = vmatprep.subr.mxu0 0.0
    %6653 = vmatpush1.msra.mxu0 %v5701
    %6654 = vmatprep.subr.mxu0 0.0
    %6655 = vmatpush1.msra.mxu0 %v5704
    %6656 = vmatprep.subr.mxu0 0.0
    %6657 = vmatpush1.msra.mxu0 %v5707
    %6658 = vmatprep.subr.mxu0 0.0
    %6659 = vmatpush1.msra.mxu0 0.0
    %6660 = vmatprep.subr.mxu0 0.0
    %6661 = vmatpush1.msra.mxu0 0.0
    %6662 = vmatprep.subr.mxu0 0.0
    %6663 = vmatpush1.msra.mxu0 0.0
    %6664 = vmatprep.subr.mxu0 0.0
    %6665 = vmatpush1.msra.mxu0 0.0
    %6666 = vmatprep.subr.mxu0 0.0
    %6667 = vmatpush1.msra.mxu0 0.0
    %6668 = vmatprep.subr.mxu0 0.0
    %6669 = vmatpush1.msra.mxu0 0.0
    %6670 = vmatprep.subr.mxu0 0.0
    %6671 = vmatpush1.msra.mxu0 0.0
    %6672 = vmatprep.subr.mxu0 0.0
    %6673 = vmatpush1.msra.mxu0 0.0
    %6674 = vmatprep.subr.mxu0 0.0
    %6675 = vmatpush1.msra.mxu0 0.0
    %6676 = vmatprep.subr.mxu0 0.0
    %6677 = vmatpush1.msra.mxu0 0.0
    %6678 = vmatprep.subr.mxu0 0.0
    %6679 = vmatpush1.msra.mxu0 0.0
    %6680 = vmatprep.subr.mxu0 0.0
    %6681 = vmatpush1.msra.mxu0 0.0
    %6682 = vmatprep.subr.mxu0 0.0
    %6683 = vmatpush1.msra.mxu0 0.0
    %6684 = vmatprep.subr.mxu0 0.0
    %6685 = vmatpush1.msra.mxu0 0.0
    %6686 = vmatprep.subr.mxu0 0.0
    %6687 = vmatpush1.msra.mxu0 0.0
    %6688 = vmatprep.subr.mxu0 0.0
    %6689 = vmatpush1.msra.mxu0 0.0
    %6690 = vmatprep.mubr.f32.mxu0 0.0
    %6691 = vmatmul.mubr.f32.gmra.mrb[0].mxu0 %v6552
    %v6692 = vpop.f32.mrb[0].mxu0
    %v6693 = vadd.f32 0.0, %v6692
    %v6694 = vpop.f32.mrb[0].mxu0
    %6695 = vdwg.mxu0
    %v6696 = vld [vmem:[%s1544] sm:$0xff]
    %v6697 = vld [vmem:[%s1544 + $0x8] sm:$0xff]
    %v6698 = vld [vmem:[%s1544 + $0x10] sm:$0xff]
    %v6699 = vadd.f32 %v6696, %v6622
    %v6700 = vxor.u32 %v6699, 2147483648
    %v6701 = vmul.f32 %v6700, 1.442695
    %v6702 = vpow.pop %v6701
    %v6703 = vadd.f32 %v6702, 1.0
    %v6704 = vrcp.pop %v6703
    %v6705 = vmul.f32 1.0, %v6704
    %v6706 = vadd.f32 %v6697, %v6624
    %v6707 = vxor.u32 %v6706, 2147483648
    %v6708 = vmul.f32 %v6707, 1.442695
    %v6709 = vpow.pop %v6708
    %v6710 = vadd.f32 %v6709, 1.0
    %v6711 = vrcp.pop %v6710
    %v6712 = vmul.f32 1.0, %v6711
    %v6713 = vadd.f32 %v6693, %v5872
    %v6714 = vmul.f32 %v6705, %v6713
    %v6715 = vadd.f32 %v6698, %v6714
    %v6716 = vtanh.pop %v6715
    %v6717 = vsub.f32 1.0, %v6712
    %v6718 = vmul.f32 %v6717, %v6716
    %v6719 = vmul.f32 %v6712, %v6552
    %v6720 = vadd.f32 %v6718, %v6719
    %s6721 = scalar_lea.vmem [#allocation5], 40
    %6722 = vst [vmem:[%s6721] sm:$0xff] %v6720
    %6723 = vmatprep.subr.mxu0 %v5661
    %6724 = vmatpush1.msra.mxu0 %v5660
    %6725 = vmatprep.subr.mxu0 %v5664
    %6726 = vmatpush1.msra.mxu0 %v5663
    %6727 = vmatprep.subr.mxu0 %v5667
    %6728 = vmatpush1.msra.mxu0 %v5666
    %6729 = vmatprep.subr.mxu0 %v5670
    %6730 = vmatpush1.msra.mxu0 %v5669
    %6731 = vmatprep.subr.mxu0 %v5673
    %6732 = vmatpush1.msra.mxu0 %v5672
    %6733 = vmatprep.subr.mxu0 %v5676
    %6734 = vmatpush1.msra.mxu0 %v5675
    %6735 = vmatprep.subr.mxu0 %v5679
    %6736 = vmatpush1.msra.mxu0 %v5678
    %6737 = vmatprep.subr.mxu0 %v5682
    %6738 = vmatpush1.msra.mxu0 %v5681
    %6739 = vmatprep.subr.mxu0 %v5685
    %6740 = vmatpush1.msra.mxu0 %v5684
    %6741 = vmatprep.subr.mxu0 %v5688
    %6742 = vmatpush1.msra.mxu0 %v5687
    %6743 = vmatprep.subr.mxu0 %v5691
    %6744 = vmatpush1.msra.mxu0 %v5690
    %6745 = vmatprep.subr.mxu0 %v5694
    %6746 = vmatpush1.msra.mxu0 %v5693
    %6747 = vmatprep.subr.mxu0 %v5697
    %6748 = vmatpush1.msra.mxu0 %v5696
    %6749 = vmatprep.subr.mxu0 %v5700
    %6750 = vmatpush1.msra.mxu0 %v5699
    %6751 = vmatprep.subr.mxu0 %v5703
    %6752 = vmatpush1.msra.mxu0 %v5702
    %6753 = vmatprep.subr.mxu0 %v5706
    %6754 = vmatpush1.msra.mxu0 %v5705
    %6755 = vmatprep.subr.mxu0 0.0
    %6756 = vmatpush1.msra.mxu0 0.0
    %6757 = vmatprep.subr.mxu0 0.0
    %6758 = vmatpush1.msra.mxu0 0.0
    %6759 = vmatprep.subr.mxu0 0.0
    %6760 = vmatpush1.msra.mxu0 0.0
    %6761 = vmatprep.subr.mxu0 0.0
    %6762 = vmatpush1.msra.mxu0 0.0
    %6763 = vmatprep.subr.mxu0 0.0
    %6764 = vmatpush1.msra.mxu0 0.0
    %6765 = vmatprep.subr.mxu0 0.0
    %6766 = vmatpush1.msra.mxu0 0.0
    %6767 = vmatprep.subr.mxu0 0.0
    %6768 = vmatpush1.msra.mxu0 0.0
    %6769 = vmatprep.subr.mxu0 0.0
    %6770 = vmatpush1.msra.mxu0 0.0
    %6771 = vmatprep.subr.mxu0 0.0
    %6772 = vmatpush1.msra.mxu0 0.0
    %6773 = vmatprep.subr.mxu0 0.0
    %6774 = vmatpush1.msra.mxu0 0.0
    %6775 = vmatprep.subr.mxu0 0.0
    %6776 = vmatpush1.msra.mxu0 0.0
    %6777 = vmatprep.subr.mxu0 0.0
    %6778 = vmatpush1.msra.mxu0 0.0
    %6779 = vmatprep.subr.mxu0 0.0
    %6780 = vmatpush1.msra.mxu0 0.0
    %6781 = vmatprep.subr.mxu0 0.0
    %6782 = vmatpush1.msra.mxu0 0.0
    %6783 = vmatprep.subr.mxu0 0.0
    %6784 = vmatpush1.msra.mxu0 0.0
    %6785 = vmatprep.subr.mxu0 0.0
    %6786 = vmatpush1.msra.mxu0 0.0
    %6787 = vmatprep.mubr.f32.mxu0 0.0
    %6788 = vmatmul.mubr.f32.gmra.mrb[0].mxu0 %v6720
    %v6789 = vpop.f32.mrb[0].mxu0
    %v6790 = vadd.f32 0.0, %v6789
    %v6791 = vpop.f32.mrb[0].mxu0
    %v6792 = vadd.f32 0.0, %v6791
    %6793 = vdwg.mxu0
    %6794 = vmatprep.subr.mxu0 0.0
    %6795 = vmatpush1.msra.mxu0 %v5662
    %6796 = vmatprep.subr.mxu0 0.0
    %6797 = vmatpush1.msra.mxu0 %v5665
    %6798 = vmatprep.subr.mxu0 0.0
    %6799 = vmatpush1.msra.mxu0 %v5668
    %6800 = vmatprep.subr.mxu0 0.0
    %6801 = vmatpush1.msra.mxu0 %v5671
    %6802 = vmatprep.subr.mxu0 0.0
    %6803 = vmatpush1.msra.mxu0 %v5674
    %6804 = vmatprep.subr.mxu0 0.0
    %6805 = vmatpush1.msra.mxu0 %v5677
    %6806 = vmatprep.subr.mxu0 0.0
    %6807 = vmatpush1.msra.mxu0 %v5680
    %6808 = vmatprep.subr.mxu0 0.0
    %6809 = vmatpush1.msra.mxu0 %v5683
    %6810 = vmatprep.subr.mxu0 0.0
    %6811 = vmatpush1.msra.mxu0 %v5686
    %6812 = vmatprep.subr.mxu0 0.0
    %6813 = vmatpush1.msra.mxu0 %v5689
    %6814 = vmatprep.subr.mxu0 0.0
    %6815 = vmatpush1.msra.mxu0 %v5692
    %6816 = vmatprep.subr.mxu0 0.0
    %6817 = vmatpush1.msra.mxu0 %v5695
    %6818 = vmatprep.subr.mxu0 0.0
    %6819 = vmatpush1.msra.mxu0 %v5698
    %6820 = vmatprep.subr.mxu0 0.0
    %6821 = vmatpush1.msra.mxu0 %v5701
    %6822 = vmatprep.subr.mxu0 0.0
    %6823 = vmatpush1.msra.mxu0 %v5704
    %6824 = vmatprep.subr.mxu0 0.0
    %6825 = vmatpush1.msra.mxu0 %v5707
    %6826 = vmatprep.subr.mxu0 0.0
    %6827 = vmatpush1.msra.mxu0 0.0
    %6828 = vmatprep.subr.mxu0 0.0
    %6829 = vmatpush1.msra.mxu0 0.0
    %6830 = vmatprep.subr.mxu0 0.0
    %6831 = vmatpush1.msra.mxu0 0.0
    %6832 = vmatprep.subr.mxu0 0.0
    %6833 = vmatpush1.msra.mxu0 0.0
    %6834 = vmatprep.subr.mxu0 0.0
    %6835 = vmatpush1.msra.mxu0 0.0
    %6836 = vmatprep.subr.mxu0 0.0
    %6837 = vmatpush1.msra.mxu0 0.0
    %6838 = vmatprep.subr.mxu0 0.0
    %6839 = vmatpush1.msra.mxu0 0.0
    %6840 = vmatprep.subr.mxu0 0.0
    %6841 = vmatpush1.msra.mxu0 0.0
    %6842 = vmatprep.subr.mxu0 0.0
    %6843 = vmatpush1.msra.mxu0 0.0
    %6844 = vmatprep.subr.mxu0 0.0
    %6845 = vmatpush1.msra.mxu0 0.0
    %6846 = vmatprep.subr.mxu0 0.0
    %6847 = vmatpush1.msra.mxu0 0.0
    %6848 = vmatprep.subr.mxu0 0.0
    %6849 = vmatpush1.msra.mxu0 0.0
    %6850 = vmatprep.subr.mxu0 0.0
    %6851 = vmatpush1.msra.mxu0 0.0
    %6852 = vmatprep.subr.mxu0 0.0
    %6853 = vmatpush1.msra.mxu0 0.0
    %6854 = vmatprep.subr.mxu0 0.0
    %6855 = vmatpush1.msra.mxu0 0.0
    %6856 = vmatprep.subr.mxu0 0.0
    %6857 = vmatpush1.msra.mxu0 0.0
    %6858 = vmatprep.mubr.f32.mxu0 0.0
    %6859 = vmatmul.mubr.f32.gmra.mrb[0].mxu0 %v6720
    %v6860 = vpop.f32.mrb[0].mxu0
    %v6861 = vadd.f32 0.0, %v6860
    %v6862 = vpop.f32.mrb[0].mxu0
    %6863 = vdwg.mxu0
    %v6864 = vld [vmem:[%s1715] sm:$0xff]
    %v6865 = vld [vmem:[%s1715 + $0x8] sm:$0xff]
    %v6866 = vld [vmem:[%s1715 + $0x10] sm:$0xff]
    %v6867 = vadd.f32 %v6864, %v6790
    %v6868 = vxor.u32 %v6867, 2147483648
    %v6869 = vmul.f32 %v6868, 1.442695
    %v6870 = vpow.pop %v6869
    %v6871 = vadd.f32 %v6870, 1.0
    %v6872 = vrcp.pop %v6871
    %v6873 = vmul.f32 1.0, %v6872
    %v6874 = vadd.f32 %v6865, %v6792
    %v6875 = vxor.u32 %v6874, 2147483648
    %v6876 = vmul.f32 %v6875, 1.442695
    %v6877 = vpow.pop %v6876
    %v6878 = vadd.f32 %v6877, 1.0
    %v6879 = vrcp.pop %v6878
    %v6880 = vmul.f32 1.0, %v6879
    %v6881 = vadd.f32 %v6861, %v5872
    %v6882 = vmul.f32 %v6873, %v6881
    %v6883 = vadd.f32 %v6866, %v6882
    %v6884 = vtanh.pop %v6883
    %v6885 = vsub.f32 1.0, %v6880
    %v6886 = vmul.f32 %v6885, %v6884
    %v6887 = vmul.f32 %v6880, %v6720
    %v6888 = vadd.f32 %v6886, %v6887
    %s6889 = scalar_lea.vmem [#allocation5], 48
    %6890 = vst [vmem:[%s6889] sm:$0xff] %v6888
    %6891 = vmatprep.subr.mxu0 %v5661
    %6892 = vmatpush1.msra.mxu0 %v5660
    %6893 = vmatprep.subr.mxu0 %v5664
    %6894 = vmatpush1.msra.mxu0 %v5663
    %6895 = vmatprep.subr.mxu0 %v5667
    %6896 = vmatpush1.msra.mxu0 %v5666
    %6897 = vmatprep.subr.mxu0 %v5670
    %6898 = vmatpush1.msra.mxu0 %v5669
    %6899 = vmatprep.subr.mxu0 %v5673
    %6900 = vmatpush1.msra.mxu0 %v5672
    %6901 = vmatprep.subr.mxu0 %v5676
    %6902 = vmatpush1.msra.mxu0 %v5675
    %6903 = vmatprep.subr.mxu0 %v5679
    %6904 = vmatpush1.msra.mxu0 %v5678
    %6905 = vmatprep.subr.mxu0 %v5682
    %6906 = vmatpush1.msra.mxu0 %v5681
    %6907 = vmatprep.subr.mxu0 %v5685
    %6908 = vmatpush1.msra.mxu0 %v5684
    %6909 = vmatprep.subr.mxu0 %v5688
    %6910 = vmatpush1.msra.mxu0 %v5687
    %6911 = vmatprep.subr.mxu0 %v5691
    %6912 = vmatpush1.msra.mxu0 %v5690
    %6913 = vmatprep.subr.mxu0 %v5694
    %6914 = vmatpush1.msra.mxu0 %v5693
    %6915 = vmatprep.subr.mxu0 %v5697
    %6916 = vmatpush1.msra.mxu0 %v5696
    %6917 = vmatprep.subr.mxu0 %v5700
    %6918 = vmatpush1.msra.mxu0 %v5699
    %6919 = vmatprep.subr.mxu0 %v5703
    %6920 = vmatpush1.msra.mxu0 %v5702
    %6921 = vmatprep.subr.mxu0 %v5706
    %6922 = vmatpush1.msra.mxu0 %v5705
    %6923 = vmatprep.subr.mxu0 0.0
    %6924 = vmatpush1.msra.mxu0 0.0
    %6925 = vmatprep.subr.mxu0 0.0
    %6926 = vmatpush1.msra.mxu0 0.0
    %6927 = vmatprep.subr.mxu0 0.0
    %6928 = vmatpush1.msra.mxu0 0.0
    %6929 = vmatprep.subr.mxu0 0.0
    %6930 = vmatpush1.msra.mxu0 0.0
    %6931 = vmatprep.subr.mxu0 0.0
    %6932 = vmatpush1.msra.mxu0 0.0
    %6933 = vmatprep.subr.mxu0 0.0
    %6934 = vmatpush1.msra.mxu0 0.0
    %6935 = vmatprep.subr.mxu0 0.0
    %6936 = vmatpush1.msra.mxu0 0.0
    %6937 = vmatprep.subr.mxu0 0.0
    %6938 = vmatpush1.msra.mxu0 0.0
    %6939 = vmatprep.subr.mxu0 0.0
    %6940 = vmatpush1.msra.mxu0 0.0
    %6941 = vmatprep.subr.mxu0 0.0
    %6942 = vmatpush1.msra.mxu0 0.0
    %6943 = vmatprep.subr.mxu0 0.0
    %6944 = vmatpush1.msra.mxu0 0.0
    %6945 = vmatprep.subr.mxu0 0.0
    %6946 = vmatpush1.msra.mxu0 0.0
    %6947 = vmatprep.subr.mxu0 0.0
    %6948 = vmatpush1.msra.mxu0 0.0
    %6949 = vmatprep.subr.mxu0 0.0
    %6950 = vmatpush1.msra.mxu0 0.0
    %6951 = vmatprep.subr.mxu0 0.0
    %6952 = vmatpush1.msra.mxu0 0.0
    %6953 = vmatprep.subr.mxu0 0.0
    %6954 = vmatpush1.msra.mxu0 0.0
    %6955 = vmatprep.mubr.f32.mxu0 0.0
    %6956 = vmatmul.mubr.f32.gmra.mrb[0].mxu0 %v6888
    %v6957 = vpop.f32.mrb[0].mxu0
    %v6958 = vadd.f32 0.0, %v6957
    %v6959 = vpop.f32.mrb[0].mxu0
    %v6960 = vadd.f32 0.0, %v6959
    %6961 = vdwg.mxu0
    %6962 = vmatprep.subr.mxu0 0.0
    %6963 = vmatpush1.msra.mxu0 %v5662
    %6964 = vmatprep.subr.mxu0 0.0
    %6965 = vmatpush1.msra.mxu0 %v5665
    %6966 = vmatprep.subr.mxu0 0.0
    %6967 = vmatpush1.msra.mxu0 %v5668
    %6968 = vmatprep.subr.mxu0 0.0
    %6969 = vmatpush1.msra.mxu0 %v5671
    %6970 = vmatprep.subr.mxu0 0.0
    %6971 = vmatpush1.msra.mxu0 %v5674
    %6972 = vmatprep.subr.mxu0 0.0
    %6973 = vmatpush1.msra.mxu0 %v5677
    %6974 = vmatprep.subr.mxu0 0.0
    %6975 = vmatpush1.msra.mxu0 %v5680
    %6976 = vmatprep.subr.mxu0 0.0
    %6977 = vmatpush1.msra.mxu0 %v5683
    %6978 = vmatprep.subr.mxu0 0.0
    %6979 = vmatpush1.msra.mxu0 %v5686
    %6980 = vmatprep.subr.mxu0 0.0
    %6981 = vmatpush1.msra.mxu0 %v5689
    %6982 = vmatprep.subr.mxu0 0.0
    %6983 = vmatpush1.msra.mxu0 %v5692
    %6984 = vmatprep.subr.mxu0 0.0
    %6985 = vmatpush1.msra.mxu0 %v5695
    %6986 = vmatprep.subr.mxu0 0.0
    %6987 = vmatpush1.msra.mxu0 %v5698
    %6988 = vmatprep.subr.mxu0 0.0
    %6989 = vmatpush1.msra.mxu0 %v5701
    %6990 = vmatprep.subr.mxu0 0.0
    %6991 = vmatpush1.msra.mxu0 %v5704
    %6992 = vmatprep.subr.mxu0 0.0
    %6993 = vmatpush1.msra.mxu0 %v5707
    %6994 = vmatprep.subr.mxu0 0.0
    %6995 = vmatpush1.msra.mxu0 0.0
    %6996 = vmatprep.subr.mxu0 0.0
    %6997 = vmatpush1.msra.mxu0 0.0
    %6998 = vmatprep.subr.mxu0 0.0
    %6999 = vmatpush1.msra.mxu0 0.0
    %7000 = vmatprep.subr.mxu0 0.0
    %7001 = vmatpush1.msra.mxu0 0.0
    %7002 = vmatprep.subr.mxu0 0.0
    %7003 = vmatpush1.msra.mxu0 0.0
    %7004 = vmatprep.subr.mxu0 0.0
    %7005 = vmatpush1.msra.mxu0 0.0
    %7006 = vmatprep.subr.mxu0 0.0
    %7007 = vmatpush1.msra.mxu0 0.0
    %7008 = vmatprep.subr.mxu0 0.0
    %7009 = vmatpush1.msra.mxu0 0.0
    %7010 = vmatprep.subr.mxu0 0.0
    %7011 = vmatpush1.msra.mxu0 0.0
    %7012 = vmatprep.subr.mxu0 0.0
    %7013 = vmatpush1.msra.mxu0 0.0
    %7014 = vmatprep.subr.mxu0 0.0
    %7015 = vmatpush1.msra.mxu0 0.0
    %7016 = vmatprep.subr.mxu0 0.0
    %7017 = vmatpush1.msra.mxu0 0.0
    %7018 = vmatprep.subr.mxu0 0.0
    %7019 = vmatpush1.msra.mxu0 0.0
    %7020 = vmatprep.subr.mxu0 0.0
    %7021 = vmatpush1.msra.mxu0 0.0
    %7022 = vmatprep.subr.mxu0 0.0
    %7023 = vmatpush1.msra.mxu0 0.0
    %7024 = vmatprep.subr.mxu0 0.0
    %7025 = vmatpush1.msra.mxu0 0.0
    %7026 = vmatprep.mubr.f32.mxu0 0.0
    %7027 = vmatmul.mubr.f32.gmra.mrb[0].mxu0 %v6888
    %v7028 = vpop.f32.mrb[0].mxu0
    %v7029 = vadd.f32 0.0, %v7028
    %v7030 = vpop.f32.mrb[0].mxu0
    %7031 = vdwg.mxu0
    %v7032 = vld [vmem:[%s1886] sm:$0xff]
    %v7033 = vld [vmem:[%s1886 + $0x8] sm:$0xff]
    %v7034 = vld [vmem:[%s1886 + $0x10] sm:$0xff]
    %v7035 = vadd.f32 %v7032, %v6958
    %v7036 = vxor.u32 %v7035, 2147483648
    %v7037 = vmul.f32 %v7036, 1.442695
    %v7038 = vpow.pop %v7037
    %v7039 = vadd.f32 %v7038, 1.0
    %v7040 = vrcp.pop %v7039
    %v7041 = vmul.f32 1.0, %v7040
    %v7042 = vadd.f32 %v7033, %v6960
    %v7043 = vxor.u32 %v7042, 2147483648
    %v7044 = vmul.f32 %v7043, 1.442695
    %v7045 = vpow.pop %v7044
    %v7046 = vadd.f32 %v7045, 1.0
    %v7047 = vrcp.pop %v7046
    %v7048 = vmul.f32 1.0, %v7047
    %v7049 = vadd.f32 %v7029, %v5872
    %v7050 = vmul.f32 %v7041, %v7049
    %v7051 = vadd.f32 %v7034, %v7050
    %v7052 = vtanh.pop %v7051
    %v7053 = vsub.f32 1.0, %v7048
    %v7054 = vmul.f32 %v7053, %v7052
    %v7055 = vmul.f32 %v7048, %v6888
    %v7056 = vadd.f32 %v7054, %v7055
    %s7057 = scalar_lea.vmem [#allocation5], 56
    %7058 = vst [vmem:[%s7057] sm:$0xff] %v7056
    %7059 = vst [vmem:[#allocation10] sm:$0xff] %v7056
    %v7060 = vld [vmem:[#allocation5] sm:$0xff]
    %v7061 = vld [vmem:[#allocation5 + $0x8] sm:$0xff]
    %v7062 = vld [vmem:[#allocation5 + $0x10] sm:$0xff]
    %v7063 = vld [vmem:[#allocation5 + $0x18] sm:$0xff]
    %v7064 = vld [vmem:[#allocation5 + $0x20] sm:$0xff]
    %v7065 = vld [vmem:[#allocation5 + $0x28] sm:$0xff]
    %v7066 = vld [vmem:[#allocation5 + $0x30] sm:$0xff]
    %v7067 = vld [vmem:[#allocation5 + $0x38] sm:$0xff]
    %v7068 = vld [vmem:[%s17] sm:$0xff]
    %v7069 = vld [vmem:[%s17 + $0x8] sm:$0xff]
    %v7070 = vld [vmem:[%s17 + $0x10] sm:$0xff]
    %v7071 = vld [vmem:[%s17 + $0x18] sm:$0xff]
    %v7072 = vld [vmem:[%s17 + $0x20] sm:$0xff]
    %v7073 = vld [vmem:[%s17 + $0x28] sm:$0xff]
    %v7074 = vld [vmem:[%s17 + $0x30] sm:$0xff]
    %v7075 = vld [vmem:[%s17 + $0x38] sm:$0xff]
    %v7076 = vld [vmem:[%s17 + $0x40] sm:$0xff]
    %v7077 = vld [vmem:[%s17 + $0x48] sm:$0xff]
    %v7078 = vld [vmem:[%s17 + $0x50] sm:$0xff]
    %v7079 = vld [vmem:[%s17 + $0x58] sm:$0xff]
    %v7080 = vld [vmem:[%s17 + $0x60] sm:$0xff]
    %v7081 = vld [vmem:[%s17 + $0x68] sm:$0xff]
    %v7082 = vld [vmem:[%s17 + $0x70] sm:$0xff]
    %v7083 = vld [vmem:[%s17 + $0x78] sm:$0xff]
    %7084 = vmatprep.subr.mxu0 0.0
    %7085 = vmatpush1.msra.mxu0 %v7068
    %7086 = vmatprep.subr.mxu0 0.0
    %7087 = vmatpush1.msra.mxu0 %v7069
    %7088 = vmatprep.subr.mxu0 0.0
    %7089 = vmatpush1.msra.mxu0 %v7070
    %7090 = vmatprep.subr.mxu0 0.0
    %7091 = vmatpush1.msra.mxu0 %v7071
    %7092 = vmatprep.subr.mxu0 0.0
    %7093 = vmatpush1.msra.mxu0 %v7072
    %7094 = vmatprep.subr.mxu0 0.0
    %7095 = vmatpush1.msra.mxu0 %v7073
    %7096 = vmatprep.subr.mxu0 0.0
    %7097 = vmatpush1.msra.mxu0 %v7074
    %7098 = vmatprep.subr.mxu0 0.0
    %7099 = vmatpush1.msra.mxu0 %v7075
    %7100 = vmatprep.subr.mxu0 0.0
    %7101 = vmatpush1.msra.mxu0 %v7076
    %7102 = vmatprep.subr.mxu0 0.0
    %7103 = vmatpush1.msra.mxu0 %v7077
    %7104 = vmatprep.subr.mxu0 0.0
    %7105 = vmatpush1.msra.mxu0 %v7078
    %7106 = vmatprep.subr.mxu0 0.0
    %7107 = vmatpush1.msra.mxu0 %v7079
    %7108 = vmatprep.subr.mxu0 0.0
    %7109 = vmatpush1.msra.mxu0 %v7080
    %7110 = vmatprep.subr.mxu0 0.0
    %7111 = vmatpush1.msra.mxu0 %v7081
    %7112 = vmatprep.subr.mxu0 0.0
    %7113 = vmatpush1.msra.mxu0 %v7082
    %7114 = vmatprep.subr.mxu0 0.0
    %7115 = vmatpush1.msra.mxu0 %v7083
    %7116 = vmatprep.subr.mxu0 0.0
    %7117 = vmatpush1.msra.mxu0 0.0
    %7118 = vmatprep.subr.mxu0 0.0
    %7119 = vmatpush1.msra.mxu0 0.0
    %7120 = vmatprep.subr.mxu0 0.0
    %7121 = vmatpush1.msra.mxu0 0.0
    %7122 = vmatprep.subr.mxu0 0.0
    %7123 = vmatpush1.msra.mxu0 0.0
    %7124 = vmatprep.subr.mxu0 0.0
    %7125 = vmatpush1.msra.mxu0 0.0
    %7126 = vmatprep.subr.mxu0 0.0
    %7127 = vmatpush1.msra.mxu0 0.0
    %7128 = vmatprep.subr.mxu0 0.0
    %7129 = vmatpush1.msra.mxu0 0.0
    %7130 = vmatprep.subr.mxu0 0.0
    %7131 = vmatpush1.msra.mxu0 0.0
    %7132 = vmatprep.subr.mxu0 0.0
    %7133 = vmatpush1.msra.mxu0 0.0
    %7134 = vmatprep.subr.mxu0 0.0
    %7135 = vmatpush1.msra.mxu0 0.0
    %7136 = vmatprep.subr.mxu0 0.0
    %7137 = vmatpush1.msra.mxu0 0.0
    %7138 = vmatprep.subr.mxu0 0.0
    %7139 = vmatpush1.msra.mxu0 0.0
    %7140 = vmatprep.subr.mxu0 0.0
    %7141 = vmatpush1.msra.mxu0 0.0
    %7142 = vmatprep.subr.mxu0 0.0
    %7143 = vmatpush1.msra.mxu0 0.0
    %7144 = vmatprep.subr.mxu0 0.0
    %7145 = vmatpush1.msra.mxu0 0.0
    %7146 = vmatprep.subr.mxu0 0.0
    %7147 = vmatpush1.msra.mxu0 0.0
    %7148 = vmatprep.mubr.f32.mxu0 0.0
    %7149 = vmatmul.mubr.f32.gmra.mrb[0].mxu0 %v7060
    %v7150 = vpop.f32.mrb[0].mxu0
    %v7151 = vadd.f32 0.0, %v7150
    %v7152 = vpop.f32.mrb[0].mxu0
    %7153 = vmatprep.mubr.f32.mxu0 0.0
    %7154 = vmatmul.mubr.f32.gmra.mrb[0].mxu0 %v7061
    %v7155 = vpop.f32.mrb[0].mxu0
    %v7156 = vadd.f32 0.0, %v7155
    %v7157 = vpop.f32.mrb[0].mxu0
    %7158 = vmatprep.mubr.f32.mxu0 0.0
    %7159 = vmatmul.mubr.f32.gmra.mrb[0].mxu0 %v7062
    %v7160 = vpop.f32.mrb[0].mxu0
    %v7161 = vadd.f32 0.0, %v7160
    %v7162 = vpop.f32.mrb[0].mxu0
    %7163 = vmatprep.mubr.f32.mxu0 0.0
    %7164 = vmatmul.mubr.f32.gmra.mrb[0].mxu0 %v7063
    %v7165 = vpop.f32.mrb[0].mxu0
    %v7166 = vadd.f32 0.0, %v7165
    %v7167 = vpop.f32.mrb[0].mxu0
    %7168 = vmatprep.mubr.f32.mxu0 0.0
    %7169 = vmatmul.mubr.f32.gmra.mrb[0].mxu0 %v7064
    %v7170 = vpop.f32.mrb[0].mxu0
    %v7171 = vadd.f32 0.0, %v7170
    %v7172 = vpop.f32.mrb[0].mxu0
    %7173 = vmatprep.mubr.f32.mxu0 0.0
    %7174 = vmatmul.mubr.f32.gmra.mrb[0].mxu0 %v7065
    %v7175 = vpop.f32.mrb[0].mxu0
    %v7176 = vadd.f32 0.0, %v7175
    %v7177 = vpop.f32.mrb[0].mxu0
    %7178 = vmatprep.mubr.f32.mxu0 0.0
    %7179 = vmatmul.mubr.f32.gmra.mrb[0].mxu0 %v7066
    %v7180 = vpop.f32.mrb[0].mxu0
    %v7181 = vadd.f32 0.0, %v7180
    %v7182 = vpop.f32.mrb[0].mxu0
    %7183 = vmatprep.mubr.f32.mxu0 0.0
    %7184 = vmatmul.mubr.f32.gmra.mrb[0].mxu0 %v7067
    %v7185 = vpop.f32.mrb[0].mxu0
    %v7186 = vadd.f32 0.0, %v7185
    %v7187 = vpop.f32.mrb[0].mxu0
    %7188 = vdwg.mxu0
    %7189 = vst [vmem:[%s18] sm:$0xff] %v7151
    %7190 = vst [vmem:[%s18 + $0x8] sm:$0xff] %v7156
    %7191 = vst [vmem:[%s18 + $0x10] sm:$0xff] %v7161
    %7192 = vst [vmem:[%s18 + $0x18] sm:$0xff] %v7166
    %7193 = vst [vmem:[%s18 + $0x20] sm:$0xff] %v7171
    %7194 = vst [vmem:[%s18 + $0x28] sm:$0xff] %v7176
    %7195 = vst [vmem:[%s18 + $0x30] sm:$0xff] %v7181
    %7196 = vst [vmem:[%s18 + $0x38] sm:$0xff] %v7186
    // Predicated region
    $region110: #{_lambda_.1} parent=1 // pred_check
      _
    $region111: #{_lambda_.1} parent=1 // pred_check_branch
      %7198 = sbr.rel (0) target = $region113
    $region112: #{_lambda_.1} parent=1 // pred_region
      _
    $region113: #{_lambda_.1} parent=1 // pred_fallthru
      _
    // Predicated region
    $region114: #{_lambda_.1} parent=1 // pred_check
      _
    $region115: #{_lambda_.1} parent=1 // pred_check_branch
      %7200 = sbr.rel (0) target = $region117
    $region116: #{_lambda_.1} parent=1 // pred_region
      _
    $region117: #{_lambda_.1} parent=1 // pred_fallthru
      _
    %7201 = vsyncpa [#allocation12], 1
    %7202 = vsyncpa [#allocation14], 1
    %7203 = vsyncpa [#allocation17], 1
    %7204 = vsyncpa [#allocation20], 1
    %7205 = vsyncpa [#allocation23], 1

</llo_original>
